<compile_context>
chip_gen: v6e
topology: v6e:2x2x1
jax: 0.10.0
libtpu: 0.0.40
codegen_flags: <defaults>
</compile_context>

<pallas_src>
import functools

import numpy as np
import jax
import jax.numpy as jnp
from jax import lax
from jax.experimental import pallas as pl
from jax.experimental.pallas import tpu as pltpu

LSTM1_HIDDEN = 32
LSTM2_HIDDEN = 128


# ---------------------------------------------------------------------------
# Fused kernel: per grid step b -> one sample's GAT + LSTM stack + Linear head.
# ---------------------------------------------------------------------------
def _st_gat_kernel(x_ref, adj_ref, w_all_ref, asrc_ref, adst_ref, gat_b_ref,
                   wih1_ref, whh1_ref, b1_ref,
                   wih2_ref, whh2_ref, b2_ref,
                   wlin_ref, blin_ref, out_ref,
                   *, heads, in_channels):
    H, C = heads, in_channels
    H1, H2 = LSTM1_HIDDEN, LSTM2_HIDDEN

    # ------------------------- GAT (this sample) --------------------------
    x = x_ref[0].astype(jnp.bfloat16)            # (n, C)
    adj = adj_ref[0]                             # (n, n), adj[dst, src]
    n = x.shape[0]

    # All heads in wide MXU ops. Attention vectors are pre-folded through W in
    # the wrapper, so a_* . (x @ W_h) == x . (W_h a_*).
    xh_all = jnp.dot(x, w_all_ref[...],
                     preferred_element_type=jnp.float32)            # (n, H*C)
    a_dst = jnp.dot(x, adst_ref[...],
                    preferred_element_type=jnp.float32)             # (n, H)
    a_src_t = lax.dot_general(asrc_ref[...], x, (((1,), (1,)), ((), ())),
                              preferred_element_type=jnp.float32)   # (H, n)

    edge = adj > 0.0
    acc = jnp.zeros((n, C), jnp.float32)
    for h in range(H):                           # static unroll over heads
        # e[dst, src] = LeakyReLU(alpha_dst[dst] + alpha_src[src], 0.2)
        e = a_dst[:, h:h + 1] + a_src_t[h:h + 1, :]                 # (n, n)
        e = jnp.where(e > 0, e, 0.2 * e)
        e = jnp.where(edge, e, jnp.float32(-1e30))
        e = e - jnp.max(e, axis=1, keepdims=True)
        p = jnp.exp(e)                           # masked entries underflow to 0
        # NOTE: a node with no incident edge at all would get uniform attention
        # here; GATConv adds self loops, so that row never occurs.
        attn = p * pl.reciprocal(jnp.sum(p, axis=1, keepdims=True), approx=True)
        xh_h = xh_all[:, h * C:(h + 1) * C]                         # (n, C)
        acc = acc + jnp.dot(attn, xh_h, preferred_element_type=jnp.float32)
    # concat=False -> mean over heads, then bias. Dropout p=0 -> identity.
    g = acc * jnp.float32(1.0 / H) + gat_b_ref[...]                 # (n, C)

    # ------------------ LSTM1 -> LSTM2 -> Linear (this sample) ------------
    # Sequence layout after reshape+movedim is (T=C, B, n): x_t[v] = g[v, t].
    # Hoisted LSTM1 input projection (per gate k): xp_k = g^T @ Wih1_k + b1_k.
    gb = g.astype(jnp.bfloat16)
    xp = []
    for k in range(4):                           # gate order (i, f, g, o)
        xp.append(lax.dot_general(gb, wih1_ref[k], (((0,), (0,)), ((), ())),
                                  preferred_element_type=jnp.float32)
                  + b1_ref[k])                   # (C, 32)

    whh1 = [whh1_ref[k] for k in range(4)]       # each (32, 32) bf16
    wih2 = wih2_ref[...]                         # (32, 512)  bf16
    whh2 = whh2_ref[...]                         # (128, 512) bf16
    b2 = b2_ref[...]                             # (1, 512)   f32

    h1 = jnp.zeros((1, H1), jnp.float32)
    c1 = jnp.zeros((1, H1), jnp.float32)
    h2 = jnp.zeros((1, H2), jnp.float32)
    c2 = jnp.zeros((1, H2), jnp.float32)

    for t in range(C):                           # static unroll over timesteps
        h1b = h1.astype(jnp.bfloat16)
        # LSTM1: per-gate weights keep every slice 0-lane aligned (hidden=32).
        gi = xp[0][t:t + 1, :] + jnp.dot(h1b, whh1[0], preferred_element_type=jnp.float32)
        gf = xp[1][t:t + 1, :] + jnp.dot(h1b, whh1[1], preferred_element_type=jnp.float32)
        gg = xp[2][t:t + 1, :] + jnp.dot(h1b, whh1[2], preferred_element_type=jnp.float32)
        go = xp[3][t:t + 1, :] + jnp.dot(h1b, whh1[3], preferred_element_type=jnp.float32)
        c1 = jax.nn.sigmoid(gf) * c1 + jax.nn.sigmoid(gi) * jnp.tanh(gg)
        h1 = jax.nn.sigmoid(go) * jnp.tanh(c1)

        # LSTM2: gate slices at 0/128/256/384 are already lane-tile aligned.
        gates2 = (jnp.dot(h1.astype(jnp.bfloat16), wih2, preferred_element_type=jnp.float32)
                  + jnp.dot(h2.astype(jnp.bfloat16), whh2, preferred_element_type=jnp.float32)
                  + b2)
        i2 = jax.nn.sigmoid(gates2[:, 0:H2])
        f2 = jax.nn.sigmoid(gates2[:, H2:2 * H2])
        g2 = jnp.tanh(gates2[:, 2 * H2:3 * H2])
        o2 = jax.nn.sigmoid(gates2[:, 3 * H2:4 * H2])
        c2 = f2 * c2 + i2 * g2
        h2 = o2 * jnp.tanh(c2)

    # torch.squeeze(x[-1]) -> last-step hidden of LSTM2, then Linear head.
    out_ref[0] = (jnp.dot(h2.astype(jnp.bfloat16), wlin_ref[...],
                          preferred_element_type=jnp.float32) + blin_ref[...])


# ---------------------------------------------------------------------------
# Wrapper: fold / stack parameters, build BlockSpecs, call the fused kernel.
# ---------------------------------------------------------------------------
def _fold_params(params, *, heads, in_channels, n_nodes):
    C, H = in_channels, heads
    w = params["gat_w"]                                          # (H, C, C)
    # Heads stacked along output lanes: w_all[:, h*C:(h+1)*C] == w[h].
    w_all = jnp.transpose(w, (1, 0, 2)).reshape(C, H * C)
    # Fold attention vectors through W:
    #   a_src . (x W_h) == x . (W_h a_src^T),  a_dst . (x W_h) == x . (W_h a_dst)
    a_src_f = jnp.einsum("hij,hj->hi", w, params["gat_asrc"][:, 0, :])   # (H, C)
    a_dst_f = jnp.einsum("hij,hj->ih", w, params["gat_adst"][:, :, 0])   # (C, H)

    def split_gates(w2d, n_in, hidden):          # (n_in, 4*hidden) -> (4, n_in, hidden)
        return jnp.transpose(w2d.reshape(n_in, 4, hidden), (1, 0, 2))

    bf = lambda a: a.astype(jnp.bfloat16)
    return dict(
        w_all=bf(w_all), a_src_f=bf(a_src_f), a_dst_f=bf(a_dst_f),
        gat_b=params["gat_bias"],
        wih1=bf(split_gates(params["lstm1_wih_t"], n_nodes, LSTM1_HIDDEN)),
        whh1=bf(split_gates(params["lstm1_whh_t"], LSTM1_HIDDEN, LSTM1_HIDDEN)),
        b1=params["lstm1_b"].reshape(4, 1, LSTM1_HIDDEN),
        wih2=bf(params["lstm2_wih_t"]), whh2=bf(params["lstm2_whh_t"]),
        b2=params["lstm2_b"],
        wlin=bf(params["lin_w_t"]), blin=params["lin_b"],
    )


def _full_spec(shape):
    zeros = (0,) * len(shape)
    return pl.BlockSpec(shape, lambda b: zeros)   # resident across grid steps


def st_gat_forward(x, adj, params, *, batch_size, n_nodes, n_pred, heads):
    n_total, c = x.shape
    assert n_total == batch_size * n_nodes
    assert adj.shape == (batch_size, n_nodes, n_nodes)

    kp = _fold_params(params, heads=heads, in_channels=c, n_nodes=n_nodes)
    out_dim = n_nodes * n_pred
    x3 = x.reshape(batch_size, n_nodes, c)

    kernel = functools.partial(_st_gat_kernel, heads=heads, in_channels=c)
    out = pl.pallas_call(
        kernel,
        out_shape=jax.ShapeDtypeStruct((batch_size, 1, out_dim), jnp.float32),
        grid=(batch_size,),
        in_specs=[
            pl.BlockSpec((1, n_nodes, c), lambda b: (b, 0, 0)),        # x (per sample)
            pl.BlockSpec((1, n_nodes, n_nodes), lambda b: (b, 0, 0)),  # adj (per sample)
            _full_spec(kp["w_all"].shape),
            _full_spec(kp["a_src_f"].shape),
            _full_spec(kp["a_dst_f"].shape),
            _full_spec(kp["gat_b"].shape),
            _full_spec(kp["wih1"].shape),
            _full_spec(kp["whh1"].shape),
            _full_spec(kp["b1"].shape),
            _full_spec(kp["wih2"].shape),
            _full_spec(kp["whh2"].shape),
            _full_spec(kp["b2"].shape),
            _full_spec(kp["wlin"].shape),
            _full_spec(kp["blin"].shape),
        ],
        out_specs=pl.BlockSpec((1, 1, out_dim), lambda b: (b, 0, 0)),
        compiler_params=pltpu.CompilerParams(
            dimension_semantics=("parallel",),          # megacore on v7x
            vmem_limit_bytes=32 * 1024 * 1024),         # safe on v5e/v6e/v7x
    )(x3, adj, kp["w_all"], kp["a_src_f"], kp["a_dst_f"], kp["gat_b"],
      kp["wih1"], kp["whh1"], kp["b1"],
      kp["wih2"], kp["whh2"], kp["b2"],
      kp["wlin"], kp["blin"])
    return out.reshape(batch_size * n_nodes, n_pred)


# ---------------------------------------------------------------------------
# Deterministic parameter init (xavier-uniform style, zero LSTM biases,
# matching the module's __init__ shapes). Weights stored pre-transposed.
# ---------------------------------------------------------------------------
def _xavier(key, shape, fan_in, fan_out):
    limit = float(np.sqrt(6.0 / (fan_in + fan_out)))
    return jax.random.uniform(key, shape, jnp.float32, -limit, limit)


def init_params(key, in_channels, n_nodes, heads, n_pred):
    ks = jax.random.split(key, 8)
    c = in_channels
    out_dim = n_nodes * n_pred
    return {
        # GATConv(in=C, out=C, heads=H, concat=False)
        "gat_w":    _xavier(ks[0], (heads, c, c), c, heads * c),
        "gat_asrc": _xavier(ks[1], (heads, 1, c), c, 1),
        "gat_adst": _xavier(ks[2], (heads, c, 1), c, 1),
        "gat_bias": jnp.zeros((1, c), jnp.float32),
        # LSTM1: input=n_nodes, hidden=32
        "lstm1_wih_t": _xavier(ks[3], (n_nodes, 4 * LSTM1_HIDDEN),
                               n_nodes, 4 * LSTM1_HIDDEN),
        "lstm1_whh_t": _xavier(ks[4], (LSTM1_HIDDEN, 4 * LSTM1_HIDDEN),
                               LSTM1_HIDDEN, 4 * LSTM1_HIDDEN),
        "lstm1_b": jnp.zeros((1, 4 * LSTM1_HIDDEN), jnp.float32),
        # LSTM2: input=32, hidden=128
        "lstm2_wih_t": _xavier(ks[5], (LSTM1_HIDDEN, 4 * LSTM2_HIDDEN),
                               LSTM1_HIDDEN, 4 * LSTM2_HIDDEN),
        "lstm2_whh_t": _xavier(ks[6], (LSTM2_HIDDEN, 4 * LSTM2_HIDDEN),
                               LSTM2_HIDDEN, 4 * LSTM2_HIDDEN),
        "lstm2_b": jnp.zeros((1, 4 * LSTM2_HIDDEN), jnp.float32),
        # Linear(128, n_nodes * n_pred)
        "lin_w_t": _xavier(ks[7], (LSTM2_HIDDEN, out_dim), LSTM2_HIDDEN, out_dim),
        "lin_b": jnp.zeros((1, out_dim), jnp.float32),
    }


if __name__ == "__main__":
    batch = 2
    n_nodes = 16
    in_channels = 12      # historical timesteps per node (= num_features)
    heads = 8
    n_pred = 3            # out_channels
    n_total = batch * n_nodes

    key = jax.random.PRNGKey(0)
    k_x, k_p = jax.random.split(key)
    x = jax.random.normal(k_x, (n_total, in_channels), jnp.float32)

    # Per-sample ring graph (bidirectional) + self loops. PyG batching is
    # block-diagonal, so per-sample blocks == the dense batched adjacency.
    adj_np = np.zeros((batch, n_nodes, n_nodes), np.float32)
    for b in range(batch):
        for i in range(n_nodes):
            j = (i + 1) % n_nodes
            adj_np[b, j, i] = 1.0    # edge i -> j
            adj_np[b, i, j] = 1.0    # edge j -> i
            adj_np[b, i, i] = 1.0    # self loop
    adj = jnp.asarray(adj_np)

    params = init_params(k_p, in_channels, n_nodes, heads, n_pred)

    out = st_gat_forward(x, adj, params, batch_size=batch, n_nodes=n_nodes,
                         n_pred=n_pred, heads=heads)
    out = jax.block_until_ready(out)
    assert out.shape == (batch * n_nodes, n_pred), out.shape
    assert bool(jnp.all(jnp.isfinite(out)))
    print("KERNEL_OK")
</pallas_src>

<mosaic_0001>
module attributes {stable_mosaic.version = 11 : i64} {
  func.func @_st_gat_kernel(%arg0: i32, %arg1: memref<1x16x12xf32, #tpu.memory_space<vmem>>, %arg2: memref<1x16x16xf32, #tpu.memory_space<vmem>>, %arg3: memref<12x96xbf16, #tpu.memory_space<vmem>>, %arg4: memref<8x12xbf16, #tpu.memory_space<vmem>>, %arg5: memref<12x8xbf16, #tpu.memory_space<vmem>>, %arg6: memref<1x12xf32, #tpu.memory_space<vmem>>, %arg7: memref<4x16x32xbf16, #tpu.memory_space<vmem>>, %arg8: memref<4x32x32xbf16, #tpu.memory_space<vmem>>, %arg9: memref<4x1x32xf32, #tpu.memory_space<vmem>>, %arg10: memref<32x512xbf16, #tpu.memory_space<vmem>>, %arg11: memref<128x512xbf16, #tpu.memory_space<vmem>>, %arg12: memref<1x512xf32, #tpu.memory_space<vmem>>, %arg13: memref<128x48xbf16, #tpu.memory_space<vmem>>, %arg14: memref<1x48xf32, #tpu.memory_space<vmem>>, %arg15: memref<1x1x48xf32, #tpu.memory_space<vmem>>) attributes {dimension_semantics = [#tpu.dimension_semantics<parallel>], iteration_bounds = array<i64: 2>, scalar_prefetch = 0 : i64, scratch_operands = 0 : i64, tpu.core_type = #tpu.core_type<tc>, window_params = [{transform_indices = @transform_0, window_bounds = array<i64: 1, 16, 12>}, {transform_indices = @transform_1, window_bounds = array<i64: 1, 16, 16>}, {pipeline_mode = #tpu.pipeline_mode<synchronous>, transform_indices = @transform_2, window_bounds = array<i64: 12, 96>}, {pipeline_mode = #tpu.pipeline_mode<synchronous>, transform_indices = @transform_3, window_bounds = array<i64: 8, 12>}, {pipeline_mode = #tpu.pipeline_mode<synchronous>, transform_indices = @transform_4, window_bounds = array<i64: 12, 8>}, {pipeline_mode = #tpu.pipeline_mode<synchronous>, transform_indices = @transform_5, window_bounds = array<i64: 1, 12>}, {pipeline_mode = #tpu.pipeline_mode<synchronous>, transform_indices = @transform_6, window_bounds = array<i64: 4, 16, 32>}, {pipeline_mode = #tpu.pipeline_mode<synchronous>, transform_indices = @transform_7, window_bounds = array<i64: 4, 32, 32>}, {pipeline_mode = #tpu.pipeline_mode<synchronous>, transform_indices = @transform_8, window_bounds = array<i64: 4, 1, 32>}, {pipeline_mode = #tpu.pipeline_mode<synchronous>, transform_indices = @transform_9, window_bounds = array<i64: 32, 512>}, {pipeline_mode = #tpu.pipeline_mode<synchronous>, transform_indices = @transform_10, window_bounds = array<i64: 128, 512>}, {pipeline_mode = #tpu.pipeline_mode<synchronous>, transform_indices = @transform_11, window_bounds = array<i64: 1, 512>}, {pipeline_mode = #tpu.pipeline_mode<synchronous>, transform_indices = @transform_12, window_bounds = array<i64: 128, 48>}, {pipeline_mode = #tpu.pipeline_mode<synchronous>, transform_indices = @transform_13, window_bounds = array<i64: 1, 48>}, {transform_indices = @transform_14, window_bounds = array<i64: 1, 1, 48>}]} {
    %c0 = arith.constant 0 : index
    %c0_0 = arith.constant 0 : index
    %c0_1 = arith.constant 0 : index
    %0 = vector.load %arg1[%c0, %c0_0, %c0_1] : memref<1x16x12xf32, #tpu.memory_space<vmem>>, vector<1x16x12xf32>
    %1 = vector.shape_cast %0 : vector<1x16x12xf32> to vector<16x12xf32>
    %2 = arith.truncf %1 : vector<16x12xf32> to vector<16x12xbf16>
    %c0_2 = arith.constant 0 : index
    %c0_3 = arith.constant 0 : index
    %c0_4 = arith.constant 0 : index
    %3 = vector.load %arg2[%c0_2, %c0_3, %c0_4] : memref<1x16x16xf32, #tpu.memory_space<vmem>>, vector<1x16x16xf32>
    %4 = vector.shape_cast %3 : vector<1x16x16xf32> to vector<16x16xf32>
    %c0_5 = arith.constant 0 : index
    %c0_6 = arith.constant 0 : index
    %5 = vector.load %arg3[%c0_5, %c0_6] : memref<12x96xbf16, #tpu.memory_space<vmem>>, vector<12x96xbf16>
    %cst = arith.constant dense<0.000000e+00> : vector<16x96xf32>
    %6 = tpu.matmul %2, %5, %cst {dimension_numbers = #tpu.dot_dimension_numbers<[1], [0], [0], [1], [0, 0, 1, 1], [], []>} : vector<16x12xbf16>, vector<12x96xbf16>, vector<16x96xf32> -> vector<16x96xf32>
    %c0_7 = arith.constant 0 : index
    %c0_8 = arith.constant 0 : index
    %7 = vector.load %arg5[%c0_7, %c0_8] : memref<12x8xbf16, #tpu.memory_space<vmem>>, vector<12x8xbf16>
    %cst_9 = arith.constant dense<0.000000e+00> : vector<16x8xf32>
    %8 = tpu.matmul %2, %7, %cst_9 {dimension_numbers = #tpu.dot_dimension_numbers<[1], [0], [0], [1], [0, 0, 1, 1], [], []>} : vector<16x12xbf16>, vector<12x8xbf16>, vector<16x8xf32> -> vector<16x8xf32>
    %c0_10 = arith.constant 0 : index
    %c0_11 = arith.constant 0 : index
    %9 = vector.load %arg4[%c0_10, %c0_11] : memref<8x12xbf16, #tpu.memory_space<vmem>>, vector<8x12xbf16>
    %cst_12 = arith.constant dense<0.000000e+00> : vector<8x16xf32>
    %10 = tpu.matmul %9, %2, %cst_12 {dimension_numbers = #tpu.dot_dimension_numbers<[1], [1], [0], [0], [0, 0, 1, 0], [], []>} : vector<8x12xbf16>, vector<16x12xbf16>, vector<8x16xf32> -> vector<8x16xf32>
    %cst_13 = arith.constant 0.000000e+00 : f32
    %11 = vector.broadcast %cst_13 : f32 to vector<16x16xf32>
    %12 = arith.cmpf ogt, %4, %11 : vector<16x16xf32>
    %cst_14 = arith.constant 0.000000e+00 : f32
    %13 = vector.broadcast %cst_14 : f32 to vector<16x12xf32>
    %14 = vector.extract_strided_slice %8 {offsets = [0, 0], sizes = [16, 1], strides = [1, 1]} : vector<16x8xf32> to vector<16x1xf32>
    %15 = vector.extract_strided_slice %10 {offsets = [0, 0], sizes = [1, 16], strides = [1, 1]} : vector<8x16xf32> to vector<1x16xf32>
    %16 = vector.broadcast %14 : vector<16x1xf32> to vector<16x16xf32>
    %17 = vector.broadcast %15 : vector<1x16xf32> to vector<16x16xf32>
    %18 = arith.addf %16, %17 : vector<16x16xf32>
    %cst_15 = arith.constant 0.000000e+00 : f32
    %19 = vector.broadcast %cst_15 : f32 to vector<16x16xf32>
    %20 = arith.cmpf ogt, %18, %19 : vector<16x16xf32>
    %cst_16 = arith.constant 2.000000e-01 : f32
    %21 = vector.broadcast %cst_16 : f32 to vector<16x16xf32>
    %22 = arith.mulf %21, %18 : vector<16x16xf32>
    %23 = arith.select %20, %18, %22 : vector<16x16xi1>, vector<16x16xf32>
    %cst_17 = arith.constant -1.000000e+30 : f32
    %24 = vector.broadcast %cst_17 : f32 to vector<16x16xf32>
    %25 = arith.select %12, %23, %24 : vector<16x16xi1>, vector<16x16xf32>
    %cst_18 = arith.constant dense<0xFF800000> : vector<16xf32>
    %26 = vector.multi_reduction <maximumf>, %25, %cst_18 [1] : vector<16x16xf32> to vector<16xf32>
    %27 = vector.shape_cast %26 : vector<16xf32> to vector<16x1xf32>
    %28 = vector.broadcast %27 : vector<16x1xf32> to vector<16x16xf32>
    %29 = arith.subf %25, %28 : vector<16x16xf32>
    %30 = math.exp %29 : vector<16x16xf32>
    %cst_19 = arith.constant dense<0.000000e+00> : vector<16xf32>
    %31 = vector.multi_reduction <add>, %30, %cst_19 [1] : vector<16x16xf32> to vector<16xf32>
    %32 = vector.shape_cast %31 : vector<16xf32> to vector<16x1xf32>
    %33 = tpu.reciprocal %32 {approx = true} : vector<16x1xf32> -> vector<16x1xf32>
    %34 = vector.broadcast %33 : vector<16x1xf32> to vector<16x16xf32>
    %35 = arith.mulf %30, %34 : vector<16x16xf32>
    %36 = vector.extract_strided_slice %6 {offsets = [0, 0], sizes = [16, 12], strides = [1, 1]} : vector<16x96xf32> to vector<16x12xf32>
    %cst_20 = arith.constant dense<0.000000e+00> : vector<16x12xf32>
    %37 = tpu.matmul %35, %36, %cst_20 {dimension_numbers = #tpu.dot_dimension_numbers<[1], [0], [0], [1], [0, 0, 1, 1], [], []>} : vector<16x16xf32>, vector<16x12xf32>, vector<16x12xf32> -> vector<16x12xf32>
    %38 = arith.addf %13, %37 : vector<16x12xf32>
    %39 = vector.extract_strided_slice %8 {offsets = [0, 1], sizes = [16, 1], strides = [1, 1]} : vector<16x8xf32> to vector<16x1xf32>
    %40 = vector.extract_strided_slice %10 {offsets = [1, 0], sizes = [1, 16], strides = [1, 1]} : vector<8x16xf32> to vector<1x16xf32>
    %41 = vector.broadcast %39 : vector<16x1xf32> to vector<16x16xf32>
    %42 = vector.broadcast %40 : vector<1x16xf32> to vector<16x16xf32>
    %43 = arith.addf %41, %42 : vector<16x16xf32>
    %cst_21 = arith.constant 0.000000e+00 : f32
    %44 = vector.broadcast %cst_21 : f32 to vector<16x16xf32>
    %45 = arith.cmpf ogt, %43, %44 : vector<16x16xf32>
    %cst_22 = arith.constant 2.000000e-01 : f32
    %46 = vector.broadcast %cst_22 : f32 to vector<16x16xf32>
    %47 = arith.mulf %46, %43 : vector<16x16xf32>
    %48 = arith.select %45, %43, %47 : vector<16x16xi1>, vector<16x16xf32>
    %cst_23 = arith.constant -1.000000e+30 : f32
    %49 = vector.broadcast %cst_23 : f32 to vector<16x16xf32>
    %50 = arith.select %12, %48, %49 : vector<16x16xi1>, vector<16x16xf32>
    %cst_24 = arith.constant dense<0xFF800000> : vector<16xf32>
    %51 = vector.multi_reduction <maximumf>, %50, %cst_24 [1] : vector<16x16xf32> to vector<16xf32>
    %52 = vector.shape_cast %51 : vector<16xf32> to vector<16x1xf32>
    %53 = vector.broadcast %52 : vector<16x1xf32> to vector<16x16xf32>
    %54 = arith.subf %50, %53 : vector<16x16xf32>
    %55 = math.exp %54 : vector<16x16xf32>
    %cst_25 = arith.constant dense<0.000000e+00> : vector<16xf32>
    %56 = vector.multi_reduction <add>, %55, %cst_25 [1] : vector<16x16xf32> to vector<16xf32>
    %57 = vector.shape_cast %56 : vector<16xf32> to vector<16x1xf32>
    %58 = tpu.reciprocal %57 {approx = true} : vector<16x1xf32> -> vector<16x1xf32>
    %59 = vector.broadcast %58 : vector<16x1xf32> to vector<16x16xf32>
    %60 = arith.mulf %55, %59 : vector<16x16xf32>
    %61 = vector.extract_strided_slice %6 {offsets = [0, 12], sizes = [16, 12], strides = [1, 1]} : vector<16x96xf32> to vector<16x12xf32>
    %cst_26 = arith.constant dense<0.000000e+00> : vector<16x12xf32>
    %62 = tpu.matmul %60, %61, %cst_26 {dimension_numbers = #tpu.dot_dimension_numbers<[1], [0], [0], [1], [0, 0, 1, 1], [], []>} : vector<16x16xf32>, vector<16x12xf32>, vector<16x12xf32> -> vector<16x12xf32>
    %63 = arith.addf %38, %62 : vector<16x12xf32>
    %64 = vector.extract_strided_slice %8 {offsets = [0, 2], sizes = [16, 1], strides = [1, 1]} : vector<16x8xf32> to vector<16x1xf32>
    %65 = vector.extract_strided_slice %10 {offsets = [2, 0], sizes = [1, 16], strides = [1, 1]} : vector<8x16xf32> to vector<1x16xf32>
    %66 = vector.broadcast %64 : vector<16x1xf32> to vector<16x16xf32>
    %67 = vector.broadcast %65 : vector<1x16xf32> to vector<16x16xf32>
    %68 = arith.addf %66, %67 : vector<16x16xf32>
    %cst_27 = arith.constant 0.000000e+00 : f32
    %69 = vector.broadcast %cst_27 : f32 to vector<16x16xf32>
    %70 = arith.cmpf ogt, %68, %69 : vector<16x16xf32>
    %cst_28 = arith.constant 2.000000e-01 : f32
    %71 = vector.broadcast %cst_28 : f32 to vector<16x16xf32>
    %72 = arith.mulf %71, %68 : vector<16x16xf32>
    %73 = arith.select %70, %68, %72 : vector<16x16xi1>, vector<16x16xf32>
    %cst_29 = arith.constant -1.000000e+30 : f32
    %74 = vector.broadcast %cst_29 : f32 to vector<16x16xf32>
    %75 = arith.select %12, %73, %74 : vector<16x16xi1>, vector<16x16xf32>
    %cst_30 = arith.constant dense<0xFF800000> : vector<16xf32>
    %76 = vector.multi_reduction <maximumf>, %75, %cst_30 [1] : vector<16x16xf32> to vector<16xf32>
    %77 = vector.shape_cast %76 : vector<16xf32> to vector<16x1xf32>
    %78 = vector.broadcast %77 : vector<16x1xf32> to vector<16x16xf32>
    %79 = arith.subf %75, %78 : vector<16x16xf32>
    %80 = math.exp %79 : vector<16x16xf32>
    %cst_31 = arith.constant dense<0.000000e+00> : vector<16xf32>
    %81 = vector.multi_reduction <add>, %80, %cst_31 [1] : vector<16x16xf32> to vector<16xf32>
    %82 = vector.shape_cast %81 : vector<16xf32> to vector<16x1xf32>
    %83 = tpu.reciprocal %82 {approx = true} : vector<16x1xf32> -> vector<16x1xf32>
    %84 = vector.broadcast %83 : vector<16x1xf32> to vector<16x16xf32>
    %85 = arith.mulf %80, %84 : vector<16x16xf32>
    %86 = vector.extract_strided_slice %6 {offsets = [0, 24], sizes = [16, 12], strides = [1, 1]} : vector<16x96xf32> to vector<16x12xf32>
    %cst_32 = arith.constant dense<0.000000e+00> : vector<16x12xf32>
    %87 = tpu.matmul %85, %86, %cst_32 {dimension_numbers = #tpu.dot_dimension_numbers<[1], [0], [0], [1], [0, 0, 1, 1], [], []>} : vector<16x16xf32>, vector<16x12xf32>, vector<16x12xf32> -> vector<16x12xf32>
    %88 = arith.addf %63, %87 : vector<16x12xf32>
    %89 = vector.extract_strided_slice %8 {offsets = [0, 3], sizes = [16, 1], strides = [1, 1]} : vector<16x8xf32> to vector<16x1xf32>
    %90 = vector.extract_strided_slice %10 {offsets = [3, 0], sizes = [1, 16], strides = [1, 1]} : vector<8x16xf32> to vector<1x16xf32>
    %91 = vector.broadcast %89 : vector<16x1xf32> to vector<16x16xf32>
    %92 = vector.broadcast %90 : vector<1x16xf32> to vector<16x16xf32>
    %93 = arith.addf %91, %92 : vector<16x16xf32>
    %cst_33 = arith.constant 0.000000e+00 : f32
    %94 = vector.broadcast %cst_33 : f32 to vector<16x16xf32>
    %95 = arith.cmpf ogt, %93, %94 : vector<16x16xf32>
    %cst_34 = arith.constant 2.000000e-01 : f32
    %96 = vector.broadcast %cst_34 : f32 to vector<16x16xf32>
    %97 = arith.mulf %96, %93 : vector<16x16xf32>
    %98 = arith.select %95, %93, %97 : vector<16x16xi1>, vector<16x16xf32>
    %cst_35 = arith.constant -1.000000e+30 : f32
    %99 = vector.broadcast %cst_35 : f32 to vector<16x16xf32>
    %100 = arith.select %12, %98, %99 : vector<16x16xi1>, vector<16x16xf32>
    %cst_36 = arith.constant dense<0xFF800000> : vector<16xf32>
    %101 = vector.multi_reduction <maximumf>, %100, %cst_36 [1] : vector<16x16xf32> to vector<16xf32>
    %102 = vector.shape_cast %101 : vector<16xf32> to vector<16x1xf32>
    %103 = vector.broadcast %102 : vector<16x1xf32> to vector<16x16xf32>
    %104 = arith.subf %100, %103 : vector<16x16xf32>
    %105 = math.exp %104 : vector<16x16xf32>
    %cst_37 = arith.constant dense<0.000000e+00> : vector<16xf32>
    %106 = vector.multi_reduction <add>, %105, %cst_37 [1] : vector<16x16xf32> to vector<16xf32>
    %107 = vector.shape_cast %106 : vector<16xf32> to vector<16x1xf32>
    %108 = tpu.reciprocal %107 {approx = true} : vector<16x1xf32> -> vector<16x1xf32>
    %109 = vector.broadcast %108 : vector<16x1xf32> to vector<16x16xf32>
    %110 = arith.mulf %105, %109 : vector<16x16xf32>
    %111 = vector.extract_strided_slice %6 {offsets = [0, 36], sizes = [16, 12], strides = [1, 1]} : vector<16x96xf32> to vector<16x12xf32>
    %cst_38 = arith.constant dense<0.000000e+00> : vector<16x12xf32>
    %112 = tpu.matmul %110, %111, %cst_38 {dimension_numbers = #tpu.dot_dimension_numbers<[1], [0], [0], [1], [0, 0, 1, 1], [], []>} : vector<16x16xf32>, vector<16x12xf32>, vector<16x12xf32> -> vector<16x12xf32>
    %113 = arith.addf %88, %112 : vector<16x12xf32>
    %114 = vector.extract_strided_slice %8 {offsets = [0, 4], sizes = [16, 1], strides = [1, 1]} : vector<16x8xf32> to vector<16x1xf32>
    %115 = vector.extract_strided_slice %10 {offsets = [4, 0], sizes = [1, 16], strides = [1, 1]} : vector<8x16xf32> to vector<1x16xf32>
    %116 = vector.broadcast %114 : vector<16x1xf32> to vector<16x16xf32>
    %117 = vector.broadcast %115 : vector<1x16xf32> to vector<16x16xf32>
    %118 = arith.addf %116, %117 : vector<16x16xf32>
    %cst_39 = arith.constant 0.000000e+00 : f32
    %119 = vector.broadcast %cst_39 : f32 to vector<16x16xf32>
    %120 = arith.cmpf ogt, %118, %119 : vector<16x16xf32>
    %cst_40 = arith.constant 2.000000e-01 : f32
    %121 = vector.broadcast %cst_40 : f32 to vector<16x16xf32>
    %122 = arith.mulf %121, %118 : vector<16x16xf32>
    %123 = arith.select %120, %118, %122 : vector<16x16xi1>, vector<16x16xf32>
    %cst_41 = arith.constant -1.000000e+30 : f32
    %124 = vector.broadcast %cst_41 : f32 to vector<16x16xf32>
    %125 = arith.select %12, %123, %124 : vector<16x16xi1>, vector<16x16xf32>
    %cst_42 = arith.constant dense<0xFF800000> : vector<16xf32>
    %126 = vector.multi_reduction <maximumf>, %125, %cst_42 [1] : vector<16x16xf32> to vector<16xf32>
    %127 = vector.shape_cast %126 : vector<16xf32> to vector<16x1xf32>
    %128 = vector.broadcast %127 : vector<16x1xf32> to vector<16x16xf32>
    %129 = arith.subf %125, %128 : vector<16x16xf32>
    %130 = math.exp %129 : vector<16x16xf32>
    %cst_43 = arith.constant dense<0.000000e+00> : vector<16xf32>
    %131 = vector.multi_reduction <add>, %130, %cst_43 [1] : vector<16x16xf32> to vector<16xf32>
    %132 = vector.shape_cast %131 : vector<16xf32> to vector<16x1xf32>
    %133 = tpu.reciprocal %132 {approx = true} : vector<16x1xf32> -> vector<16x1xf32>
    %134 = vector.broadcast %133 : vector<16x1xf32> to vector<16x16xf32>
    %135 = arith.mulf %130, %134 : vector<16x16xf32>
    %136 = vector.extract_strided_slice %6 {offsets = [0, 48], sizes = [16, 12], strides = [1, 1]} : vector<16x96xf32> to vector<16x12xf32>
    %cst_44 = arith.constant dense<0.000000e+00> : vector<16x12xf32>
    %137 = tpu.matmul %135, %136, %cst_44 {dimension_numbers = #tpu.dot_dimension_numbers<[1], [0], [0], [1], [0, 0, 1, 1], [], []>} : vector<16x16xf32>, vector<16x12xf32>, vector<16x12xf32> -> vector<16x12xf32>
    %138 = arith.addf %113, %137 : vector<16x12xf32>
    %139 = vector.extract_strided_slice %8 {offsets = [0, 5], sizes = [16, 1], strides = [1, 1]} : vector<16x8xf32> to vector<16x1xf32>
    %140 = vector.extract_strided_slice %10 {offsets = [5, 0], sizes = [1, 16], strides = [1, 1]} : vector<8x16xf32> to vector<1x16xf32>
    %141 = vector.broadcast %139 : vector<16x1xf32> to vector<16x16xf32>
    %142 = vector.broadcast %140 : vector<1x16xf32> to vector<16x16xf32>
    %143 = arith.addf %141, %142 : vector<16x16xf32>
    %cst_45 = arith.constant 0.000000e+00 : f32
    %144 = vector.broadcast %cst_45 : f32 to vector<16x16xf32>
    %145 = arith.cmpf ogt, %143, %144 : vector<16x16xf32>
    %cst_46 = arith.constant 2.000000e-01 : f32
    %146 = vector.broadcast %cst_46 : f32 to vector<16x16xf32>
    %147 = arith.mulf %146, %143 : vector<16x16xf32>
    %148 = arith.select %145, %143, %147 : vector<16x16xi1>, vector<16x16xf32>
    %cst_47 = arith.constant -1.000000e+30 : f32
    %149 = vector.broadcast %cst_47 : f32 to vector<16x16xf32>
    %150 = arith.select %12, %148, %149 : vector<16x16xi1>, vector<16x16xf32>
    %cst_48 = arith.constant dense<0xFF800000> : vector<16xf32>
    %151 = vector.multi_reduction <maximumf>, %150, %cst_48 [1] : vector<16x16xf32> to vector<16xf32>
    %152 = vector.shape_cast %151 : vector<16xf32> to vector<16x1xf32>
    %153 = vector.broadcast %152 : vector<16x1xf32> to vector<16x16xf32>
    %154 = arith.subf %150, %153 : vector<16x16xf32>
    %155 = math.exp %154 : vector<16x16xf32>
    %cst_49 = arith.constant dense<0.000000e+00> : vector<16xf32>
    %156 = vector.multi_reduction <add>, %155, %cst_49 [1] : vector<16x16xf32> to vector<16xf32>
    %157 = vector.shape_cast %156 : vector<16xf32> to vector<16x1xf32>
    %158 = tpu.reciprocal %157 {approx = true} : vector<16x1xf32> -> vector<16x1xf32>
    %159 = vector.broadcast %158 : vector<16x1xf32> to vector<16x16xf32>
    %160 = arith.mulf %155, %159 : vector<16x16xf32>
    %161 = vector.extract_strided_slice %6 {offsets = [0, 60], sizes = [16, 12], strides = [1, 1]} : vector<16x96xf32> to vector<16x12xf32>
    %cst_50 = arith.constant dense<0.000000e+00> : vector<16x12xf32>
    %162 = tpu.matmul %160, %161, %cst_50 {dimension_numbers = #tpu.dot_dimension_numbers<[1], [0], [0], [1], [0, 0, 1, 1], [], []>} : vector<16x16xf32>, vector<16x12xf32>, vector<16x12xf32> -> vector<16x12xf32>
    %163 = arith.addf %138, %162 : vector<16x12xf32>
    %164 = vector.extract_strided_slice %8 {offsets = [0, 6], sizes = [16, 1], strides = [1, 1]} : vector<16x8xf32> to vector<16x1xf32>
    %165 = vector.extract_strided_slice %10 {offsets = [6, 0], sizes = [1, 16], strides = [1, 1]} : vector<8x16xf32> to vector<1x16xf32>
    %166 = vector.broadcast %164 : vector<16x1xf32> to vector<16x16xf32>
    %167 = vector.broadcast %165 : vector<1x16xf32> to vector<16x16xf32>
    %168 = arith.addf %166, %167 : vector<16x16xf32>
    %cst_51 = arith.constant 0.000000e+00 : f32
    %169 = vector.broadcast %cst_51 : f32 to vector<16x16xf32>
    %170 = arith.cmpf ogt, %168, %169 : vector<16x16xf32>
    %cst_52 = arith.constant 2.000000e-01 : f32
    %171 = vector.broadcast %cst_52 : f32 to vector<16x16xf32>
    %172 = arith.mulf %171, %168 : vector<16x16xf32>
    %173 = arith.select %170, %168, %172 : vector<16x16xi1>, vector<16x16xf32>
    %cst_53 = arith.constant -1.000000e+30 : f32
    %174 = vector.broadcast %cst_53 : f32 to vector<16x16xf32>
    %175 = arith.select %12, %173, %174 : vector<16x16xi1>, vector<16x16xf32>
    %cst_54 = arith.constant dense<0xFF800000> : vector<16xf32>
    %176 = vector.multi_reduction <maximumf>, %175, %cst_54 [1] : vector<16x16xf32> to vector<16xf32>
    %177 = vector.shape_cast %176 : vector<16xf32> to vector<16x1xf32>
    %178 = vector.broadcast %177 : vector<16x1xf32> to vector<16x16xf32>
    %179 = arith.subf %175, %178 : vector<16x16xf32>
    %180 = math.exp %179 : vector<16x16xf32>
    %cst_55 = arith.constant dense<0.000000e+00> : vector<16xf32>
    %181 = vector.multi_reduction <add>, %180, %cst_55 [1] : vector<16x16xf32> to vector<16xf32>
    %182 = vector.shape_cast %181 : vector<16xf32> to vector<16x1xf32>
    %183 = tpu.reciprocal %182 {approx = true} : vector<16x1xf32> -> vector<16x1xf32>
    %184 = vector.broadcast %183 : vector<16x1xf32> to vector<16x16xf32>
    %185 = arith.mulf %180, %184 : vector<16x16xf32>
    %186 = vector.extract_strided_slice %6 {offsets = [0, 72], sizes = [16, 12], strides = [1, 1]} : vector<16x96xf32> to vector<16x12xf32>
    %cst_56 = arith.constant dense<0.000000e+00> : vector<16x12xf32>
    %187 = tpu.matmul %185, %186, %cst_56 {dimension_numbers = #tpu.dot_dimension_numbers<[1], [0], [0], [1], [0, 0, 1, 1], [], []>} : vector<16x16xf32>, vector<16x12xf32>, vector<16x12xf32> -> vector<16x12xf32>
    %188 = arith.addf %163, %187 : vector<16x12xf32>
    %189 = vector.extract_strided_slice %8 {offsets = [0, 7], sizes = [16, 1], strides = [1, 1]} : vector<16x8xf32> to vector<16x1xf32>
    %190 = vector.extract_strided_slice %10 {offsets = [7, 0], sizes = [1, 16], strides = [1, 1]} : vector<8x16xf32> to vector<1x16xf32>
    %191 = vector.broadcast %189 : vector<16x1xf32> to vector<16x16xf32>
    %192 = vector.broadcast %190 : vector<1x16xf32> to vector<16x16xf32>
    %193 = arith.addf %191, %192 : vector<16x16xf32>
    %cst_57 = arith.constant 0.000000e+00 : f32
    %194 = vector.broadcast %cst_57 : f32 to vector<16x16xf32>
    %195 = arith.cmpf ogt, %193, %194 : vector<16x16xf32>
    %cst_58 = arith.constant 2.000000e-01 : f32
    %196 = vector.broadcast %cst_58 : f32 to vector<16x16xf32>
    %197 = arith.mulf %196, %193 : vector<16x16xf32>
    %198 = arith.select %195, %193, %197 : vector<16x16xi1>, vector<16x16xf32>
    %cst_59 = arith.constant -1.000000e+30 : f32
    %199 = vector.broadcast %cst_59 : f32 to vector<16x16xf32>
    %200 = arith.select %12, %198, %199 : vector<16x16xi1>, vector<16x16xf32>
    %cst_60 = arith.constant dense<0xFF800000> : vector<16xf32>
    %201 = vector.multi_reduction <maximumf>, %200, %cst_60 [1] : vector<16x16xf32> to vector<16xf32>
    %202 = vector.shape_cast %201 : vector<16xf32> to vector<16x1xf32>
    %203 = vector.broadcast %202 : vector<16x1xf32> to vector<16x16xf32>
    %204 = arith.subf %200, %203 : vector<16x16xf32>
    %205 = math.exp %204 : vector<16x16xf32>
    %cst_61 = arith.constant dense<0.000000e+00> : vector<16xf32>
    %206 = vector.multi_reduction <add>, %205, %cst_61 [1] : vector<16x16xf32> to vector<16xf32>
    %207 = vector.shape_cast %206 : vector<16xf32> to vector<16x1xf32>
    %208 = tpu.reciprocal %207 {approx = true} : vector<16x1xf32> -> vector<16x1xf32>
    %209 = vector.broadcast %208 : vector<16x1xf32> to vector<16x16xf32>
    %210 = arith.mulf %205, %209 : vector<16x16xf32>
    %211 = vector.extract_strided_slice %6 {offsets = [0, 84], sizes = [16, 12], strides = [1, 1]} : vector<16x96xf32> to vector<16x12xf32>
    %cst_62 = arith.constant dense<0.000000e+00> : vector<16x12xf32>
    %212 = tpu.matmul %210, %211, %cst_62 {dimension_numbers = #tpu.dot_dimension_numbers<[1], [0], [0], [1], [0, 0, 1, 1], [], []>} : vector<16x16xf32>, vector<16x12xf32>, vector<16x12xf32> -> vector<16x12xf32>
    %213 = arith.addf %188, %212 : vector<16x12xf32>
    %cst_63 = arith.constant 1.250000e-01 : f32
    %214 = vector.broadcast %cst_63 : f32 to vector<16x12xf32>
    %215 = arith.mulf %213, %214 : vector<16x12xf32>
    %c0_64 = arith.constant 0 : index
    %c0_65 = arith.constant 0 : index
    %216 = vector.load %arg6[%c0_64, %c0_65] : memref<1x12xf32, #tpu.memory_space<vmem>>, vector<1x12xf32>
    %217 = vector.broadcast %216 : vector<1x12xf32> to vector<16x12xf32>
    %218 = arith.addf %215, %217 : vector<16x12xf32>
    %219 = arith.truncf %218 : vector<16x12xf32> to vector<16x12xbf16>
    %c0_66 = arith.constant 0 : index
    %c0_67 = arith.constant 0 : index
    %c0_68 = arith.constant 0 : index
    %220 = vector.load %arg7[%c0_66, %c0_67, %c0_68] : memref<4x16x32xbf16, #tpu.memory_space<vmem>>, vector<1x16x32xbf16>
    %221 = vector.shape_cast %220 : vector<1x16x32xbf16> to vector<16x32xbf16>
    %cst_69 = arith.constant dense<0.000000e+00> : vector<12x32xf32>
    %222 = tpu.matmul %219, %221, %cst_69 {dimension_numbers = #tpu.dot_dimension_numbers<[0], [0], [1], [1], [0, 1, 1, 1], [], []>} : vector<16x12xbf16>, vector<16x32xbf16>, vector<12x32xf32> -> vector<12x32xf32>
    %c0_70 = arith.constant 0 : index
    %c0_71 = arith.constant 0 : index
    %c0_72 = arith.constant 0 : index
    %223 = vector.load %arg9[%c0_70, %c0_71, %c0_72] : memref<4x1x32xf32, #tpu.memory_space<vmem>>, vector<1x1x32xf32>
    %224 = vector.shape_cast %223 : vector<1x1x32xf32> to vector<1x32xf32>
    %225 = vector.broadcast %224 : vector<1x32xf32> to vector<12x32xf32>
    %226 = arith.addf %222, %225 : vector<12x32xf32>
    %c1 = arith.constant 1 : index
    %c0_73 = arith.constant 0 : index
    %c0_74 = arith.constant 0 : index
    %227 = vector.load %arg7[%c1, %c0_73, %c0_74] : memref<4x16x32xbf16, #tpu.memory_space<vmem>>, vector<1x16x32xbf16>
    %228 = vector.shape_cast %227 : vector<1x16x32xbf16> to vector<16x32xbf16>
    %cst_75 = arith.constant dense<0.000000e+00> : vector<12x32xf32>
    %229 = tpu.matmul %219, %228, %cst_75 {dimension_numbers = #tpu.dot_dimension_numbers<[0], [0], [1], [1], [0, 1, 1, 1], [], []>} : vector<16x12xbf16>, vector<16x32xbf16>, vector<12x32xf32> -> vector<12x32xf32>
    %c1_76 = arith.constant 1 : index
    %c0_77 = arith.constant 0 : index
    %c0_78 = arith.constant 0 : index
    %230 = vector.load %arg9[%c1_76, %c0_77, %c0_78] : memref<4x1x32xf32, #tpu.memory_space<vmem>>, vector<1x1x32xf32>
    %231 = vector.shape_cast %230 : vector<1x1x32xf32> to vector<1x32xf32>
    %232 = vector.broadcast %231 : vector<1x32xf32> to vector<12x32xf32>
    %233 = arith.addf %229, %232 : vector<12x32xf32>
    %c2 = arith.constant 2 : index
    %c0_79 = arith.constant 0 : index
    %c0_80 = arith.constant 0 : index
    %234 = vector.load %arg7[%c2, %c0_79, %c0_80] : memref<4x16x32xbf16, #tpu.memory_space<vmem>>, vector<1x16x32xbf16>
    %235 = vector.shape_cast %234 : vector<1x16x32xbf16> to vector<16x32xbf16>
    %cst_81 = arith.constant dense<0.000000e+00> : vector<12x32xf32>
    %236 = tpu.matmul %219, %235, %cst_81 {dimension_numbers = #tpu.dot_dimension_numbers<[0], [0], [1], [1], [0, 1, 1, 1], [], []>} : vector<16x12xbf16>, vector<16x32xbf16>, vector<12x32xf32> -> vector<12x32xf32>
    %c2_82 = arith.constant 2 : index
    %c0_83 = arith.constant 0 : index
    %c0_84 = arith.constant 0 : index
    %237 = vector.load %arg9[%c2_82, %c0_83, %c0_84] : memref<4x1x32xf32, #tpu.memory_space<vmem>>, vector<1x1x32xf32>
    %238 = vector.shape_cast %237 : vector<1x1x32xf32> to vector<1x32xf32>
    %239 = vector.broadcast %238 : vector<1x32xf32> to vector<12x32xf32>
    %240 = arith.addf %236, %239 : vector<12x32xf32>
    %c3 = arith.constant 3 : index
    %c0_85 = arith.constant 0 : index
    %c0_86 = arith.constant 0 : index
    %241 = vector.load %arg7[%c3, %c0_85, %c0_86] : memref<4x16x32xbf16, #tpu.memory_space<vmem>>, vector<1x16x32xbf16>
    %242 = vector.shape_cast %241 : vector<1x16x32xbf16> to vector<16x32xbf16>
    %cst_87 = arith.constant dense<0.000000e+00> : vector<12x32xf32>
    %243 = tpu.matmul %219, %242, %cst_87 {dimension_numbers = #tpu.dot_dimension_numbers<[0], [0], [1], [1], [0, 1, 1, 1], [], []>} : vector<16x12xbf16>, vector<16x32xbf16>, vector<12x32xf32> -> vector<12x32xf32>
    %c3_88 = arith.constant 3 : index
    %c0_89 = arith.constant 0 : index
    %c0_90 = arith.constant 0 : index
    %244 = vector.load %arg9[%c3_88, %c0_89, %c0_90] : memref<4x1x32xf32, #tpu.memory_space<vmem>>, vector<1x1x32xf32>
    %245 = vector.shape_cast %244 : vector<1x1x32xf32> to vector<1x32xf32>
    %246 = vector.broadcast %245 : vector<1x32xf32> to vector<12x32xf32>
    %247 = arith.addf %243, %246 : vector<12x32xf32>
    %c0_91 = arith.constant 0 : index
    %c0_92 = arith.constant 0 : index
    %c0_93 = arith.constant 0 : index
    %248 = vector.load %arg8[%c0_91, %c0_92, %c0_93] : memref<4x32x32xbf16, #tpu.memory_space<vmem>>, vector<1x32x32xbf16>
    %249 = vector.shape_cast %248 : vector<1x32x32xbf16> to vector<32x32xbf16>
    %c1_94 = arith.constant 1 : index
    %c0_95 = arith.constant 0 : index
    %c0_96 = arith.constant 0 : index
    %250 = vector.load %arg8[%c1_94, %c0_95, %c0_96] : memref<4x32x32xbf16, #tpu.memory_space<vmem>>, vector<1x32x32xbf16>
    %251 = vector.shape_cast %250 : vector<1x32x32xbf16> to vector<32x32xbf16>
    %c2_97 = arith.constant 2 : index
    %c0_98 = arith.constant 0 : index
    %c0_99 = arith.constant 0 : index
    %252 = vector.load %arg8[%c2_97, %c0_98, %c0_99] : memref<4x32x32xbf16, #tpu.memory_space<vmem>>, vector<1x32x32xbf16>
    %253 = vector.shape_cast %252 : vector<1x32x32xbf16> to vector<32x32xbf16>
    %c3_100 = arith.constant 3 : index
    %c0_101 = arith.constant 0 : index
    %c0_102 = arith.constant 0 : index
    %254 = vector.load %arg8[%c3_100, %c0_101, %c0_102] : memref<4x32x32xbf16, #tpu.memory_space<vmem>>, vector<1x32x32xbf16>
    %255 = vector.shape_cast %254 : vector<1x32x32xbf16> to vector<32x32xbf16>
    %c0_103 = arith.constant 0 : index
    %c0_104 = arith.constant 0 : index
    %256 = vector.load %arg10[%c0_103, %c0_104] : memref<32x512xbf16, #tpu.memory_space<vmem>>, vector<32x512xbf16>
    %c0_105 = arith.constant 0 : index
    %c0_106 = arith.constant 0 : index
    %257 = vector.load %arg11[%c0_105, %c0_106] : memref<128x512xbf16, #tpu.memory_space<vmem>>, vector<128x512xbf16>
    %c0_107 = arith.constant 0 : index
    %c0_108 = arith.constant 0 : index
    %258 = vector.load %arg12[%c0_107, %c0_108] : memref<1x512xf32, #tpu.memory_space<vmem>>, vector<1x512xf32>
    %cst_109 = arith.constant 0.000000e+00 : f32
    %259 = vector.broadcast %cst_109 : f32 to vector<1x32xf32>
    %cst_110 = arith.constant 0.000000e+00 : f32
    %260 = vector.broadcast %cst_110 : f32 to vector<1x32xf32>
    %cst_111 = arith.constant 0.000000e+00 : f32
    %261 = vector.broadcast %cst_111 : f32 to vector<1x128xf32>
    %cst_112 = arith.constant 0.000000e+00 : f32
    %262 = vector.broadcast %cst_112 : f32 to vector<1x128xf32>
    %263 = arith.truncf %259 : vector<1x32xf32> to vector<1x32xbf16>
    %264 = vector.extract_strided_slice %226 {offsets = [0, 0], sizes = [1, 32], strides = [1, 1]} : vector<12x32xf32> to vector<1x32xf32>
    %cst_113 = arith.constant dense<0.000000e+00> : vector<1x32xf32>
    %265 = tpu.matmul %263, %249, %cst_113 {dimension_numbers = #tpu.dot_dimension_numbers<[1], [0], [0], [1], [0, 0, 1, 1], [], []>} : vector<1x32xbf16>, vector<32x32xbf16>, vector<1x32xf32> -> vector<1x32xf32>
    %266 = arith.addf %264, %265 : vector<1x32xf32>
    %267 = vector.extract_strided_slice %233 {offsets = [0, 0], sizes = [1, 32], strides = [1, 1]} : vector<12x32xf32> to vector<1x32xf32>
    %cst_114 = arith.constant dense<0.000000e+00> : vector<1x32xf32>
    %268 = tpu.matmul %263, %251, %cst_114 {dimension_numbers = #tpu.dot_dimension_numbers<[1], [0], [0], [1], [0, 0, 1, 1], [], []>} : vector<1x32xbf16>, vector<32x32xbf16>, vector<1x32xf32> -> vector<1x32xf32>
    %269 = arith.addf %267, %268 : vector<1x32xf32>
    %270 = vector.extract_strided_slice %240 {offsets = [0, 0], sizes = [1, 32], strides = [1, 1]} : vector<12x32xf32> to vector<1x32xf32>
    %cst_115 = arith.constant dense<0.000000e+00> : vector<1x32xf32>
    %271 = tpu.matmul %263, %253, %cst_115 {dimension_numbers = #tpu.dot_dimension_numbers<[1], [0], [0], [1], [0, 0, 1, 1], [], []>} : vector<1x32xbf16>, vector<32x32xbf16>, vector<1x32xf32> -> vector<1x32xf32>
    %272 = arith.addf %270, %271 : vector<1x32xf32>
    %273 = vector.extract_strided_slice %247 {offsets = [0, 0], sizes = [1, 32], strides = [1, 1]} : vector<12x32xf32> to vector<1x32xf32>
    %cst_116 = arith.constant dense<0.000000e+00> : vector<1x32xf32>
    %274 = tpu.matmul %263, %255, %cst_116 {dimension_numbers = #tpu.dot_dimension_numbers<[1], [0], [0], [1], [0, 0, 1, 1], [], []>} : vector<1x32xbf16>, vector<32x32xbf16>, vector<1x32xf32> -> vector<1x32xf32>
    %275 = arith.addf %273, %274 : vector<1x32xf32>
    %276 = arith.negf %269 : vector<1x32xf32>
    %277 = math.exp %276 : vector<1x32xf32>
    %cst_117 = arith.constant 1.000000e+00 : f32
    %278 = vector.broadcast %cst_117 : f32 to vector<1x32xf32>
    %279 = arith.addf %278, %277 : vector<1x32xf32>
    %280 = arith.divf %278, %279 : vector<1x32xf32>
    %281 = arith.mulf %280, %260 : vector<1x32xf32>
    %282 = arith.negf %266 : vector<1x32xf32>
    %283 = math.exp %282 : vector<1x32xf32>
    %cst_118 = arith.constant 1.000000e+00 : f32
    %284 = vector.broadcast %cst_118 : f32 to vector<1x32xf32>
    %285 = arith.addf %284, %283 : vector<1x32xf32>
    %286 = arith.divf %284, %285 : vector<1x32xf32>
    %287 = math.tanh %272 : vector<1x32xf32>
    %288 = arith.mulf %286, %287 : vector<1x32xf32>
    %289 = arith.addf %281, %288 : vector<1x32xf32>
    %290 = arith.negf %275 : vector<1x32xf32>
    %291 = math.exp %290 : vector<1x32xf32>
    %cst_119 = arith.constant 1.000000e+00 : f32
    %292 = vector.broadcast %cst_119 : f32 to vector<1x32xf32>
    %293 = arith.addf %292, %291 : vector<1x32xf32>
    %294 = arith.divf %292, %293 : vector<1x32xf32>
    %295 = math.tanh %289 : vector<1x32xf32>
    %296 = arith.mulf %294, %295 : vector<1x32xf32>
    %297 = arith.truncf %296 : vector<1x32xf32> to vector<1x32xbf16>
    %cst_120 = arith.constant dense<0.000000e+00> : vector<1x512xf32>
    %298 = tpu.matmul %297, %256, %cst_120 {dimension_numbers = #tpu.dot_dimension_numbers<[1], [0], [0], [1], [0, 0, 1, 1], [], []>} : vector<1x32xbf16>, vector<32x512xbf16>, vector<1x512xf32> -> vector<1x512xf32>
    %299 = arith.truncf %261 : vector<1x128xf32> to vector<1x128xbf16>
    %cst_121 = arith.constant dense<0.000000e+00> : vector<1x512xf32>
    %300 = tpu.matmul %299, %257, %cst_121 {dimension_numbers = #tpu.dot_dimension_numbers<[1], [0], [0], [1], [0, 0, 1, 1], [], []>} : vector<1x128xbf16>, vector<128x512xbf16>, vector<1x512xf32> -> vector<1x512xf32>
    %301 = arith.addf %298, %300 : vector<1x512xf32>
    %302 = arith.addf %301, %258 : vector<1x512xf32>
    %303 = vector.extract_strided_slice %302 {offsets = [0, 0], sizes = [1, 128], strides = [1, 1]} : vector<1x512xf32> to vector<1x128xf32>
    %304 = arith.negf %303 : vector<1x128xf32>
    %305 = math.exp %304 : vector<1x128xf32>
    %cst_122 = arith.constant 1.000000e+00 : f32
    %306 = vector.broadcast %cst_122 : f32 to vector<1x128xf32>
    %307 = arith.addf %306, %305 : vector<1x128xf32>
    %308 = arith.divf %306, %307 : vector<1x128xf32>
    %309 = vector.extract_strided_slice %302 {offsets = [0, 128], sizes = [1, 128], strides = [1, 1]} : vector<1x512xf32> to vector<1x128xf32>
    %310 = arith.negf %309 : vector<1x128xf32>
    %311 = math.exp %310 : vector<1x128xf32>
    %cst_123 = arith.constant 1.000000e+00 : f32
    %312 = vector.broadcast %cst_123 : f32 to vector<1x128xf32>
    %313 = arith.addf %312, %311 : vector<1x128xf32>
    %314 = arith.divf %312, %313 : vector<1x128xf32>
    %315 = vector.extract_strided_slice %302 {offsets = [0, 256], sizes = [1, 128], strides = [1, 1]} : vector<1x512xf32> to vector<1x128xf32>
    %316 = math.tanh %315 : vector<1x128xf32>
    %317 = vector.extract_strided_slice %302 {offsets = [0, 384], sizes = [1, 128], strides = [1, 1]} : vector<1x512xf32> to vector<1x128xf32>
    %318 = arith.negf %317 : vector<1x128xf32>
    %319 = math.exp %318 : vector<1x128xf32>
    %cst_124 = arith.constant 1.000000e+00 : f32
    %320 = vector.broadcast %cst_124 : f32 to vector<1x128xf32>
    %321 = arith.addf %320, %319 : vector<1x128xf32>
    %322 = arith.divf %320, %321 : vector<1x128xf32>
    %323 = arith.mulf %314, %262 : vector<1x128xf32>
    %324 = arith.mulf %308, %316 : vector<1x128xf32>
    %325 = arith.addf %323, %324 : vector<1x128xf32>
    %326 = math.tanh %325 : vector<1x128xf32>
    %327 = arith.mulf %322, %326 : vector<1x128xf32>
    %328 = arith.truncf %296 : vector<1x32xf32> to vector<1x32xbf16>
    %329 = vector.extract_strided_slice %226 {offsets = [1, 0], sizes = [1, 32], strides = [1, 1]} : vector<12x32xf32> to vector<1x32xf32>
    %cst_125 = arith.constant dense<0.000000e+00> : vector<1x32xf32>
    %330 = tpu.matmul %328, %249, %cst_125 {dimension_numbers = #tpu.dot_dimension_numbers<[1], [0], [0], [1], [0, 0, 1, 1], [], []>} : vector<1x32xbf16>, vector<32x32xbf16>, vector<1x32xf32> -> vector<1x32xf32>
    %331 = arith.addf %329, %330 : vector<1x32xf32>
    %332 = vector.extract_strided_slice %233 {offsets = [1, 0], sizes = [1, 32], strides = [1, 1]} : vector<12x32xf32> to vector<1x32xf32>
    %cst_126 = arith.constant dense<0.000000e+00> : vector<1x32xf32>
    %333 = tpu.matmul %328, %251, %cst_126 {dimension_numbers = #tpu.dot_dimension_numbers<[1], [0], [0], [1], [0, 0, 1, 1], [], []>} : vector<1x32xbf16>, vector<32x32xbf16>, vector<1x32xf32> -> vector<1x32xf32>
    %334 = arith.addf %332, %333 : vector<1x32xf32>
    %335 = vector.extract_strided_slice %240 {offsets = [1, 0], sizes = [1, 32], strides = [1, 1]} : vector<12x32xf32> to vector<1x32xf32>
    %cst_127 = arith.constant dense<0.000000e+00> : vector<1x32xf32>
    %336 = tpu.matmul %328, %253, %cst_127 {dimension_numbers = #tpu.dot_dimension_numbers<[1], [0], [0], [1], [0, 0, 1, 1], [], []>} : vector<1x32xbf16>, vector<32x32xbf16>, vector<1x32xf32> -> vector<1x32xf32>
    %337 = arith.addf %335, %336 : vector<1x32xf32>
    %338 = vector.extract_strided_slice %247 {offsets = [1, 0], sizes = [1, 32], strides = [1, 1]} : vector<12x32xf32> to vector<1x32xf32>
    %cst_128 = arith.constant dense<0.000000e+00> : vector<1x32xf32>
    %339 = tpu.matmul %328, %255, %cst_128 {dimension_numbers = #tpu.dot_dimension_numbers<[1], [0], [0], [1], [0, 0, 1, 1], [], []>} : vector<1x32xbf16>, vector<32x32xbf16>, vector<1x32xf32> -> vector<1x32xf32>
    %340 = arith.addf %338, %339 : vector<1x32xf32>
    %341 = arith.negf %334 : vector<1x32xf32>
    %342 = math.exp %341 : vector<1x32xf32>
    %cst_129 = arith.constant 1.000000e+00 : f32
    %343 = vector.broadcast %cst_129 : f32 to vector<1x32xf32>
    %344 = arith.addf %343, %342 : vector<1x32xf32>
    %345 = arith.divf %343, %344 : vector<1x32xf32>
    %346 = arith.mulf %345, %289 : vector<1x32xf32>
    %347 = arith.negf %331 : vector<1x32xf32>
    %348 = math.exp %347 : vector<1x32xf32>
    %cst_130 = arith.constant 1.000000e+00 : f32
    %349 = vector.broadcast %cst_130 : f32 to vector<1x32xf32>
    %350 = arith.addf %349, %348 : vector<1x32xf32>
    %351 = arith.divf %349, %350 : vector<1x32xf32>
    %352 = math.tanh %337 : vector<1x32xf32>
    %353 = arith.mulf %351, %352 : vector<1x32xf32>
    %354 = arith.addf %346, %353 : vector<1x32xf32>
    %355 = arith.negf %340 : vector<1x32xf32>
    %356 = math.exp %355 : vector<1x32xf32>
    %cst_131 = arith.constant 1.000000e+00 : f32
    %357 = vector.broadcast %cst_131 : f32 to vector<1x32xf32>
    %358 = arith.addf %357, %356 : vector<1x32xf32>
    %359 = arith.divf %357, %358 : vector<1x32xf32>
    %360 = math.tanh %354 : vector<1x32xf32>
    %361 = arith.mulf %359, %360 : vector<1x32xf32>
    %362 = arith.truncf %361 : vector<1x32xf32> to vector<1x32xbf16>
    %cst_132 = arith.constant dense<0.000000e+00> : vector<1x512xf32>
    %363 = tpu.matmul %362, %256, %cst_132 {dimension_numbers = #tpu.dot_dimension_numbers<[1], [0], [0], [1], [0, 0, 1, 1], [], []>} : vector<1x32xbf16>, vector<32x512xbf16>, vector<1x512xf32> -> vector<1x512xf32>
    %364 = arith.truncf %327 : vector<1x128xf32> to vector<1x128xbf16>
    %cst_133 = arith.constant dense<0.000000e+00> : vector<1x512xf32>
    %365 = tpu.matmul %364, %257, %cst_133 {dimension_numbers = #tpu.dot_dimension_numbers<[1], [0], [0], [1], [0, 0, 1, 1], [], []>} : vector<1x128xbf16>, vector<128x512xbf16>, vector<1x512xf32> -> vector<1x512xf32>
    %366 = arith.addf %363, %365 : vector<1x512xf32>
    %367 = arith.addf %366, %258 : vector<1x512xf32>
    %368 = vector.extract_strided_slice %367 {offsets = [0, 0], sizes = [1, 128], strides = [1, 1]} : vector<1x512xf32> to vector<1x128xf32>
    %369 = arith.negf %368 : vector<1x128xf32>
    %370 = math.exp %369 : vector<1x128xf32>
    %cst_134 = arith.constant 1.000000e+00 : f32
    %371 = vector.broadcast %cst_134 : f32 to vector<1x128xf32>
    %372 = arith.addf %371, %370 : vector<1x128xf32>
    %373 = arith.divf %371, %372 : vector<1x128xf32>
    %374 = vector.extract_strided_slice %367 {offsets = [0, 128], sizes = [1, 128], strides = [1, 1]} : vector<1x512xf32> to vector<1x128xf32>
    %375 = arith.negf %374 : vector<1x128xf32>
    %376 = math.exp %375 : vector<1x128xf32>
    %cst_135 = arith.constant 1.000000e+00 : f32
    %377 = vector.broadcast %cst_135 : f32 to vector<1x128xf32>
    %378 = arith.addf %377, %376 : vector<1x128xf32>
    %379 = arith.divf %377, %378 : vector<1x128xf32>
    %380 = vector.extract_strided_slice %367 {offsets = [0, 256], sizes = [1, 128], strides = [1, 1]} : vector<1x512xf32> to vector<1x128xf32>
    %381 = math.tanh %380 : vector<1x128xf32>
    %382 = vector.extract_strided_slice %367 {offsets = [0, 384], sizes = [1, 128], strides = [1, 1]} : vector<1x512xf32> to vector<1x128xf32>
    %383 = arith.negf %382 : vector<1x128xf32>
    %384 = math.exp %383 : vector<1x128xf32>
    %cst_136 = arith.constant 1.000000e+00 : f32
    %385 = vector.broadcast %cst_136 : f32 to vector<1x128xf32>
    %386 = arith.addf %385, %384 : vector<1x128xf32>
    %387 = arith.divf %385, %386 : vector<1x128xf32>
    %388 = arith.mulf %379, %325 : vector<1x128xf32>
    %389 = arith.mulf %373, %381 : vector<1x128xf32>
    %390 = arith.addf %388, %389 : vector<1x128xf32>
    %391 = math.tanh %390 : vector<1x128xf32>
    %392 = arith.mulf %387, %391 : vector<1x128xf32>
    %393 = arith.truncf %361 : vector<1x32xf32> to vector<1x32xbf16>
    %394 = vector.extract_strided_slice %226 {offsets = [2, 0], sizes = [1, 32], strides = [1, 1]} : vector<12x32xf32> to vector<1x32xf32>
    %cst_137 = arith.constant dense<0.000000e+00> : vector<1x32xf32>
    %395 = tpu.matmul %393, %249, %cst_137 {dimension_numbers = #tpu.dot_dimension_numbers<[1], [0], [0], [1], [0, 0, 1, 1], [], []>} : vector<1x32xbf16>, vector<32x32xbf16>, vector<1x32xf32> -> vector<1x32xf32>
    %396 = arith.addf %394, %395 : vector<1x32xf32>
    %397 = vector.extract_strided_slice %233 {offsets = [2, 0], sizes = [1, 32], strides = [1, 1]} : vector<12x32xf32> to vector<1x32xf32>
    %cst_138 = arith.constant dense<0.000000e+00> : vector<1x32xf32>
    %398 = tpu.matmul %393, %251, %cst_138 {dimension_numbers = #tpu.dot_dimension_numbers<[1], [0], [0], [1], [0, 0, 1, 1], [], []>} : vector<1x32xbf16>, vector<32x32xbf16>, vector<1x32xf32> -> vector<1x32xf32>
    %399 = arith.addf %397, %398 : vector<1x32xf32>
    %400 = vector.extract_strided_slice %240 {offsets = [2, 0], sizes = [1, 32], strides = [1, 1]} : vector<12x32xf32> to vector<1x32xf32>
    %cst_139 = arith.constant dense<0.000000e+00> : vector<1x32xf32>
    %401 = tpu.matmul %393, %253, %cst_139 {dimension_numbers = #tpu.dot_dimension_numbers<[1], [0], [0], [1], [0, 0, 1, 1], [], []>} : vector<1x32xbf16>, vector<32x32xbf16>, vector<1x32xf32> -> vector<1x32xf32>
    %402 = arith.addf %400, %401 : vector<1x32xf32>
    %403 = vector.extract_strided_slice %247 {offsets = [2, 0], sizes = [1, 32], strides = [1, 1]} : vector<12x32xf32> to vector<1x32xf32>
    %cst_140 = arith.constant dense<0.000000e+00> : vector<1x32xf32>
    %404 = tpu.matmul %393, %255, %cst_140 {dimension_numbers = #tpu.dot_dimension_numbers<[1], [0], [0], [1], [0, 0, 1, 1], [], []>} : vector<1x32xbf16>, vector<32x32xbf16>, vector<1x32xf32> -> vector<1x32xf32>
    %405 = arith.addf %403, %404 : vector<1x32xf32>
    %406 = arith.negf %399 : vector<1x32xf32>
    %407 = math.exp %406 : vector<1x32xf32>
    %cst_141 = arith.constant 1.000000e+00 : f32
    %408 = vector.broadcast %cst_141 : f32 to vector<1x32xf32>
    %409 = arith.addf %408, %407 : vector<1x32xf32>
    %410 = arith.divf %408, %409 : vector<1x32xf32>
    %411 = arith.mulf %410, %354 : vector<1x32xf32>
    %412 = arith.negf %396 : vector<1x32xf32>
    %413 = math.exp %412 : vector<1x32xf32>
    %cst_142 = arith.constant 1.000000e+00 : f32
    %414 = vector.broadcast %cst_142 : f32 to vector<1x32xf32>
    %415 = arith.addf %414, %413 : vector<1x32xf32>
    %416 = arith.divf %414, %415 : vector<1x32xf32>
    %417 = math.tanh %402 : vector<1x32xf32>
    %418 = arith.mulf %416, %417 : vector<1x32xf32>
    %419 = arith.addf %411, %418 : vector<1x32xf32>
    %420 = arith.negf %405 : vector<1x32xf32>
    %421 = math.exp %420 : vector<1x32xf32>
    %cst_143 = arith.constant 1.000000e+00 : f32
    %422 = vector.broadcast %cst_143 : f32 to vector<1x32xf32>
    %423 = arith.addf %422, %421 : vector<1x32xf32>
    %424 = arith.divf %422, %423 : vector<1x32xf32>
    %425 = math.tanh %419 : vector<1x32xf32>
    %426 = arith.mulf %424, %425 : vector<1x32xf32>
    %427 = arith.truncf %426 : vector<1x32xf32> to vector<1x32xbf16>
    %cst_144 = arith.constant dense<0.000000e+00> : vector<1x512xf32>
    %428 = tpu.matmul %427, %256, %cst_144 {dimension_numbers = #tpu.dot_dimension_numbers<[1], [0], [0], [1], [0, 0, 1, 1], [], []>} : vector<1x32xbf16>, vector<32x512xbf16>, vector<1x512xf32> -> vector<1x512xf32>
    %429 = arith.truncf %392 : vector<1x128xf32> to vector<1x128xbf16>
    %cst_145 = arith.constant dense<0.000000e+00> : vector<1x512xf32>
    %430 = tpu.matmul %429, %257, %cst_145 {dimension_numbers = #tpu.dot_dimension_numbers<[1], [0], [0], [1], [0, 0, 1, 1], [], []>} : vector<1x128xbf16>, vector<128x512xbf16>, vector<1x512xf32> -> vector<1x512xf32>
    %431 = arith.addf %428, %430 : vector<1x512xf32>
    %432 = arith.addf %431, %258 : vector<1x512xf32>
    %433 = vector.extract_strided_slice %432 {offsets = [0, 0], sizes = [1, 128], strides = [1, 1]} : vector<1x512xf32> to vector<1x128xf32>
    %434 = arith.negf %433 : vector<1x128xf32>
    %435 = math.exp %434 : vector<1x128xf32>
    %cst_146 = arith.constant 1.000000e+00 : f32
    %436 = vector.broadcast %cst_146 : f32 to vector<1x128xf32>
    %437 = arith.addf %436, %435 : vector<1x128xf32>
    %438 = arith.divf %436, %437 : vector<1x128xf32>
    %439 = vector.extract_strided_slice %432 {offsets = [0, 128], sizes = [1, 128], strides = [1, 1]} : vector<1x512xf32> to vector<1x128xf32>
    %440 = arith.negf %439 : vector<1x128xf32>
    %441 = math.exp %440 : vector<1x128xf32>
    %cst_147 = arith.constant 1.000000e+00 : f32
    %442 = vector.broadcast %cst_147 : f32 to vector<1x128xf32>
    %443 = arith.addf %442, %441 : vector<1x128xf32>
    %444 = arith.divf %442, %443 : vector<1x128xf32>
    %445 = vector.extract_strided_slice %432 {offsets = [0, 256], sizes = [1, 128], strides = [1, 1]} : vector<1x512xf32> to vector<1x128xf32>
    %446 = math.tanh %445 : vector<1x128xf32>
    %447 = vector.extract_strided_slice %432 {offsets = [0, 384], sizes = [1, 128], strides = [1, 1]} : vector<1x512xf32> to vector<1x128xf32>
    %448 = arith.negf %447 : vector<1x128xf32>
    %449 = math.exp %448 : vector<1x128xf32>
    %cst_148 = arith.constant 1.000000e+00 : f32
    %450 = vector.broadcast %cst_148 : f32 to vector<1x128xf32>
    %451 = arith.addf %450, %449 : vector<1x128xf32>
    %452 = arith.divf %450, %451 : vector<1x128xf32>
    %453 = arith.mulf %444, %390 : vector<1x128xf32>
    %454 = arith.mulf %438, %446 : vector<1x128xf32>
    %455 = arith.addf %453, %454 : vector<1x128xf32>
    %456 = math.tanh %455 : vector<1x128xf32>
    %457 = arith.mulf %452, %456 : vector<1x128xf32>
    %458 = arith.truncf %426 : vector<1x32xf32> to vector<1x32xbf16>
    %459 = vector.extract_strided_slice %226 {offsets = [3, 0], sizes = [1, 32], strides = [1, 1]} : vector<12x32xf32> to vector<1x32xf32>
    %cst_149 = arith.constant dense<0.000000e+00> : vector<1x32xf32>
    %460 = tpu.matmul %458, %249, %cst_149 {dimension_numbers = #tpu.dot_dimension_numbers<[1], [0], [0], [1], [0, 0, 1, 1], [], []>} : vector<1x32xbf16>, vector<32x32xbf16>, vector<1x32xf32> -> vector<1x32xf32>
    %461 = arith.addf %459, %460 : vector<1x32xf32>
    %462 = vector.extract_strided_slice %233 {offsets = [3, 0], sizes = [1, 32], strides = [1, 1]} : vector<12x32xf32> to vector<1x32xf32>
    %cst_150 = arith.constant dense<0.000000e+00> : vector<1x32xf32>
    %463 = tpu.matmul %458, %251, %cst_150 {dimension_numbers = #tpu.dot_dimension_numbers<[1], [0], [0], [1], [0, 0, 1, 1], [], []>} : vector<1x32xbf16>, vector<32x32xbf16>, vector<1x32xf32> -> vector<1x32xf32>
    %464 = arith.addf %462, %463 : vector<1x32xf32>
    %465 = vector.extract_strided_slice %240 {offsets = [3, 0], sizes = [1, 32], strides = [1, 1]} : vector<12x32xf32> to vector<1x32xf32>
    %cst_151 = arith.constant dense<0.000000e+00> : vector<1x32xf32>
    %466 = tpu.matmul %458, %253, %cst_151 {dimension_numbers = #tpu.dot_dimension_numbers<[1], [0], [0], [1], [0, 0, 1, 1], [], []>} : vector<1x32xbf16>, vector<32x32xbf16>, vector<1x32xf32> -> vector<1x32xf32>
    %467 = arith.addf %465, %466 : vector<1x32xf32>
    %468 = vector.extract_strided_slice %247 {offsets = [3, 0], sizes = [1, 32], strides = [1, 1]} : vector<12x32xf32> to vector<1x32xf32>
    %cst_152 = arith.constant dense<0.000000e+00> : vector<1x32xf32>
    %469 = tpu.matmul %458, %255, %cst_152 {dimension_numbers = #tpu.dot_dimension_numbers<[1], [0], [0], [1], [0, 0, 1, 1], [], []>} : vector<1x32xbf16>, vector<32x32xbf16>, vector<1x32xf32> -> vector<1x32xf32>
    %470 = arith.addf %468, %469 : vector<1x32xf32>
    %471 = arith.negf %464 : vector<1x32xf32>
    %472 = math.exp %471 : vector<1x32xf32>
    %cst_153 = arith.constant 1.000000e+00 : f32
    %473 = vector.broadcast %cst_153 : f32 to vector<1x32xf32>
    %474 = arith.addf %473, %472 : vector<1x32xf32>
    %475 = arith.divf %473, %474 : vector<1x32xf32>
    %476 = arith.mulf %475, %419 : vector<1x32xf32>
    %477 = arith.negf %461 : vector<1x32xf32>
    %478 = math.exp %477 : vector<1x32xf32>
    %cst_154 = arith.constant 1.000000e+00 : f32
    %479 = vector.broadcast %cst_154 : f32 to vector<1x32xf32>
    %480 = arith.addf %479, %478 : vector<1x32xf32>
    %481 = arith.divf %479, %480 : vector<1x32xf32>
    %482 = math.tanh %467 : vector<1x32xf32>
    %483 = arith.mulf %481, %482 : vector<1x32xf32>
    %484 = arith.addf %476, %483 : vector<1x32xf32>
    %485 = arith.negf %470 : vector<1x32xf32>
    %486 = math.exp %485 : vector<1x32xf32>
    %cst_155 = arith.constant 1.000000e+00 : f32
    %487 = vector.broadcast %cst_155 : f32 to vector<1x32xf32>
    %488 = arith.addf %487, %486 : vector<1x32xf32>
    %489 = arith.divf %487, %488 : vector<1x32xf32>
    %490 = math.tanh %484 : vector<1x32xf32>
    %491 = arith.mulf %489, %490 : vector<1x32xf32>
    %492 = arith.truncf %491 : vector<1x32xf32> to vector<1x32xbf16>
    %cst_156 = arith.constant dense<0.000000e+00> : vector<1x512xf32>
    %493 = tpu.matmul %492, %256, %cst_156 {dimension_numbers = #tpu.dot_dimension_numbers<[1], [0], [0], [1], [0, 0, 1, 1], [], []>} : vector<1x32xbf16>, vector<32x512xbf16>, vector<1x512xf32> -> vector<1x512xf32>
    %494 = arith.truncf %457 : vector<1x128xf32> to vector<1x128xbf16>
    %cst_157 = arith.constant dense<0.000000e+00> : vector<1x512xf32>
    %495 = tpu.matmul %494, %257, %cst_157 {dimension_numbers = #tpu.dot_dimension_numbers<[1], [0], [0], [1], [0, 0, 1, 1], [], []>} : vector<1x128xbf16>, vector<128x512xbf16>, vector<1x512xf32> -> vector<1x512xf32>
    %496 = arith.addf %493, %495 : vector<1x512xf32>
    %497 = arith.addf %496, %258 : vector<1x512xf32>
    %498 = vector.extract_strided_slice %497 {offsets = [0, 0], sizes = [1, 128], strides = [1, 1]} : vector<1x512xf32> to vector<1x128xf32>
    %499 = arith.negf %498 : vector<1x128xf32>
    %500 = math.exp %499 : vector<1x128xf32>
    %cst_158 = arith.constant 1.000000e+00 : f32
    %501 = vector.broadcast %cst_158 : f32 to vector<1x128xf32>
    %502 = arith.addf %501, %500 : vector<1x128xf32>
    %503 = arith.divf %501, %502 : vector<1x128xf32>
    %504 = vector.extract_strided_slice %497 {offsets = [0, 128], sizes = [1, 128], strides = [1, 1]} : vector<1x512xf32> to vector<1x128xf32>
    %505 = arith.negf %504 : vector<1x128xf32>
    %506 = math.exp %505 : vector<1x128xf32>
    %cst_159 = arith.constant 1.000000e+00 : f32
    %507 = vector.broadcast %cst_159 : f32 to vector<1x128xf32>
    %508 = arith.addf %507, %506 : vector<1x128xf32>
    %509 = arith.divf %507, %508 : vector<1x128xf32>
    %510 = vector.extract_strided_slice %497 {offsets = [0, 256], sizes = [1, 128], strides = [1, 1]} : vector<1x512xf32> to vector<1x128xf32>
    %511 = math.tanh %510 : vector<1x128xf32>
    %512 = vector.extract_strided_slice %497 {offsets = [0, 384], sizes = [1, 128], strides = [1, 1]} : vector<1x512xf32> to vector<1x128xf32>
    %513 = arith.negf %512 : vector<1x128xf32>
    %514 = math.exp %513 : vector<1x128xf32>
    %cst_160 = arith.constant 1.000000e+00 : f32
    %515 = vector.broadcast %cst_160 : f32 to vector<1x128xf32>
    %516 = arith.addf %515, %514 : vector<1x128xf32>
    %517 = arith.divf %515, %516 : vector<1x128xf32>
    %518 = arith.mulf %509, %455 : vector<1x128xf32>
    %519 = arith.mulf %503, %511 : vector<1x128xf32>
    %520 = arith.addf %518, %519 : vector<1x128xf32>
    %521 = math.tanh %520 : vector<1x128xf32>
    %522 = arith.mulf %517, %521 : vector<1x128xf32>
    %523 = arith.truncf %491 : vector<1x32xf32> to vector<1x32xbf16>
    %524 = vector.extract_strided_slice %226 {offsets = [4, 0], sizes = [1, 32], strides = [1, 1]} : vector<12x32xf32> to vector<1x32xf32>
    %cst_161 = arith.constant dense<0.000000e+00> : vector<1x32xf32>
    %525 = tpu.matmul %523, %249, %cst_161 {dimension_numbers = #tpu.dot_dimension_numbers<[1], [0], [0], [1], [0, 0, 1, 1], [], []>} : vector<1x32xbf16>, vector<32x32xbf16>, vector<1x32xf32> -> vector<1x32xf32>
    %526 = arith.addf %524, %525 : vector<1x32xf32>
    %527 = vector.extract_strided_slice %233 {offsets = [4, 0], sizes = [1, 32], strides = [1, 1]} : vector<12x32xf32> to vector<1x32xf32>
    %cst_162 = arith.constant dense<0.000000e+00> : vector<1x32xf32>
    %528 = tpu.matmul %523, %251, %cst_162 {dimension_numbers = #tpu.dot_dimension_numbers<[1], [0], [0], [1], [0, 0, 1, 1], [], []>} : vector<1x32xbf16>, vector<32x32xbf16>, vector<1x32xf32> -> vector<1x32xf32>
    %529 = arith.addf %527, %528 : vector<1x32xf32>
    %530 = vector.extract_strided_slice %240 {offsets = [4, 0], sizes = [1, 32], strides = [1, 1]} : vector<12x32xf32> to vector<1x32xf32>
    %cst_163 = arith.constant dense<0.000000e+00> : vector<1x32xf32>
    %531 = tpu.matmul %523, %253, %cst_163 {dimension_numbers = #tpu.dot_dimension_numbers<[1], [0], [0], [1], [0, 0, 1, 1], [], []>} : vector<1x32xbf16>, vector<32x32xbf16>, vector<1x32xf32> -> vector<1x32xf32>
    %532 = arith.addf %530, %531 : vector<1x32xf32>
    %533 = vector.extract_strided_slice %247 {offsets = [4, 0], sizes = [1, 32], strides = [1, 1]} : vector<12x32xf32> to vector<1x32xf32>
    %cst_164 = arith.constant dense<0.000000e+00> : vector<1x32xf32>
    %534 = tpu.matmul %523, %255, %cst_164 {dimension_numbers = #tpu.dot_dimension_numbers<[1], [0], [0], [1], [0, 0, 1, 1], [], []>} : vector<1x32xbf16>, vector<32x32xbf16>, vector<1x32xf32> -> vector<1x32xf32>
    %535 = arith.addf %533, %534 : vector<1x32xf32>
    %536 = arith.negf %529 : vector<1x32xf32>
    %537 = math.exp %536 : vector<1x32xf32>
    %cst_165 = arith.constant 1.000000e+00 : f32
    %538 = vector.broadcast %cst_165 : f32 to vector<1x32xf32>
    %539 = arith.addf %538, %537 : vector<1x32xf32>
    %540 = arith.divf %538, %539 : vector<1x32xf32>
    %541 = arith.mulf %540, %484 : vector<1x32xf32>
    %542 = arith.negf %526 : vector<1x32xf32>
    %543 = math.exp %542 : vector<1x32xf32>
    %cst_166 = arith.constant 1.000000e+00 : f32
    %544 = vector.broadcast %cst_166 : f32 to vector<1x32xf32>
    %545 = arith.addf %544, %543 : vector<1x32xf32>
    %546 = arith.divf %544, %545 : vector<1x32xf32>
    %547 = math.tanh %532 : vector<1x32xf32>
    %548 = arith.mulf %546, %547 : vector<1x32xf32>
    %549 = arith.addf %541, %548 : vector<1x32xf32>
    %550 = arith.negf %535 : vector<1x32xf32>
    %551 = math.exp %550 : vector<1x32xf32>
    %cst_167 = arith.constant 1.000000e+00 : f32
    %552 = vector.broadcast %cst_167 : f32 to vector<1x32xf32>
    %553 = arith.addf %552, %551 : vector<1x32xf32>
    %554 = arith.divf %552, %553 : vector<1x32xf32>
    %555 = math.tanh %549 : vector<1x32xf32>
    %556 = arith.mulf %554, %555 : vector<1x32xf32>
    %557 = arith.truncf %556 : vector<1x32xf32> to vector<1x32xbf16>
    %cst_168 = arith.constant dense<0.000000e+00> : vector<1x512xf32>
    %558 = tpu.matmul %557, %256, %cst_168 {dimension_numbers = #tpu.dot_dimension_numbers<[1], [0], [0], [1], [0, 0, 1, 1], [], []>} : vector<1x32xbf16>, vector<32x512xbf16>, vector<1x512xf32> -> vector<1x512xf32>
    %559 = arith.truncf %522 : vector<1x128xf32> to vector<1x128xbf16>
    %cst_169 = arith.constant dense<0.000000e+00> : vector<1x512xf32>
    %560 = tpu.matmul %559, %257, %cst_169 {dimension_numbers = #tpu.dot_dimension_numbers<[1], [0], [0], [1], [0, 0, 1, 1], [], []>} : vector<1x128xbf16>, vector<128x512xbf16>, vector<1x512xf32> -> vector<1x512xf32>
    %561 = arith.addf %558, %560 : vector<1x512xf32>
    %562 = arith.addf %561, %258 : vector<1x512xf32>
    %563 = vector.extract_strided_slice %562 {offsets = [0, 0], sizes = [1, 128], strides = [1, 1]} : vector<1x512xf32> to vector<1x128xf32>
    %564 = arith.negf %563 : vector<1x128xf32>
    %565 = math.exp %564 : vector<1x128xf32>
    %cst_170 = arith.constant 1.000000e+00 : f32
    %566 = vector.broadcast %cst_170 : f32 to vector<1x128xf32>
    %567 = arith.addf %566, %565 : vector<1x128xf32>
    %568 = arith.divf %566, %567 : vector<1x128xf32>
    %569 = vector.extract_strided_slice %562 {offsets = [0, 128], sizes = [1, 128], strides = [1, 1]} : vector<1x512xf32> to vector<1x128xf32>
    %570 = arith.negf %569 : vector<1x128xf32>
    %571 = math.exp %570 : vector<1x128xf32>
    %cst_171 = arith.constant 1.000000e+00 : f32
    %572 = vector.broadcast %cst_171 : f32 to vector<1x128xf32>
    %573 = arith.addf %572, %571 : vector<1x128xf32>
    %574 = arith.divf %572, %573 : vector<1x128xf32>
    %575 = vector.extract_strided_slice %562 {offsets = [0, 256], sizes = [1, 128], strides = [1, 1]} : vector<1x512xf32> to vector<1x128xf32>
    %576 = math.tanh %575 : vector<1x128xf32>
    %577 = vector.extract_strided_slice %562 {offsets = [0, 384], sizes = [1, 128], strides = [1, 1]} : vector<1x512xf32> to vector<1x128xf32>
    %578 = arith.negf %577 : vector<1x128xf32>
    %579 = math.exp %578 : vector<1x128xf32>
    %cst_172 = arith.constant 1.000000e+00 : f32
    %580 = vector.broadcast %cst_172 : f32 to vector<1x128xf32>
    %581 = arith.addf %580, %579 : vector<1x128xf32>
    %582 = arith.divf %580, %581 : vector<1x128xf32>
    %583 = arith.mulf %574, %520 : vector<1x128xf32>
    %584 = arith.mulf %568, %576 : vector<1x128xf32>
    %585 = arith.addf %583, %584 : vector<1x128xf32>
    %586 = math.tanh %585 : vector<1x128xf32>
    %587 = arith.mulf %582, %586 : vector<1x128xf32>
    %588 = arith.truncf %556 : vector<1x32xf32> to vector<1x32xbf16>
    %589 = vector.extract_strided_slice %226 {offsets = [5, 0], sizes = [1, 32], strides = [1, 1]} : vector<12x32xf32> to vector<1x32xf32>
    %cst_173 = arith.constant dense<0.000000e+00> : vector<1x32xf32>
    %590 = tpu.matmul %588, %249, %cst_173 {dimension_numbers = #tpu.dot_dimension_numbers<[1], [0], [0], [1], [0, 0, 1, 1], [], []>} : vector<1x32xbf16>, vector<32x32xbf16>, vector<1x32xf32> -> vector<1x32xf32>
    %591 = arith.addf %589, %590 : vector<1x32xf32>
    %592 = vector.extract_strided_slice %233 {offsets = [5, 0], sizes = [1, 32], strides = [1, 1]} : vector<12x32xf32> to vector<1x32xf32>
    %cst_174 = arith.constant dense<0.000000e+00> : vector<1x32xf32>
    %593 = tpu.matmul %588, %251, %cst_174 {dimension_numbers = #tpu.dot_dimension_numbers<[1], [0], [0], [1], [0, 0, 1, 1], [], []>} : vector<1x32xbf16>, vector<32x32xbf16>, vector<1x32xf32> -> vector<1x32xf32>
    %594 = arith.addf %592, %593 : vector<1x32xf32>
    %595 = vector.extract_strided_slice %240 {offsets = [5, 0], sizes = [1, 32], strides = [1, 1]} : vector<12x32xf32> to vector<1x32xf32>
    %cst_175 = arith.constant dense<0.000000e+00> : vector<1x32xf32>
    %596 = tpu.matmul %588, %253, %cst_175 {dimension_numbers = #tpu.dot_dimension_numbers<[1], [0], [0], [1], [0, 0, 1, 1], [], []>} : vector<1x32xbf16>, vector<32x32xbf16>, vector<1x32xf32> -> vector<1x32xf32>
    %597 = arith.addf %595, %596 : vector<1x32xf32>
    %598 = vector.extract_strided_slice %247 {offsets = [5, 0], sizes = [1, 32], strides = [1, 1]} : vector<12x32xf32> to vector<1x32xf32>
    %cst_176 = arith.constant dense<0.000000e+00> : vector<1x32xf32>
    %599 = tpu.matmul %588, %255, %cst_176 {dimension_numbers = #tpu.dot_dimension_numbers<[1], [0], [0], [1], [0, 0, 1, 1], [], []>} : vector<1x32xbf16>, vector<32x32xbf16>, vector<1x32xf32> -> vector<1x32xf32>
    %600 = arith.addf %598, %599 : vector<1x32xf32>
    %601 = arith.negf %594 : vector<1x32xf32>
    %602 = math.exp %601 : vector<1x32xf32>
    %cst_177 = arith.constant 1.000000e+00 : f32
    %603 = vector.broadcast %cst_177 : f32 to vector<1x32xf32>
    %604 = arith.addf %603, %602 : vector<1x32xf32>
    %605 = arith.divf %603, %604 : vector<1x32xf32>
    %606 = arith.mulf %605, %549 : vector<1x32xf32>
    %607 = arith.negf %591 : vector<1x32xf32>
    %608 = math.exp %607 : vector<1x32xf32>
    %cst_178 = arith.constant 1.000000e+00 : f32
    %609 = vector.broadcast %cst_178 : f32 to vector<1x32xf32>
    %610 = arith.addf %609, %608 : vector<1x32xf32>
    %611 = arith.divf %609, %610 : vector<1x32xf32>
    %612 = math.tanh %597 : vector<1x32xf32>
    %613 = arith.mulf %611, %612 : vector<1x32xf32>
    %614 = arith.addf %606, %613 : vector<1x32xf32>
    %615 = arith.negf %600 : vector<1x32xf32>
    %616 = math.exp %615 : vector<1x32xf32>
    %cst_179 = arith.constant 1.000000e+00 : f32
    %617 = vector.broadcast %cst_179 : f32 to vector<1x32xf32>
    %618 = arith.addf %617, %616 : vector<1x32xf32>
    %619 = arith.divf %617, %618 : vector<1x32xf32>
    %620 = math.tanh %614 : vector<1x32xf32>
    %621 = arith.mulf %619, %620 : vector<1x32xf32>
    %622 = arith.truncf %621 : vector<1x32xf32> to vector<1x32xbf16>
    %cst_180 = arith.constant dense<0.000000e+00> : vector<1x512xf32>
    %623 = tpu.matmul %622, %256, %cst_180 {dimension_numbers = #tpu.dot_dimension_numbers<[1], [0], [0], [1], [0, 0, 1, 1], [], []>} : vector<1x32xbf16>, vector<32x512xbf16>, vector<1x512xf32> -> vector<1x512xf32>
    %624 = arith.truncf %587 : vector<1x128xf32> to vector<1x128xbf16>
    %cst_181 = arith.constant dense<0.000000e+00> : vector<1x512xf32>
    %625 = tpu.matmul %624, %257, %cst_181 {dimension_numbers = #tpu.dot_dimension_numbers<[1], [0], [0], [1], [0, 0, 1, 1], [], []>} : vector<1x128xbf16>, vector<128x512xbf16>, vector<1x512xf32> -> vector<1x512xf32>
    %626 = arith.addf %623, %625 : vector<1x512xf32>
    %627 = arith.addf %626, %258 : vector<1x512xf32>
    %628 = vector.extract_strided_slice %627 {offsets = [0, 0], sizes = [1, 128], strides = [1, 1]} : vector<1x512xf32> to vector<1x128xf32>
    %629 = arith.negf %628 : vector<1x128xf32>
    %630 = math.exp %629 : vector<1x128xf32>
    %cst_182 = arith.constant 1.000000e+00 : f32
    %631 = vector.broadcast %cst_182 : f32 to vector<1x128xf32>
    %632 = arith.addf %631, %630 : vector<1x128xf32>
    %633 = arith.divf %631, %632 : vector<1x128xf32>
    %634 = vector.extract_strided_slice %627 {offsets = [0, 128], sizes = [1, 128], strides = [1, 1]} : vector<1x512xf32> to vector<1x128xf32>
    %635 = arith.negf %634 : vector<1x128xf32>
    %636 = math.exp %635 : vector<1x128xf32>
    %cst_183 = arith.constant 1.000000e+00 : f32
    %637 = vector.broadcast %cst_183 : f32 to vector<1x128xf32>
    %638 = arith.addf %637, %636 : vector<1x128xf32>
    %639 = arith.divf %637, %638 : vector<1x128xf32>
    %640 = vector.extract_strided_slice %627 {offsets = [0, 256], sizes = [1, 128], strides = [1, 1]} : vector<1x512xf32> to vector<1x128xf32>
    %641 = math.tanh %640 : vector<1x128xf32>
    %642 = vector.extract_strided_slice %627 {offsets = [0, 384], sizes = [1, 128], strides = [1, 1]} : vector<1x512xf32> to vector<1x128xf32>
    %643 = arith.negf %642 : vector<1x128xf32>
    %644 = math.exp %643 : vector<1x128xf32>
    %cst_184 = arith.constant 1.000000e+00 : f32
    %645 = vector.broadcast %cst_184 : f32 to vector<1x128xf32>
    %646 = arith.addf %645, %644 : vector<1x128xf32>
    %647 = arith.divf %645, %646 : vector<1x128xf32>
    %648 = arith.mulf %639, %585 : vector<1x128xf32>
    %649 = arith.mulf %633, %641 : vector<1x128xf32>
    %650 = arith.addf %648, %649 : vector<1x128xf32>
    %651 = math.tanh %650 : vector<1x128xf32>
    %652 = arith.mulf %647, %651 : vector<1x128xf32>
    %653 = arith.truncf %621 : vector<1x32xf32> to vector<1x32xbf16>
    %654 = vector.extract_strided_slice %226 {offsets = [6, 0], sizes = [1, 32], strides = [1, 1]} : vector<12x32xf32> to vector<1x32xf32>
    %cst_185 = arith.constant dense<0.000000e+00> : vector<1x32xf32>
    %655 = tpu.matmul %653, %249, %cst_185 {dimension_numbers = #tpu.dot_dimension_numbers<[1], [0], [0], [1], [0, 0, 1, 1], [], []>} : vector<1x32xbf16>, vector<32x32xbf16>, vector<1x32xf32> -> vector<1x32xf32>
    %656 = arith.addf %654, %655 : vector<1x32xf32>
    %657 = vector.extract_strided_slice %233 {offsets = [6, 0], sizes = [1, 32], strides = [1, 1]} : vector<12x32xf32> to vector<1x32xf32>
    %cst_186 = arith.constant dense<0.000000e+00> : vector<1x32xf32>
    %658 = tpu.matmul %653, %251, %cst_186 {dimension_numbers = #tpu.dot_dimension_numbers<[1], [0], [0], [1], [0, 0, 1, 1], [], []>} : vector<1x32xbf16>, vector<32x32xbf16>, vector<1x32xf32> -> vector<1x32xf32>
    %659 = arith.addf %657, %658 : vector<1x32xf32>
    %660 = vector.extract_strided_slice %240 {offsets = [6, 0], sizes = [1, 32], strides = [1, 1]} : vector<12x32xf32> to vector<1x32xf32>
    %cst_187 = arith.constant dense<0.000000e+00> : vector<1x32xf32>
    %661 = tpu.matmul %653, %253, %cst_187 {dimension_numbers = #tpu.dot_dimension_numbers<[1], [0], [0], [1], [0, 0, 1, 1], [], []>} : vector<1x32xbf16>, vector<32x32xbf16>, vector<1x32xf32> -> vector<1x32xf32>
    %662 = arith.addf %660, %661 : vector<1x32xf32>
    %663 = vector.extract_strided_slice %247 {offsets = [6, 0], sizes = [1, 32], strides = [1, 1]} : vector<12x32xf32> to vector<1x32xf32>
    %cst_188 = arith.constant dense<0.000000e+00> : vector<1x32xf32>
    %664 = tpu.matmul %653, %255, %cst_188 {dimension_numbers = #tpu.dot_dimension_numbers<[1], [0], [0], [1], [0, 0, 1, 1], [], []>} : vector<1x32xbf16>, vector<32x32xbf16>, vector<1x32xf32> -> vector<1x32xf32>
    %665 = arith.addf %663, %664 : vector<1x32xf32>
    %666 = arith.negf %659 : vector<1x32xf32>
    %667 = math.exp %666 : vector<1x32xf32>
    %cst_189 = arith.constant 1.000000e+00 : f32
    %668 = vector.broadcast %cst_189 : f32 to vector<1x32xf32>
    %669 = arith.addf %668, %667 : vector<1x32xf32>
    %670 = arith.divf %668, %669 : vector<1x32xf32>
    %671 = arith.mulf %670, %614 : vector<1x32xf32>
    %672 = arith.negf %656 : vector<1x32xf32>
    %673 = math.exp %672 : vector<1x32xf32>
    %cst_190 = arith.constant 1.000000e+00 : f32
    %674 = vector.broadcast %cst_190 : f32 to vector<1x32xf32>
    %675 = arith.addf %674, %673 : vector<1x32xf32>
    %676 = arith.divf %674, %675 : vector<1x32xf32>
    %677 = math.tanh %662 : vector<1x32xf32>
    %678 = arith.mulf %676, %677 : vector<1x32xf32>
    %679 = arith.addf %671, %678 : vector<1x32xf32>
    %680 = arith.negf %665 : vector<1x32xf32>
    %681 = math.exp %680 : vector<1x32xf32>
    %cst_191 = arith.constant 1.000000e+00 : f32
    %682 = vector.broadcast %cst_191 : f32 to vector<1x32xf32>
    %683 = arith.addf %682, %681 : vector<1x32xf32>
    %684 = arith.divf %682, %683 : vector<1x32xf32>
    %685 = math.tanh %679 : vector<1x32xf32>
    %686 = arith.mulf %684, %685 : vector<1x32xf32>
    %687 = arith.truncf %686 : vector<1x32xf32> to vector<1x32xbf16>
    %cst_192 = arith.constant dense<0.000000e+00> : vector<1x512xf32>
    %688 = tpu.matmul %687, %256, %cst_192 {dimension_numbers = #tpu.dot_dimension_numbers<[1], [0], [0], [1], [0, 0, 1, 1], [], []>} : vector<1x32xbf16>, vector<32x512xbf16>, vector<1x512xf32> -> vector<1x512xf32>
    %689 = arith.truncf %652 : vector<1x128xf32> to vector<1x128xbf16>
    %cst_193 = arith.constant dense<0.000000e+00> : vector<1x512xf32>
    %690 = tpu.matmul %689, %257, %cst_193 {dimension_numbers = #tpu.dot_dimension_numbers<[1], [0], [0], [1], [0, 0, 1, 1], [], []>} : vector<1x128xbf16>, vector<128x512xbf16>, vector<1x512xf32> -> vector<1x512xf32>
    %691 = arith.addf %688, %690 : vector<1x512xf32>
    %692 = arith.addf %691, %258 : vector<1x512xf32>
    %693 = vector.extract_strided_slice %692 {offsets = [0, 0], sizes = [1, 128], strides = [1, 1]} : vector<1x512xf32> to vector<1x128xf32>
    %694 = arith.negf %693 : vector<1x128xf32>
    %695 = math.exp %694 : vector<1x128xf32>
    %cst_194 = arith.constant 1.000000e+00 : f32
    %696 = vector.broadcast %cst_194 : f32 to vector<1x128xf32>
    %697 = arith.addf %696, %695 : vector<1x128xf32>
    %698 = arith.divf %696, %697 : vector<1x128xf32>
    %699 = vector.extract_strided_slice %692 {offsets = [0, 128], sizes = [1, 128], strides = [1, 1]} : vector<1x512xf32> to vector<1x128xf32>
    %700 = arith.negf %699 : vector<1x128xf32>
    %701 = math.exp %700 : vector<1x128xf32>
    %cst_195 = arith.constant 1.000000e+00 : f32
    %702 = vector.broadcast %cst_195 : f32 to vector<1x128xf32>
    %703 = arith.addf %702, %701 : vector<1x128xf32>
    %704 = arith.divf %702, %703 : vector<1x128xf32>
    %705 = vector.extract_strided_slice %692 {offsets = [0, 256], sizes = [1, 128], strides = [1, 1]} : vector<1x512xf32> to vector<1x128xf32>
    %706 = math.tanh %705 : vector<1x128xf32>
    %707 = vector.extract_strided_slice %692 {offsets = [0, 384], sizes = [1, 128], strides = [1, 1]} : vector<1x512xf32> to vector<1x128xf32>
    %708 = arith.negf %707 : vector<1x128xf32>
    %709 = math.exp %708 : vector<1x128xf32>
    %cst_196 = arith.constant 1.000000e+00 : f32
    %710 = vector.broadcast %cst_196 : f32 to vector<1x128xf32>
    %711 = arith.addf %710, %709 : vector<1x128xf32>
    %712 = arith.divf %710, %711 : vector<1x128xf32>
    %713 = arith.mulf %704, %650 : vector<1x128xf32>
    %714 = arith.mulf %698, %706 : vector<1x128xf32>
    %715 = arith.addf %713, %714 : vector<1x128xf32>
    %716 = math.tanh %715 : vector<1x128xf32>
    %717 = arith.mulf %712, %716 : vector<1x128xf32>
    %718 = arith.truncf %686 : vector<1x32xf32> to vector<1x32xbf16>
    %719 = vector.extract_strided_slice %226 {offsets = [7, 0], sizes = [1, 32], strides = [1, 1]} : vector<12x32xf32> to vector<1x32xf32>
    %cst_197 = arith.constant dense<0.000000e+00> : vector<1x32xf32>
    %720 = tpu.matmul %718, %249, %cst_197 {dimension_numbers = #tpu.dot_dimension_numbers<[1], [0], [0], [1], [0, 0, 1, 1], [], []>} : vector<1x32xbf16>, vector<32x32xbf16>, vector<1x32xf32> -> vector<1x32xf32>
    %721 = arith.addf %719, %720 : vector<1x32xf32>
    %722 = vector.extract_strided_slice %233 {offsets = [7, 0], sizes = [1, 32], strides = [1, 1]} : vector<12x32xf32> to vector<1x32xf32>
    %cst_198 = arith.constant dense<0.000000e+00> : vector<1x32xf32>
    %723 = tpu.matmul %718, %251, %cst_198 {dimension_numbers = #tpu.dot_dimension_numbers<[1], [0], [0], [1], [0, 0, 1, 1], [], []>} : vector<1x32xbf16>, vector<32x32xbf16>, vector<1x32xf32> -> vector<1x32xf32>
    %724 = arith.addf %722, %723 : vector<1x32xf32>
    %725 = vector.extract_strided_slice %240 {offsets = [7, 0], sizes = [1, 32], strides = [1, 1]} : vector<12x32xf32> to vector<1x32xf32>
    %cst_199 = arith.constant dense<0.000000e+00> : vector<1x32xf32>
    %726 = tpu.matmul %718, %253, %cst_199 {dimension_numbers = #tpu.dot_dimension_numbers<[1], [0], [0], [1], [0, 0, 1, 1], [], []>} : vector<1x32xbf16>, vector<32x32xbf16>, vector<1x32xf32> -> vector<1x32xf32>
    %727 = arith.addf %725, %726 : vector<1x32xf32>
    %728 = vector.extract_strided_slice %247 {offsets = [7, 0], sizes = [1, 32], strides = [1, 1]} : vector<12x32xf32> to vector<1x32xf32>
    %cst_200 = arith.constant dense<0.000000e+00> : vector<1x32xf32>
    %729 = tpu.matmul %718, %255, %cst_200 {dimension_numbers = #tpu.dot_dimension_numbers<[1], [0], [0], [1], [0, 0, 1, 1], [], []>} : vector<1x32xbf16>, vector<32x32xbf16>, vector<1x32xf32> -> vector<1x32xf32>
    %730 = arith.addf %728, %729 : vector<1x32xf32>
    %731 = arith.negf %724 : vector<1x32xf32>
    %732 = math.exp %731 : vector<1x32xf32>
    %cst_201 = arith.constant 1.000000e+00 : f32
    %733 = vector.broadcast %cst_201 : f32 to vector<1x32xf32>
    %734 = arith.addf %733, %732 : vector<1x32xf32>
    %735 = arith.divf %733, %734 : vector<1x32xf32>
    %736 = arith.mulf %735, %679 : vector<1x32xf32>
    %737 = arith.negf %721 : vector<1x32xf32>
    %738 = math.exp %737 : vector<1x32xf32>
    %cst_202 = arith.constant 1.000000e+00 : f32
    %739 = vector.broadcast %cst_202 : f32 to vector<1x32xf32>
    %740 = arith.addf %739, %738 : vector<1x32xf32>
    %741 = arith.divf %739, %740 : vector<1x32xf32>
    %742 = math.tanh %727 : vector<1x32xf32>
    %743 = arith.mulf %741, %742 : vector<1x32xf32>
    %744 = arith.addf %736, %743 : vector<1x32xf32>
    %745 = arith.negf %730 : vector<1x32xf32>
    %746 = math.exp %745 : vector<1x32xf32>
    %cst_203 = arith.constant 1.000000e+00 : f32
    %747 = vector.broadcast %cst_203 : f32 to vector<1x32xf32>
    %748 = arith.addf %747, %746 : vector<1x32xf32>
    %749 = arith.divf %747, %748 : vector<1x32xf32>
    %750 = math.tanh %744 : vector<1x32xf32>
    %751 = arith.mulf %749, %750 : vector<1x32xf32>
    %752 = arith.truncf %751 : vector<1x32xf32> to vector<1x32xbf16>
    %cst_204 = arith.constant dense<0.000000e+00> : vector<1x512xf32>
    %753 = tpu.matmul %752, %256, %cst_204 {dimension_numbers = #tpu.dot_dimension_numbers<[1], [0], [0], [1], [0, 0, 1, 1], [], []>} : vector<1x32xbf16>, vector<32x512xbf16>, vector<1x512xf32> -> vector<1x512xf32>
    %754 = arith.truncf %717 : vector<1x128xf32> to vector<1x128xbf16>
    %cst_205 = arith.constant dense<0.000000e+00> : vector<1x512xf32>
    %755 = tpu.matmul %754, %257, %cst_205 {dimension_numbers = #tpu.dot_dimension_numbers<[1], [0], [0], [1], [0, 0, 1, 1], [], []>} : vector<1x128xbf16>, vector<128x512xbf16>, vector<1x512xf32> -> vector<1x512xf32>
    %756 = arith.addf %753, %755 : vector<1x512xf32>
    %757 = arith.addf %756, %258 : vector<1x512xf32>
    %758 = vector.extract_strided_slice %757 {offsets = [0, 0], sizes = [1, 128], strides = [1, 1]} : vector<1x512xf32> to vector<1x128xf32>
    %759 = arith.negf %758 : vector<1x128xf32>
    %760 = math.exp %759 : vector<1x128xf32>
    %cst_206 = arith.constant 1.000000e+00 : f32
    %761 = vector.broadcast %cst_206 : f32 to vector<1x128xf32>
    %762 = arith.addf %761, %760 : vector<1x128xf32>
    %763 = arith.divf %761, %762 : vector<1x128xf32>
    %764 = vector.extract_strided_slice %757 {offsets = [0, 128], sizes = [1, 128], strides = [1, 1]} : vector<1x512xf32> to vector<1x128xf32>
    %765 = arith.negf %764 : vector<1x128xf32>
    %766 = math.exp %765 : vector<1x128xf32>
    %cst_207 = arith.constant 1.000000e+00 : f32
    %767 = vector.broadcast %cst_207 : f32 to vector<1x128xf32>
    %768 = arith.addf %767, %766 : vector<1x128xf32>
    %769 = arith.divf %767, %768 : vector<1x128xf32>
    %770 = vector.extract_strided_slice %757 {offsets = [0, 256], sizes = [1, 128], strides = [1, 1]} : vector<1x512xf32> to vector<1x128xf32>
    %771 = math.tanh %770 : vector<1x128xf32>
    %772 = vector.extract_strided_slice %757 {offsets = [0, 384], sizes = [1, 128], strides = [1, 1]} : vector<1x512xf32> to vector<1x128xf32>
    %773 = arith.negf %772 : vector<1x128xf32>
    %774 = math.exp %773 : vector<1x128xf32>
    %cst_208 = arith.constant 1.000000e+00 : f32
    %775 = vector.broadcast %cst_208 : f32 to vector<1x128xf32>
    %776 = arith.addf %775, %774 : vector<1x128xf32>
    %777 = arith.divf %775, %776 : vector<1x128xf32>
    %778 = arith.mulf %769, %715 : vector<1x128xf32>
    %779 = arith.mulf %763, %771 : vector<1x128xf32>
    %780 = arith.addf %778, %779 : vector<1x128xf32>
    %781 = math.tanh %780 : vector<1x128xf32>
    %782 = arith.mulf %777, %781 : vector<1x128xf32>
    %783 = arith.truncf %751 : vector<1x32xf32> to vector<1x32xbf16>
    %784 = vector.extract_strided_slice %226 {offsets = [8, 0], sizes = [1, 32], strides = [1, 1]} : vector<12x32xf32> to vector<1x32xf32>
    %cst_209 = arith.constant dense<0.000000e+00> : vector<1x32xf32>
    %785 = tpu.matmul %783, %249, %cst_209 {dimension_numbers = #tpu.dot_dimension_numbers<[1], [0], [0], [1], [0, 0, 1, 1], [], []>} : vector<1x32xbf16>, vector<32x32xbf16>, vector<1x32xf32> -> vector<1x32xf32>
    %786 = arith.addf %784, %785 : vector<1x32xf32>
    %787 = vector.extract_strided_slice %233 {offsets = [8, 0], sizes = [1, 32], strides = [1, 1]} : vector<12x32xf32> to vector<1x32xf32>
    %cst_210 = arith.constant dense<0.000000e+00> : vector<1x32xf32>
    %788 = tpu.matmul %783, %251, %cst_210 {dimension_numbers = #tpu.dot_dimension_numbers<[1], [0], [0], [1], [0, 0, 1, 1], [], []>} : vector<1x32xbf16>, vector<32x32xbf16>, vector<1x32xf32> -> vector<1x32xf32>
    %789 = arith.addf %787, %788 : vector<1x32xf32>
    %790 = vector.extract_strided_slice %240 {offsets = [8, 0], sizes = [1, 32], strides = [1, 1]} : vector<12x32xf32> to vector<1x32xf32>
    %cst_211 = arith.constant dense<0.000000e+00> : vector<1x32xf32>
    %791 = tpu.matmul %783, %253, %cst_211 {dimension_numbers = #tpu.dot_dimension_numbers<[1], [0], [0], [1], [0, 0, 1, 1], [], []>} : vector<1x32xbf16>, vector<32x32xbf16>, vector<1x32xf32> -> vector<1x32xf32>
    %792 = arith.addf %790, %791 : vector<1x32xf32>
    %793 = vector.extract_strided_slice %247 {offsets = [8, 0], sizes = [1, 32], strides = [1, 1]} : vector<12x32xf32> to vector<1x32xf32>
    %cst_212 = arith.constant dense<0.000000e+00> : vector<1x32xf32>
    %794 = tpu.matmul %783, %255, %cst_212 {dimension_numbers = #tpu.dot_dimension_numbers<[1], [0], [0], [1], [0, 0, 1, 1], [], []>} : vector<1x32xbf16>, vector<32x32xbf16>, vector<1x32xf32> -> vector<1x32xf32>
    %795 = arith.addf %793, %794 : vector<1x32xf32>
    %796 = arith.negf %789 : vector<1x32xf32>
    %797 = math.exp %796 : vector<1x32xf32>
    %cst_213 = arith.constant 1.000000e+00 : f32
    %798 = vector.broadcast %cst_213 : f32 to vector<1x32xf32>
    %799 = arith.addf %798, %797 : vector<1x32xf32>
    %800 = arith.divf %798, %799 : vector<1x32xf32>
    %801 = arith.mulf %800, %744 : vector<1x32xf32>
    %802 = arith.negf %786 : vector<1x32xf32>
    %803 = math.exp %802 : vector<1x32xf32>
    %cst_214 = arith.constant 1.000000e+00 : f32
    %804 = vector.broadcast %cst_214 : f32 to vector<1x32xf32>
    %805 = arith.addf %804, %803 : vector<1x32xf32>
    %806 = arith.divf %804, %805 : vector<1x32xf32>
    %807 = math.tanh %792 : vector<1x32xf32>
    %808 = arith.mulf %806, %807 : vector<1x32xf32>
    %809 = arith.addf %801, %808 : vector<1x32xf32>
    %810 = arith.negf %795 : vector<1x32xf32>
    %811 = math.exp %810 : vector<1x32xf32>
    %cst_215 = arith.constant 1.000000e+00 : f32
    %812 = vector.broadcast %cst_215 : f32 to vector<1x32xf32>
    %813 = arith.addf %812, %811 : vector<1x32xf32>
    %814 = arith.divf %812, %813 : vector<1x32xf32>
    %815 = math.tanh %809 : vector<1x32xf32>
    %816 = arith.mulf %814, %815 : vector<1x32xf32>
    %817 = arith.truncf %816 : vector<1x32xf32> to vector<1x32xbf16>
    %cst_216 = arith.constant dense<0.000000e+00> : vector<1x512xf32>
    %818 = tpu.matmul %817, %256, %cst_216 {dimension_numbers = #tpu.dot_dimension_numbers<[1], [0], [0], [1], [0, 0, 1, 1], [], []>} : vector<1x32xbf16>, vector<32x512xbf16>, vector<1x512xf32> -> vector<1x512xf32>
    %819 = arith.truncf %782 : vector<1x128xf32> to vector<1x128xbf16>
    %cst_217 = arith.constant dense<0.000000e+00> : vector<1x512xf32>
    %820 = tpu.matmul %819, %257, %cst_217 {dimension_numbers = #tpu.dot_dimension_numbers<[1], [0], [0], [1], [0, 0, 1, 1], [], []>} : vector<1x128xbf16>, vector<128x512xbf16>, vector<1x512xf32> -> vector<1x512xf32>
    %821 = arith.addf %818, %820 : vector<1x512xf32>
    %822 = arith.addf %821, %258 : vector<1x512xf32>
    %823 = vector.extract_strided_slice %822 {offsets = [0, 0], sizes = [1, 128], strides = [1, 1]} : vector<1x512xf32> to vector<1x128xf32>
    %824 = arith.negf %823 : vector<1x128xf32>
    %825 = math.exp %824 : vector<1x128xf32>
    %cst_218 = arith.constant 1.000000e+00 : f32
    %826 = vector.broadcast %cst_218 : f32 to vector<1x128xf32>
    %827 = arith.addf %826, %825 : vector<1x128xf32>
    %828 = arith.divf %826, %827 : vector<1x128xf32>
    %829 = vector.extract_strided_slice %822 {offsets = [0, 128], sizes = [1, 128], strides = [1, 1]} : vector<1x512xf32> to vector<1x128xf32>
    %830 = arith.negf %829 : vector<1x128xf32>
    %831 = math.exp %830 : vector<1x128xf32>
    %cst_219 = arith.constant 1.000000e+00 : f32
    %832 = vector.broadcast %cst_219 : f32 to vector<1x128xf32>
    %833 = arith.addf %832, %831 : vector<1x128xf32>
    %834 = arith.divf %832, %833 : vector<1x128xf32>
    %835 = vector.extract_strided_slice %822 {offsets = [0, 256], sizes = [1, 128], strides = [1, 1]} : vector<1x512xf32> to vector<1x128xf32>
    %836 = math.tanh %835 : vector<1x128xf32>
    %837 = vector.extract_strided_slice %822 {offsets = [0, 384], sizes = [1, 128], strides = [1, 1]} : vector<1x512xf32> to vector<1x128xf32>
    %838 = arith.negf %837 : vector<1x128xf32>
    %839 = math.exp %838 : vector<1x128xf32>
    %cst_220 = arith.constant 1.000000e+00 : f32
    %840 = vector.broadcast %cst_220 : f32 to vector<1x128xf32>
    %841 = arith.addf %840, %839 : vector<1x128xf32>
    %842 = arith.divf %840, %841 : vector<1x128xf32>
    %843 = arith.mulf %834, %780 : vector<1x128xf32>
    %844 = arith.mulf %828, %836 : vector<1x128xf32>
    %845 = arith.addf %843, %844 : vector<1x128xf32>
    %846 = math.tanh %845 : vector<1x128xf32>
    %847 = arith.mulf %842, %846 : vector<1x128xf32>
    %848 = arith.truncf %816 : vector<1x32xf32> to vector<1x32xbf16>
    %849 = vector.extract_strided_slice %226 {offsets = [9, 0], sizes = [1, 32], strides = [1, 1]} : vector<12x32xf32> to vector<1x32xf32>
    %cst_221 = arith.constant dense<0.000000e+00> : vector<1x32xf32>
    %850 = tpu.matmul %848, %249, %cst_221 {dimension_numbers = #tpu.dot_dimension_numbers<[1], [0], [0], [1], [0, 0, 1, 1], [], []>} : vector<1x32xbf16>, vector<32x32xbf16>, vector<1x32xf32> -> vector<1x32xf32>
    %851 = arith.addf %849, %850 : vector<1x32xf32>
    %852 = vector.extract_strided_slice %233 {offsets = [9, 0], sizes = [1, 32], strides = [1, 1]} : vector<12x32xf32> to vector<1x32xf32>
    %cst_222 = arith.constant dense<0.000000e+00> : vector<1x32xf32>
    %853 = tpu.matmul %848, %251, %cst_222 {dimension_numbers = #tpu.dot_dimension_numbers<[1], [0], [0], [1], [0, 0, 1, 1], [], []>} : vector<1x32xbf16>, vector<32x32xbf16>, vector<1x32xf32> -> vector<1x32xf32>
    %854 = arith.addf %852, %853 : vector<1x32xf32>
    %855 = vector.extract_strided_slice %240 {offsets = [9, 0], sizes = [1, 32], strides = [1, 1]} : vector<12x32xf32> to vector<1x32xf32>
    %cst_223 = arith.constant dense<0.000000e+00> : vector<1x32xf32>
    %856 = tpu.matmul %848, %253, %cst_223 {dimension_numbers = #tpu.dot_dimension_numbers<[1], [0], [0], [1], [0, 0, 1, 1], [], []>} : vector<1x32xbf16>, vector<32x32xbf16>, vector<1x32xf32> -> vector<1x32xf32>
    %857 = arith.addf %855, %856 : vector<1x32xf32>
    %858 = vector.extract_strided_slice %247 {offsets = [9, 0], sizes = [1, 32], strides = [1, 1]} : vector<12x32xf32> to vector<1x32xf32>
    %cst_224 = arith.constant dense<0.000000e+00> : vector<1x32xf32>
    %859 = tpu.matmul %848, %255, %cst_224 {dimension_numbers = #tpu.dot_dimension_numbers<[1], [0], [0], [1], [0, 0, 1, 1], [], []>} : vector<1x32xbf16>, vector<32x32xbf16>, vector<1x32xf32> -> vector<1x32xf32>
    %860 = arith.addf %858, %859 : vector<1x32xf32>
    %861 = arith.negf %854 : vector<1x32xf32>
    %862 = math.exp %861 : vector<1x32xf32>
    %cst_225 = arith.constant 1.000000e+00 : f32
    %863 = vector.broadcast %cst_225 : f32 to vector<1x32xf32>
    %864 = arith.addf %863, %862 : vector<1x32xf32>
    %865 = arith.divf %863, %864 : vector<1x32xf32>
    %866 = arith.mulf %865, %809 : vector<1x32xf32>
    %867 = arith.negf %851 : vector<1x32xf32>
    %868 = math.exp %867 : vector<1x32xf32>
    %cst_226 = arith.constant 1.000000e+00 : f32
    %869 = vector.broadcast %cst_226 : f32 to vector<1x32xf32>
    %870 = arith.addf %869, %868 : vector<1x32xf32>
    %871 = arith.divf %869, %870 : vector<1x32xf32>
    %872 = math.tanh %857 : vector<1x32xf32>
    %873 = arith.mulf %871, %872 : vector<1x32xf32>
    %874 = arith.addf %866, %873 : vector<1x32xf32>
    %875 = arith.negf %860 : vector<1x32xf32>
    %876 = math.exp %875 : vector<1x32xf32>
    %cst_227 = arith.constant 1.000000e+00 : f32
    %877 = vector.broadcast %cst_227 : f32 to vector<1x32xf32>
    %878 = arith.addf %877, %876 : vector<1x32xf32>
    %879 = arith.divf %877, %878 : vector<1x32xf32>
    %880 = math.tanh %874 : vector<1x32xf32>
    %881 = arith.mulf %879, %880 : vector<1x32xf32>
    %882 = arith.truncf %881 : vector<1x32xf32> to vector<1x32xbf16>
    %cst_228 = arith.constant dense<0.000000e+00> : vector<1x512xf32>
    %883 = tpu.matmul %882, %256, %cst_228 {dimension_numbers = #tpu.dot_dimension_numbers<[1], [0], [0], [1], [0, 0, 1, 1], [], []>} : vector<1x32xbf16>, vector<32x512xbf16>, vector<1x512xf32> -> vector<1x512xf32>
    %884 = arith.truncf %847 : vector<1x128xf32> to vector<1x128xbf16>
    %cst_229 = arith.constant dense<0.000000e+00> : vector<1x512xf32>
    %885 = tpu.matmul %884, %257, %cst_229 {dimension_numbers = #tpu.dot_dimension_numbers<[1], [0], [0], [1], [0, 0, 1, 1], [], []>} : vector<1x128xbf16>, vector<128x512xbf16>, vector<1x512xf32> -> vector<1x512xf32>
    %886 = arith.addf %883, %885 : vector<1x512xf32>
    %887 = arith.addf %886, %258 : vector<1x512xf32>
    %888 = vector.extract_strided_slice %887 {offsets = [0, 0], sizes = [1, 128], strides = [1, 1]} : vector<1x512xf32> to vector<1x128xf32>
    %889 = arith.negf %888 : vector<1x128xf32>
    %890 = math.exp %889 : vector<1x128xf32>
    %cst_230 = arith.constant 1.000000e+00 : f32
    %891 = vector.broadcast %cst_230 : f32 to vector<1x128xf32>
    %892 = arith.addf %891, %890 : vector<1x128xf32>
    %893 = arith.divf %891, %892 : vector<1x128xf32>
    %894 = vector.extract_strided_slice %887 {offsets = [0, 128], sizes = [1, 128], strides = [1, 1]} : vector<1x512xf32> to vector<1x128xf32>
    %895 = arith.negf %894 : vector<1x128xf32>
    %896 = math.exp %895 : vector<1x128xf32>
    %cst_231 = arith.constant 1.000000e+00 : f32
    %897 = vector.broadcast %cst_231 : f32 to vector<1x128xf32>
    %898 = arith.addf %897, %896 : vector<1x128xf32>
    %899 = arith.divf %897, %898 : vector<1x128xf32>
    %900 = vector.extract_strided_slice %887 {offsets = [0, 256], sizes = [1, 128], strides = [1, 1]} : vector<1x512xf32> to vector<1x128xf32>
    %901 = math.tanh %900 : vector<1x128xf32>
    %902 = vector.extract_strided_slice %887 {offsets = [0, 384], sizes = [1, 128], strides = [1, 1]} : vector<1x512xf32> to vector<1x128xf32>
    %903 = arith.negf %902 : vector<1x128xf32>
    %904 = math.exp %903 : vector<1x128xf32>
    %cst_232 = arith.constant 1.000000e+00 : f32
    %905 = vector.broadcast %cst_232 : f32 to vector<1x128xf32>
    %906 = arith.addf %905, %904 : vector<1x128xf32>
    %907 = arith.divf %905, %906 : vector<1x128xf32>
    %908 = arith.mulf %899, %845 : vector<1x128xf32>
    %909 = arith.mulf %893, %901 : vector<1x128xf32>
    %910 = arith.addf %908, %909 : vector<1x128xf32>
    %911 = math.tanh %910 : vector<1x128xf32>
    %912 = arith.mulf %907, %911 : vector<1x128xf32>
    %913 = arith.truncf %881 : vector<1x32xf32> to vector<1x32xbf16>
    %914 = vector.extract_strided_slice %226 {offsets = [10, 0], sizes = [1, 32], strides = [1, 1]} : vector<12x32xf32> to vector<1x32xf32>
    %cst_233 = arith.constant dense<0.000000e+00> : vector<1x32xf32>
    %915 = tpu.matmul %913, %249, %cst_233 {dimension_numbers = #tpu.dot_dimension_numbers<[1], [0], [0], [1], [0, 0, 1, 1], [], []>} : vector<1x32xbf16>, vector<32x32xbf16>, vector<1x32xf32> -> vector<1x32xf32>
    %916 = arith.addf %914, %915 : vector<1x32xf32>
    %917 = vector.extract_strided_slice %233 {offsets = [10, 0], sizes = [1, 32], strides = [1, 1]} : vector<12x32xf32> to vector<1x32xf32>
    %cst_234 = arith.constant dense<0.000000e+00> : vector<1x32xf32>
    %918 = tpu.matmul %913, %251, %cst_234 {dimension_numbers = #tpu.dot_dimension_numbers<[1], [0], [0], [1], [0, 0, 1, 1], [], []>} : vector<1x32xbf16>, vector<32x32xbf16>, vector<1x32xf32> -> vector<1x32xf32>
    %919 = arith.addf %917, %918 : vector<1x32xf32>
    %920 = vector.extract_strided_slice %240 {offsets = [10, 0], sizes = [1, 32], strides = [1, 1]} : vector<12x32xf32> to vector<1x32xf32>
    %cst_235 = arith.constant dense<0.000000e+00> : vector<1x32xf32>
    %921 = tpu.matmul %913, %253, %cst_235 {dimension_numbers = #tpu.dot_dimension_numbers<[1], [0], [0], [1], [0, 0, 1, 1], [], []>} : vector<1x32xbf16>, vector<32x32xbf16>, vector<1x32xf32> -> vector<1x32xf32>
    %922 = arith.addf %920, %921 : vector<1x32xf32>
    %923 = vector.extract_strided_slice %247 {offsets = [10, 0], sizes = [1, 32], strides = [1, 1]} : vector<12x32xf32> to vector<1x32xf32>
    %cst_236 = arith.constant dense<0.000000e+00> : vector<1x32xf32>
    %924 = tpu.matmul %913, %255, %cst_236 {dimension_numbers = #tpu.dot_dimension_numbers<[1], [0], [0], [1], [0, 0, 1, 1], [], []>} : vector<1x32xbf16>, vector<32x32xbf16>, vector<1x32xf32> -> vector<1x32xf32>
    %925 = arith.addf %923, %924 : vector<1x32xf32>
    %926 = arith.negf %919 : vector<1x32xf32>
    %927 = math.exp %926 : vector<1x32xf32>
    %cst_237 = arith.constant 1.000000e+00 : f32
    %928 = vector.broadcast %cst_237 : f32 to vector<1x32xf32>
    %929 = arith.addf %928, %927 : vector<1x32xf32>
    %930 = arith.divf %928, %929 : vector<1x32xf32>
    %931 = arith.mulf %930, %874 : vector<1x32xf32>
    %932 = arith.negf %916 : vector<1x32xf32>
    %933 = math.exp %932 : vector<1x32xf32>
    %cst_238 = arith.constant 1.000000e+00 : f32
    %934 = vector.broadcast %cst_238 : f32 to vector<1x32xf32>
    %935 = arith.addf %934, %933 : vector<1x32xf32>
    %936 = arith.divf %934, %935 : vector<1x32xf32>
    %937 = math.tanh %922 : vector<1x32xf32>
    %938 = arith.mulf %936, %937 : vector<1x32xf32>
    %939 = arith.addf %931, %938 : vector<1x32xf32>
    %940 = arith.negf %925 : vector<1x32xf32>
    %941 = math.exp %940 : vector<1x32xf32>
    %cst_239 = arith.constant 1.000000e+00 : f32
    %942 = vector.broadcast %cst_239 : f32 to vector<1x32xf32>
    %943 = arith.addf %942, %941 : vector<1x32xf32>
    %944 = arith.divf %942, %943 : vector<1x32xf32>
    %945 = math.tanh %939 : vector<1x32xf32>
    %946 = arith.mulf %944, %945 : vector<1x32xf32>
    %947 = arith.truncf %946 : vector<1x32xf32> to vector<1x32xbf16>
    %cst_240 = arith.constant dense<0.000000e+00> : vector<1x512xf32>
    %948 = tpu.matmul %947, %256, %cst_240 {dimension_numbers = #tpu.dot_dimension_numbers<[1], [0], [0], [1], [0, 0, 1, 1], [], []>} : vector<1x32xbf16>, vector<32x512xbf16>, vector<1x512xf32> -> vector<1x512xf32>
    %949 = arith.truncf %912 : vector<1x128xf32> to vector<1x128xbf16>
    %cst_241 = arith.constant dense<0.000000e+00> : vector<1x512xf32>
    %950 = tpu.matmul %949, %257, %cst_241 {dimension_numbers = #tpu.dot_dimension_numbers<[1], [0], [0], [1], [0, 0, 1, 1], [], []>} : vector<1x128xbf16>, vector<128x512xbf16>, vector<1x512xf32> -> vector<1x512xf32>
    %951 = arith.addf %948, %950 : vector<1x512xf32>
    %952 = arith.addf %951, %258 : vector<1x512xf32>
    %953 = vector.extract_strided_slice %952 {offsets = [0, 0], sizes = [1, 128], strides = [1, 1]} : vector<1x512xf32> to vector<1x128xf32>
    %954 = arith.negf %953 : vector<1x128xf32>
    %955 = math.exp %954 : vector<1x128xf32>
    %cst_242 = arith.constant 1.000000e+00 : f32
    %956 = vector.broadcast %cst_242 : f32 to vector<1x128xf32>
    %957 = arith.addf %956, %955 : vector<1x128xf32>
    %958 = arith.divf %956, %957 : vector<1x128xf32>
    %959 = vector.extract_strided_slice %952 {offsets = [0, 128], sizes = [1, 128], strides = [1, 1]} : vector<1x512xf32> to vector<1x128xf32>
    %960 = arith.negf %959 : vector<1x128xf32>
    %961 = math.exp %960 : vector<1x128xf32>
    %cst_243 = arith.constant 1.000000e+00 : f32
    %962 = vector.broadcast %cst_243 : f32 to vector<1x128xf32>
    %963 = arith.addf %962, %961 : vector<1x128xf32>
    %964 = arith.divf %962, %963 : vector<1x128xf32>
    %965 = vector.extract_strided_slice %952 {offsets = [0, 256], sizes = [1, 128], strides = [1, 1]} : vector<1x512xf32> to vector<1x128xf32>
    %966 = math.tanh %965 : vector<1x128xf32>
    %967 = vector.extract_strided_slice %952 {offsets = [0, 384], sizes = [1, 128], strides = [1, 1]} : vector<1x512xf32> to vector<1x128xf32>
    %968 = arith.negf %967 : vector<1x128xf32>
    %969 = math.exp %968 : vector<1x128xf32>
    %cst_244 = arith.constant 1.000000e+00 : f32
    %970 = vector.broadcast %cst_244 : f32 to vector<1x128xf32>
    %971 = arith.addf %970, %969 : vector<1x128xf32>
    %972 = arith.divf %970, %971 : vector<1x128xf32>
    %973 = arith.mulf %964, %910 : vector<1x128xf32>
    %974 = arith.mulf %958, %966 : vector<1x128xf32>
    %975 = arith.addf %973, %974 : vector<1x128xf32>
    %976 = math.tanh %975 : vector<1x128xf32>
    %977 = arith.mulf %972, %976 : vector<1x128xf32>
    %978 = arith.truncf %946 : vector<1x32xf32> to vector<1x32xbf16>
    %979 = vector.extract_strided_slice %226 {offsets = [11, 0], sizes = [1, 32], strides = [1, 1]} : vector<12x32xf32> to vector<1x32xf32>
    %cst_245 = arith.constant dense<0.000000e+00> : vector<1x32xf32>
    %980 = tpu.matmul %978, %249, %cst_245 {dimension_numbers = #tpu.dot_dimension_numbers<[1], [0], [0], [1], [0, 0, 1, 1], [], []>} : vector<1x32xbf16>, vector<32x32xbf16>, vector<1x32xf32> -> vector<1x32xf32>
    %981 = arith.addf %979, %980 : vector<1x32xf32>
    %982 = vector.extract_strided_slice %233 {offsets = [11, 0], sizes = [1, 32], strides = [1, 1]} : vector<12x32xf32> to vector<1x32xf32>
    %cst_246 = arith.constant dense<0.000000e+00> : vector<1x32xf32>
    %983 = tpu.matmul %978, %251, %cst_246 {dimension_numbers = #tpu.dot_dimension_numbers<[1], [0], [0], [1], [0, 0, 1, 1], [], []>} : vector<1x32xbf16>, vector<32x32xbf16>, vector<1x32xf32> -> vector<1x32xf32>
    %984 = arith.addf %982, %983 : vector<1x32xf32>
    %985 = vector.extract_strided_slice %240 {offsets = [11, 0], sizes = [1, 32], strides = [1, 1]} : vector<12x32xf32> to vector<1x32xf32>
    %cst_247 = arith.constant dense<0.000000e+00> : vector<1x32xf32>
    %986 = tpu.matmul %978, %253, %cst_247 {dimension_numbers = #tpu.dot_dimension_numbers<[1], [0], [0], [1], [0, 0, 1, 1], [], []>} : vector<1x32xbf16>, vector<32x32xbf16>, vector<1x32xf32> -> vector<1x32xf32>
    %987 = arith.addf %985, %986 : vector<1x32xf32>
    %988 = vector.extract_strided_slice %247 {offsets = [11, 0], sizes = [1, 32], strides = [1, 1]} : vector<12x32xf32> to vector<1x32xf32>
    %cst_248 = arith.constant dense<0.000000e+00> : vector<1x32xf32>
    %989 = tpu.matmul %978, %255, %cst_248 {dimension_numbers = #tpu.dot_dimension_numbers<[1], [0], [0], [1], [0, 0, 1, 1], [], []>} : vector<1x32xbf16>, vector<32x32xbf16>, vector<1x32xf32> -> vector<1x32xf32>
    %990 = arith.addf %988, %989 : vector<1x32xf32>
    %991 = arith.negf %984 : vector<1x32xf32>
    %992 = math.exp %991 : vector<1x32xf32>
    %cst_249 = arith.constant 1.000000e+00 : f32
    %993 = vector.broadcast %cst_249 : f32 to vector<1x32xf32>
    %994 = arith.addf %993, %992 : vector<1x32xf32>
    %995 = arith.divf %993, %994 : vector<1x32xf32>
    %996 = arith.mulf %995, %939 : vector<1x32xf32>
    %997 = arith.negf %981 : vector<1x32xf32>
    %998 = math.exp %997 : vector<1x32xf32>
    %cst_250 = arith.constant 1.000000e+00 : f32
    %999 = vector.broadcast %cst_250 : f32 to vector<1x32xf32>
    %1000 = arith.addf %999, %998 : vector<1x32xf32>
    %1001 = arith.divf %999, %1000 : vector<1x32xf32>
    %1002 = math.tanh %987 : vector<1x32xf32>
    %1003 = arith.mulf %1001, %1002 : vector<1x32xf32>
    %1004 = arith.addf %996, %1003 : vector<1x32xf32>
    %1005 = arith.negf %990 : vector<1x32xf32>
    %1006 = math.exp %1005 : vector<1x32xf32>
    %cst_251 = arith.constant 1.000000e+00 : f32
    %1007 = vector.broadcast %cst_251 : f32 to vector<1x32xf32>
    %1008 = arith.addf %1007, %1006 : vector<1x32xf32>
    %1009 = arith.divf %1007, %1008 : vector<1x32xf32>
    %1010 = math.tanh %1004 : vector<1x32xf32>
    %1011 = arith.mulf %1009, %1010 : vector<1x32xf32>
    %1012 = arith.truncf %1011 : vector<1x32xf32> to vector<1x32xbf16>
    %cst_252 = arith.constant dense<0.000000e+00> : vector<1x512xf32>
    %1013 = tpu.matmul %1012, %256, %cst_252 {dimension_numbers = #tpu.dot_dimension_numbers<[1], [0], [0], [1], [0, 0, 1, 1], [], []>} : vector<1x32xbf16>, vector<32x512xbf16>, vector<1x512xf32> -> vector<1x512xf32>
    %1014 = arith.truncf %977 : vector<1x128xf32> to vector<1x128xbf16>
    %cst_253 = arith.constant dense<0.000000e+00> : vector<1x512xf32>
    %1015 = tpu.matmul %1014, %257, %cst_253 {dimension_numbers = #tpu.dot_dimension_numbers<[1], [0], [0], [1], [0, 0, 1, 1], [], []>} : vector<1x128xbf16>, vector<128x512xbf16>, vector<1x512xf32> -> vector<1x512xf32>
    %1016 = arith.addf %1013, %1015 : vector<1x512xf32>
    %1017 = arith.addf %1016, %258 : vector<1x512xf32>
    %1018 = vector.extract_strided_slice %1017 {offsets = [0, 0], sizes = [1, 128], strides = [1, 1]} : vector<1x512xf32> to vector<1x128xf32>
    %1019 = arith.negf %1018 : vector<1x128xf32>
    %1020 = math.exp %1019 : vector<1x128xf32>
    %cst_254 = arith.constant 1.000000e+00 : f32
    %1021 = vector.broadcast %cst_254 : f32 to vector<1x128xf32>
    %1022 = arith.addf %1021, %1020 : vector<1x128xf32>
    %1023 = arith.divf %1021, %1022 : vector<1x128xf32>
    %1024 = vector.extract_strided_slice %1017 {offsets = [0, 128], sizes = [1, 128], strides = [1, 1]} : vector<1x512xf32> to vector<1x128xf32>
    %1025 = arith.negf %1024 : vector<1x128xf32>
    %1026 = math.exp %1025 : vector<1x128xf32>
    %cst_255 = arith.constant 1.000000e+00 : f32
    %1027 = vector.broadcast %cst_255 : f32 to vector<1x128xf32>
    %1028 = arith.addf %1027, %1026 : vector<1x128xf32>
    %1029 = arith.divf %1027, %1028 : vector<1x128xf32>
    %1030 = vector.extract_strided_slice %1017 {offsets = [0, 256], sizes = [1, 128], strides = [1, 1]} : vector<1x512xf32> to vector<1x128xf32>
    %1031 = math.tanh %1030 : vector<1x128xf32>
    %1032 = vector.extract_strided_slice %1017 {offsets = [0, 384], sizes = [1, 128], strides = [1, 1]} : vector<1x512xf32> to vector<1x128xf32>
    %1033 = arith.negf %1032 : vector<1x128xf32>
    %1034 = math.exp %1033 : vector<1x128xf32>
    %cst_256 = arith.constant 1.000000e+00 : f32
    %1035 = vector.broadcast %cst_256 : f32 to vector<1x128xf32>
    %1036 = arith.addf %1035, %1034 : vector<1x128xf32>
    %1037 = arith.divf %1035, %1036 : vector<1x128xf32>
    %1038 = arith.mulf %1029, %975 : vector<1x128xf32>
    %1039 = arith.mulf %1023, %1031 : vector<1x128xf32>
    %1040 = arith.addf %1038, %1039 : vector<1x128xf32>
    %1041 = math.tanh %1040 : vector<1x128xf32>
    %1042 = arith.mulf %1037, %1041 : vector<1x128xf32>
    %1043 = arith.truncf %1042 : vector<1x128xf32> to vector<1x128xbf16>
    %c0_257 = arith.constant 0 : index
    %c0_258 = arith.constant 0 : index
    %1044 = vector.load %arg13[%c0_257, %c0_258] : memref<128x48xbf16, #tpu.memory_space<vmem>>, vector<128x48xbf16>
    %cst_259 = arith.constant dense<0.000000e+00> : vector<1x48xf32>
    %1045 = tpu.matmul %1043, %1044, %cst_259 {dimension_numbers = #tpu.dot_dimension_numbers<[1], [0], [0], [1], [0, 0, 1, 1], [], []>} : vector<1x128xbf16>, vector<128x48xbf16>, vector<1x48xf32> -> vector<1x48xf32>
    %c0_260 = arith.constant 0 : index
    %c0_261 = arith.constant 0 : index
    %1046 = vector.load %arg14[%c0_260, %c0_261] : memref<1x48xf32, #tpu.memory_space<vmem>>, vector<1x48xf32>
    %1047 = arith.addf %1045, %1046 : vector<1x48xf32>
    %c0_262 = arith.constant 0 : index
    %c0_263 = arith.constant 0 : index
    %c0_264 = arith.constant 0 : index
    %1048 = vector.load %arg15[%c0_262, %c0_263, %c0_264] : memref<1x1x48xf32, #tpu.memory_space<vmem>>, vector<1x1x48xf32>
    %1049 = vector.shape_cast %1048 : vector<1x1x48xf32> to vector<1x48xf32>
    %1050 = vector.shape_cast %1047 : vector<1x48xf32> to vector<1x1x48xf32>
    tpu.vector_store %arg15[%c0_262, %c0_263, %c0_264], %1050 {strides = array<i32>} : memref<1x1x48xf32, #tpu.memory_space<vmem>>, vector<1x1x48xf32>,
    return
  }
  func.func @transform_0(%arg0: i32) -> (i32, i32, i32) {
    %c0_i32 = arith.constant 0 : i32
    %c0_i32_0 = arith.constant 0 : i32
    %c0_i32_1 = arith.constant 0 : i32
    return %arg0, %c0_i32, %c0_i32_0 : i32, i32, i32
  }
  func.func @transform_1(%arg0: i32) -> (i32, i32, i32) {
    %c0_i32 = arith.constant 0 : i32
    %c0_i32_0 = arith.constant 0 : i32
    %c0_i32_1 = arith.constant 0 : i32
    return %arg0, %c0_i32, %c0_i32_0 : i32, i32, i32
  }
  func.func @transform_2(%arg0: i32) -> (i32, i32) {
    %c0_i32 = arith.constant 0 : i32
    %c0_i32_0 = arith.constant 0 : i32
    %c0_i32_1 = arith.constant 0 : i32
    return %c0_i32, %c0_i32_0 : i32, i32
  }
  func.func @transform_3(%arg0: i32) -> (i32, i32) {
    %c0_i32 = arith.constant 0 : i32
    %c0_i32_0 = arith.constant 0 : i32
    %c0_i32_1 = arith.constant 0 : i32
    return %c0_i32, %c0_i32_0 : i32, i32
  }
  func.func @transform_4(%arg0: i32) -> (i32, i32) {
    %c0_i32 = arith.constant 0 : i32
    %c0_i32_0 = arith.constant 0 : i32
    %c0_i32_1 = arith.constant 0 : i32
    return %c0_i32, %c0_i32_0 : i32, i32
  }
  func.func @transform_5(%arg0: i32) -> (i32, i32) {
    %c0_i32 = arith.constant 0 : i32
    %c0_i32_0 = arith.constant 0 : i32
    %c0_i32_1 = arith.constant 0 : i32
    return %c0_i32, %c0_i32_0 : i32, i32
  }
  func.func @transform_6(%arg0: i32) -> (i32, i32, i32) {
    %c0_i32 = arith.constant 0 : i32
    %c0_i32_0 = arith.constant 0 : i32
    %c0_i32_1 = arith.constant 0 : i32
    %c0_i32_2 = arith.constant 0 : i32
    return %c0_i32, %c0_i32_0, %c0_i32_1 : i32, i32, i32
  }
  func.func @transform_7(%arg0: i32) -> (i32, i32, i32) {
    %c0_i32 = arith.constant 0 : i32
    %c0_i32_0 = arith.constant 0 : i32
    %c0_i32_1 = arith.constant 0 : i32
    %c0_i32_2 = arith.constant 0 : i32
    return %c0_i32, %c0_i32_0, %c0_i32_1 : i32, i32, i32
  }
  func.func @transform_8(%arg0: i32) -> (i32, i32, i32) {
    %c0_i32 = arith.constant 0 : i32
    %c0_i32_0 = arith.constant 0 : i32
    %c0_i32_1 = arith.constant 0 : i32
    %c0_i32_2 = arith.constant 0 : i32
    return %c0_i32, %c0_i32_0, %c0_i32_1 : i32, i32, i32
  }
  func.func @transform_9(%arg0: i32) -> (i32, i32) {
    %c0_i32 = arith.constant 0 : i32
    %c0_i32_0 = arith.constant 0 : i32
    %c0_i32_1 = arith.constant 0 : i32
    return %c0_i32, %c0_i32_0 : i32, i32
  }
  func.func @transform_10(%arg0: i32) -> (i32, i32) {
    %c0_i32 = arith.constant 0 : i32
    %c0_i32_0 = arith.constant 0 : i32
    %c0_i32_1 = arith.constant 0 : i32
    return %c0_i32, %c0_i32_0 : i32, i32
  }
  func.func @transform_11(%arg0: i32) -> (i32, i32) {
    %c0_i32 = arith.constant 0 : i32
    %c0_i32_0 = arith.constant 0 : i32
    %c0_i32_1 = arith.constant 0 : i32
    return %c0_i32, %c0_i32_0 : i32, i32
  }
  func.func @transform_12(%arg0: i32) -> (i32, i32) {
    %c0_i32 = arith.constant 0 : i32
    %c0_i32_0 = arith.constant 0 : i32
    %c0_i32_1 = arith.constant 0 : i32
    return %c0_i32, %c0_i32_0 : i32, i32
  }
  func.func @transform_13(%arg0: i32) -> (i32, i32) {
    %c0_i32 = arith.constant 0 : i32
    %c0_i32_0 = arith.constant 0 : i32
    %c0_i32_1 = arith.constant 0 : i32
    return %c0_i32, %c0_i32_0 : i32, i32
  }
  func.func @transform_14(%arg0: i32) -> (i32, i32, i32) {
    %c0_i32 = arith.constant 0 : i32
    %c0_i32_0 = arith.constant 0 : i32
    %c0_i32_1 = arith.constant 0 : i32
    return %arg0, %c0_i32, %c0_i32_0 : i32, i32, i32
  }
}

</mosaic_0001>

<llo_original>
// kernel: tpu_custom_call.1
$region0: #{tpu_custom_call.1}
  #allocation0 [shape = 'u32[]', space=smem, size = 0x4, offset = 0x4, fixed_abs, tag = 'smem constant byte address 0x4 - core index']
  #allocation1 [shape = 'u32[144,128]{1,0:T(1,128)}', space=vmem, size = 0x12000, scoped, tag = 'internal scratch']
  %s0 = inlined_call_operand.vmem [shape: f32[2,16,12], index: 0, kind: input, shape index: {}]
  %s1 = inlined_call_operand.hbm [shape: f32[2,16,16], index: 1, kind: input, shape index: {}]
  %s2 = inlined_call_operand.hbm [shape: bf16[12,96], index: 2, kind: input, shape index: {}]
  %s3 = inlined_call_operand.hbm [shape: bf16[8,12], index: 3, kind: input, shape index: {}]
  %s4 = inlined_call_operand.vmem [shape: bf16[12,8], index: 4, kind: input, shape index: {}]
  %s5 = inlined_call_operand.hbm [shape: f32[1,12], index: 5, kind: input, shape index: {}]
  %s6 = inlined_call_operand.vmem [shape: bf16[4,16,32], index: 6, kind: input, shape index: {}]
  %s7 = inlined_call_operand.vmem [shape: bf16[4,32,32], index: 7, kind: input, shape index: {}]
  %s8 = inlined_call_operand.vmem [shape: f32[4,1,32], index: 8, kind: input, shape index: {}]
  %s9 = inlined_call_operand.vmem [shape: bf16[32,512], index: 9, kind: input, shape index: {}]
  %s10 = inlined_call_operand.hbm [shape: bf16[128,512], index: 10, kind: input, shape index: {}]
  %s11 = inlined_call_operand.vmem [shape: f32[1,512], index: 11, kind: input, shape index: {}]
  %s12 = inlined_call_operand.vmem [shape: bf16[128,48], index: 12, kind: input, shape index: {}]
  %s13 = inlined_call_operand.vmem [shape: f32[1,48], index: 13, kind: input, shape index: {}]
  %s14 = inlined_call_operand.hbm [shape: f32[2,1,48], index: 14, kind: output, shape index: {}]
  %s15 = sld [smem:[#allocation0]]
  $region109: #{tpu_custom_call.1} parent=0
    _
  %s17 = ssub.s32 1, %s15
  %s18 = scalar_select 0, %s17, %s15
  $region1: #{tpu_custom_call.1} parent=0
    #allocation2 [shape = 'u8[16384]{0}', space=vmem, size = 0x4000, scoped, tag = 'input window, operand 1']
    #allocation3 [shape = 's32[2]{0}', space=sflag, size = 0x8, scoped, tag = 'scoped memory for tpu_custom_call.1']
    #allocation4 [shape = 's32[2]{0}', space=sflag, size = 0x8, scoped, tag = 'scoped memory for tpu_custom_call.1']
    #allocation5 [shape = 'u8[4096]{0}', space=vmem, size = 0x1000, scoped, tag = 'input window, operand 2, single buffered']
    #allocation6 [shape = 's32[1]{0}', space=sflag, size = 0x4, scoped, tag = 'scoped memory for tpu_custom_call.1']
    #allocation7 [shape = 'u8[2048]{0}', space=vmem, size = 0x800, scoped, tag = 'input window, operand 3, single buffered']
    #allocation8 [shape = 'u8[512]{0}', space=vmem, size = 0x400, scoped, tag = 'input window, operand 5, single buffered']
    #allocation9 [shape = 's32[1]{0}', space=sflag, size = 0x4, scoped, tag = 'scoped memory for tpu_custom_call.1']
    #allocation10 [shape = 'u8[131072]{0}', space=vmem, size = 0x20000, scoped, tag = 'input window, operand 10, single buffered']
    #allocation11 [shape = 'u8[1024]{0}', space=vmem, size = 0x400, scoped, tag = 'output window, operand 0']
    %19 = vsyncpa [#allocation3], 0
    %s20 = scalar_lea.sflag [#allocation3], 1
    %21 = vsyncpa %s20, 0
    %22 = vsyncpa [#allocation6], 0
    %23 = vsyncpa [#allocation9], 0
    %24 = vsyncpa [#allocation4], 0
    %s25 = scalar_lea.sflag [#allocation4], 1
    %26 = vsyncpa %s25, 0
    loop: start=0, step=1, limit=4
    $region2: #{tpu_custom_call.1} parent=1 // loop_pre_header
      _
    $region3: #{tpu_custom_call.1} parent=1 // loop_header
      %s28 = sphi 0, %s32
      %p29 = scmp.ge.s32.totalorder %s28, 4
      %s38 = sphi 0, %s40
      %s41 = sphi 0, %s38
      %s42 = sphi 0, %s41
      %s58 = sphi 0, %s42
      %s64 = sphi 0, %s66
      %s67 = sphi 0, %s64
      %s68 = sphi 0, %s67
      %s84 = sphi 0, %s68
      %s88 = sphi 0, %s88
      %s90 = sphi 0, %s88
      %s91 = sphi 0, %s90
      %s105 = sphi 0, %s91
      %s109 = sphi 0, %s109
      %s111 = sphi 0, %s109
      %s112 = sphi 0, %s111
      %s126 = sphi 0, %s112
      %s130 = sphi 0, %s130
      %s132 = sphi 0, %s130
      %s133 = sphi 0, %s132
      %s147 = sphi 0, %s133
      %s151 = sphi 0, %s151
      %s153 = sphi 0, %s151
      %s154 = sphi 0, %s153
      %s168 = sphi 0, %s154
      %s172 = sphi 0, %s172
      %s174 = sphi 0, %s172
      %s175 = sphi 0, %s174
      %s189 = sphi 0, %s175
      %s193 = sphi 0, %s193
      %s195 = sphi 0, %s193
      %s196 = sphi 0, %s195
      %s210 = sphi 0, %s196
      %s214 = sphi 0, %s214
      %s216 = sphi 0, %s214
      %s217 = sphi 0, %s216
      %s231 = sphi 0, %s217
      %s235 = sphi 0, %s235
      %s237 = sphi 0, %s235
      %s238 = sphi 0, %s237
      %s252 = sphi 0, %s238
      %s256 = sphi 0, %s256
      %s258 = sphi 0, %s256
      %s259 = sphi 0, %s258
      %s273 = sphi 0, %s259
      %s277 = sphi 0, %s277
      %s279 = sphi 0, %s277
      %s280 = sphi 0, %s279
      %s294 = sphi 0, %s280
      %s298 = sphi 0, %s298
      %s300 = sphi 0, %s298
      %s301 = sphi 0, %s300
      %s315 = sphi 0, %s301
      %s319 = sphi 0, %s319
      %s321 = sphi 0, %s319
      %s322 = sphi 0, %s321
      %s336 = sphi 0, %s322
      %s342 = sphi 0, %s344
      %s345 = sphi 0, %s342
      %s346 = sphi 0, %s345
      %s362 = sphi 0, %s346
    $region4: #{tpu_custom_call.1} parent=1 // loop_header_branch
      %31 = sbr.rel (%p29) target = $region8
    $region5: #{tpu_custom_call.1} parent=1 // loop_body
      %s33 = ssub.s32 %s28, 1
      %s34 = ssub.s32 %s28, 2
      %s35 = sadd.s32 %s28, 1
      %s36 = ssub.s32 %s28, %s35
      %p37 = scmp.eq.s32.totalorder %s36, 0
      %s39 = sadd.s32 %s38, 1
      %s40 = scalar_select %p37, %s38, %s39
      %p43 = pneg %p37
      %p44 = scmp.eq.s32.totalorder %s28, 1
      %p45 = por %p43, %p44
      %p46 = scmp.ne.s32.totalorder %s38, %s41
      %p47 = scmp.eq.s32.totalorder %s28, 0
      %p48 = por %p46, %p47
      %p49 = scmp.ne.s32.totalorder %s38, %s41
      %p50 = scmp.eq.s32.totalorder %s33, 1
      %p51 = por %p49, %p50
      %p52 = scmp.ne.s32.totalorder %s41, %s42
      %p53 = scmp.eq.s32.totalorder %s33, 0
      %p54 = por %p52, %p53
      %p55 = scmp.ne.s32.totalorder %s41, %s42
      %p56 = scmp.eq.s32.totalorder %s34, 1
      %p57 = por %p55, %p56
      %p59 = scmp.ne.s32.totalorder %s42, %s58
      %p60 = scmp.eq.s32.totalorder %s34, 0
      %p61 = por %p59, %p60
      %s62 = ssub.s32 %s28, %s35
      %p63 = scmp.eq.s32.totalorder %s62, 0
      %s65 = sadd.s32 %s64, 1
      %s66 = scalar_select %p63, %s64, %s65
      %p69 = pneg %p63
      %p70 = scmp.eq.s32.totalorder %s28, 1
      %p71 = por %p69, %p70
      %p72 = scmp.ne.s32.totalorder %s64, %s67
      %p73 = scmp.eq.s32.totalorder %s28, 0
      %p74 = por %p72, %p73
      %p75 = scmp.ne.s32.totalorder %s64, %s67
      %p76 = scmp.eq.s32.totalorder %s33, 1
      %p77 = por %p75, %p76
      %p78 = scmp.ne.s32.totalorder %s67, %s68
      %p79 = scmp.eq.s32.totalorder %s33, 0
      %p80 = por %p78, %p79
      %p81 = scmp.ne.s32.totalorder %s67, %s68
      %p82 = scmp.eq.s32.totalorder %s34, 1
      %p83 = por %p81, %p82
      %p85 = scmp.ne.s32.totalorder %s68, %s84
      %p86 = scmp.eq.s32.totalorder %s34, 0
      %p87 = por %p85, %p86
      %s89 = sadd.s32 %s88, 1
      %p92 = scmp.eq.s32.totalorder %s28, 1
      %p93 = scmp.ne.s32.totalorder %s88, %s90
      %p94 = scmp.eq.s32.totalorder %s28, 0
      %p95 = por %p93, %p94
      %p96 = scmp.ne.s32.totalorder %s88, %s90
      %p97 = scmp.eq.s32.totalorder %s33, 1
      %p98 = por %p96, %p97
      %p99 = scmp.ne.s32.totalorder %s90, %s91
      %p100 = scmp.eq.s32.totalorder %s33, 0
      %p101 = por %p99, %p100
      %p102 = scmp.ne.s32.totalorder %s90, %s91
      %p103 = scmp.eq.s32.totalorder %s34, 1
      %p104 = por %p102, %p103
      %p106 = scmp.ne.s32.totalorder %s91, %s105
      %p107 = scmp.eq.s32.totalorder %s34, 0
      %p108 = por %p106, %p107
      %s110 = sadd.s32 %s109, 1
      %p113 = scmp.eq.s32.totalorder %s28, 1
      %p114 = scmp.ne.s32.totalorder %s109, %s111
      %p115 = scmp.eq.s32.totalorder %s28, 0
      %p116 = por %p114, %p115
      %p117 = scmp.ne.s32.totalorder %s109, %s111
      %p118 = scmp.eq.s32.totalorder %s33, 1
      %p119 = por %p117, %p118
      %p120 = scmp.ne.s32.totalorder %s111, %s112
      %p121 = scmp.eq.s32.totalorder %s33, 0
      %p122 = por %p120, %p121
      %p123 = scmp.ne.s32.totalorder %s111, %s112
      %p124 = scmp.eq.s32.totalorder %s34, 1
      %p125 = por %p123, %p124
      %p127 = scmp.ne.s32.totalorder %s112, %s126
      %p128 = scmp.eq.s32.totalorder %s34, 0
      %p129 = por %p127, %p128
      %s131 = sadd.s32 %s130, 1
      %p134 = scmp.eq.s32.totalorder %s28, 1
      %p135 = scmp.ne.s32.totalorder %s130, %s132
      %p136 = scmp.eq.s32.totalorder %s28, 0
      %p137 = por %p135, %p136
      %p138 = scmp.ne.s32.totalorder %s130, %s132
      %p139 = scmp.eq.s32.totalorder %s33, 1
      %p140 = por %p138, %p139
      %p141 = scmp.ne.s32.totalorder %s132, %s133
      %p142 = scmp.eq.s32.totalorder %s33, 0
      %p143 = por %p141, %p142
      %p144 = scmp.ne.s32.totalorder %s132, %s133
      %p145 = scmp.eq.s32.totalorder %s34, 1
      %p146 = por %p144, %p145
      %p148 = scmp.ne.s32.totalorder %s133, %s147
      %p149 = scmp.eq.s32.totalorder %s34, 0
      %p150 = por %p148, %p149
      %s152 = sadd.s32 %s151, 1
      %p155 = scmp.eq.s32.totalorder %s28, 1
      %p156 = scmp.ne.s32.totalorder %s151, %s153
      %p157 = scmp.eq.s32.totalorder %s28, 0
      %p158 = por %p156, %p157
      %p159 = scmp.ne.s32.totalorder %s151, %s153
      %p160 = scmp.eq.s32.totalorder %s33, 1
      %p161 = por %p159, %p160
      %p162 = scmp.ne.s32.totalorder %s153, %s154
      %p163 = scmp.eq.s32.totalorder %s33, 0
      %p164 = por %p162, %p163
      %p165 = scmp.ne.s32.totalorder %s153, %s154
      %p166 = scmp.eq.s32.totalorder %s34, 1
      %p167 = por %p165, %p166
      %p169 = scmp.ne.s32.totalorder %s154, %s168
      %p170 = scmp.eq.s32.totalorder %s34, 0
      %p171 = por %p169, %p170
      %s173 = sadd.s32 %s172, 1
      %p176 = scmp.eq.s32.totalorder %s28, 1
      %p177 = scmp.ne.s32.totalorder %s172, %s174
      %p178 = scmp.eq.s32.totalorder %s28, 0
      %p179 = por %p177, %p178
      %p180 = scmp.ne.s32.totalorder %s172, %s174
      %p181 = scmp.eq.s32.totalorder %s33, 1
      %p182 = por %p180, %p181
      %p183 = scmp.ne.s32.totalorder %s174, %s175
      %p184 = scmp.eq.s32.totalorder %s33, 0
      %p185 = por %p183, %p184
      %p186 = scmp.ne.s32.totalorder %s174, %s175
      %p187 = scmp.eq.s32.totalorder %s34, 1
      %p188 = por %p186, %p187
      %p190 = scmp.ne.s32.totalorder %s175, %s189
      %p191 = scmp.eq.s32.totalorder %s34, 0
      %p192 = por %p190, %p191
      %s194 = sadd.s32 %s193, 1
      %p197 = scmp.eq.s32.totalorder %s28, 1
      %p198 = scmp.ne.s32.totalorder %s193, %s195
      %p199 = scmp.eq.s32.totalorder %s28, 0
      %p200 = por %p198, %p199
      %p201 = scmp.ne.s32.totalorder %s193, %s195
      %p202 = scmp.eq.s32.totalorder %s33, 1
      %p203 = por %p201, %p202
      %p204 = scmp.ne.s32.totalorder %s195, %s196
      %p205 = scmp.eq.s32.totalorder %s33, 0
      %p206 = por %p204, %p205
      %p207 = scmp.ne.s32.totalorder %s195, %s196
      %p208 = scmp.eq.s32.totalorder %s34, 1
      %p209 = por %p207, %p208
      %p211 = scmp.ne.s32.totalorder %s196, %s210
      %p212 = scmp.eq.s32.totalorder %s34, 0
      %p213 = por %p211, %p212
      %s215 = sadd.s32 %s214, 1
      %p218 = scmp.eq.s32.totalorder %s28, 1
      %p219 = scmp.ne.s32.totalorder %s214, %s216
      %p220 = scmp.eq.s32.totalorder %s28, 0
      %p221 = por %p219, %p220
      %p222 = scmp.ne.s32.totalorder %s214, %s216
      %p223 = scmp.eq.s32.totalorder %s33, 1
      %p224 = por %p222, %p223
      %p225 = scmp.ne.s32.totalorder %s216, %s217
      %p226 = scmp.eq.s32.totalorder %s33, 0
      %p227 = por %p225, %p226
      %p228 = scmp.ne.s32.totalorder %s216, %s217
      %p229 = scmp.eq.s32.totalorder %s34, 1
      %p230 = por %p228, %p229
      %p232 = scmp.ne.s32.totalorder %s217, %s231
      %p233 = scmp.eq.s32.totalorder %s34, 0
      %p234 = por %p232, %p233
      %s236 = sadd.s32 %s235, 1
      %p239 = scmp.eq.s32.totalorder %s28, 1
      %p240 = scmp.ne.s32.totalorder %s235, %s237
      %p241 = scmp.eq.s32.totalorder %s28, 0
      %p242 = por %p240, %p241
      %p243 = scmp.ne.s32.totalorder %s235, %s237
      %p244 = scmp.eq.s32.totalorder %s33, 1
      %p245 = por %p243, %p244
      %p246 = scmp.ne.s32.totalorder %s237, %s238
      %p247 = scmp.eq.s32.totalorder %s33, 0
      %p248 = por %p246, %p247
      %p249 = scmp.ne.s32.totalorder %s237, %s238
      %p250 = scmp.eq.s32.totalorder %s34, 1
      %p251 = por %p249, %p250
      %p253 = scmp.ne.s32.totalorder %s238, %s252
      %p254 = scmp.eq.s32.totalorder %s34, 0
      %p255 = por %p253, %p254
      %s257 = sadd.s32 %s256, 1
      %p260 = scmp.eq.s32.totalorder %s28, 1
      %p261 = scmp.ne.s32.totalorder %s256, %s258
      %p262 = scmp.eq.s32.totalorder %s28, 0
      %p263 = por %p261, %p262
      %p264 = scmp.ne.s32.totalorder %s256, %s258
      %p265 = scmp.eq.s32.totalorder %s33, 1
      %p266 = por %p264, %p265
      %p267 = scmp.ne.s32.totalorder %s258, %s259
      %p268 = scmp.eq.s32.totalorder %s33, 0
      %p269 = por %p267, %p268
      %p270 = scmp.ne.s32.totalorder %s258, %s259
      %p271 = scmp.eq.s32.totalorder %s34, 1
      %p272 = por %p270, %p271
      %p274 = scmp.ne.s32.totalorder %s259, %s273
      %p275 = scmp.eq.s32.totalorder %s34, 0
      %p276 = por %p274, %p275
      %s278 = sadd.s32 %s277, 1
      %p281 = scmp.eq.s32.totalorder %s28, 1
      %p282 = scmp.ne.s32.totalorder %s277, %s279
      %p283 = scmp.eq.s32.totalorder %s28, 0
      %p284 = por %p282, %p283
      %p285 = scmp.ne.s32.totalorder %s277, %s279
      %p286 = scmp.eq.s32.totalorder %s33, 1
      %p287 = por %p285, %p286
      %p288 = scmp.ne.s32.totalorder %s279, %s280
      %p289 = scmp.eq.s32.totalorder %s33, 0
      %p290 = por %p288, %p289
      %p291 = scmp.ne.s32.totalorder %s279, %s280
      %p292 = scmp.eq.s32.totalorder %s34, 1
      %p293 = por %p291, %p292
      %p295 = scmp.ne.s32.totalorder %s280, %s294
      %p296 = scmp.eq.s32.totalorder %s34, 0
      %p297 = por %p295, %p296
      %s299 = sadd.s32 %s298, 1
      %p302 = scmp.eq.s32.totalorder %s28, 1
      %p303 = scmp.ne.s32.totalorder %s298, %s300
      %p304 = scmp.eq.s32.totalorder %s28, 0
      %p305 = por %p303, %p304
      %p306 = scmp.ne.s32.totalorder %s298, %s300
      %p307 = scmp.eq.s32.totalorder %s33, 1
      %p308 = por %p306, %p307
      %p309 = scmp.ne.s32.totalorder %s300, %s301
      %p310 = scmp.eq.s32.totalorder %s33, 0
      %p311 = por %p309, %p310
      %p312 = scmp.ne.s32.totalorder %s300, %s301
      %p313 = scmp.eq.s32.totalorder %s34, 1
      %p314 = por %p312, %p313
      %p316 = scmp.ne.s32.totalorder %s301, %s315
      %p317 = scmp.eq.s32.totalorder %s34, 0
      %p318 = por %p316, %p317
      %s320 = sadd.s32 %s319, 1
      %p323 = scmp.eq.s32.totalorder %s28, 1
      %p324 = scmp.ne.s32.totalorder %s319, %s321
      %p325 = scmp.eq.s32.totalorder %s28, 0
      %p326 = por %p324, %p325
      %p327 = scmp.ne.s32.totalorder %s319, %s321
      %p328 = scmp.eq.s32.totalorder %s33, 1
      %p329 = por %p327, %p328
      %p330 = scmp.ne.s32.totalorder %s321, %s322
      %p331 = scmp.eq.s32.totalorder %s33, 0
      %p332 = por %p330, %p331
      %p333 = scmp.ne.s32.totalorder %s321, %s322
      %p334 = scmp.eq.s32.totalorder %s34, 1
      %p335 = por %p333, %p334
      %p337 = scmp.ne.s32.totalorder %s322, %s336
      %p338 = scmp.eq.s32.totalorder %s34, 0
      %p339 = por %p337, %p338
      %s340 = ssub.s32 %s28, %s35
      %p341 = scmp.eq.s32.totalorder %s340, 0
      %s343 = sadd.s32 %s342, 1
      %s344 = scalar_select %p341, %s342, %s343
      %p347 = pneg %p341
      %p348 = scmp.eq.s32.totalorder %s28, 1
      %p349 = por %p347, %p348
      %p350 = scmp.ne.s32.totalorder %s342, %s345
      %p351 = scmp.eq.s32.totalorder %s28, 0
      %p352 = por %p350, %p351
      %p353 = scmp.ne.s32.totalorder %s342, %s345
      %p354 = scmp.eq.s32.totalorder %s33, 1
      %p355 = por %p353, %p354
      %p356 = scmp.ne.s32.totalorder %s345, %s346
      %p357 = scmp.eq.s32.totalorder %s33, 0
      %p358 = por %p356, %p357
      %p359 = scmp.ne.s32.totalorder %s345, %s346
      %p360 = scmp.eq.s32.totalorder %s34, 1
      %p361 = por %p359, %p360
      %p363 = scmp.ne.s32.totalorder %s346, %s362
      %p364 = scmp.eq.s32.totalorder %s34, 0
      %p365 = por %p363, %p364
      %p366 = scmp.le.s32.totalorder 1, %s28
      %p367 = scmp.lt.s32.totalorder %s28, 3
      %p368 = pnand %p366, %p367
      %p369 = pneg %p368
      // Predicated region
      $region9: #{tpu_custom_call.1} parent=5 // pred_check
        _
      $region10: #{tpu_custom_call.1} parent=5 // pred_check_branch
        %371 = sbr.rel (%p368) target = $region12
      $region11: #{tpu_custom_call.1} parent=5 // pred_region
        %s372 = ssub.s32 %s28, 1
        // Predicated region
        $region13: #{tpu_custom_call.1} parent=11 // pred_check
          %p373 = pneg %p101
        $region14: #{tpu_custom_call.1} parent=11 // pred_check_branch
          %375 = sbr.rel (%p373) target = $region16
        $region15: #{tpu_custom_call.1} parent=11 // pred_region
          %s377 = ssub.s32 128, 128
          %378 = vsyncadd [#allocation6], %s377
          %s379 = sshll.u32 [#allocation5], 4
          %s380 = int_to_ptr.vmem [resolvable:$true] %s379
          %385 = dma.hbm_to_vmem [thread:$0]  %s2, 128, %s380, [#allocation6], 64, 64, 4
        $region16: #{tpu_custom_call.1} parent=11 // pred_fallthru
          _
        // Predicated region
        $region17: #{tpu_custom_call.1} parent=11 // pred_check
          %p386 = pneg %p122
        $region18: #{tpu_custom_call.1} parent=11 // pred_check_branch
          %388 = sbr.rel (%p386) target = $region20
        $region19: #{tpu_custom_call.1} parent=11 // pred_region
          %s390 = ssub.s32 64, 64
          %391 = vsyncadd [#allocation6], %s390
          %s393 = sshll.u32 [#allocation7], 4
          %s394 = int_to_ptr.vmem [resolvable:$true] %s393
          %396 = dma.hbm_to_vmem [thread:$0]  %s3, 64, %s394, [#allocation6]
        $region20: #{tpu_custom_call.1} parent=11 // pred_fallthru
          _
        // Predicated region
        $region21: #{tpu_custom_call.1} parent=11 // pred_check
          %p397 = pneg %p143
        $region22: #{tpu_custom_call.1} parent=11 // pred_check_branch
          %399 = sbr.rel (%p397) target = $region24
        $region23: #{tpu_custom_call.1} parent=11 // pred_region
          _
        $region24: #{tpu_custom_call.1} parent=11 // pred_fallthru
          _
        // Predicated region
        $region25: #{tpu_custom_call.1} parent=11 // pred_check
          %p400 = pneg %p164
        $region26: #{tpu_custom_call.1} parent=11 // pred_check_branch
          %402 = sbr.rel (%p400) target = $region28
        $region27: #{tpu_custom_call.1} parent=11 // pred_region
          %s404 = ssub.s32 16, 16
          %405 = vsyncadd [#allocation9], %s404
          %s407 = sshll.u32 [#allocation8], 4
          %s408 = int_to_ptr.vmem [resolvable:$true] %s407
          %410 = dma.hbm_to_vmem [thread:$0]  %s5, 16, %s408, [#allocation9]
        $region28: #{tpu_custom_call.1} parent=11 // pred_fallthru
          _
        // Predicated region
        $region29: #{tpu_custom_call.1} parent=11 // pred_check
          %p411 = pneg %p185
        $region30: #{tpu_custom_call.1} parent=11 // pred_check_branch
          %413 = sbr.rel (%p411) target = $region32
        $region31: #{tpu_custom_call.1} parent=11 // pred_region
          _
        $region32: #{tpu_custom_call.1} parent=11 // pred_fallthru
          _
        // Predicated region
        $region33: #{tpu_custom_call.1} parent=11 // pred_check
          %p414 = pneg %p206
        $region34: #{tpu_custom_call.1} parent=11 // pred_check_branch
          %416 = sbr.rel (%p414) target = $region36
        $region35: #{tpu_custom_call.1} parent=11 // pred_region
          _
        $region36: #{tpu_custom_call.1} parent=11 // pred_fallthru
          _
        // Predicated region
        $region37: #{tpu_custom_call.1} parent=11 // pred_check
          %p417 = pneg %p227
        $region38: #{tpu_custom_call.1} parent=11 // pred_check_branch
          %419 = sbr.rel (%p417) target = $region40
        $region39: #{tpu_custom_call.1} parent=11 // pred_region
          _
        $region40: #{tpu_custom_call.1} parent=11 // pred_fallthru
          _
        // Predicated region
        $region41: #{tpu_custom_call.1} parent=11 // pred_check
          %p420 = pneg %p248
        $region42: #{tpu_custom_call.1} parent=11 // pred_check_branch
          %422 = sbr.rel (%p420) target = $region44
        $region43: #{tpu_custom_call.1} parent=11 // pred_region
          _
        $region44: #{tpu_custom_call.1} parent=11 // pred_fallthru
          _
        // Predicated region
        $region45: #{tpu_custom_call.1} parent=11 // pred_check
          %p423 = pneg %p269
        $region46: #{tpu_custom_call.1} parent=11 // pred_check_branch
          %425 = sbr.rel (%p423) target = $region48
        $region47: #{tpu_custom_call.1} parent=11 // pred_region
          %s427 = ssub.s32 4096, 4096
          %428 = vsyncadd [#allocation9], %s427
          %s429 = sshll.u32 [#allocation10], 4
          %s430 = int_to_ptr.vmem [resolvable:$true] %s429
          %435 = dma.hbm_to_vmem [thread:$0]  %s10, 4096, %s430, [#allocation9], 256, 256, 16
        $region48: #{tpu_custom_call.1} parent=11 // pred_fallthru
          _
        // Predicated region
        $region49: #{tpu_custom_call.1} parent=11 // pred_check
          %p436 = pneg %p290
        $region50: #{tpu_custom_call.1} parent=11 // pred_check_branch
          %438 = sbr.rel (%p436) target = $region52
        $region51: #{tpu_custom_call.1} parent=11 // pred_region
          _
        $region52: #{tpu_custom_call.1} parent=11 // pred_fallthru
          _
        // Predicated region
        $region53: #{tpu_custom_call.1} parent=11 // pred_check
          %p439 = pneg %p311
        $region54: #{tpu_custom_call.1} parent=11 // pred_check_branch
          %441 = sbr.rel (%p439) target = $region56
        $region55: #{tpu_custom_call.1} parent=11 // pred_region
          _
        $region56: #{tpu_custom_call.1} parent=11 // pred_fallthru
          _
        // Predicated region
        $region57: #{tpu_custom_call.1} parent=11 // pred_check
          %p442 = pneg %p332
        $region58: #{tpu_custom_call.1} parent=11 // pred_check_branch
          %444 = sbr.rel (%p442) target = $region60
        $region59: #{tpu_custom_call.1} parent=11 // pred_region
          _
        $region60: #{tpu_custom_call.1} parent=11 // pred_fallthru
          _
      $region12: #{tpu_custom_call.1} parent=5 // pred_fallthru
        _
      %p445 = scmp.lt.s32.totalorder %s28, 2
      // Predicated region
      $region61: #{tpu_custom_call.1} parent=5 // pred_check
        %p446 = pneg %p445
      $region62: #{tpu_custom_call.1} parent=5 // pred_check_branch
        %448 = sbr.rel (%p446) target = $region64
      $region63: #{tpu_custom_call.1} parent=5 // pred_region
        // Predicated region
        $region65: #{tpu_custom_call.1} parent=63 // pred_check
          %p449 = pneg %p48
        $region66: #{tpu_custom_call.1} parent=63 // pred_check_branch
          %451 = sbr.rel (%p449) target = $region68
        $region67: #{tpu_custom_call.1} parent=63 // pred_region
          %p452 = scmp.lt.s32.totalorder %s28, 1
          %s453 = scalar_select %p452, %s28, 1
          %s454 = smul.addr %s453, 2
          %s455 = smul.addr %s454, 8
          %s456 = scalar_lea.vmem %s0, %s455
        $region68: #{tpu_custom_call.1} parent=63 // pred_fallthru
          _
        // Predicated region
        $region69: #{tpu_custom_call.1} parent=63 // pred_check
          %p457 = pneg %p74
        $region70: #{tpu_custom_call.1} parent=63 // pred_check_branch
          %459 = sbr.rel (%p457) target = $region72
        $region71: #{tpu_custom_call.1} parent=63 // pred_region
          %s460 = sand.u32 %s64, 1
          %s461 = scalar_lea.sflag [#allocation3], %s460
          %s462 = sand.u32 %s64, 1
          %s463 = smul.addr %s462, 16
          %s464 = scalar_lea.vmem [#allocation2], %s463
          %s466 = ssub.s32 256, 256
          %467 = vsyncadd %s461, %s466
          %s468 = smul.addr %s28, 2
          %s469 = smul.addr %s468, 128
          %s470 = scalar_lea.hbm %s1, %s469
          %s471 = sshll.u32 %s464, 4
          %s472 = int_to_ptr.vmem [resolvable:$true] %s471
          %477 = dma.hbm_to_vmem [thread:$0]  %s470, 256, %s472, %s461, 128, 128, 8
        $region72: #{tpu_custom_call.1} parent=63 // pred_fallthru
          _
      $region64: #{tpu_custom_call.1} parent=5 // pred_fallthru
        _
      %p478 = scmp.le.s32.totalorder 1, %s28
      %p479 = scmp.lt.s32.totalorder %s28, 3
      %p480 = pnand %p478, %p479
      %p481 = pneg %p480
      // Predicated region
      $region73: #{tpu_custom_call.1} parent=5 // pred_check
        _
      $region74: #{tpu_custom_call.1} parent=5 // pred_check_branch
        %483 = sbr.rel (%p480) target = $region76
      $region75: #{tpu_custom_call.1} parent=5 // pred_region
        %s484 = ssub.s32 %s28, 1
        %s485 = sand.u32 %s67, 1
        %s486 = scalar_lea.sflag [#allocation3], %s485
        %s487 = sand.u32 %s67, 1
        %s488 = smul.addr %s487, 16
        %s489 = scalar_lea.vmem [#allocation2], %s488
        // Predicated region
        $region77: #{tpu_custom_call.1} parent=75 // pred_check
          %p490 = pneg %p80
        $region78: #{tpu_custom_call.1} parent=75 // pred_check_branch
          %492 = sbr.rel (%p490) target = $region80
        $region79: #{tpu_custom_call.1} parent=75 // pred_region
          %493 = dma.done %s486, 256
        $region80: #{tpu_custom_call.1} parent=75 // pred_fallthru
          _
        // Predicated region
        $region81: #{tpu_custom_call.1} parent=75 // pred_check
          %p494 = pneg %p101
        $region82: #{tpu_custom_call.1} parent=75 // pred_check_branch
          %496 = sbr.rel (%p494) target = $region84
        $region83: #{tpu_custom_call.1} parent=75 // pred_region
          %497 = dma.done [#allocation6], 128
        $region84: #{tpu_custom_call.1} parent=75 // pred_fallthru
          _
        // Predicated region
        $region85: #{tpu_custom_call.1} parent=75 // pred_check
          %p498 = pneg %p122
        $region86: #{tpu_custom_call.1} parent=75 // pred_check_branch
          %500 = sbr.rel (%p498) target = $region88
        $region87: #{tpu_custom_call.1} parent=75 // pred_region
          %501 = dma.done [#allocation6], 64
        $region88: #{tpu_custom_call.1} parent=75 // pred_fallthru
          _
        // Predicated region
        $region89: #{tpu_custom_call.1} parent=75 // pred_check
          %p502 = pneg %p164
        $region90: #{tpu_custom_call.1} parent=75 // pred_check_branch
          %504 = sbr.rel (%p502) target = $region92
        $region91: #{tpu_custom_call.1} parent=75 // pred_region
          %505 = dma.done [#allocation9], 16
        $region92: #{tpu_custom_call.1} parent=75 // pred_fallthru
          _
        // Predicated region
        $region93: #{tpu_custom_call.1} parent=75 // pred_check
          %p506 = pneg %p269
        $region94: #{tpu_custom_call.1} parent=75 // pred_check_branch
          %508 = sbr.rel (%p506) target = $region96
        $region95: #{tpu_custom_call.1} parent=75 // pred_region
          %509 = dma.done [#allocation9], 4096
        $region96: #{tpu_custom_call.1} parent=75 // pred_fallthru
          _
        %p510 = scmp.lt.s32.totalorder %s33, 1
        %s511 = scalar_select %p510, %s33, 1
        %s512 = smul.addr %s511, 2
        %s513 = smul.addr %s512, 8
        %s514 = scalar_lea.vmem %s0, %s513
        %p515 = pneg %p54
        %p516 = pneg %p51
        %s517 = sand.u32 %s67, 1
        %s518 = scalar_lea.sflag [#allocation3], %s517
        %s519 = sand.u32 %s67, 1
        %s520 = smul.addr %s519, 16
        %s521 = scalar_lea.vmem [#allocation2], %s520
        %p522 = pneg %p80
        %p523 = pneg %p77
        %p524 = pneg %p101
        %p525 = pneg %p98
        %p526 = pneg %p122
        %p527 = pneg %p119
        %p528 = pneg %p143
        %p529 = pneg %p140
        %p530 = pneg %p164
        %p531 = pneg %p161
        %p532 = pneg %p185
        %p533 = pneg %p182
        %p534 = pneg %p206
        %p535 = pneg %p203
        %p536 = pneg %p227
        %p537 = pneg %p224
        %p538 = pneg %p248
        %p539 = pneg %p245
        %p540 = pneg %p269
        %p541 = pneg %p266
        %p542 = pneg %p290
        %p543 = pneg %p287
        %p544 = pneg %p311
        %p545 = pneg %p308
        %p546 = pneg %p332
        %p547 = pneg %p329
        %p548 = pneg %p358
        %p549 = pneg %p355
        %s550 = sand.u32 %s345, 1
        %s551 = scalar_lea.sflag [#allocation4], %s550
        %s552 = sand.u32 %s345, 1
        %s553 = scalar_lea.vmem [#allocation11], %s552
        %p554 = scmp.lt.s32.totalorder %s33, 1
        %s555 = scalar_select %p554, %s33, 1
        %s556 = smul.addr %s555, 2
        %s557 = smul.addr %s556, 8
        %s558 = scalar_lea.vmem %s0, %s557
        %v560 = vld [vmem:[%s558] sm:$0xff]
        %v561 = vld [vmem:[%s558 + $0x8] sm:$0xff]
        %v562 = vpack.c.bf16 %v561, %v560
        %v563 = vld [vmem:[%s489] sm:$0xff]
        %v564 = vld [vmem:[%s489 + $0x8] sm:$0xff]
        %v565 = vld [vmem:[#allocation5] sm:$0xf]
        %v566 = vld [vmem:[#allocation5 + $0x4] sm:$0x3]
        %v569 = vunpack.c.l.b16 %v565
        %v570 = vunpack.c.l.b16 %v566
        %v571 = vpack.c.b16 %v570, %v569
        %vm572 = vcmask 97280
        %v574 = vsel %vm572, %v562, 0
        %vm576 = vcmask 1045504
        %v578 = vsel %vm576, %v571, 0
        %580 = vmatprep.subr.bf16.mxu0 0
        %581 = vmatpush1.bf16.msra.mxu0 0
        %582 = vmatprep.subr.bf16.mxu0 0
        %583 = vmatpush1.bf16.msra.mxu0 0
        %584 = vmatprep.subr.bf16.mxu0 0
        %585 = vmatpush1.bf16.msra.mxu0 0
        %586 = vmatprep.subr.bf16.mxu0 0
        %587 = vmatpush1.bf16.msra.mxu0 0
        %588 = vmatprep.subr.bf16.mxu0 0
        %589 = vmatpush1.bf16.msra.mxu0 0
        %590 = vmatprep.subr.bf16.mxu0 0
        %591 = vmatpush1.bf16.msra.mxu0 0
        %592 = vmatprep.subr.bf16.mxu0 0
        %593 = vmatpush1.bf16.msra.mxu0 0
        %594 = vmatprep.subr.bf16.mxu0 0
        %595 = vmatpush1.bf16.msra.mxu0 %v578
        %596 = vmatprep.subr.bf16.mxu0 0
        %597 = vmatpush2.bf16.msra.mxu0 0
        %598 = vmatprep.subr.bf16.mxu0 0
        %599 = vmatpush2.bf16.msra.mxu0 0
        %600 = vmatprep.subr.bf16.mxu0 0
        %601 = vmatpush2.bf16.msra.mxu0 0
        %602 = vmatprep.subr.bf16.mxu0 0
        %603 = vmatpush2.bf16.msra.mxu0 0
        %604 = vmatprep.subr.bf16.mxu0 0
        %605 = vmatpush2.bf16.msra.mxu0 0
        %606 = vmatprep.subr.bf16.mxu0 0
        %607 = vmatpush2.bf16.msra.mxu0 0
        %608 = vmatprep.subr.bf16.mxu0 0
        %609 = vmatpush2.bf16.msra.mxu0 0
        %610 = vmatprep.subr.bf16.mxu0 0
        %611 = vmatpush2.bf16.msra.mxu0 0
        %612 = vmatprep.mubr.bf16.mxu0 0
        %613 = vmatmul.mubr.bf16.gmra.mxu0 %v574
        %v614 = vpop.f32.mrf.mxu0
        %v615 = vadd.f32 0.0, %v614
        %v616 = vpop.f32.mrf.mxu0
        %v617 = vpop.f32.mrf.mxu0
        %v618 = vadd.f32 0.0, %v617
        %v619 = vpop.f32.mrf.mxu0
        %620 = vdwg.mxu0
        %v621 = vld [vmem:[%s4] sm:$0xf]
        %v622 = vld [vmem:[%s4 + $0x4] sm:$0x3]
        %v625 = vunpack.c.l.b16 %v621
        %v626 = vunpack.c.l.b16 %v622
        %v627 = vpack.c.b16 %v626, %v625
        %v629 = vsel %vm576, %v627, 0
        %631 = vmatprep.subr.bf16.mxu0 0
        %632 = vmatpush1.bf16.msra.mxu0 0
        %633 = vmatprep.subr.bf16.mxu0 0
        %634 = vmatpush1.bf16.msra.mxu0 0
        %635 = vmatprep.subr.bf16.mxu0 0
        %636 = vmatpush1.bf16.msra.mxu0 0
        %637 = vmatprep.subr.bf16.mxu0 0
        %638 = vmatpush1.bf16.msra.mxu0 0
        %639 = vmatprep.subr.bf16.mxu0 0
        %640 = vmatpush1.bf16.msra.mxu0 0
        %641 = vmatprep.subr.bf16.mxu0 0
        %642 = vmatpush1.bf16.msra.mxu0 0
        %643 = vmatprep.subr.bf16.mxu0 0
        %644 = vmatpush1.bf16.msra.mxu0 0
        %645 = vmatprep.subr.bf16.mxu0 0
        %646 = vmatpush1.bf16.msra.mxu0 %v629
        %647 = vmatprep.subr.bf16.mxu0 0
        %648 = vmatpush2.bf16.msra.mxu0 0
        %649 = vmatprep.subr.bf16.mxu0 0
        %650 = vmatpush2.bf16.msra.mxu0 0
        %651 = vmatprep.subr.bf16.mxu0 0
        %652 = vmatpush2.bf16.msra.mxu0 0
        %653 = vmatprep.subr.bf16.mxu0 0
        %654 = vmatpush2.bf16.msra.mxu0 0
        %655 = vmatprep.subr.bf16.mxu0 0
        %656 = vmatpush2.bf16.msra.mxu0 0
        %657 = vmatprep.subr.bf16.mxu0 0
        %658 = vmatpush2.bf16.msra.mxu0 0
        %659 = vmatprep.subr.bf16.mxu0 0
        %660 = vmatpush2.bf16.msra.mxu0 0
        %661 = vmatprep.subr.bf16.mxu0 0
        %662 = vmatpush2.bf16.msra.mxu0 0
        %663 = vmatprep.mubr.bf16.mxu0 0
        %664 = vmatmul.mubr.bf16.gmra.mxu0 %v574
        %v665 = vpop.f32.mrf.mxu0
        %v666 = vadd.f32 0.0, %v665
        %v667 = vpop.f32.mrf.mxu0
        %v668 = vpop.f32.mrf.mxu0
        %v669 = vadd.f32 0.0, %v668
        %v670 = vpop.f32.mrf.mxu0
        %671 = vdwg.mxu0
        %v672 = vld [vmem:[#allocation7] sm:$0xf]
        %v674 = vsel %vm572, %v672, 0
        %676 = vmatprep.subr.bf16.mxu0 0
        %677 = vmatpush1.bf16.xpose.msra.mxu0 0
        %678 = vmatprep.subr.bf16.mxu0 0
        %679 = vmatpush1.bf16.xpose.msra.mxu0 0
        %680 = vmatprep.subr.bf16.mxu0 0
        %681 = vmatpush1.bf16.xpose.msra.mxu0 0
        %682 = vmatprep.subr.bf16.mxu0 0
        %683 = vmatpush1.bf16.xpose.msra.mxu0 0
        %684 = vmatprep.subr.bf16.mxu0 0
        %685 = vmatpush1.bf16.xpose.msra.mxu0 0
        %686 = vmatprep.subr.bf16.mxu0 0
        %687 = vmatpush1.bf16.xpose.msra.mxu0 0
        %688 = vmatprep.subr.bf16.mxu0 0
        %689 = vmatpush1.bf16.xpose.msra.mxu0 0
        %690 = vmatprep.subr.bf16.mxu0 0
        %691 = vmatpush1.bf16.xpose.msra.mxu0 %v574
        %692 = vmatprep.subr.bf16.mxu0 0
        %693 = vmatpush2.bf16.xpose.msra.mxu0 0
        %694 = vmatprep.subr.bf16.mxu0 0
        %695 = vmatpush2.bf16.xpose.msra.mxu0 0
        %696 = vmatprep.subr.bf16.mxu0 0
        %697 = vmatpush2.bf16.xpose.msra.mxu0 0
        %698 = vmatprep.subr.bf16.mxu0 0
        %699 = vmatpush2.bf16.xpose.msra.mxu0 0
        %700 = vmatprep.subr.bf16.mxu0 0
        %701 = vmatpush2.bf16.xpose.msra.mxu0 0
        %702 = vmatprep.subr.bf16.mxu0 0
        %703 = vmatpush2.bf16.xpose.msra.mxu0 0
        %704 = vmatprep.subr.bf16.mxu0 0
        %705 = vmatpush2.bf16.xpose.msra.mxu0 0
        %706 = vmatprep.subr.bf16.mxu0 0
        %707 = vmatpush2.bf16.xpose.msra.mxu0 0
        %708 = vmatprep.mubr.bf16.mxu0 0
        %709 = vmatmul.mubr.bf16.gmra.mxu0 %v674
        %v710 = vpop.f32.mrf.mxu0
        %v711 = vadd.f32 0.0, %v710
        %v712 = vpop.f32.mrf.mxu0
        %v713 = vpop.f32.mrf.mxu0
        %v714 = vpop.f32.mrf.mxu0
        %715 = vdwg.mxu0
        %vm716 = vcmp.gt.f32.partialorder %v563, 0.0
        %vm717 = vcmp.gt.f32.partialorder %v564, 0.0
        %719 = vset.pattern.permute.xlu0 0
        %720 = vperm.xlu0 %719, %v666
        %v721 = vpop.permute.xlu0 %720
        %724 = vset.pattern.permute.xlu0 0
        %725 = vperm.xlu0 %724, %v669
        %v726 = vpop.permute.xlu0 %725
        %v728 = vlaneseq
        %v729 = vshrl.u32 %v728, 7
        %v730 = vsub.s32 0, %v729
        %v731 = vrot.slane %v711, %v730
        %v732 = vadd.f32 %v721, %v731
        %v733 = vadd.f32 %v726, %v731
        %vm734 = vcmp.gt.f32.partialorder %v732, 0.0
        %vm735 = vcmp.gt.f32.partialorder %v733, 0.0
        %v736 = vmul.f32 %v732, 0.2
        %v737 = vmul.f32 %v733, 0.2
        %v738 = vsel %vm734, %v732, %v736
        %v739 = vsel %vm735, %v733, %v737
        %v740 = vsel %vm716, %v738, -1e+30
        %v741 = vsel %vm717, %v739, -1e+30
        %vm742 = vcmask 130048
        %v743 = vsel %vm742, %v740, -inf
        %744 = vmax.xlane.f32.xlu0 %v743
        %v745 = vpop.xlane.xlu0 %744
        %v746 = vsel %vm742, %v741, -inf
        %747 = vmax.xlane.f32.xlu0 %v746
        %v748 = vpop.xlane.xlu0 %747
        %v749 = vsub.f32 %v740, %v745
        %v750 = vsub.f32 %v741, %v748
        %v751 = vmul.f32 %v749, 1.442695
        %v752 = vpow.pop %v751
        %v753 = vmul.f32 %v750, 1.442695
        %v754 = vpow.pop %v753
        %v755 = vsel %vm742, %v752, 0.0
        %756 = vadd.xlane.f32.xlu0 %v755
        %v757 = vpop.xlane.xlu0 %756
        %v758 = vsel %vm742, %v754, 0.0
        %759 = vadd.xlane.f32.xlu0 %v758
        %v760 = vpop.xlane.xlu0 %759
        %v761 = vrcp.pop %v757
        %v762 = vrcp.pop %v760
        %v763 = vmul.f32 %v752, %v761
        %v764 = vmul.f32 %v754, %v762
        %765 = vset.pattern.permute.xlu0 1
        %766 = vperm.xlu0 %765, %v666
        %v767 = vpop.permute.xlu0 %766
        %769 = vset.pattern.permute.xlu0 1
        %770 = vperm.xlu0 %769, %v669
        %v771 = vpop.permute.xlu0 %770
        %v773 = vlaneseq
        %v774 = vshrl.u32 %v773, 7
        %v775 = vsub.s32 1, %v774
        %v776 = vrot.slane %v711, %v775
        %v777 = vadd.f32 %v767, %v776
        %v778 = vadd.f32 %v771, %v776
        %vm779 = vcmp.gt.f32.partialorder %v777, 0.0
        %vm780 = vcmp.gt.f32.partialorder %v778, 0.0
        %v781 = vmul.f32 %v777, 0.2
        %v782 = vmul.f32 %v778, 0.2
        %v783 = vsel %vm779, %v777, %v781
        %v784 = vsel %vm780, %v778, %v782
        %v785 = vsel %vm716, %v783, -1e+30
        %v786 = vsel %vm717, %v784, -1e+30
        %v787 = vsel %vm742, %v785, -inf
        %788 = vmax.xlane.f32.xlu0 %v787
        %v789 = vpop.xlane.xlu0 %788
        %v790 = vsel %vm742, %v786, -inf
        %791 = vmax.xlane.f32.xlu0 %v790
        %v792 = vpop.xlane.xlu0 %791
        %v793 = vsub.f32 %v785, %v789
        %v794 = vsub.f32 %v786, %v792
        %v795 = vmul.f32 %v793, 1.442695
        %v796 = vpow.pop %v795
        %v797 = vmul.f32 %v794, 1.442695
        %v798 = vpow.pop %v797
        %v799 = vsel %vm742, %v796, 0.0
        %800 = vadd.xlane.f32.xlu0 %v799
        %v801 = vpop.xlane.xlu0 %800
        %v802 = vsel %vm742, %v798, 0.0
        %803 = vadd.xlane.f32.xlu0 %v802
        %v804 = vpop.xlane.xlu0 %803
        %v805 = vrcp.pop %v801
        %v806 = vrcp.pop %v804
        %v807 = vmul.f32 %v796, %v805
        %v808 = vmul.f32 %v798, %v806
        %811 = vrot.lane.b32.xlu0 %v615, 116
        %v812 = vpop.permute.xlu0 %811
        %813 = vrot.lane.b32.xlu0 %v618, 116
        %v814 = vpop.permute.xlu0 %813
        %v818 = vsel %vm742, %v807, 0
        %v821 = vsel %vm742, %v808, 0
        %823 = vmatprep.subr.mxu0 0.0
        %824 = vmatpush1.msra.mxu0 0.0
        %825 = vmatprep.subr.mxu0 0.0
        %826 = vmatpush1.msra.mxu0 0.0
        %827 = vmatprep.subr.mxu0 0.0
        %828 = vmatpush1.msra.mxu0 0.0
        %829 = vmatprep.subr.mxu0 0.0
        %830 = vmatpush1.msra.mxu0 0.0
        %831 = vmatprep.subr.mxu0 0.0
        %832 = vmatpush1.msra.mxu0 0.0
        %833 = vmatprep.subr.mxu0 0.0
        %834 = vmatpush1.msra.mxu0 0.0
        %835 = vmatprep.subr.mxu0 0.0
        %836 = vmatpush1.msra.mxu0 0.0
        %837 = vmatprep.subr.mxu0 0.0
        %838 = vmatpush1.msra.mxu0 0.0
        %839 = vmatprep.subr.mxu0 0.0
        %840 = vmatpush1.msra.mxu0 0.0
        %841 = vmatprep.subr.mxu0 0.0
        %842 = vmatpush1.msra.mxu0 0.0
        %843 = vmatprep.subr.mxu0 0.0
        %844 = vmatpush1.msra.mxu0 0.0
        %845 = vmatprep.subr.mxu0 0.0
        %846 = vmatpush1.msra.mxu0 0.0
        %847 = vmatprep.subr.mxu0 0.0
        %848 = vmatpush1.msra.mxu0 0.0
        %849 = vmatprep.subr.mxu0 0.0
        %850 = vmatpush1.msra.mxu0 0.0
        %851 = vmatprep.subr.mxu0 0.0
        %852 = vmatpush1.msra.mxu0 %v814
        %853 = vmatprep.subr.mxu0 0.0
        %854 = vmatpush1.msra.mxu0 %v812
        %855 = vmatprep.subr.mxu0 0.0
        %856 = vmatpush2.msra.mxu0 0.0
        %857 = vmatprep.subr.mxu0 0.0
        %858 = vmatpush2.msra.mxu0 0.0
        %859 = vmatprep.subr.mxu0 0.0
        %860 = vmatpush2.msra.mxu0 0.0
        %861 = vmatprep.subr.mxu0 0.0
        %862 = vmatpush2.msra.mxu0 0.0
        %863 = vmatprep.subr.mxu0 0.0
        %864 = vmatpush2.msra.mxu0 0.0
        %865 = vmatprep.subr.mxu0 0.0
        %866 = vmatpush2.msra.mxu0 0.0
        %867 = vmatprep.subr.mxu0 0.0
        %868 = vmatpush2.msra.mxu0 0.0
        %869 = vmatprep.subr.mxu0 0.0
        %870 = vmatpush2.msra.mxu0 0.0
        %871 = vmatprep.subr.mxu0 0.0
        %872 = vmatpush2.msra.mxu0 0.0
        %873 = vmatprep.subr.mxu0 0.0
        %874 = vmatpush2.msra.mxu0 0.0
        %875 = vmatprep.subr.mxu0 0.0
        %876 = vmatpush2.msra.mxu0 0.0
        %877 = vmatprep.subr.mxu0 0.0
        %878 = vmatpush2.msra.mxu0 0.0
        %879 = vmatprep.subr.mxu0 0.0
        %880 = vmatpush2.msra.mxu0 0.0
        %881 = vmatprep.subr.mxu0 0.0
        %882 = vmatpush2.msra.mxu0 0.0
        %883 = vmatprep.subr.mxu0 0.0
        %884 = vmatpush2.msra.mxu0 0.0
        %885 = vmatprep.subr.mxu0 0.0
        %886 = vmatpush2.msra.mxu0 0.0
        %887 = vmatprep.mubr.f32.mxu0 0.0
        %888 = vmatmul.mubr.f32.gmra.mxu0 %v818
        %v889 = vpop.f32.mrf.mxu0
        %v890 = vadd.f32 0.0, %v889
        %v891 = vpop.f32.mrf.mxu0
        %892 = vmatprep.mubr.f32.mxu0 0.0
        %893 = vmatmul.mubr.f32.gmra.mxu0 %v821
        %v894 = vpop.f32.mrf.mxu0
        %v895 = vadd.f32 0.0, %v894
        %v896 = vpop.f32.mrf.mxu0
        %897 = vdwg.mxu0
        %v899 = vsel %vm742, %v763, 0
        %v902 = vsel %vm742, %v764, 0
        %904 = vmatprep.subr.mxu0 0.0
        %905 = vmatpush1.msra.mxu0 0.0
        %906 = vmatprep.subr.mxu0 0.0
        %907 = vmatpush1.msra.mxu0 0.0
        %908 = vmatprep.subr.mxu0 0.0
        %909 = vmatpush1.msra.mxu0 0.0
        %910 = vmatprep.subr.mxu0 0.0
        %911 = vmatpush1.msra.mxu0 0.0
        %912 = vmatprep.subr.mxu0 0.0
        %913 = vmatpush1.msra.mxu0 0.0
        %914 = vmatprep.subr.mxu0 0.0
        %915 = vmatpush1.msra.mxu0 0.0
        %916 = vmatprep.subr.mxu0 0.0
        %917 = vmatpush1.msra.mxu0 0.0
        %918 = vmatprep.subr.mxu0 0.0
        %919 = vmatpush1.msra.mxu0 0.0
        %920 = vmatprep.subr.mxu0 0.0
        %921 = vmatpush1.msra.mxu0 0.0
        %922 = vmatprep.subr.mxu0 0.0
        %923 = vmatpush1.msra.mxu0 0.0
        %924 = vmatprep.subr.mxu0 0.0
        %925 = vmatpush1.msra.mxu0 0.0
        %926 = vmatprep.subr.mxu0 0.0
        %927 = vmatpush1.msra.mxu0 0.0
        %928 = vmatprep.subr.mxu0 0.0
        %929 = vmatpush1.msra.mxu0 0.0
        %930 = vmatprep.subr.mxu0 0.0
        %931 = vmatpush1.msra.mxu0 0.0
        %932 = vmatprep.subr.mxu0 0.0
        %933 = vmatpush1.msra.mxu0 %v618
        %934 = vmatprep.subr.mxu0 0.0
        %935 = vmatpush1.msra.mxu0 %v615
        %936 = vmatprep.subr.mxu0 0.0
        %937 = vmatpush2.msra.mxu0 0.0
        %938 = vmatprep.subr.mxu0 0.0
        %939 = vmatpush2.msra.mxu0 0.0
        %940 = vmatprep.subr.mxu0 0.0
        %941 = vmatpush2.msra.mxu0 0.0
        %942 = vmatprep.subr.mxu0 0.0
        %943 = vmatpush2.msra.mxu0 0.0
        %944 = vmatprep.subr.mxu0 0.0
        %945 = vmatpush2.msra.mxu0 0.0
        %946 = vmatprep.subr.mxu0 0.0
        %947 = vmatpush2.msra.mxu0 0.0
        %948 = vmatprep.subr.mxu0 0.0
        %949 = vmatpush2.msra.mxu0 0.0
        %950 = vmatprep.subr.mxu0 0.0
        %951 = vmatpush2.msra.mxu0 0.0
        %952 = vmatprep.subr.mxu0 0.0
        %953 = vmatpush2.msra.mxu0 0.0
        %954 = vmatprep.subr.mxu0 0.0
        %955 = vmatpush2.msra.mxu0 0.0
        %956 = vmatprep.subr.mxu0 0.0
        %957 = vmatpush2.msra.mxu0 0.0
        %958 = vmatprep.subr.mxu0 0.0
        %959 = vmatpush2.msra.mxu0 0.0
        %960 = vmatprep.subr.mxu0 0.0
        %961 = vmatpush2.msra.mxu0 0.0
        %962 = vmatprep.subr.mxu0 0.0
        %963 = vmatpush2.msra.mxu0 0.0
        %964 = vmatprep.subr.mxu0 0.0
        %965 = vmatpush2.msra.mxu0 0.0
        %966 = vmatprep.subr.mxu0 0.0
        %967 = vmatpush2.msra.mxu0 0.0
        %968 = vmatprep.mubr.f32.mxu0 0.0
        %969 = vmatmul.mubr.f32.gmra.mxu0 %v899
        %v970 = vpop.f32.mrf.mxu0
        %v971 = vadd.f32 %v890, %v970
        %v972 = vpop.f32.mrf.mxu0
        %973 = vmatprep.mubr.f32.mxu0 0.0
        %974 = vmatmul.mubr.f32.gmra.mxu0 %v902
        %v975 = vpop.f32.mrf.mxu0
        %v976 = vadd.f32 %v895, %v975
        %v977 = vpop.f32.mrf.mxu0
        %978 = vdwg.mxu0
        %979 = vset.pattern.permute.xlu0 2
        %980 = vperm.xlu0 %979, %v666
        %v981 = vpop.permute.xlu0 %980
        %983 = vset.pattern.permute.xlu0 2
        %984 = vperm.xlu0 %983, %v669
        %v985 = vpop.permute.xlu0 %984
        %v987 = vlaneseq
        %v988 = vshrl.u32 %v987, 7
        %v989 = vsub.s32 2, %v988
        %v990 = vrot.slane %v711, %v989
        %v991 = vadd.f32 %v981, %v990
        %v992 = vadd.f32 %v985, %v990
        %vm993 = vcmp.gt.f32.partialorder %v991, 0.0
        %vm994 = vcmp.gt.f32.partialorder %v992, 0.0
        %v995 = vmul.f32 %v991, 0.2
        %v996 = vmul.f32 %v992, 0.2
        %v997 = vsel %vm993, %v991, %v995
        %v998 = vsel %vm994, %v992, %v996
        %v999 = vsel %vm716, %v997, -1e+30
        %v1000 = vsel %vm717, %v998, -1e+30
        %v1001 = vsel %vm742, %v999, -inf
        %1002 = vmax.xlane.f32.xlu0 %v1001
        %v1003 = vpop.xlane.xlu0 %1002
        %v1004 = vsel %vm742, %v1000, -inf
        %1005 = vmax.xlane.f32.xlu0 %v1004
        %v1006 = vpop.xlane.xlu0 %1005
        %v1007 = vsub.f32 %v999, %v1003
        %v1008 = vsub.f32 %v1000, %v1006
        %v1009 = vmul.f32 %v1007, 1.442695
        %v1010 = vpow.pop %v1009
        %v1011 = vmul.f32 %v1008, 1.442695
        %v1012 = vpow.pop %v1011
        %v1013 = vsel %vm742, %v1010, 0.0
        %1014 = vadd.xlane.f32.xlu0 %v1013
        %v1015 = vpop.xlane.xlu0 %1014
        %v1016 = vsel %vm742, %v1012, 0.0
        %1017 = vadd.xlane.f32.xlu0 %v1016
        %v1018 = vpop.xlane.xlu0 %1017
        %v1019 = vrcp.pop %v1015
        %v1020 = vrcp.pop %v1018
        %v1021 = vmul.f32 %v1010, %v1019
        %v1022 = vmul.f32 %v1012, %v1020
        %1023 = vrot.lane.b32.xlu0 %v615, 104
        %v1024 = vpop.permute.xlu0 %1023
        %1025 = vrot.lane.b32.xlu0 %v618, 104
        %v1026 = vpop.permute.xlu0 %1025
        %v1030 = vsel %vm742, %v1021, 0
        %v1033 = vsel %vm742, %v1022, 0
        %1035 = vmatprep.subr.mxu0 0.0
        %1036 = vmatpush1.msra.mxu0 0.0
        %1037 = vmatprep.subr.mxu0 0.0
        %1038 = vmatpush1.msra.mxu0 0.0
        %1039 = vmatprep.subr.mxu0 0.0
        %1040 = vmatpush1.msra.mxu0 0.0
        %1041 = vmatprep.subr.mxu0 0.0
        %1042 = vmatpush1.msra.mxu0 0.0
        %1043 = vmatprep.subr.mxu0 0.0
        %1044 = vmatpush1.msra.mxu0 0.0
        %1045 = vmatprep.subr.mxu0 0.0
        %1046 = vmatpush1.msra.mxu0 0.0
        %1047 = vmatprep.subr.mxu0 0.0
        %1048 = vmatpush1.msra.mxu0 0.0
        %1049 = vmatprep.subr.mxu0 0.0
        %1050 = vmatpush1.msra.mxu0 0.0
        %1051 = vmatprep.subr.mxu0 0.0
        %1052 = vmatpush1.msra.mxu0 0.0
        %1053 = vmatprep.subr.mxu0 0.0
        %1054 = vmatpush1.msra.mxu0 0.0
        %1055 = vmatprep.subr.mxu0 0.0
        %1056 = vmatpush1.msra.mxu0 0.0
        %1057 = vmatprep.subr.mxu0 0.0
        %1058 = vmatpush1.msra.mxu0 0.0
        %1059 = vmatprep.subr.mxu0 0.0
        %1060 = vmatpush1.msra.mxu0 0.0
        %1061 = vmatprep.subr.mxu0 0.0
        %1062 = vmatpush1.msra.mxu0 0.0
        %1063 = vmatprep.subr.mxu0 0.0
        %1064 = vmatpush1.msra.mxu0 %v1026
        %1065 = vmatprep.subr.mxu0 0.0
        %1066 = vmatpush1.msra.mxu0 %v1024
        %1067 = vmatprep.subr.mxu0 0.0
        %1068 = vmatpush2.msra.mxu0 0.0
        %1069 = vmatprep.subr.mxu0 0.0
        %1070 = vmatpush2.msra.mxu0 0.0
        %1071 = vmatprep.subr.mxu0 0.0
        %1072 = vmatpush2.msra.mxu0 0.0
        %1073 = vmatprep.subr.mxu0 0.0
        %1074 = vmatpush2.msra.mxu0 0.0
        %1075 = vmatprep.subr.mxu0 0.0
        %1076 = vmatpush2.msra.mxu0 0.0
        %1077 = vmatprep.subr.mxu0 0.0
        %1078 = vmatpush2.msra.mxu0 0.0
        %1079 = vmatprep.subr.mxu0 0.0
        %1080 = vmatpush2.msra.mxu0 0.0
        %1081 = vmatprep.subr.mxu0 0.0
        %1082 = vmatpush2.msra.mxu0 0.0
        %1083 = vmatprep.subr.mxu0 0.0
        %1084 = vmatpush2.msra.mxu0 0.0
        %1085 = vmatprep.subr.mxu0 0.0
        %1086 = vmatpush2.msra.mxu0 0.0
        %1087 = vmatprep.subr.mxu0 0.0
        %1088 = vmatpush2.msra.mxu0 0.0
        %1089 = vmatprep.subr.mxu0 0.0
        %1090 = vmatpush2.msra.mxu0 0.0
        %1091 = vmatprep.subr.mxu0 0.0
        %1092 = vmatpush2.msra.mxu0 0.0
        %1093 = vmatprep.subr.mxu0 0.0
        %1094 = vmatpush2.msra.mxu0 0.0
        %1095 = vmatprep.subr.mxu0 0.0
        %1096 = vmatpush2.msra.mxu0 0.0
        %1097 = vmatprep.subr.mxu0 0.0
        %1098 = vmatpush2.msra.mxu0 0.0
        %1099 = vmatprep.mubr.f32.mxu0 0.0
        %1100 = vmatmul.mubr.f32.gmra.mxu0 %v1030
        %v1101 = vpop.f32.mrf.mxu0
        %v1102 = vadd.f32 0.0, %v1101
        %v1103 = vpop.f32.mrf.mxu0
        %1104 = vmatprep.mubr.f32.mxu0 0.0
        %1105 = vmatmul.mubr.f32.gmra.mxu0 %v1033
        %v1106 = vpop.f32.mrf.mxu0
        %v1107 = vadd.f32 0.0, %v1106
        %v1108 = vpop.f32.mrf.mxu0
        %1109 = vdwg.mxu0
        %v1110 = vadd.f32 %v971, %v1102
        %v1111 = vadd.f32 %v976, %v1107
        %1112 = vset.pattern.permute.xlu0 3
        %1113 = vperm.xlu0 %1112, %v666
        %v1114 = vpop.permute.xlu0 %1113
        %1116 = vset.pattern.permute.xlu0 3
        %1117 = vperm.xlu0 %1116, %v669
        %v1118 = vpop.permute.xlu0 %1117
        %v1120 = vlaneseq
        %v1121 = vshrl.u32 %v1120, 7
        %v1122 = vsub.s32 3, %v1121
        %v1123 = vrot.slane %v711, %v1122
        %v1124 = vadd.f32 %v1114, %v1123
        %v1125 = vadd.f32 %v1118, %v1123
        %vm1126 = vcmp.gt.f32.partialorder %v1124, 0.0
        %vm1127 = vcmp.gt.f32.partialorder %v1125, 0.0
        %v1128 = vmul.f32 %v1124, 0.2
        %v1129 = vmul.f32 %v1125, 0.2
        %v1130 = vsel %vm1126, %v1124, %v1128
        %v1131 = vsel %vm1127, %v1125, %v1129
        %v1132 = vsel %vm716, %v1130, -1e+30
        %v1133 = vsel %vm717, %v1131, -1e+30
        %v1134 = vsel %vm742, %v1132, -inf
        %1135 = vmax.xlane.f32.xlu0 %v1134
        %v1136 = vpop.xlane.xlu0 %1135
        %v1137 = vsel %vm742, %v1133, -inf
        %1138 = vmax.xlane.f32.xlu0 %v1137
        %v1139 = vpop.xlane.xlu0 %1138
        %v1140 = vsub.f32 %v1132, %v1136
        %v1141 = vsub.f32 %v1133, %v1139
        %v1142 = vmul.f32 %v1140, 1.442695
        %v1143 = vpow.pop %v1142
        %v1144 = vmul.f32 %v1141, 1.442695
        %v1145 = vpow.pop %v1144
        %v1146 = vsel %vm742, %v1143, 0.0
        %1147 = vadd.xlane.f32.xlu0 %v1146
        %v1148 = vpop.xlane.xlu0 %1147
        %v1149 = vsel %vm742, %v1145, 0.0
        %1150 = vadd.xlane.f32.xlu0 %v1149
        %v1151 = vpop.xlane.xlu0 %1150
        %v1152 = vrcp.pop %v1148
        %v1153 = vrcp.pop %v1151
        %v1154 = vmul.f32 %v1143, %v1152
        %v1155 = vmul.f32 %v1145, %v1153
        %1156 = vrot.lane.b32.xlu0 %v615, 92
        %v1157 = vpop.permute.xlu0 %1156
        %1158 = vrot.lane.b32.xlu0 %v618, 92
        %v1159 = vpop.permute.xlu0 %1158
        %v1163 = vsel %vm742, %v1154, 0
        %v1166 = vsel %vm742, %v1155, 0
        %1168 = vmatprep.subr.mxu0 0.0
        %1169 = vmatpush1.msra.mxu0 0.0
        %1170 = vmatprep.subr.mxu0 0.0
        %1171 = vmatpush1.msra.mxu0 0.0
        %1172 = vmatprep.subr.mxu0 0.0
        %1173 = vmatpush1.msra.mxu0 0.0
        %1174 = vmatprep.subr.mxu0 0.0
        %1175 = vmatpush1.msra.mxu0 0.0
        %1176 = vmatprep.subr.mxu0 0.0
        %1177 = vmatpush1.msra.mxu0 0.0
        %1178 = vmatprep.subr.mxu0 0.0
        %1179 = vmatpush1.msra.mxu0 0.0
        %1180 = vmatprep.subr.mxu0 0.0
        %1181 = vmatpush1.msra.mxu0 0.0
        %1182 = vmatprep.subr.mxu0 0.0
        %1183 = vmatpush1.msra.mxu0 0.0
        %1184 = vmatprep.subr.mxu0 0.0
        %1185 = vmatpush1.msra.mxu0 0.0
        %1186 = vmatprep.subr.mxu0 0.0
        %1187 = vmatpush1.msra.mxu0 0.0
        %1188 = vmatprep.subr.mxu0 0.0
        %1189 = vmatpush1.msra.mxu0 0.0
        %1190 = vmatprep.subr.mxu0 0.0
        %1191 = vmatpush1.msra.mxu0 0.0
        %1192 = vmatprep.subr.mxu0 0.0
        %1193 = vmatpush1.msra.mxu0 0.0
        %1194 = vmatprep.subr.mxu0 0.0
        %1195 = vmatpush1.msra.mxu0 0.0
        %1196 = vmatprep.subr.mxu0 0.0
        %1197 = vmatpush1.msra.mxu0 %v1159
        %1198 = vmatprep.subr.mxu0 0.0
        %1199 = vmatpush1.msra.mxu0 %v1157
        %1200 = vmatprep.subr.mxu0 0.0
        %1201 = vmatpush2.msra.mxu0 0.0
        %1202 = vmatprep.subr.mxu0 0.0
        %1203 = vmatpush2.msra.mxu0 0.0
        %1204 = vmatprep.subr.mxu0 0.0
        %1205 = vmatpush2.msra.mxu0 0.0
        %1206 = vmatprep.subr.mxu0 0.0
        %1207 = vmatpush2.msra.mxu0 0.0
        %1208 = vmatprep.subr.mxu0 0.0
        %1209 = vmatpush2.msra.mxu0 0.0
        %1210 = vmatprep.subr.mxu0 0.0
        %1211 = vmatpush2.msra.mxu0 0.0
        %1212 = vmatprep.subr.mxu0 0.0
        %1213 = vmatpush2.msra.mxu0 0.0
        %1214 = vmatprep.subr.mxu0 0.0
        %1215 = vmatpush2.msra.mxu0 0.0
        %1216 = vmatprep.subr.mxu0 0.0
        %1217 = vmatpush2.msra.mxu0 0.0
        %1218 = vmatprep.subr.mxu0 0.0
        %1219 = vmatpush2.msra.mxu0 0.0
        %1220 = vmatprep.subr.mxu0 0.0
        %1221 = vmatpush2.msra.mxu0 0.0
        %1222 = vmatprep.subr.mxu0 0.0
        %1223 = vmatpush2.msra.mxu0 0.0
        %1224 = vmatprep.subr.mxu0 0.0
        %1225 = vmatpush2.msra.mxu0 0.0
        %1226 = vmatprep.subr.mxu0 0.0
        %1227 = vmatpush2.msra.mxu0 0.0
        %1228 = vmatprep.subr.mxu0 0.0
        %1229 = vmatpush2.msra.mxu0 0.0
        %1230 = vmatprep.subr.mxu0 0.0
        %1231 = vmatpush2.msra.mxu0 0.0
        %1232 = vmatprep.mubr.f32.mxu0 0.0
        %1233 = vmatmul.mubr.f32.gmra.mxu0 %v1163
        %v1234 = vpop.f32.mrf.mxu0
        %v1235 = vadd.f32 0.0, %v1234
        %v1236 = vpop.f32.mrf.mxu0
        %1237 = vmatprep.mubr.f32.mxu0 0.0
        %1238 = vmatmul.mubr.f32.gmra.mxu0 %v1166
        %v1239 = vpop.f32.mrf.mxu0
        %v1240 = vadd.f32 0.0, %v1239
        %v1241 = vpop.f32.mrf.mxu0
        %1242 = vdwg.mxu0
        %v1243 = vadd.f32 %v1110, %v1235
        %v1244 = vadd.f32 %v1111, %v1240
        %1245 = vset.pattern.permute.xlu0 4
        %1246 = vperm.xlu0 %1245, %v666
        %v1247 = vpop.permute.xlu0 %1246
        %1249 = vset.pattern.permute.xlu0 4
        %1250 = vperm.xlu0 %1249, %v669
        %v1251 = vpop.permute.xlu0 %1250
        %v1253 = vlaneseq
        %v1254 = vshrl.u32 %v1253, 7
        %v1255 = vsub.s32 4, %v1254
        %v1256 = vrot.slane %v711, %v1255
        %v1257 = vadd.f32 %v1247, %v1256
        %v1258 = vadd.f32 %v1251, %v1256
        %vm1259 = vcmp.gt.f32.partialorder %v1257, 0.0
        %vm1260 = vcmp.gt.f32.partialorder %v1258, 0.0
        %v1261 = vmul.f32 %v1257, 0.2
        %v1262 = vmul.f32 %v1258, 0.2
        %v1263 = vsel %vm1259, %v1257, %v1261
        %v1264 = vsel %vm1260, %v1258, %v1262
        %v1265 = vsel %vm716, %v1263, -1e+30
        %v1266 = vsel %vm717, %v1264, -1e+30
        %v1267 = vsel %vm742, %v1265, -inf
        %1268 = vmax.xlane.f32.xlu0 %v1267
        %v1269 = vpop.xlane.xlu0 %1268
        %v1270 = vsel %vm742, %v1266, -inf
        %1271 = vmax.xlane.f32.xlu0 %v1270
        %v1272 = vpop.xlane.xlu0 %1271
        %v1273 = vsub.f32 %v1265, %v1269
        %v1274 = vsub.f32 %v1266, %v1272
        %v1275 = vmul.f32 %v1273, 1.442695
        %v1276 = vpow.pop %v1275
        %v1277 = vmul.f32 %v1274, 1.442695
        %v1278 = vpow.pop %v1277
        %v1279 = vsel %vm742, %v1276, 0.0
        %1280 = vadd.xlane.f32.xlu0 %v1279
        %v1281 = vpop.xlane.xlu0 %1280
        %v1282 = vsel %vm742, %v1278, 0.0
        %1283 = vadd.xlane.f32.xlu0 %v1282
        %v1284 = vpop.xlane.xlu0 %1283
        %v1285 = vrcp.pop %v1281
        %v1286 = vrcp.pop %v1284
        %v1287 = vmul.f32 %v1276, %v1285
        %v1288 = vmul.f32 %v1278, %v1286
        %1289 = vrot.lane.b32.xlu0 %v615, 80
        %v1290 = vpop.permute.xlu0 %1289
        %1291 = vrot.lane.b32.xlu0 %v618, 80
        %v1292 = vpop.permute.xlu0 %1291
        %v1296 = vsel %vm742, %v1287, 0
        %v1299 = vsel %vm742, %v1288, 0
        %1301 = vmatprep.subr.mxu0 0.0
        %1302 = vmatpush1.msra.mxu0 0.0
        %1303 = vmatprep.subr.mxu0 0.0
        %1304 = vmatpush1.msra.mxu0 0.0
        %1305 = vmatprep.subr.mxu0 0.0
        %1306 = vmatpush1.msra.mxu0 0.0
        %1307 = vmatprep.subr.mxu0 0.0
        %1308 = vmatpush1.msra.mxu0 0.0
        %1309 = vmatprep.subr.mxu0 0.0
        %1310 = vmatpush1.msra.mxu0 0.0
        %1311 = vmatprep.subr.mxu0 0.0
        %1312 = vmatpush1.msra.mxu0 0.0
        %1313 = vmatprep.subr.mxu0 0.0
        %1314 = vmatpush1.msra.mxu0 0.0
        %1315 = vmatprep.subr.mxu0 0.0
        %1316 = vmatpush1.msra.mxu0 0.0
        %1317 = vmatprep.subr.mxu0 0.0
        %1318 = vmatpush1.msra.mxu0 0.0
        %1319 = vmatprep.subr.mxu0 0.0
        %1320 = vmatpush1.msra.mxu0 0.0
        %1321 = vmatprep.subr.mxu0 0.0
        %1322 = vmatpush1.msra.mxu0 0.0
        %1323 = vmatprep.subr.mxu0 0.0
        %1324 = vmatpush1.msra.mxu0 0.0
        %1325 = vmatprep.subr.mxu0 0.0
        %1326 = vmatpush1.msra.mxu0 0.0
        %1327 = vmatprep.subr.mxu0 0.0
        %1328 = vmatpush1.msra.mxu0 0.0
        %1329 = vmatprep.subr.mxu0 0.0
        %1330 = vmatpush1.msra.mxu0 %v1292
        %1331 = vmatprep.subr.mxu0 0.0
        %1332 = vmatpush1.msra.mxu0 %v1290
        %1333 = vmatprep.subr.mxu0 0.0
        %1334 = vmatpush2.msra.mxu0 0.0
        %1335 = vmatprep.subr.mxu0 0.0
        %1336 = vmatpush2.msra.mxu0 0.0
        %1337 = vmatprep.subr.mxu0 0.0
        %1338 = vmatpush2.msra.mxu0 0.0
        %1339 = vmatprep.subr.mxu0 0.0
        %1340 = vmatpush2.msra.mxu0 0.0
        %1341 = vmatprep.subr.mxu0 0.0
        %1342 = vmatpush2.msra.mxu0 0.0
        %1343 = vmatprep.subr.mxu0 0.0
        %1344 = vmatpush2.msra.mxu0 0.0
        %1345 = vmatprep.subr.mxu0 0.0
        %1346 = vmatpush2.msra.mxu0 0.0
        %1347 = vmatprep.subr.mxu0 0.0
        %1348 = vmatpush2.msra.mxu0 0.0
        %1349 = vmatprep.subr.mxu0 0.0
        %1350 = vmatpush2.msra.mxu0 0.0
        %1351 = vmatprep.subr.mxu0 0.0
        %1352 = vmatpush2.msra.mxu0 0.0
        %1353 = vmatprep.subr.mxu0 0.0
        %1354 = vmatpush2.msra.mxu0 0.0
        %1355 = vmatprep.subr.mxu0 0.0
        %1356 = vmatpush2.msra.mxu0 0.0
        %1357 = vmatprep.subr.mxu0 0.0
        %1358 = vmatpush2.msra.mxu0 0.0
        %1359 = vmatprep.subr.mxu0 0.0
        %1360 = vmatpush2.msra.mxu0 0.0
        %1361 = vmatprep.subr.mxu0 0.0
        %1362 = vmatpush2.msra.mxu0 0.0
        %1363 = vmatprep.subr.mxu0 0.0
        %1364 = vmatpush2.msra.mxu0 0.0
        %1365 = vmatprep.mubr.f32.mxu0 0.0
        %1366 = vmatmul.mubr.f32.gmra.mxu0 %v1296
        %v1367 = vpop.f32.mrf.mxu0
        %v1368 = vadd.f32 0.0, %v1367
        %v1369 = vpop.f32.mrf.mxu0
        %1370 = vmatprep.mubr.f32.mxu0 0.0
        %1371 = vmatmul.mubr.f32.gmra.mxu0 %v1299
        %v1372 = vpop.f32.mrf.mxu0
        %v1373 = vadd.f32 0.0, %v1372
        %v1374 = vpop.f32.mrf.mxu0
        %1375 = vdwg.mxu0
        %v1376 = vadd.f32 %v1243, %v1368
        %v1377 = vadd.f32 %v1244, %v1373
        %1378 = vset.pattern.permute.xlu0 5
        %1379 = vperm.xlu0 %1378, %v666
        %v1380 = vpop.permute.xlu0 %1379
        %1382 = vset.pattern.permute.xlu0 5
        %1383 = vperm.xlu0 %1382, %v669
        %v1384 = vpop.permute.xlu0 %1383
        %v1386 = vlaneseq
        %v1387 = vshrl.u32 %v1386, 7
        %v1388 = vsub.s32 5, %v1387
        %v1389 = vrot.slane %v711, %v1388
        %v1390 = vadd.f32 %v1380, %v1389
        %v1391 = vadd.f32 %v1384, %v1389
        %vm1392 = vcmp.gt.f32.partialorder %v1390, 0.0
        %vm1393 = vcmp.gt.f32.partialorder %v1391, 0.0
        %v1394 = vmul.f32 %v1390, 0.2
        %v1395 = vmul.f32 %v1391, 0.2
        %v1396 = vsel %vm1392, %v1390, %v1394
        %v1397 = vsel %vm1393, %v1391, %v1395
        %v1398 = vsel %vm716, %v1396, -1e+30
        %v1399 = vsel %vm717, %v1397, -1e+30
        %v1400 = vsel %vm742, %v1398, -inf
        %1401 = vmax.xlane.f32.xlu0 %v1400
        %v1402 = vpop.xlane.xlu0 %1401
        %v1403 = vsel %vm742, %v1399, -inf
        %1404 = vmax.xlane.f32.xlu0 %v1403
        %v1405 = vpop.xlane.xlu0 %1404
        %v1406 = vsub.f32 %v1398, %v1402
        %v1407 = vsub.f32 %v1399, %v1405
        %v1408 = vmul.f32 %v1406, 1.442695
        %v1409 = vpow.pop %v1408
        %v1410 = vmul.f32 %v1407, 1.442695
        %v1411 = vpow.pop %v1410
        %v1412 = vsel %vm742, %v1409, 0.0
        %1413 = vadd.xlane.f32.xlu0 %v1412
        %v1414 = vpop.xlane.xlu0 %1413
        %v1415 = vsel %vm742, %v1411, 0.0
        %1416 = vadd.xlane.f32.xlu0 %v1415
        %v1417 = vpop.xlane.xlu0 %1416
        %v1418 = vrcp.pop %v1414
        %v1419 = vrcp.pop %v1417
        %v1420 = vmul.f32 %v1409, %v1418
        %v1421 = vmul.f32 %v1411, %v1419
        %1422 = vrot.lane.b32.xlu0 %v615, 68
        %v1423 = vpop.permute.xlu0 %1422
        %1424 = vrot.lane.b32.xlu0 %v618, 68
        %v1425 = vpop.permute.xlu0 %1424
        %v1429 = vsel %vm742, %v1420, 0
        %v1432 = vsel %vm742, %v1421, 0
        %1434 = vmatprep.subr.mxu0 0.0
        %1435 = vmatpush1.msra.mxu0 0.0
        %1436 = vmatprep.subr.mxu0 0.0
        %1437 = vmatpush1.msra.mxu0 0.0
        %1438 = vmatprep.subr.mxu0 0.0
        %1439 = vmatpush1.msra.mxu0 0.0
        %1440 = vmatprep.subr.mxu0 0.0
        %1441 = vmatpush1.msra.mxu0 0.0
        %1442 = vmatprep.subr.mxu0 0.0
        %1443 = vmatpush1.msra.mxu0 0.0
        %1444 = vmatprep.subr.mxu0 0.0
        %1445 = vmatpush1.msra.mxu0 0.0
        %1446 = vmatprep.subr.mxu0 0.0
        %1447 = vmatpush1.msra.mxu0 0.0
        %1448 = vmatprep.subr.mxu0 0.0
        %1449 = vmatpush1.msra.mxu0 0.0
        %1450 = vmatprep.subr.mxu0 0.0
        %1451 = vmatpush1.msra.mxu0 0.0
        %1452 = vmatprep.subr.mxu0 0.0
        %1453 = vmatpush1.msra.mxu0 0.0
        %1454 = vmatprep.subr.mxu0 0.0
        %1455 = vmatpush1.msra.mxu0 0.0
        %1456 = vmatprep.subr.mxu0 0.0
        %1457 = vmatpush1.msra.mxu0 0.0
        %1458 = vmatprep.subr.mxu0 0.0
        %1459 = vmatpush1.msra.mxu0 0.0
        %1460 = vmatprep.subr.mxu0 0.0
        %1461 = vmatpush1.msra.mxu0 0.0
        %1462 = vmatprep.subr.mxu0 0.0
        %1463 = vmatpush1.msra.mxu0 %v1425
        %1464 = vmatprep.subr.mxu0 0.0
        %1465 = vmatpush1.msra.mxu0 %v1423
        %1466 = vmatprep.subr.mxu0 0.0
        %1467 = vmatpush2.msra.mxu0 0.0
        %1468 = vmatprep.subr.mxu0 0.0
        %1469 = vmatpush2.msra.mxu0 0.0
        %1470 = vmatprep.subr.mxu0 0.0
        %1471 = vmatpush2.msra.mxu0 0.0
        %1472 = vmatprep.subr.mxu0 0.0
        %1473 = vmatpush2.msra.mxu0 0.0
        %1474 = vmatprep.subr.mxu0 0.0
        %1475 = vmatpush2.msra.mxu0 0.0
        %1476 = vmatprep.subr.mxu0 0.0
        %1477 = vmatpush2.msra.mxu0 0.0
        %1478 = vmatprep.subr.mxu0 0.0
        %1479 = vmatpush2.msra.mxu0 0.0
        %1480 = vmatprep.subr.mxu0 0.0
        %1481 = vmatpush2.msra.mxu0 0.0
        %1482 = vmatprep.subr.mxu0 0.0
        %1483 = vmatpush2.msra.mxu0 0.0
        %1484 = vmatprep.subr.mxu0 0.0
        %1485 = vmatpush2.msra.mxu0 0.0
        %1486 = vmatprep.subr.mxu0 0.0
        %1487 = vmatpush2.msra.mxu0 0.0
        %1488 = vmatprep.subr.mxu0 0.0
        %1489 = vmatpush2.msra.mxu0 0.0
        %1490 = vmatprep.subr.mxu0 0.0
        %1491 = vmatpush2.msra.mxu0 0.0
        %1492 = vmatprep.subr.mxu0 0.0
        %1493 = vmatpush2.msra.mxu0 0.0
        %1494 = vmatprep.subr.mxu0 0.0
        %1495 = vmatpush2.msra.mxu0 0.0
        %1496 = vmatprep.subr.mxu0 0.0
        %1497 = vmatpush2.msra.mxu0 0.0
        %1498 = vmatprep.mubr.f32.mxu0 0.0
        %1499 = vmatmul.mubr.f32.gmra.mxu0 %v1429
        %v1500 = vpop.f32.mrf.mxu0
        %v1501 = vadd.f32 0.0, %v1500
        %v1502 = vpop.f32.mrf.mxu0
        %1503 = vmatprep.mubr.f32.mxu0 0.0
        %1504 = vmatmul.mubr.f32.gmra.mxu0 %v1432
        %v1505 = vpop.f32.mrf.mxu0
        %v1506 = vadd.f32 0.0, %v1505
        %v1507 = vpop.f32.mrf.mxu0
        %1508 = vdwg.mxu0
        %v1509 = vadd.f32 %v1376, %v1501
        %v1510 = vadd.f32 %v1377, %v1506
        %1511 = vset.pattern.permute.xlu0 6
        %1512 = vperm.xlu0 %1511, %v666
        %v1513 = vpop.permute.xlu0 %1512
        %1515 = vset.pattern.permute.xlu0 6
        %1516 = vperm.xlu0 %1515, %v669
        %v1517 = vpop.permute.xlu0 %1516
        %v1519 = vlaneseq
        %v1520 = vshrl.u32 %v1519, 7
        %v1521 = vsub.s32 6, %v1520
        %v1522 = vrot.slane %v711, %v1521
        %v1523 = vadd.f32 %v1513, %v1522
        %v1524 = vadd.f32 %v1517, %v1522
        %vm1525 = vcmp.gt.f32.partialorder %v1523, 0.0
        %vm1526 = vcmp.gt.f32.partialorder %v1524, 0.0
        %v1527 = vmul.f32 %v1523, 0.2
        %v1528 = vmul.f32 %v1524, 0.2
        %v1529 = vsel %vm1525, %v1523, %v1527
        %v1530 = vsel %vm1526, %v1524, %v1528
        %v1531 = vsel %vm716, %v1529, -1e+30
        %v1532 = vsel %vm717, %v1530, -1e+30
        %v1533 = vsel %vm742, %v1531, -inf
        %1534 = vmax.xlane.f32.xlu0 %v1533
        %v1535 = vpop.xlane.xlu0 %1534
        %v1536 = vsel %vm742, %v1532, -inf
        %1537 = vmax.xlane.f32.xlu0 %v1536
        %v1538 = vpop.xlane.xlu0 %1537
        %v1539 = vsub.f32 %v1531, %v1535
        %v1540 = vsub.f32 %v1532, %v1538
        %v1541 = vmul.f32 %v1539, 1.442695
        %v1542 = vpow.pop %v1541
        %v1543 = vmul.f32 %v1540, 1.442695
        %v1544 = vpow.pop %v1543
        %v1545 = vsel %vm742, %v1542, 0.0
        %1546 = vadd.xlane.f32.xlu0 %v1545
        %v1547 = vpop.xlane.xlu0 %1546
        %v1548 = vsel %vm742, %v1544, 0.0
        %1549 = vadd.xlane.f32.xlu0 %v1548
        %v1550 = vpop.xlane.xlu0 %1549
        %v1551 = vrcp.pop %v1547
        %v1552 = vrcp.pop %v1550
        %v1553 = vmul.f32 %v1542, %v1551
        %v1554 = vmul.f32 %v1544, %v1552
        %1555 = vrot.lane.b32.xlu0 %v615, 56
        %v1556 = vpop.permute.xlu0 %1555
        %1557 = vrot.lane.b32.xlu0 %v618, 56
        %v1558 = vpop.permute.xlu0 %1557
        %v1562 = vsel %vm742, %v1553, 0
        %v1565 = vsel %vm742, %v1554, 0
        %1567 = vmatprep.subr.mxu0 0.0
        %1568 = vmatpush1.msra.mxu0 0.0
        %1569 = vmatprep.subr.mxu0 0.0
        %1570 = vmatpush1.msra.mxu0 0.0
        %1571 = vmatprep.subr.mxu0 0.0
        %1572 = vmatpush1.msra.mxu0 0.0
        %1573 = vmatprep.subr.mxu0 0.0
        %1574 = vmatpush1.msra.mxu0 0.0
        %1575 = vmatprep.subr.mxu0 0.0
        %1576 = vmatpush1.msra.mxu0 0.0
        %1577 = vmatprep.subr.mxu0 0.0
        %1578 = vmatpush1.msra.mxu0 0.0
        %1579 = vmatprep.subr.mxu0 0.0
        %1580 = vmatpush1.msra.mxu0 0.0
        %1581 = vmatprep.subr.mxu0 0.0
        %1582 = vmatpush1.msra.mxu0 0.0
        %1583 = vmatprep.subr.mxu0 0.0
        %1584 = vmatpush1.msra.mxu0 0.0
        %1585 = vmatprep.subr.mxu0 0.0
        %1586 = vmatpush1.msra.mxu0 0.0
        %1587 = vmatprep.subr.mxu0 0.0
        %1588 = vmatpush1.msra.mxu0 0.0
        %1589 = vmatprep.subr.mxu0 0.0
        %1590 = vmatpush1.msra.mxu0 0.0
        %1591 = vmatprep.subr.mxu0 0.0
        %1592 = vmatpush1.msra.mxu0 0.0
        %1593 = vmatprep.subr.mxu0 0.0
        %1594 = vmatpush1.msra.mxu0 0.0
        %1595 = vmatprep.subr.mxu0 0.0
        %1596 = vmatpush1.msra.mxu0 %v1558
        %1597 = vmatprep.subr.mxu0 0.0
        %1598 = vmatpush1.msra.mxu0 %v1556
        %1599 = vmatprep.subr.mxu0 0.0
        %1600 = vmatpush2.msra.mxu0 0.0
        %1601 = vmatprep.subr.mxu0 0.0
        %1602 = vmatpush2.msra.mxu0 0.0
        %1603 = vmatprep.subr.mxu0 0.0
        %1604 = vmatpush2.msra.mxu0 0.0
        %1605 = vmatprep.subr.mxu0 0.0
        %1606 = vmatpush2.msra.mxu0 0.0
        %1607 = vmatprep.subr.mxu0 0.0
        %1608 = vmatpush2.msra.mxu0 0.0
        %1609 = vmatprep.subr.mxu0 0.0
        %1610 = vmatpush2.msra.mxu0 0.0
        %1611 = vmatprep.subr.mxu0 0.0
        %1612 = vmatpush2.msra.mxu0 0.0
        %1613 = vmatprep.subr.mxu0 0.0
        %1614 = vmatpush2.msra.mxu0 0.0
        %1615 = vmatprep.subr.mxu0 0.0
        %1616 = vmatpush2.msra.mxu0 0.0
        %1617 = vmatprep.subr.mxu0 0.0
        %1618 = vmatpush2.msra.mxu0 0.0
        %1619 = vmatprep.subr.mxu0 0.0
        %1620 = vmatpush2.msra.mxu0 0.0
        %1621 = vmatprep.subr.mxu0 0.0
        %1622 = vmatpush2.msra.mxu0 0.0
        %1623 = vmatprep.subr.mxu0 0.0
        %1624 = vmatpush2.msra.mxu0 0.0
        %1625 = vmatprep.subr.mxu0 0.0
        %1626 = vmatpush2.msra.mxu0 0.0
        %1627 = vmatprep.subr.mxu0 0.0
        %1628 = vmatpush2.msra.mxu0 0.0
        %1629 = vmatprep.subr.mxu0 0.0
        %1630 = vmatpush2.msra.mxu0 0.0
        %1631 = vmatprep.mubr.f32.mxu0 0.0
        %1632 = vmatmul.mubr.f32.gmra.mxu0 %v1562
        %v1633 = vpop.f32.mrf.mxu0
        %v1634 = vadd.f32 0.0, %v1633
        %v1635 = vpop.f32.mrf.mxu0
        %1636 = vmatprep.mubr.f32.mxu0 0.0
        %1637 = vmatmul.mubr.f32.gmra.mxu0 %v1565
        %v1638 = vpop.f32.mrf.mxu0
        %v1639 = vadd.f32 0.0, %v1638
        %v1640 = vpop.f32.mrf.mxu0
        %1641 = vdwg.mxu0
        %v1642 = vadd.f32 %v1509, %v1634
        %v1643 = vadd.f32 %v1510, %v1639
        %1644 = vset.pattern.permute.xlu0 7
        %1645 = vperm.xlu0 %1644, %v666
        %v1646 = vpop.permute.xlu0 %1645
        %1648 = vset.pattern.permute.xlu0 7
        %1649 = vperm.xlu0 %1648, %v669
        %v1650 = vpop.permute.xlu0 %1649
        %v1652 = vlaneseq
        %v1653 = vshrl.u32 %v1652, 7
        %v1654 = vsub.s32 7, %v1653
        %v1655 = vrot.slane %v711, %v1654
        %v1656 = vadd.f32 %v1646, %v1655
        %v1657 = vadd.f32 %v1650, %v1655
        %vm1658 = vcmp.gt.f32.partialorder %v1656, 0.0
        %vm1659 = vcmp.gt.f32.partialorder %v1657, 0.0
        %v1660 = vmul.f32 %v1656, 0.2
        %v1661 = vmul.f32 %v1657, 0.2
        %v1662 = vsel %vm1658, %v1656, %v1660
        %v1663 = vsel %vm1659, %v1657, %v1661
        %v1664 = vsel %vm716, %v1662, -1e+30
        %v1665 = vsel %vm717, %v1663, -1e+30
        %v1666 = vsel %vm742, %v1664, -inf
        %1667 = vmax.xlane.f32.xlu0 %v1666
        %v1668 = vpop.xlane.xlu0 %1667
        %v1669 = vsel %vm742, %v1665, -inf
        %1670 = vmax.xlane.f32.xlu0 %v1669
        %v1671 = vpop.xlane.xlu0 %1670
        %v1672 = vsub.f32 %v1664, %v1668
        %v1673 = vsub.f32 %v1665, %v1671
        %v1674 = vmul.f32 %v1672, 1.442695
        %v1675 = vpow.pop %v1674
        %v1676 = vmul.f32 %v1673, 1.442695
        %v1677 = vpow.pop %v1676
        %v1678 = vsel %vm742, %v1675, 0.0
        %1679 = vadd.xlane.f32.xlu0 %v1678
        %v1680 = vpop.xlane.xlu0 %1679
        %v1681 = vsel %vm742, %v1677, 0.0
        %1682 = vadd.xlane.f32.xlu0 %v1681
        %v1683 = vpop.xlane.xlu0 %1682
        %v1684 = vrcp.pop %v1680
        %v1685 = vrcp.pop %v1683
        %v1686 = vmul.f32 %v1675, %v1684
        %v1687 = vmul.f32 %v1677, %v1685
        %1688 = vrot.lane.b32.xlu0 %v615, 44
        %v1689 = vpop.permute.xlu0 %1688
        %1690 = vrot.lane.b32.xlu0 %v618, 44
        %v1691 = vpop.permute.xlu0 %1690
        %v1695 = vsel %vm742, %v1686, 0
        %v1698 = vsel %vm742, %v1687, 0
        %1700 = vmatprep.subr.mxu0 0.0
        %1701 = vmatpush1.msra.mxu0 0.0
        %1702 = vmatprep.subr.mxu0 0.0
        %1703 = vmatpush1.msra.mxu0 0.0
        %1704 = vmatprep.subr.mxu0 0.0
        %1705 = vmatpush1.msra.mxu0 0.0
        %1706 = vmatprep.subr.mxu0 0.0
        %1707 = vmatpush1.msra.mxu0 0.0
        %1708 = vmatprep.subr.mxu0 0.0
        %1709 = vmatpush1.msra.mxu0 0.0
        %1710 = vmatprep.subr.mxu0 0.0
        %1711 = vmatpush1.msra.mxu0 0.0
        %1712 = vmatprep.subr.mxu0 0.0
        %1713 = vmatpush1.msra.mxu0 0.0
        %1714 = vmatprep.subr.mxu0 0.0
        %1715 = vmatpush1.msra.mxu0 0.0
        %1716 = vmatprep.subr.mxu0 0.0
        %1717 = vmatpush1.msra.mxu0 0.0
        %1718 = vmatprep.subr.mxu0 0.0
        %1719 = vmatpush1.msra.mxu0 0.0
        %1720 = vmatprep.subr.mxu0 0.0
        %1721 = vmatpush1.msra.mxu0 0.0
        %1722 = vmatprep.subr.mxu0 0.0
        %1723 = vmatpush1.msra.mxu0 0.0
        %1724 = vmatprep.subr.mxu0 0.0
        %1725 = vmatpush1.msra.mxu0 0.0
        %1726 = vmatprep.subr.mxu0 0.0
        %1727 = vmatpush1.msra.mxu0 0.0
        %1728 = vmatprep.subr.mxu0 0.0
        %1729 = vmatpush1.msra.mxu0 %v1691
        %1730 = vmatprep.subr.mxu0 0.0
        %1731 = vmatpush1.msra.mxu0 %v1689
        %1732 = vmatprep.subr.mxu0 0.0
        %1733 = vmatpush2.msra.mxu0 0.0
        %1734 = vmatprep.subr.mxu0 0.0
        %1735 = vmatpush2.msra.mxu0 0.0
        %1736 = vmatprep.subr.mxu0 0.0
        %1737 = vmatpush2.msra.mxu0 0.0
        %1738 = vmatprep.subr.mxu0 0.0
        %1739 = vmatpush2.msra.mxu0 0.0
        %1740 = vmatprep.subr.mxu0 0.0
        %1741 = vmatpush2.msra.mxu0 0.0
        %1742 = vmatprep.subr.mxu0 0.0
        %1743 = vmatpush2.msra.mxu0 0.0
        %1744 = vmatprep.subr.mxu0 0.0
        %1745 = vmatpush2.msra.mxu0 0.0
        %1746 = vmatprep.subr.mxu0 0.0
        %1747 = vmatpush2.msra.mxu0 0.0
        %1748 = vmatprep.subr.mxu0 0.0
        %1749 = vmatpush2.msra.mxu0 0.0
        %1750 = vmatprep.subr.mxu0 0.0
        %1751 = vmatpush2.msra.mxu0 0.0
        %1752 = vmatprep.subr.mxu0 0.0
        %1753 = vmatpush2.msra.mxu0 0.0
        %1754 = vmatprep.subr.mxu0 0.0
        %1755 = vmatpush2.msra.mxu0 0.0
        %1756 = vmatprep.subr.mxu0 0.0
        %1757 = vmatpush2.msra.mxu0 0.0
        %1758 = vmatprep.subr.mxu0 0.0
        %1759 = vmatpush2.msra.mxu0 0.0
        %1760 = vmatprep.subr.mxu0 0.0
        %1761 = vmatpush2.msra.mxu0 0.0
        %1762 = vmatprep.subr.mxu0 0.0
        %1763 = vmatpush2.msra.mxu0 0.0
        %1764 = vmatprep.mubr.f32.mxu0 0.0
        %1765 = vmatmul.mubr.f32.gmra.mxu0 %v1695
        %v1766 = vpop.f32.mrf.mxu0
        %v1767 = vadd.f32 0.0, %v1766
        %v1768 = vpop.f32.mrf.mxu0
        %1769 = vmatprep.mubr.f32.mxu0 0.0
        %1770 = vmatmul.mubr.f32.gmra.mxu0 %v1698
        %v1771 = vpop.f32.mrf.mxu0
        %v1772 = vadd.f32 0.0, %v1771
        %v1773 = vpop.f32.mrf.mxu0
        %1774 = vdwg.mxu0
        %v1775 = vadd.f32 %v1642, %v1767
        %v1776 = vadd.f32 %v1643, %v1772
        %v1777 = vmul.f32 %v1775, 0.125
        %v1778 = vmul.f32 %v1776, 0.125
        %v1779 = vld [vmem:[#allocation8] sm:$0x1]
        %v1781 = vlaneseq
        %v1782 = vshrl.u32 %v1781, 7
        %v1783 = vsub.s32 0, %v1782
        %v1784 = vrot.slane %v1779, %v1783
        %v1786 = vadd.f32 %v1777, %v1784
        %v1787 = vadd.f32 %v1778, %v1784
        %v1788 = vpack.c.bf16 %v1787, %v1786
        %v1789 = vld [vmem:[%s6] sm:$0xf]
        %v1790 = vld [vmem:[%s6 + $0x4] sm:$0xf]
        %v1791 = vld [vmem:[%s8] sm:$0x1]
        %v1793 = vlaneseq
        %v1794 = vshrl.u32 %v1793, 7
        %v1795 = vsub.s32 0, %v1794
        %v1796 = vrot.slane %v1791, %v1795
        %1798 = vxpose.xlu0.c.b16.start [1/8] %v1788, 128
        %1799 = vxpose.xlu0.c.b16.cont [2/8] 0, 128
        %1800 = vxpose.xlu0.c.b16.cont [3/8] 0, 128
        %1801 = vxpose.xlu0.c.b16.cont [4/8] 0, 128
        %1802 = vxpose.xlu0.c.b16.cont [5/8] 0, 128
        %1803 = vxpose.xlu0.c.b16.cont [6/8] 0, 128
        %1804 = vxpose.xlu0.c.b16.cont [7/8] 0, 128
        %1805 = vxpose.xlu0.c.b16.end [8/8] 0, 128
        %v1806 = vpop.trf.xlu0
        %v1807 = vpop.trf.xlu0
        %v1808 = vpop.trf.xlu0
        %v1809 = vpop.trf.xlu0
        %v1810 = vpop.trf.xlu0
        %v1811 = vpop.trf.xlu0
        %v1812 = vpop.trf.xlu0
        %v1813 = vpop.trf.xlu0
        %v1816 = vunpack.c.l.b16 %v1789
        %v1817 = vunpack.c.l.b16 %v1790
        %v1818 = vpack.c.b16 %v1817, %v1816
        %v1821 = vsel %vm742, %v1806, 0
        %1823 = vmatprep.subr.bf16.mxu0 0
        %1824 = vmatpush1.bf16.msra.mxu0 0
        %1825 = vmatprep.subr.bf16.mxu0 0
        %1826 = vmatpush1.bf16.msra.mxu0 0
        %1827 = vmatprep.subr.bf16.mxu0 0
        %1828 = vmatpush1.bf16.msra.mxu0 0
        %1829 = vmatprep.subr.bf16.mxu0 0
        %1830 = vmatpush1.bf16.msra.mxu0 0
        %1831 = vmatprep.subr.bf16.mxu0 0
        %1832 = vmatpush1.bf16.msra.mxu0 0
        %1833 = vmatprep.subr.bf16.mxu0 0
        %1834 = vmatpush1.bf16.msra.mxu0 0
        %1835 = vmatprep.subr.bf16.mxu0 0
        %1836 = vmatpush1.bf16.msra.mxu0 0
        %1837 = vmatprep.subr.bf16.mxu0 0
        %1838 = vmatpush1.bf16.msra.mxu0 %v1818
        %1839 = vmatprep.subr.bf16.mxu0 0
        %1840 = vmatpush2.bf16.msra.mxu0 0
        %1841 = vmatprep.subr.bf16.mxu0 0
        %1842 = vmatpush2.bf16.msra.mxu0 0
        %1843 = vmatprep.subr.bf16.mxu0 0
        %1844 = vmatpush2.bf16.msra.mxu0 0
        %1845 = vmatprep.subr.bf16.mxu0 0
        %1846 = vmatpush2.bf16.msra.mxu0 0
        %1847 = vmatprep.subr.bf16.mxu0 0
        %1848 = vmatpush2.bf16.msra.mxu0 0
        %1849 = vmatprep.subr.bf16.mxu0 0
        %1850 = vmatpush2.bf16.msra.mxu0 0
        %1851 = vmatprep.subr.bf16.mxu0 0
        %1852 = vmatpush2.bf16.msra.mxu0 0
        %1853 = vmatprep.subr.bf16.mxu0 0
        %1854 = vmatpush2.bf16.msra.mxu0 0
        %1855 = vmatprep.mubr.bf16.mxu0 0
        %1856 = vmatmul.mubr.bf16.gmra.mxu0 %v1821
        %v1857 = vpop.f32.mrf.mxu0
        %v1858 = vadd.f32 %v1796, %v1857
        %v1859 = vpop.f32.mrf.mxu0
        %v1860 = vpop.f32.mrf.mxu0
        %v1861 = vadd.f32 %v1796, %v1860
        %v1862 = vpop.f32.mrf.mxu0
        %1863 = vdwg.mxu0
        %s1864 = scalar_lea.vmem %s6, 8
        %v1865 = vld [vmem:[%s1864] sm:$0xf]
        %v1866 = vld [vmem:[%s1864 + $0x4] sm:$0xf]
        %s1867 = scalar_lea.vmem %s8, 1
        %v1868 = vld [vmem:[%s1867] sm:$0x1]
        %v1870 = vlaneseq
        %v1871 = vshrl.u32 %v1870, 7
        %v1872 = vsub.s32 0, %v1871
        %v1873 = vrot.slane %v1868, %v1872
        %v1877 = vunpack.c.l.b16 %v1865
        %v1878 = vunpack.c.l.b16 %v1866
        %v1879 = vpack.c.b16 %v1878, %v1877
        %1881 = vmatprep.subr.bf16.mxu0 0
        %1882 = vmatpush1.bf16.msra.mxu0 0
        %1883 = vmatprep.subr.bf16.mxu0 0
        %1884 = vmatpush1.bf16.msra.mxu0 0
        %1885 = vmatprep.subr.bf16.mxu0 0
        %1886 = vmatpush1.bf16.msra.mxu0 0
        %1887 = vmatprep.subr.bf16.mxu0 0
        %1888 = vmatpush1.bf16.msra.mxu0 0
        %1889 = vmatprep.subr.bf16.mxu0 0
        %1890 = vmatpush1.bf16.msra.mxu0 0
        %1891 = vmatprep.subr.bf16.mxu0 0
        %1892 = vmatpush1.bf16.msra.mxu0 0
        %1893 = vmatprep.subr.bf16.mxu0 0
        %1894 = vmatpush1.bf16.msra.mxu0 0
        %1895 = vmatprep.subr.bf16.mxu0 0
        %1896 = vmatpush1.bf16.msra.mxu0 %v1879
        %1897 = vmatprep.subr.bf16.mxu0 0
        %1898 = vmatpush2.bf16.msra.mxu0 0
        %1899 = vmatprep.subr.bf16.mxu0 0
        %1900 = vmatpush2.bf16.msra.mxu0 0
        %1901 = vmatprep.subr.bf16.mxu0 0
        %1902 = vmatpush2.bf16.msra.mxu0 0
        %1903 = vmatprep.subr.bf16.mxu0 0
        %1904 = vmatpush2.bf16.msra.mxu0 0
        %1905 = vmatprep.subr.bf16.mxu0 0
        %1906 = vmatpush2.bf16.msra.mxu0 0
        %1907 = vmatprep.subr.bf16.mxu0 0
        %1908 = vmatpush2.bf16.msra.mxu0 0
        %1909 = vmatprep.subr.bf16.mxu0 0
        %1910 = vmatpush2.bf16.msra.mxu0 0
        %1911 = vmatprep.subr.bf16.mxu0 0
        %1912 = vmatpush2.bf16.msra.mxu0 0
        %1913 = vmatprep.mubr.bf16.mxu0 0
        %1914 = vmatmul.mubr.bf16.gmra.mxu0 %v1821
        %v1915 = vpop.f32.mrf.mxu0
        %v1916 = vadd.f32 %v1873, %v1915
        %v1917 = vpop.f32.mrf.mxu0
        %v1918 = vpop.f32.mrf.mxu0
        %v1919 = vadd.f32 %v1873, %v1918
        %v1920 = vpop.f32.mrf.mxu0
        %1921 = vdwg.mxu0
        %s1922 = scalar_lea.vmem %s6, 16
        %v1923 = vld [vmem:[%s1922] sm:$0xf]
        %v1924 = vld [vmem:[%s1922 + $0x4] sm:$0xf]
        %s1925 = scalar_lea.vmem %s8, 2
        %v1926 = vld [vmem:[%s1925] sm:$0x1]
        %v1928 = vlaneseq
        %v1929 = vshrl.u32 %v1928, 7
        %v1930 = vsub.s32 0, %v1929
        %v1931 = vrot.slane %v1926, %v1930
        %v1935 = vunpack.c.l.b16 %v1923
        %v1936 = vunpack.c.l.b16 %v1924
        %v1937 = vpack.c.b16 %v1936, %v1935
        %1939 = vmatprep.subr.bf16.mxu0 0
        %1940 = vmatpush1.bf16.msra.mxu0 0
        %1941 = vmatprep.subr.bf16.mxu0 0
        %1942 = vmatpush1.bf16.msra.mxu0 0
        %1943 = vmatprep.subr.bf16.mxu0 0
        %1944 = vmatpush1.bf16.msra.mxu0 0
        %1945 = vmatprep.subr.bf16.mxu0 0
        %1946 = vmatpush1.bf16.msra.mxu0 0
        %1947 = vmatprep.subr.bf16.mxu0 0
        %1948 = vmatpush1.bf16.msra.mxu0 0
        %1949 = vmatprep.subr.bf16.mxu0 0
        %1950 = vmatpush1.bf16.msra.mxu0 0
        %1951 = vmatprep.subr.bf16.mxu0 0
        %1952 = vmatpush1.bf16.msra.mxu0 0
        %1953 = vmatprep.subr.bf16.mxu0 0
        %1954 = vmatpush1.bf16.msra.mxu0 %v1937
        %1955 = vmatprep.subr.bf16.mxu0 0
        %1956 = vmatpush2.bf16.msra.mxu0 0
        %1957 = vmatprep.subr.bf16.mxu0 0
        %1958 = vmatpush2.bf16.msra.mxu0 0
        %1959 = vmatprep.subr.bf16.mxu0 0
        %1960 = vmatpush2.bf16.msra.mxu0 0
        %1961 = vmatprep.subr.bf16.mxu0 0
        %1962 = vmatpush2.bf16.msra.mxu0 0
        %1963 = vmatprep.subr.bf16.mxu0 0
        %1964 = vmatpush2.bf16.msra.mxu0 0
        %1965 = vmatprep.subr.bf16.mxu0 0
        %1966 = vmatpush2.bf16.msra.mxu0 0
        %1967 = vmatprep.subr.bf16.mxu0 0
        %1968 = vmatpush2.bf16.msra.mxu0 0
        %1969 = vmatprep.subr.bf16.mxu0 0
        %1970 = vmatpush2.bf16.msra.mxu0 0
        %1971 = vmatprep.mubr.bf16.mxu0 0
        %1972 = vmatmul.mubr.bf16.gmra.mxu0 %v1821
        %v1973 = vpop.f32.mrf.mxu0
        %v1974 = vadd.f32 %v1931, %v1973
        %v1975 = vpop.f32.mrf.mxu0
        %v1976 = vpop.f32.mrf.mxu0
        %v1977 = vadd.f32 %v1931, %v1976
        %v1978 = vpop.f32.mrf.mxu0
        %1979 = vdwg.mxu0
        %s1980 = scalar_lea.vmem %s6, 24
        %v1981 = vld [vmem:[%s1980] sm:$0xf]
        %v1982 = vld [vmem:[%s1980 + $0x4] sm:$0xf]
        %s1983 = scalar_lea.vmem %s8, 3
        %v1984 = vld [vmem:[%s1983] sm:$0x1]
        %v1986 = vlaneseq
        %v1987 = vshrl.u32 %v1986, 7
        %v1988 = vsub.s32 0, %v1987
        %v1989 = vrot.slane %v1984, %v1988
        %v1993 = vunpack.c.l.b16 %v1981
        %v1994 = vunpack.c.l.b16 %v1982
        %v1995 = vpack.c.b16 %v1994, %v1993
        %1997 = vmatprep.subr.bf16.mxu0 0
        %1998 = vmatpush1.bf16.msra.mxu0 0
        %1999 = vmatprep.subr.bf16.mxu0 0
        %2000 = vmatpush1.bf16.msra.mxu0 0
        %2001 = vmatprep.subr.bf16.mxu0 0
        %2002 = vmatpush1.bf16.msra.mxu0 0
        %2003 = vmatprep.subr.bf16.mxu0 0
        %2004 = vmatpush1.bf16.msra.mxu0 0
        %2005 = vmatprep.subr.bf16.mxu0 0
        %2006 = vmatpush1.bf16.msra.mxu0 0
        %2007 = vmatprep.subr.bf16.mxu0 0
        %2008 = vmatpush1.bf16.msra.mxu0 0
        %2009 = vmatprep.subr.bf16.mxu0 0
        %2010 = vmatpush1.bf16.msra.mxu0 0
        %2011 = vmatprep.subr.bf16.mxu0 0
        %2012 = vmatpush1.bf16.msra.mxu0 %v1995
        %2013 = vmatprep.subr.bf16.mxu0 0
        %2014 = vmatpush2.bf16.msra.mxu0 0
        %2015 = vmatprep.subr.bf16.mxu0 0
        %2016 = vmatpush2.bf16.msra.mxu0 0
        %2017 = vmatprep.subr.bf16.mxu0 0
        %2018 = vmatpush2.bf16.msra.mxu0 0
        %2019 = vmatprep.subr.bf16.mxu0 0
        %2020 = vmatpush2.bf16.msra.mxu0 0
        %2021 = vmatprep.subr.bf16.mxu0 0
        %2022 = vmatpush2.bf16.msra.mxu0 0
        %2023 = vmatprep.subr.bf16.mxu0 0
        %2024 = vmatpush2.bf16.msra.mxu0 0
        %2025 = vmatprep.subr.bf16.mxu0 0
        %2026 = vmatpush2.bf16.msra.mxu0 0
        %2027 = vmatprep.subr.bf16.mxu0 0
        %2028 = vmatpush2.bf16.msra.mxu0 0
        %2029 = vmatprep.mubr.bf16.mxu0 0
        %2030 = vmatmul.mubr.bf16.gmra.mxu0 %v1821
        %v2031 = vpop.f32.mrf.mxu0
        %v2032 = vadd.f32 %v1989, %v2031
        %v2033 = vpop.f32.mrf.mxu0
        %v2034 = vpop.f32.mrf.mxu0
        %v2035 = vadd.f32 %v1989, %v2034
        %v2036 = vpop.f32.mrf.mxu0
        %2037 = vdwg.mxu0
        %v2038 = vld [vmem:[%s7] sm:$0xf]
        %v2039 = vld [vmem:[%s7 + $0x4] sm:$0xf]
        %v2040 = vld [vmem:[%s7 + $0x8] sm:$0xf]
        %v2041 = vld [vmem:[%s7 + $0xc] sm:$0xf]
        %s2042 = scalar_lea.vmem %s7, 16
        %v2043 = vld [vmem:[%s2042] sm:$0xf]
        %v2044 = vld [vmem:[%s2042 + $0x4] sm:$0xf]
        %v2045 = vld [vmem:[%s2042 + $0x8] sm:$0xf]
        %v2046 = vld [vmem:[%s2042 + $0xc] sm:$0xf]
        %s2047 = scalar_lea.vmem %s7, 32
        %v2048 = vld [vmem:[%s2047] sm:$0xf]
        %v2049 = vld [vmem:[%s2047 + $0x4] sm:$0xf]
        %v2050 = vld [vmem:[%s2047 + $0x8] sm:$0xf]
        %v2051 = vld [vmem:[%s2047 + $0xc] sm:$0xf]
        %s2052 = scalar_lea.vmem %s7, 48
        %v2053 = vld [vmem:[%s2052] sm:$0xf]
        %v2054 = vld [vmem:[%s2052 + $0x4] sm:$0xf]
        %v2055 = vld [vmem:[%s2052 + $0x8] sm:$0xf]
        %v2056 = vld [vmem:[%s2052 + $0xc] sm:$0xf]
        %v2057 = vld [vmem:[%s9] sm:$0xff]
        %v2058 = vld [vmem:[%s9 + $0x8] sm:$0xff]
        %v2059 = vld [vmem:[%s9 + $0x10] sm:$0xff]
        %v2060 = vld [vmem:[%s9 + $0x18] sm:$0xff]
        %v2061 = vld [vmem:[%s9 + $0x20] sm:$0xff]
        %v2062 = vld [vmem:[%s9 + $0x28] sm:$0xff]
        %v2063 = vld [vmem:[%s9 + $0x30] sm:$0xff]
        %v2064 = vld [vmem:[%s9 + $0x38] sm:$0xff]
        %v2065 = vld [vmem:[#allocation10] sm:$0xff]
        %v2066 = vld [vmem:[#allocation10 + $0x8] sm:$0xff]
        %v2067 = vld [vmem:[#allocation10 + $0x10] sm:$0xff]
        %v2068 = vld [vmem:[#allocation10 + $0x18] sm:$0xff]
        %v2069 = vld [vmem:[#allocation10 + $0x20] sm:$0xff]
        %v2070 = vld [vmem:[#allocation10 + $0x28] sm:$0xff]
        %v2071 = vld [vmem:[#allocation10 + $0x30] sm:$0xff]
        %v2072 = vld [vmem:[#allocation10 + $0x38] sm:$0xff]
        %v2073 = vld [vmem:[#allocation10 + $0x40] sm:$0xff]
        %v2074 = vld [vmem:[#allocation10 + $0x48] sm:$0xff]
        %v2075 = vld [vmem:[#allocation10 + $0x50] sm:$0xff]
        %v2076 = vld [vmem:[#allocation10 + $0x58] sm:$0xff]
        %v2077 = vld [vmem:[#allocation10 + $0x60] sm:$0xff]
        %v2078 = vld [vmem:[#allocation10 + $0x68] sm:$0xff]
        %v2079 = vld [vmem:[#allocation10 + $0x70] sm:$0xff]
        %v2080 = vld [vmem:[#allocation10 + $0x78] sm:$0xff]
        %v2081 = vld [vmem:[#allocation10 + $0x80] sm:$0xff]
        %v2082 = vld [vmem:[#allocation10 + $0x88] sm:$0xff]
        %v2083 = vld [vmem:[#allocation10 + $0x90] sm:$0xff]
        %v2084 = vld [vmem:[#allocation10 + $0x98] sm:$0xff]
        %v2085 = vld [vmem:[#allocation10 + $0xa0] sm:$0xff]
        %v2086 = vld [vmem:[#allocation10 + $0xa8] sm:$0xff]
        %v2087 = vld [vmem:[#allocation10 + $0xb0] sm:$0xff]
        %v2088 = vld [vmem:[#allocation10 + $0xb8] sm:$0xff]
        %v2089 = vld [vmem:[#allocation10 + $0xc0] sm:$0xff]
        %v2090 = vld [vmem:[#allocation10 + $0xc8] sm:$0xff]
        %v2091 = vld [vmem:[#allocation10 + $0xd0] sm:$0xff]
        %v2092 = vld [vmem:[#allocation10 + $0xd8] sm:$0xff]
        %v2093 = vld [vmem:[#allocation10 + $0xe0] sm:$0xff]
        %v2094 = vld [vmem:[#allocation10 + $0xe8] sm:$0xff]
        %v2095 = vld [vmem:[#allocation10 + $0xf0] sm:$0xff]
        %v2096 = vld [vmem:[#allocation10 + $0xf8] sm:$0xff]
        %v2097 = vld [vmem:[%s11] sm:$0xf]
        %v2102 = vunpack.c.l.b16 %v2038
        %v2103 = vunpack.c.l.b16 %v2039
        %v2104 = vunpack.c.l.b16 %v2040
        %v2105 = vunpack.c.l.b16 %v2041
        %v2106 = vpack.c.b16 %v2103, %v2102
        %v2107 = vpack.c.b16 %v2105, %v2104
        %vm2110 = vcmask 261120
        %v2112 = vsel %vm2110, 0, 0
        %2114 = vmatprep.subr.bf16.mxu0 0
        %2115 = vmatpush1.bf16.msra.mxu0 0
        %2116 = vmatprep.subr.bf16.mxu0 0
        %2117 = vmatpush1.bf16.msra.mxu0 0
        %2118 = vmatprep.subr.bf16.mxu0 0
        %2119 = vmatpush1.bf16.msra.mxu0 0
        %2120 = vmatprep.subr.bf16.mxu0 0
        %2121 = vmatpush1.bf16.msra.mxu0 0
        %2122 = vmatprep.subr.bf16.mxu0 0
        %2123 = vmatpush1.bf16.msra.mxu0 0
        %2124 = vmatprep.subr.bf16.mxu0 0
        %2125 = vmatpush1.bf16.msra.mxu0 0
        %2126 = vmatprep.subr.bf16.mxu0 0
        %2127 = vmatpush1.bf16.msra.mxu0 %v2107
        %2128 = vmatprep.subr.bf16.mxu0 0
        %2129 = vmatpush1.bf16.msra.mxu0 %v2106
        %2130 = vmatprep.subr.bf16.mxu0 0
        %2131 = vmatpush2.bf16.msra.mxu0 0
        %2132 = vmatprep.subr.bf16.mxu0 0
        %2133 = vmatpush2.bf16.msra.mxu0 0
        %2134 = vmatprep.subr.bf16.mxu0 0
        %2135 = vmatpush2.bf16.msra.mxu0 0
        %2136 = vmatprep.subr.bf16.mxu0 0
        %2137 = vmatpush2.bf16.msra.mxu0 0
        %2138 = vmatprep.subr.bf16.mxu0 0
        %2139 = vmatpush2.bf16.msra.mxu0 0
        %2140 = vmatprep.subr.bf16.mxu0 0
        %2141 = vmatpush2.bf16.msra.mxu0 0
        %2142 = vmatprep.subr.bf16.mxu0 0
        %2143 = vmatpush2.bf16.msra.mxu0 0
        %2144 = vmatprep.subr.bf16.mxu0 0
        %2145 = vmatpush2.bf16.msra.mxu0 0
        %2146 = vmatprep.mubr.bf16.mxu0 0
        %2147 = vmatmul.mubr.bf16.gmra.mxu0 %v2112
        %v2148 = vpop.f32.mrf.mxu0
        %v2149 = vadd.f32 0.0, %v2148
        %v2150 = vpop.f32.mrf.mxu0
        %v2151 = vpop.f32.mrf.mxu0
        %v2152 = vpop.f32.mrf.mxu0
        %2153 = vdwg.mxu0
        %v2154 = vadd.f32 %v1858, %v2149
        %v2159 = vunpack.c.l.b16 %v2043
        %v2160 = vunpack.c.l.b16 %v2044
        %v2161 = vunpack.c.l.b16 %v2045
        %v2162 = vunpack.c.l.b16 %v2046
        %v2163 = vpack.c.b16 %v2160, %v2159
        %v2164 = vpack.c.b16 %v2162, %v2161
        %2167 = vmatprep.subr.bf16.mxu0 0
        %2168 = vmatpush1.bf16.msra.mxu0 0
        %2169 = vmatprep.subr.bf16.mxu0 0
        %2170 = vmatpush1.bf16.msra.mxu0 0
        %2171 = vmatprep.subr.bf16.mxu0 0
        %2172 = vmatpush1.bf16.msra.mxu0 0
        %2173 = vmatprep.subr.bf16.mxu0 0
        %2174 = vmatpush1.bf16.msra.mxu0 0
        %2175 = vmatprep.subr.bf16.mxu0 0
        %2176 = vmatpush1.bf16.msra.mxu0 0
        %2177 = vmatprep.subr.bf16.mxu0 0
        %2178 = vmatpush1.bf16.msra.mxu0 0
        %2179 = vmatprep.subr.bf16.mxu0 0
        %2180 = vmatpush1.bf16.msra.mxu0 %v2164
        %2181 = vmatprep.subr.bf16.mxu0 0
        %2182 = vmatpush1.bf16.msra.mxu0 %v2163
        %2183 = vmatprep.subr.bf16.mxu0 0
        %2184 = vmatpush2.bf16.msra.mxu0 0
        %2185 = vmatprep.subr.bf16.mxu0 0
        %2186 = vmatpush2.bf16.msra.mxu0 0
        %2187 = vmatprep.subr.bf16.mxu0 0
        %2188 = vmatpush2.bf16.msra.mxu0 0
        %2189 = vmatprep.subr.bf16.mxu0 0
        %2190 = vmatpush2.bf16.msra.mxu0 0
        %2191 = vmatprep.subr.bf16.mxu0 0
        %2192 = vmatpush2.bf16.msra.mxu0 0
        %2193 = vmatprep.subr.bf16.mxu0 0
        %2194 = vmatpush2.bf16.msra.mxu0 0
        %2195 = vmatprep.subr.bf16.mxu0 0
        %2196 = vmatpush2.bf16.msra.mxu0 0
        %2197 = vmatprep.subr.bf16.mxu0 0
        %2198 = vmatpush2.bf16.msra.mxu0 0
        %2199 = vmatprep.mubr.bf16.mxu0 0
        %2200 = vmatmul.mubr.bf16.gmra.mxu0 %v2112
        %v2201 = vpop.f32.mrf.mxu0
        %v2202 = vadd.f32 0.0, %v2201
        %v2203 = vpop.f32.mrf.mxu0
        %v2204 = vpop.f32.mrf.mxu0
        %v2205 = vpop.f32.mrf.mxu0
        %2206 = vdwg.mxu0
        %v2207 = vadd.f32 %v1916, %v2202
        %v2212 = vunpack.c.l.b16 %v2048
        %v2213 = vunpack.c.l.b16 %v2049
        %v2214 = vunpack.c.l.b16 %v2050
        %v2215 = vunpack.c.l.b16 %v2051
        %v2216 = vpack.c.b16 %v2213, %v2212
        %v2217 = vpack.c.b16 %v2215, %v2214
        %2220 = vmatprep.subr.bf16.mxu0 0
        %2221 = vmatpush1.bf16.msra.mxu0 0
        %2222 = vmatprep.subr.bf16.mxu0 0
        %2223 = vmatpush1.bf16.msra.mxu0 0
        %2224 = vmatprep.subr.bf16.mxu0 0
        %2225 = vmatpush1.bf16.msra.mxu0 0
        %2226 = vmatprep.subr.bf16.mxu0 0
        %2227 = vmatpush1.bf16.msra.mxu0 0
        %2228 = vmatprep.subr.bf16.mxu0 0
        %2229 = vmatpush1.bf16.msra.mxu0 0
        %2230 = vmatprep.subr.bf16.mxu0 0
        %2231 = vmatpush1.bf16.msra.mxu0 0
        %2232 = vmatprep.subr.bf16.mxu0 0
        %2233 = vmatpush1.bf16.msra.mxu0 %v2217
        %2234 = vmatprep.subr.bf16.mxu0 0
        %2235 = vmatpush1.bf16.msra.mxu0 %v2216
        %2236 = vmatprep.subr.bf16.mxu0 0
        %2237 = vmatpush2.bf16.msra.mxu0 0
        %2238 = vmatprep.subr.bf16.mxu0 0
        %2239 = vmatpush2.bf16.msra.mxu0 0
        %2240 = vmatprep.subr.bf16.mxu0 0
        %2241 = vmatpush2.bf16.msra.mxu0 0
        %2242 = vmatprep.subr.bf16.mxu0 0
        %2243 = vmatpush2.bf16.msra.mxu0 0
        %2244 = vmatprep.subr.bf16.mxu0 0
        %2245 = vmatpush2.bf16.msra.mxu0 0
        %2246 = vmatprep.subr.bf16.mxu0 0
        %2247 = vmatpush2.bf16.msra.mxu0 0
        %2248 = vmatprep.subr.bf16.mxu0 0
        %2249 = vmatpush2.bf16.msra.mxu0 0
        %2250 = vmatprep.subr.bf16.mxu0 0
        %2251 = vmatpush2.bf16.msra.mxu0 0
        %2252 = vmatprep.mubr.bf16.mxu0 0
        %2253 = vmatmul.mubr.bf16.gmra.mxu0 %v2112
        %v2254 = vpop.f32.mrf.mxu0
        %v2255 = vadd.f32 0.0, %v2254
        %v2256 = vpop.f32.mrf.mxu0
        %v2257 = vpop.f32.mrf.mxu0
        %v2258 = vpop.f32.mrf.mxu0
        %2259 = vdwg.mxu0
        %v2260 = vadd.f32 %v1974, %v2255
        %v2265 = vunpack.c.l.b16 %v2053
        %v2266 = vunpack.c.l.b16 %v2054
        %v2267 = vunpack.c.l.b16 %v2055
        %v2268 = vunpack.c.l.b16 %v2056
        %v2269 = vpack.c.b16 %v2266, %v2265
        %v2270 = vpack.c.b16 %v2268, %v2267
        %2273 = vmatprep.subr.bf16.mxu0 0
        %2274 = vmatpush1.bf16.msra.mxu0 0
        %2275 = vmatprep.subr.bf16.mxu0 0
        %2276 = vmatpush1.bf16.msra.mxu0 0
        %2277 = vmatprep.subr.bf16.mxu0 0
        %2278 = vmatpush1.bf16.msra.mxu0 0
        %2279 = vmatprep.subr.bf16.mxu0 0
        %2280 = vmatpush1.bf16.msra.mxu0 0
        %2281 = vmatprep.subr.bf16.mxu0 0
        %2282 = vmatpush1.bf16.msra.mxu0 0
        %2283 = vmatprep.subr.bf16.mxu0 0
        %2284 = vmatpush1.bf16.msra.mxu0 0
        %2285 = vmatprep.subr.bf16.mxu0 0
        %2286 = vmatpush1.bf16.msra.mxu0 %v2270
        %2287 = vmatprep.subr.bf16.mxu0 0
        %2288 = vmatpush1.bf16.msra.mxu0 %v2269
        %2289 = vmatprep.subr.bf16.mxu0 0
        %2290 = vmatpush2.bf16.msra.mxu0 0
        %2291 = vmatprep.subr.bf16.mxu0 0
        %2292 = vmatpush2.bf16.msra.mxu0 0
        %2293 = vmatprep.subr.bf16.mxu0 0
        %2294 = vmatpush2.bf16.msra.mxu0 0
        %2295 = vmatprep.subr.bf16.mxu0 0
        %2296 = vmatpush2.bf16.msra.mxu0 0
        %2297 = vmatprep.subr.bf16.mxu0 0
        %2298 = vmatpush2.bf16.msra.mxu0 0
        %2299 = vmatprep.subr.bf16.mxu0 0
        %2300 = vmatpush2.bf16.msra.mxu0 0
        %2301 = vmatprep.subr.bf16.mxu0 0
        %2302 = vmatpush2.bf16.msra.mxu0 0
        %2303 = vmatprep.subr.bf16.mxu0 0
        %2304 = vmatpush2.bf16.msra.mxu0 0
        %2305 = vmatprep.mubr.bf16.mxu0 0
        %2306 = vmatmul.mubr.bf16.gmra.mxu0 %v2112
        %v2307 = vpop.f32.mrf.mxu0
        %v2308 = vadd.f32 0.0, %v2307
        %v2309 = vpop.f32.mrf.mxu0
        %v2310 = vpop.f32.mrf.mxu0
        %v2311 = vpop.f32.mrf.mxu0
        %2312 = vdwg.mxu0
        %v2313 = vadd.f32 %v2032, %v2308
        %v2314 = vxor.u32 %v2207, 2147483648
        %v2315 = vmul.f32 %v2314, 1.442695
        %v2316 = vpow.pop %v2315
        %v2317 = vadd.f32 %v2316, 1.0
        %v2318 = vrcp.pop %v2317
        %v2319 = vmul.f32 1.0, %v2318
        %v2320 = vmul.f32 %v2319, 0.0
        %v2321 = vxor.u32 %v2154, 2147483648
        %v2322 = vmul.f32 %v2321, 1.442695
        %v2323 = vpow.pop %v2322
        %v2324 = vadd.f32 %v2323, 1.0
        %v2325 = vrcp.pop %v2324
        %v2326 = vmul.f32 1.0, %v2325
        %v2327 = vtanh.pop %v2260
        %v2328 = vmul.f32 %v2326, %v2327
        %v2329 = vadd.f32 %v2320, %v2328
        %v2330 = vxor.u32 %v2313, 2147483648
        %v2331 = vmul.f32 %v2330, 1.442695
        %v2332 = vpow.pop %v2331
        %v2333 = vadd.f32 %v2332, 1.0
        %v2334 = vrcp.pop %v2333
        %v2335 = vmul.f32 1.0, %v2334
        %v2336 = vtanh.pop %v2329
        %v2337 = vmul.f32 %v2335, %v2336
        %v2338 = vpack.c.bf16 %v2337, %v2337
        %v2371 = vunpack.c.l.b16 %v2065
        %v2372 = vunpack.c.h.b16 %v2065
        %v2373 = vunpack.c.l.b16 %v2066
        %v2374 = vunpack.c.h.b16 %v2066
        %v2375 = vunpack.c.l.b16 %v2067
        %v2376 = vunpack.c.h.b16 %v2067
        %v2377 = vunpack.c.l.b16 %v2068
        %v2378 = vunpack.c.h.b16 %v2068
        %v2379 = vunpack.c.l.b16 %v2069
        %v2380 = vunpack.c.h.b16 %v2069
        %v2381 = vunpack.c.l.b16 %v2070
        %v2382 = vunpack.c.h.b16 %v2070
        %v2383 = vunpack.c.l.b16 %v2071
        %v2384 = vunpack.c.h.b16 %v2071
        %v2385 = vunpack.c.l.b16 %v2072
        %v2386 = vunpack.c.h.b16 %v2072
        %v2387 = vunpack.c.l.b16 %v2073
        %v2388 = vunpack.c.h.b16 %v2073
        %v2389 = vunpack.c.l.b16 %v2074
        %v2390 = vunpack.c.h.b16 %v2074
        %v2391 = vunpack.c.l.b16 %v2075
        %v2392 = vunpack.c.h.b16 %v2075
        %v2393 = vunpack.c.l.b16 %v2076
        %v2394 = vunpack.c.h.b16 %v2076
        %v2395 = vunpack.c.l.b16 %v2077
        %v2396 = vunpack.c.h.b16 %v2077
        %v2397 = vunpack.c.l.b16 %v2078
        %v2398 = vunpack.c.h.b16 %v2078
        %v2399 = vunpack.c.l.b16 %v2079
        %v2400 = vunpack.c.h.b16 %v2079
        %v2401 = vunpack.c.l.b16 %v2080
        %v2402 = vunpack.c.h.b16 %v2080
        %v2403 = vunpack.c.l.b16 %v2081
        %v2404 = vunpack.c.h.b16 %v2081
        %v2405 = vunpack.c.l.b16 %v2082
        %v2406 = vunpack.c.h.b16 %v2082
        %v2407 = vunpack.c.l.b16 %v2083
        %v2408 = vunpack.c.h.b16 %v2083
        %v2409 = vunpack.c.l.b16 %v2084
        %v2410 = vunpack.c.h.b16 %v2084
        %v2411 = vunpack.c.l.b16 %v2085
        %v2412 = vunpack.c.h.b16 %v2085
        %v2413 = vunpack.c.l.b16 %v2086
        %v2414 = vunpack.c.h.b16 %v2086
        %v2415 = vunpack.c.l.b16 %v2087
        %v2416 = vunpack.c.h.b16 %v2087
        %v2417 = vunpack.c.l.b16 %v2088
        %v2418 = vunpack.c.h.b16 %v2088
        %v2419 = vunpack.c.l.b16 %v2089
        %v2420 = vunpack.c.h.b16 %v2089
        %v2421 = vunpack.c.l.b16 %v2090
        %v2422 = vunpack.c.h.b16 %v2090
        %v2423 = vunpack.c.l.b16 %v2091
        %v2424 = vunpack.c.h.b16 %v2091
        %v2425 = vunpack.c.l.b16 %v2092
        %v2426 = vunpack.c.h.b16 %v2092
        %v2427 = vunpack.c.l.b16 %v2093
        %v2428 = vunpack.c.h.b16 %v2093
        %v2429 = vunpack.c.l.b16 %v2094
        %v2430 = vunpack.c.h.b16 %v2094
        %v2431 = vunpack.c.l.b16 %v2095
        %v2432 = vunpack.c.h.b16 %v2095
        %v2433 = vunpack.c.l.b16 %v2096
        %v2434 = vunpack.c.h.b16 %v2096
        %v2435 = vpack.c.b16 %v2375, %v2371
        %v2436 = vpack.c.b16 %v2376, %v2372
        %v2437 = vpack.c.b16 %v2377, %v2373
        %v2438 = vpack.c.b16 %v2378, %v2374
        %v2439 = vpack.c.b16 %v2383, %v2379
        %v2440 = vpack.c.b16 %v2384, %v2380
        %v2441 = vpack.c.b16 %v2385, %v2381
        %v2442 = vpack.c.b16 %v2386, %v2382
        %v2443 = vpack.c.b16 %v2391, %v2387
        %v2444 = vpack.c.b16 %v2392, %v2388
        %v2445 = vpack.c.b16 %v2393, %v2389
        %v2446 = vpack.c.b16 %v2394, %v2390
        %v2447 = vpack.c.b16 %v2399, %v2395
        %v2448 = vpack.c.b16 %v2400, %v2396
        %v2449 = vpack.c.b16 %v2401, %v2397
        %v2450 = vpack.c.b16 %v2402, %v2398
        %v2451 = vpack.c.b16 %v2407, %v2403
        %v2452 = vpack.c.b16 %v2408, %v2404
        %v2453 = vpack.c.b16 %v2409, %v2405
        %v2454 = vpack.c.b16 %v2410, %v2406
        %v2455 = vpack.c.b16 %v2415, %v2411
        %v2456 = vpack.c.b16 %v2416, %v2412
        %v2457 = vpack.c.b16 %v2417, %v2413
        %v2458 = vpack.c.b16 %v2418, %v2414
        %v2459 = vpack.c.b16 %v2423, %v2419
        %v2460 = vpack.c.b16 %v2424, %v2420
        %v2461 = vpack.c.b16 %v2425, %v2421
        %v2462 = vpack.c.b16 %v2426, %v2422
        %v2463 = vpack.c.b16 %v2431, %v2427
        %v2464 = vpack.c.b16 %v2432, %v2428
        %v2465 = vpack.c.b16 %v2433, %v2429
        %v2466 = vpack.c.b16 %v2434, %v2430
        %2499 = vmatprep.subr.bf16.mxu0 %v2464
        %2500 = vmatpush1.bf16.msra.mxu0 %v2463
        %2501 = vmatprep.subr.bf16.mxu0 %v2460
        %2502 = vmatpush1.bf16.msra.mxu0 %v2459
        %2503 = vmatprep.subr.bf16.mxu0 %v2456
        %2504 = vmatpush1.bf16.msra.mxu0 %v2455
        %2505 = vmatprep.subr.bf16.mxu0 %v2452
        %2506 = vmatpush1.bf16.msra.mxu0 %v2451
        %2507 = vmatprep.subr.bf16.mxu0 %v2448
        %2508 = vmatpush1.bf16.msra.mxu0 %v2447
        %2509 = vmatprep.subr.bf16.mxu0 %v2444
        %2510 = vmatpush1.bf16.msra.mxu0 %v2443
        %2511 = vmatprep.subr.bf16.mxu0 %v2440
        %2512 = vmatpush1.bf16.msra.mxu0 %v2439
        %2513 = vmatprep.subr.bf16.mxu0 %v2436
        %2514 = vmatpush1.bf16.msra.mxu0 %v2435
        %2515 = vmatprep.subr.bf16.mxu0 0
        %2516 = vmatpush2.bf16.msra.mxu0 0
        %2517 = vmatprep.subr.bf16.mxu0 0
        %2518 = vmatpush2.bf16.msra.mxu0 0
        %2519 = vmatprep.subr.bf16.mxu0 0
        %2520 = vmatpush2.bf16.msra.mxu0 0
        %2521 = vmatprep.subr.bf16.mxu0 0
        %2522 = vmatpush2.bf16.msra.mxu0 0
        %2523 = vmatprep.subr.bf16.mxu0 0
        %2524 = vmatpush2.bf16.msra.mxu0 0
        %2525 = vmatprep.subr.bf16.mxu0 0
        %2526 = vmatpush2.bf16.msra.mxu0 0
        %2527 = vmatprep.subr.bf16.mxu0 0
        %2528 = vmatpush2.bf16.msra.mxu0 0
        %2529 = vmatprep.subr.bf16.mxu0 0
        %2530 = vmatpush2.bf16.msra.mxu0 0
        %2531 = vmatprep.mubr.bf16.mxu0 0
        %2532 = vmatmul.mubr.bf16.gmra.mxu0 0
        %v2533 = vpop.f32.mrf.mxu0
        %v2534 = vadd.f32 0.0, %v2533
        %v2535 = vpop.f32.mrf.mxu0
        %v2536 = vadd.f32 0.0, %v2535
        %v2537 = vpop.f32.mrf.mxu0
        %v2538 = vpop.f32.mrf.mxu0
        %2539 = vdwg.mxu0
        %2540 = vmatprep.subr.bf16.mxu0 %v2466
        %2541 = vmatpush1.bf16.msra.mxu0 %v2465
        %2542 = vmatprep.subr.bf16.mxu0 %v2462
        %2543 = vmatpush1.bf16.msra.mxu0 %v2461
        %2544 = vmatprep.subr.bf16.mxu0 %v2458
        %2545 = vmatpush1.bf16.msra.mxu0 %v2457
        %2546 = vmatprep.subr.bf16.mxu0 %v2454
        %2547 = vmatpush1.bf16.msra.mxu0 %v2453
        %2548 = vmatprep.subr.bf16.mxu0 %v2450
        %2549 = vmatpush1.bf16.msra.mxu0 %v2449
        %2550 = vmatprep.subr.bf16.mxu0 %v2446
        %2551 = vmatpush1.bf16.msra.mxu0 %v2445
        %2552 = vmatprep.subr.bf16.mxu0 %v2442
        %2553 = vmatpush1.bf16.msra.mxu0 %v2441
        %2554 = vmatprep.subr.bf16.mxu0 %v2438
        %2555 = vmatpush1.bf16.msra.mxu0 %v2437
        %2556 = vmatprep.subr.bf16.mxu0 0
        %2557 = vmatpush2.bf16.msra.mxu0 0
        %2558 = vmatprep.subr.bf16.mxu0 0
        %2559 = vmatpush2.bf16.msra.mxu0 0
        %2560 = vmatprep.subr.bf16.mxu0 0
        %2561 = vmatpush2.bf16.msra.mxu0 0
        %2562 = vmatprep.subr.bf16.mxu0 0
        %2563 = vmatpush2.bf16.msra.mxu0 0
        %2564 = vmatprep.subr.bf16.mxu0 0
        %2565 = vmatpush2.bf16.msra.mxu0 0
        %2566 = vmatprep.subr.bf16.mxu0 0
        %2567 = vmatpush2.bf16.msra.mxu0 0
        %2568 = vmatprep.subr.bf16.mxu0 0
        %2569 = vmatpush2.bf16.msra.mxu0 0
        %2570 = vmatprep.subr.bf16.mxu0 0
        %2571 = vmatpush2.bf16.msra.mxu0 0
        %2572 = vmatprep.mubr.bf16.mxu0 0
        %2573 = vmatmul.mubr.bf16.gmra.mxu0 0
        %v2574 = vpop.f32.mrf.mxu0
        %v2575 = vadd.f32 0.0, %v2574
        %v2576 = vpop.f32.mrf.mxu0
        %v2577 = vadd.f32 0.0, %v2576
        %v2578 = vpop.f32.mrf.mxu0
        %v2579 = vpop.f32.mrf.mxu0
        %2580 = vdwg.mxu0
        %v2589 = vunpack.c.l.b16 %v2057
        %v2590 = vunpack.c.h.b16 %v2057
        %v2591 = vunpack.c.l.b16 %v2058
        %v2592 = vunpack.c.h.b16 %v2058
        %v2593 = vunpack.c.l.b16 %v2059
        %v2594 = vunpack.c.h.b16 %v2059
        %v2595 = vunpack.c.l.b16 %v2060
        %v2596 = vunpack.c.h.b16 %v2060
        %v2597 = vunpack.c.l.b16 %v2061
        %v2598 = vunpack.c.h.b16 %v2061
        %v2599 = vunpack.c.l.b16 %v2062
        %v2600 = vunpack.c.h.b16 %v2062
        %v2601 = vunpack.c.l.b16 %v2063
        %v2602 = vunpack.c.h.b16 %v2063
        %v2603 = vunpack.c.l.b16 %v2064
        %v2604 = vunpack.c.h.b16 %v2064
        %v2605 = vpack.c.b16 %v2593, %v2589
        %v2606 = vpack.c.b16 %v2594, %v2590
        %v2607 = vpack.c.b16 %v2595, %v2591
        %v2608 = vpack.c.b16 %v2596, %v2592
        %v2609 = vpack.c.b16 %v2601, %v2597
        %v2610 = vpack.c.b16 %v2602, %v2598
        %v2611 = vpack.c.b16 %v2603, %v2599
        %v2612 = vpack.c.b16 %v2604, %v2600
        %v2622 = vsel %vm2110, %v2338, 0
        %2624 = vmatprep.subr.bf16.mxu0 0
        %2625 = vmatpush1.bf16.msra.mxu0 0
        %2626 = vmatprep.subr.bf16.mxu0 0
        %2627 = vmatpush1.bf16.msra.mxu0 0
        %2628 = vmatprep.subr.bf16.mxu0 0
        %2629 = vmatpush1.bf16.msra.mxu0 0
        %2630 = vmatprep.subr.bf16.mxu0 0
        %2631 = vmatpush1.bf16.msra.mxu0 0
        %2632 = vmatprep.subr.bf16.mxu0 0
        %2633 = vmatpush1.bf16.msra.mxu0 0
        %2634 = vmatprep.subr.bf16.mxu0 0
        %2635 = vmatpush1.bf16.msra.mxu0 0
        %2636 = vmatprep.subr.bf16.mxu0 %v2610
        %2637 = vmatpush1.bf16.msra.mxu0 %v2609
        %2638 = vmatprep.subr.bf16.mxu0 %v2606
        %2639 = vmatpush1.bf16.msra.mxu0 %v2605
        %2640 = vmatprep.subr.bf16.mxu0 0
        %2641 = vmatpush2.bf16.msra.mxu0 0
        %2642 = vmatprep.subr.bf16.mxu0 0
        %2643 = vmatpush2.bf16.msra.mxu0 0
        %2644 = vmatprep.subr.bf16.mxu0 0
        %2645 = vmatpush2.bf16.msra.mxu0 0
        %2646 = vmatprep.subr.bf16.mxu0 0
        %2647 = vmatpush2.bf16.msra.mxu0 0
        %2648 = vmatprep.subr.bf16.mxu0 0
        %2649 = vmatpush2.bf16.msra.mxu0 0
        %2650 = vmatprep.subr.bf16.mxu0 0
        %2651 = vmatpush2.bf16.msra.mxu0 0
        %2652 = vmatprep.subr.bf16.mxu0 0
        %2653 = vmatpush2.bf16.msra.mxu0 0
        %2654 = vmatprep.subr.bf16.mxu0 0
        %2655 = vmatpush2.bf16.msra.mxu0 0
        %2656 = vmatprep.mubr.bf16.mxu0 0
        %2657 = vmatmul.mubr.bf16.gmra.mxu0 %v2622
        %v2658 = vpop.f32.mrf.mxu0
        %v2659 = vadd.f32 %v2534, %v2658
        %v2660 = vpop.f32.mrf.mxu0
        %v2661 = vadd.f32 %v2536, %v2660
        %v2662 = vpop.f32.mrf.mxu0
        %v2663 = vpop.f32.mrf.mxu0
        %2664 = vdwg.mxu0
        %2665 = vmatprep.subr.bf16.mxu0 0
        %2666 = vmatpush1.bf16.msra.mxu0 0
        %2667 = vmatprep.subr.bf16.mxu0 0
        %2668 = vmatpush1.bf16.msra.mxu0 0
        %2669 = vmatprep.subr.bf16.mxu0 0
        %2670 = vmatpush1.bf16.msra.mxu0 0
        %2671 = vmatprep.subr.bf16.mxu0 0
        %2672 = vmatpush1.bf16.msra.mxu0 0
        %2673 = vmatprep.subr.bf16.mxu0 0
        %2674 = vmatpush1.bf16.msra.mxu0 0
        %2675 = vmatprep.subr.bf16.mxu0 0
        %2676 = vmatpush1.bf16.msra.mxu0 0
        %2677 = vmatprep.subr.bf16.mxu0 %v2612
        %2678 = vmatpush1.bf16.msra.mxu0 %v2611
        %2679 = vmatprep.subr.bf16.mxu0 %v2608
        %2680 = vmatpush1.bf16.msra.mxu0 %v2607
        %2681 = vmatprep.subr.bf16.mxu0 0
        %2682 = vmatpush2.bf16.msra.mxu0 0
        %2683 = vmatprep.subr.bf16.mxu0 0
        %2684 = vmatpush2.bf16.msra.mxu0 0
        %2685 = vmatprep.subr.bf16.mxu0 0
        %2686 = vmatpush2.bf16.msra.mxu0 0
        %2687 = vmatprep.subr.bf16.mxu0 0
        %2688 = vmatpush2.bf16.msra.mxu0 0
        %2689 = vmatprep.subr.bf16.mxu0 0
        %2690 = vmatpush2.bf16.msra.mxu0 0
        %2691 = vmatprep.subr.bf16.mxu0 0
        %2692 = vmatpush2.bf16.msra.mxu0 0
        %2693 = vmatprep.subr.bf16.mxu0 0
        %2694 = vmatpush2.bf16.msra.mxu0 0
        %2695 = vmatprep.subr.bf16.mxu0 0
        %2696 = vmatpush2.bf16.msra.mxu0 0
        %2697 = vmatprep.mubr.bf16.mxu0 0
        %2698 = vmatmul.mubr.bf16.gmra.mxu0 %v2622
        %v2699 = vpop.f32.mrf.mxu0
        %v2700 = vadd.f32 %v2575, %v2699
        %v2701 = vpop.f32.mrf.mxu0
        %v2702 = vadd.f32 %v2577, %v2701
        %v2703 = vpop.f32.mrf.mxu0
        %v2704 = vpop.f32.mrf.mxu0
        %2705 = vdwg.mxu0
        %v2707 = vlaneseq
        %v2708 = vshrl.u32 %v2707, 7
        %v2709 = vsub.s32 0, %v2708
        %v2710 = vrot.slane %v2097, %v2709
        %v2711 = vlaneseq
        %v2712 = vshrl.u32 %v2711, 7
        %v2713 = vsub.s32 1, %v2712
        %v2714 = vrot.slane %v2097, %v2713
        %v2715 = vlaneseq
        %v2716 = vshrl.u32 %v2715, 7
        %v2717 = vsub.s32 2, %v2716
        %v2718 = vrot.slane %v2097, %v2717
        %v2719 = vlaneseq
        %v2720 = vshrl.u32 %v2719, 7
        %v2721 = vsub.s32 3, %v2720
        %v2722 = vrot.slane %v2097, %v2721
        %v2727 = vadd.f32 %v2659, %v2710
        %v2728 = vadd.f32 %v2661, %v2714
        %v2729 = vadd.f32 %v2700, %v2718
        %v2730 = vadd.f32 %v2702, %v2722
        %v2731 = vxor.u32 %v2727, 2147483648
        %v2732 = vmul.f32 %v2731, 1.442695
        %v2733 = vpow.pop %v2732
        %v2734 = vadd.f32 %v2733, 1.0
        %v2735 = vrcp.pop %v2734
        %v2736 = vmul.f32 1.0, %v2735
        %v2737 = vxor.u32 %v2728, 2147483648
        %v2738 = vmul.f32 %v2737, 1.442695
        %v2739 = vpow.pop %v2738
        %v2740 = vadd.f32 %v2739, 1.0
        %v2741 = vrcp.pop %v2740
        %v2742 = vmul.f32 1.0, %v2741
        %v2743 = vtanh.pop %v2729
        %v2744 = vxor.u32 %v2730, 2147483648
        %v2745 = vmul.f32 %v2744, 1.442695
        %v2746 = vpow.pop %v2745
        %v2747 = vadd.f32 %v2746, 1.0
        %v2748 = vrcp.pop %v2747
        %v2749 = vmul.f32 1.0, %v2748
        %v2750 = vmul.f32 %v2742, 0.0
        %v2751 = vmul.f32 %v2736, %v2743
        %v2752 = vadd.f32 %v2750, %v2751
        %v2753 = vtanh.pop %v2752
        %v2754 = vmul.f32 %v2749, %v2753
        %2755 = vmatprep.subr.bf16.mxu0 0
        %2756 = vmatpush1.bf16.msra.mxu0 0
        %2757 = vmatprep.subr.bf16.mxu0 0
        %2758 = vmatpush1.bf16.msra.mxu0 0
        %2759 = vmatprep.subr.bf16.mxu0 0
        %2760 = vmatpush1.bf16.msra.mxu0 0
        %2761 = vmatprep.subr.bf16.mxu0 0
        %2762 = vmatpush1.bf16.msra.mxu0 0
        %2763 = vmatprep.subr.bf16.mxu0 0
        %2764 = vmatpush1.bf16.msra.mxu0 0
        %2765 = vmatprep.subr.bf16.mxu0 0
        %2766 = vmatpush1.bf16.msra.mxu0 0
        %2767 = vmatprep.subr.bf16.mxu0 0
        %2768 = vmatpush1.bf16.msra.mxu0 %v2107
        %2769 = vmatprep.subr.bf16.mxu0 0
        %2770 = vmatpush1.bf16.msra.mxu0 %v2106
        %2771 = vmatprep.subr.bf16.mxu0 0
        %2772 = vmatpush2.bf16.msra.mxu0 0
        %2773 = vmatprep.subr.bf16.mxu0 0
        %2774 = vmatpush2.bf16.msra.mxu0 0
        %2775 = vmatprep.subr.bf16.mxu0 0
        %2776 = vmatpush2.bf16.msra.mxu0 0
        %2777 = vmatprep.subr.bf16.mxu0 0
        %2778 = vmatpush2.bf16.msra.mxu0 0
        %2779 = vmatprep.subr.bf16.mxu0 0
        %2780 = vmatpush2.bf16.msra.mxu0 0
        %2781 = vmatprep.subr.bf16.mxu0 0
        %2782 = vmatpush2.bf16.msra.mxu0 0
        %2783 = vmatprep.subr.bf16.mxu0 0
        %2784 = vmatpush2.bf16.msra.mxu0 0
        %2785 = vmatprep.subr.bf16.mxu0 0
        %2786 = vmatpush2.bf16.msra.mxu0 0
        %2787 = vmatprep.mubr.bf16.mxu0 0
        %2788 = vmatmul.mubr.bf16.gmra.mxu0 %v2622
        %v2789 = vpop.f32.mrf.mxu0
        %v2790 = vadd.f32 0.0, %v2789
        %v2791 = vpop.f32.mrf.mxu0
        %v2792 = vpop.f32.mrf.mxu0
        %v2793 = vpop.f32.mrf.mxu0
        %2794 = vdwg.mxu0
        %v2796 = vrot.slane %v2790, 7
        %v2798 = vadd.f32 %v1858, %v2796
        %2799 = vmatprep.subr.bf16.mxu0 0
        %2800 = vmatpush1.bf16.msra.mxu0 0
        %2801 = vmatprep.subr.bf16.mxu0 0
        %2802 = vmatpush1.bf16.msra.mxu0 0
        %2803 = vmatprep.subr.bf16.mxu0 0
        %2804 = vmatpush1.bf16.msra.mxu0 0
        %2805 = vmatprep.subr.bf16.mxu0 0
        %2806 = vmatpush1.bf16.msra.mxu0 0
        %2807 = vmatprep.subr.bf16.mxu0 0
        %2808 = vmatpush1.bf16.msra.mxu0 0
        %2809 = vmatprep.subr.bf16.mxu0 0
        %2810 = vmatpush1.bf16.msra.mxu0 0
        %2811 = vmatprep.subr.bf16.mxu0 0
        %2812 = vmatpush1.bf16.msra.mxu0 %v2164
        %2813 = vmatprep.subr.bf16.mxu0 0
        %2814 = vmatpush1.bf16.msra.mxu0 %v2163
        %2815 = vmatprep.subr.bf16.mxu0 0
        %2816 = vmatpush2.bf16.msra.mxu0 0
        %2817 = vmatprep.subr.bf16.mxu0 0
        %2818 = vmatpush2.bf16.msra.mxu0 0
        %2819 = vmatprep.subr.bf16.mxu0 0
        %2820 = vmatpush2.bf16.msra.mxu0 0
        %2821 = vmatprep.subr.bf16.mxu0 0
        %2822 = vmatpush2.bf16.msra.mxu0 0
        %2823 = vmatprep.subr.bf16.mxu0 0
        %2824 = vmatpush2.bf16.msra.mxu0 0
        %2825 = vmatprep.subr.bf16.mxu0 0
        %2826 = vmatpush2.bf16.msra.mxu0 0
        %2827 = vmatprep.subr.bf16.mxu0 0
        %2828 = vmatpush2.bf16.msra.mxu0 0
        %2829 = vmatprep.subr.bf16.mxu0 0
        %2830 = vmatpush2.bf16.msra.mxu0 0
        %2831 = vmatprep.mubr.bf16.mxu0 0
        %2832 = vmatmul.mubr.bf16.gmra.mxu0 %v2622
        %v2833 = vpop.f32.mrf.mxu0
        %v2834 = vadd.f32 0.0, %v2833
        %v2835 = vpop.f32.mrf.mxu0
        %v2836 = vpop.f32.mrf.mxu0
        %v2837 = vpop.f32.mrf.mxu0
        %2838 = vdwg.mxu0
        %v2840 = vrot.slane %v2834, 7
        %v2842 = vadd.f32 %v1916, %v2840
        %2843 = vmatprep.subr.bf16.mxu0 0
        %2844 = vmatpush1.bf16.msra.mxu0 0
        %2845 = vmatprep.subr.bf16.mxu0 0
        %2846 = vmatpush1.bf16.msra.mxu0 0
        %2847 = vmatprep.subr.bf16.mxu0 0
        %2848 = vmatpush1.bf16.msra.mxu0 0
        %2849 = vmatprep.subr.bf16.mxu0 0
        %2850 = vmatpush1.bf16.msra.mxu0 0
        %2851 = vmatprep.subr.bf16.mxu0 0
        %2852 = vmatpush1.bf16.msra.mxu0 0
        %2853 = vmatprep.subr.bf16.mxu0 0
        %2854 = vmatpush1.bf16.msra.mxu0 0
        %2855 = vmatprep.subr.bf16.mxu0 0
        %2856 = vmatpush1.bf16.msra.mxu0 %v2217
        %2857 = vmatprep.subr.bf16.mxu0 0
        %2858 = vmatpush1.bf16.msra.mxu0 %v2216
        %2859 = vmatprep.subr.bf16.mxu0 0
        %2860 = vmatpush2.bf16.msra.mxu0 0
        %2861 = vmatprep.subr.bf16.mxu0 0
        %2862 = vmatpush2.bf16.msra.mxu0 0
        %2863 = vmatprep.subr.bf16.mxu0 0
        %2864 = vmatpush2.bf16.msra.mxu0 0
        %2865 = vmatprep.subr.bf16.mxu0 0
        %2866 = vmatpush2.bf16.msra.mxu0 0
        %2867 = vmatprep.subr.bf16.mxu0 0
        %2868 = vmatpush2.bf16.msra.mxu0 0
        %2869 = vmatprep.subr.bf16.mxu0 0
        %2870 = vmatpush2.bf16.msra.mxu0 0
        %2871 = vmatprep.subr.bf16.mxu0 0
        %2872 = vmatpush2.bf16.msra.mxu0 0
        %2873 = vmatprep.subr.bf16.mxu0 0
        %2874 = vmatpush2.bf16.msra.mxu0 0
        %2875 = vmatprep.mubr.bf16.mxu0 0
        %2876 = vmatmul.mubr.bf16.gmra.mxu0 %v2622
        %v2877 = vpop.f32.mrf.mxu0
        %v2878 = vadd.f32 0.0, %v2877
        %v2879 = vpop.f32.mrf.mxu0
        %v2880 = vpop.f32.mrf.mxu0
        %v2881 = vpop.f32.mrf.mxu0
        %2882 = vdwg.mxu0
        %v2884 = vrot.slane %v2878, 7
        %v2886 = vadd.f32 %v1974, %v2884
        %2887 = vmatprep.subr.bf16.mxu0 0
        %2888 = vmatpush1.bf16.msra.mxu0 0
        %2889 = vmatprep.subr.bf16.mxu0 0
        %2890 = vmatpush1.bf16.msra.mxu0 0
        %2891 = vmatprep.subr.bf16.mxu0 0
        %2892 = vmatpush1.bf16.msra.mxu0 0
        %2893 = vmatprep.subr.bf16.mxu0 0
        %2894 = vmatpush1.bf16.msra.mxu0 0
        %2895 = vmatprep.subr.bf16.mxu0 0
        %2896 = vmatpush1.bf16.msra.mxu0 0
        %2897 = vmatprep.subr.bf16.mxu0 0
        %2898 = vmatpush1.bf16.msra.mxu0 0
        %2899 = vmatprep.subr.bf16.mxu0 0
        %2900 = vmatpush1.bf16.msra.mxu0 %v2270
        %2901 = vmatprep.subr.bf16.mxu0 0
        %2902 = vmatpush1.bf16.msra.mxu0 %v2269
        %2903 = vmatprep.subr.bf16.mxu0 0
        %2904 = vmatpush2.bf16.msra.mxu0 0
        %2905 = vmatprep.subr.bf16.mxu0 0
        %2906 = vmatpush2.bf16.msra.mxu0 0
        %2907 = vmatprep.subr.bf16.mxu0 0
        %2908 = vmatpush2.bf16.msra.mxu0 0
        %2909 = vmatprep.subr.bf16.mxu0 0
        %2910 = vmatpush2.bf16.msra.mxu0 0
        %2911 = vmatprep.subr.bf16.mxu0 0
        %2912 = vmatpush2.bf16.msra.mxu0 0
        %2913 = vmatprep.subr.bf16.mxu0 0
        %2914 = vmatpush2.bf16.msra.mxu0 0
        %2915 = vmatprep.subr.bf16.mxu0 0
        %2916 = vmatpush2.bf16.msra.mxu0 0
        %2917 = vmatprep.subr.bf16.mxu0 0
        %2918 = vmatpush2.bf16.msra.mxu0 0
        %2919 = vmatprep.mubr.bf16.mxu0 0
        %2920 = vmatmul.mubr.bf16.gmra.mxu0 %v2622
        %v2921 = vpop.f32.mrf.mxu0
        %v2922 = vadd.f32 0.0, %v2921
        %v2923 = vpop.f32.mrf.mxu0
        %v2924 = vpop.f32.mrf.mxu0
        %v2925 = vpop.f32.mrf.mxu0
        %2926 = vdwg.mxu0
        %v2928 = vrot.slane %v2922, 7
        %v2930 = vadd.f32 %v2032, %v2928
        %v2931 = vxor.u32 %v2842, 2147483648
        %v2932 = vmul.f32 %v2931, 1.442695
        %v2933 = vpow.pop %v2932
        %v2934 = vadd.f32 %v2933, 1.0
        %v2935 = vrcp.pop %v2934
        %v2936 = vmul.f32 1.0, %v2935
        %v2938 = vrot.slane %v2329, 7
        %v2940 = vmul.f32 %v2936, %v2938
        %v2941 = vxor.u32 %v2798, 2147483648
        %v2942 = vmul.f32 %v2941, 1.442695
        %v2943 = vpow.pop %v2942
        %v2944 = vadd.f32 %v2943, 1.0
        %v2945 = vrcp.pop %v2944
        %v2946 = vmul.f32 1.0, %v2945
        %v2947 = vtanh.pop %v2886
        %v2948 = vmul.f32 %v2946, %v2947
        %v2949 = vadd.f32 %v2940, %v2948
        %v2950 = vxor.u32 %v2930, 2147483648
        %v2951 = vmul.f32 %v2950, 1.442695
        %v2952 = vpow.pop %v2951
        %v2953 = vadd.f32 %v2952, 1.0
        %v2954 = vrcp.pop %v2953
        %v2955 = vmul.f32 1.0, %v2954
        %v2956 = vtanh.pop %v2949
        %v2957 = vmul.f32 %v2955, %v2956
        %v2958 = vpack.c.bf16 %v2957, %v2957
        %v2959 = vpack.c.bf16 %v2754, %v2754
        %2960 = vmatprep.subr.bf16.mxu0 %v2464
        %2961 = vmatpush1.bf16.msra.mxu0 %v2463
        %2962 = vmatprep.subr.bf16.mxu0 %v2460
        %2963 = vmatpush1.bf16.msra.mxu0 %v2459
        %2964 = vmatprep.subr.bf16.mxu0 %v2456
        %2965 = vmatpush1.bf16.msra.mxu0 %v2455
        %2966 = vmatprep.subr.bf16.mxu0 %v2452
        %2967 = vmatpush1.bf16.msra.mxu0 %v2451
        %2968 = vmatprep.subr.bf16.mxu0 %v2448
        %2969 = vmatpush1.bf16.msra.mxu0 %v2447
        %2970 = vmatprep.subr.bf16.mxu0 %v2444
        %2971 = vmatpush1.bf16.msra.mxu0 %v2443
        %2972 = vmatprep.subr.bf16.mxu0 %v2440
        %2973 = vmatpush1.bf16.msra.mxu0 %v2439
        %2974 = vmatprep.subr.bf16.mxu0 %v2436
        %2975 = vmatpush1.bf16.msra.mxu0 %v2435
        %2976 = vmatprep.subr.bf16.mxu0 0
        %2977 = vmatpush2.bf16.msra.mxu0 0
        %2978 = vmatprep.subr.bf16.mxu0 0
        %2979 = vmatpush2.bf16.msra.mxu0 0
        %2980 = vmatprep.subr.bf16.mxu0 0
        %2981 = vmatpush2.bf16.msra.mxu0 0
        %2982 = vmatprep.subr.bf16.mxu0 0
        %2983 = vmatpush2.bf16.msra.mxu0 0
        %2984 = vmatprep.subr.bf16.mxu0 0
        %2985 = vmatpush2.bf16.msra.mxu0 0
        %2986 = vmatprep.subr.bf16.mxu0 0
        %2987 = vmatpush2.bf16.msra.mxu0 0
        %2988 = vmatprep.subr.bf16.mxu0 0
        %2989 = vmatpush2.bf16.msra.mxu0 0
        %2990 = vmatprep.subr.bf16.mxu0 0
        %2991 = vmatpush2.bf16.msra.mxu0 0
        %2992 = vmatprep.mubr.bf16.mxu0 0
        %2993 = vmatmul.mubr.bf16.gmra.mxu0 %v2959
        %v2994 = vpop.f32.mrf.mxu0
        %v2995 = vadd.f32 0.0, %v2994
        %v2996 = vpop.f32.mrf.mxu0
        %v2997 = vadd.f32 0.0, %v2996
        %v2998 = vpop.f32.mrf.mxu0
        %v2999 = vpop.f32.mrf.mxu0
        %3000 = vdwg.mxu0
        %3001 = vmatprep.subr.bf16.mxu0 %v2466
        %3002 = vmatpush1.bf16.msra.mxu0 %v2465
        %3003 = vmatprep.subr.bf16.mxu0 %v2462
        %3004 = vmatpush1.bf16.msra.mxu0 %v2461
        %3005 = vmatprep.subr.bf16.mxu0 %v2458
        %3006 = vmatpush1.bf16.msra.mxu0 %v2457
        %3007 = vmatprep.subr.bf16.mxu0 %v2454
        %3008 = vmatpush1.bf16.msra.mxu0 %v2453
        %3009 = vmatprep.subr.bf16.mxu0 %v2450
        %3010 = vmatpush1.bf16.msra.mxu0 %v2449
        %3011 = vmatprep.subr.bf16.mxu0 %v2446
        %3012 = vmatpush1.bf16.msra.mxu0 %v2445
        %3013 = vmatprep.subr.bf16.mxu0 %v2442
        %3014 = vmatpush1.bf16.msra.mxu0 %v2441
        %3015 = vmatprep.subr.bf16.mxu0 %v2438
        %3016 = vmatpush1.bf16.msra.mxu0 %v2437
        %3017 = vmatprep.subr.bf16.mxu0 0
        %3018 = vmatpush2.bf16.msra.mxu0 0
        %3019 = vmatprep.subr.bf16.mxu0 0
        %3020 = vmatpush2.bf16.msra.mxu0 0
        %3021 = vmatprep.subr.bf16.mxu0 0
        %3022 = vmatpush2.bf16.msra.mxu0 0
        %3023 = vmatprep.subr.bf16.mxu0 0
        %3024 = vmatpush2.bf16.msra.mxu0 0
        %3025 = vmatprep.subr.bf16.mxu0 0
        %3026 = vmatpush2.bf16.msra.mxu0 0
        %3027 = vmatprep.subr.bf16.mxu0 0
        %3028 = vmatpush2.bf16.msra.mxu0 0
        %3029 = vmatprep.subr.bf16.mxu0 0
        %3030 = vmatpush2.bf16.msra.mxu0 0
        %3031 = vmatprep.subr.bf16.mxu0 0
        %3032 = vmatpush2.bf16.msra.mxu0 0
        %3033 = vmatprep.mubr.bf16.mxu0 0
        %3034 = vmatmul.mubr.bf16.gmra.mxu0 %v2959
        %v3035 = vpop.f32.mrf.mxu0
        %v3036 = vadd.f32 0.0, %v3035
        %v3037 = vpop.f32.mrf.mxu0
        %v3038 = vadd.f32 0.0, %v3037
        %v3039 = vpop.f32.mrf.mxu0
        %v3040 = vpop.f32.mrf.mxu0
        %3041 = vdwg.mxu0
        %v3043 = vshrl.u32 %v2958, 16
        %v3046 = vsel %vm2110, %v3043, 0
        %3048 = vmatprep.subr.bf16.mxu0 0
        %3049 = vmatpush1.bf16.msra.mxu0 0
        %3050 = vmatprep.subr.bf16.mxu0 0
        %3051 = vmatpush1.bf16.msra.mxu0 0
        %3052 = vmatprep.subr.bf16.mxu0 0
        %3053 = vmatpush1.bf16.msra.mxu0 0
        %3054 = vmatprep.subr.bf16.mxu0 0
        %3055 = vmatpush1.bf16.msra.mxu0 0
        %3056 = vmatprep.subr.bf16.mxu0 0
        %3057 = vmatpush1.bf16.msra.mxu0 0
        %3058 = vmatprep.subr.bf16.mxu0 0
        %3059 = vmatpush1.bf16.msra.mxu0 0
        %3060 = vmatprep.subr.bf16.mxu0 %v2610
        %3061 = vmatpush1.bf16.msra.mxu0 %v2609
        %3062 = vmatprep.subr.bf16.mxu0 %v2606
        %3063 = vmatpush1.bf16.msra.mxu0 %v2605
        %3064 = vmatprep.subr.bf16.mxu0 0
        %3065 = vmatpush2.bf16.msra.mxu0 0
        %3066 = vmatprep.subr.bf16.mxu0 0
        %3067 = vmatpush2.bf16.msra.mxu0 0
        %3068 = vmatprep.subr.bf16.mxu0 0
        %3069 = vmatpush2.bf16.msra.mxu0 0
        %3070 = vmatprep.subr.bf16.mxu0 0
        %3071 = vmatpush2.bf16.msra.mxu0 0
        %3072 = vmatprep.subr.bf16.mxu0 0
        %3073 = vmatpush2.bf16.msra.mxu0 0
        %3074 = vmatprep.subr.bf16.mxu0 0
        %3075 = vmatpush2.bf16.msra.mxu0 0
        %3076 = vmatprep.subr.bf16.mxu0 0
        %3077 = vmatpush2.bf16.msra.mxu0 0
        %3078 = vmatprep.subr.bf16.mxu0 0
        %3079 = vmatpush2.bf16.msra.mxu0 0
        %3080 = vmatprep.mubr.bf16.mxu0 0
        %3081 = vmatmul.mubr.bf16.gmra.mxu0 %v3046
        %v3082 = vpop.f32.mrf.mxu0
        %v3083 = vadd.f32 %v2995, %v3082
        %v3084 = vpop.f32.mrf.mxu0
        %v3085 = vadd.f32 %v2997, %v3084
        %v3086 = vpop.f32.mrf.mxu0
        %v3087 = vpop.f32.mrf.mxu0
        %3088 = vdwg.mxu0
        %3089 = vmatprep.subr.bf16.mxu0 0
        %3090 = vmatpush1.bf16.msra.mxu0 0
        %3091 = vmatprep.subr.bf16.mxu0 0
        %3092 = vmatpush1.bf16.msra.mxu0 0
        %3093 = vmatprep.subr.bf16.mxu0 0
        %3094 = vmatpush1.bf16.msra.mxu0 0
        %3095 = vmatprep.subr.bf16.mxu0 0
        %3096 = vmatpush1.bf16.msra.mxu0 0
        %3097 = vmatprep.subr.bf16.mxu0 0
        %3098 = vmatpush1.bf16.msra.mxu0 0
        %3099 = vmatprep.subr.bf16.mxu0 0
        %3100 = vmatpush1.bf16.msra.mxu0 0
        %3101 = vmatprep.subr.bf16.mxu0 %v2612
        %3102 = vmatpush1.bf16.msra.mxu0 %v2611
        %3103 = vmatprep.subr.bf16.mxu0 %v2608
        %3104 = vmatpush1.bf16.msra.mxu0 %v2607
        %3105 = vmatprep.subr.bf16.mxu0 0
        %3106 = vmatpush2.bf16.msra.mxu0 0
        %3107 = vmatprep.subr.bf16.mxu0 0
        %3108 = vmatpush2.bf16.msra.mxu0 0
        %3109 = vmatprep.subr.bf16.mxu0 0
        %3110 = vmatpush2.bf16.msra.mxu0 0
        %3111 = vmatprep.subr.bf16.mxu0 0
        %3112 = vmatpush2.bf16.msra.mxu0 0
        %3113 = vmatprep.subr.bf16.mxu0 0
        %3114 = vmatpush2.bf16.msra.mxu0 0
        %3115 = vmatprep.subr.bf16.mxu0 0
        %3116 = vmatpush2.bf16.msra.mxu0 0
        %3117 = vmatprep.subr.bf16.mxu0 0
        %3118 = vmatpush2.bf16.msra.mxu0 0
        %3119 = vmatprep.subr.bf16.mxu0 0
        %3120 = vmatpush2.bf16.msra.mxu0 0
        %3121 = vmatprep.mubr.bf16.mxu0 0
        %3122 = vmatmul.mubr.bf16.gmra.mxu0 %v3046
        %v3123 = vpop.f32.mrf.mxu0
        %v3124 = vadd.f32 %v3036, %v3123
        %v3125 = vpop.f32.mrf.mxu0
        %v3126 = vadd.f32 %v3038, %v3125
        %v3127 = vpop.f32.mrf.mxu0
        %v3128 = vpop.f32.mrf.mxu0
        %3129 = vdwg.mxu0
        %v3130 = vadd.f32 %v3083, %v2710
        %v3131 = vadd.f32 %v3085, %v2714
        %v3132 = vadd.f32 %v3124, %v2718
        %v3133 = vadd.f32 %v3126, %v2722
        %v3134 = vxor.u32 %v3130, 2147483648
        %v3135 = vmul.f32 %v3134, 1.442695
        %v3136 = vpow.pop %v3135
        %v3137 = vadd.f32 %v3136, 1.0
        %v3138 = vrcp.pop %v3137
        %v3139 = vmul.f32 1.0, %v3138
        %v3140 = vxor.u32 %v3131, 2147483648
        %v3141 = vmul.f32 %v3140, 1.442695
        %v3142 = vpow.pop %v3141
        %v3143 = vadd.f32 %v3142, 1.0
        %v3144 = vrcp.pop %v3143
        %v3145 = vmul.f32 1.0, %v3144
        %v3146 = vtanh.pop %v3132
        %v3147 = vxor.u32 %v3133, 2147483648
        %v3148 = vmul.f32 %v3147, 1.442695
        %v3149 = vpow.pop %v3148
        %v3150 = vadd.f32 %v3149, 1.0
        %v3151 = vrcp.pop %v3150
        %v3152 = vmul.f32 1.0, %v3151
        %v3153 = vmul.f32 %v3145, %v2752
        %v3154 = vmul.f32 %v3139, %v3146
        %v3155 = vadd.f32 %v3153, %v3154
        %v3156 = vtanh.pop %v3155
        %v3157 = vmul.f32 %v3152, %v3156
        %3158 = vmatprep.subr.bf16.mxu0 0
        %3159 = vmatpush1.bf16.msra.mxu0 0
        %3160 = vmatprep.subr.bf16.mxu0 0
        %3161 = vmatpush1.bf16.msra.mxu0 0
        %3162 = vmatprep.subr.bf16.mxu0 0
        %3163 = vmatpush1.bf16.msra.mxu0 0
        %3164 = vmatprep.subr.bf16.mxu0 0
        %3165 = vmatpush1.bf16.msra.mxu0 0
        %3166 = vmatprep.subr.bf16.mxu0 0
        %3167 = vmatpush1.bf16.msra.mxu0 0
        %3168 = vmatprep.subr.bf16.mxu0 0
        %3169 = vmatpush1.bf16.msra.mxu0 0
        %3170 = vmatprep.subr.bf16.mxu0 0
        %3171 = vmatpush1.bf16.msra.mxu0 %v2107
        %3172 = vmatprep.subr.bf16.mxu0 0
        %3173 = vmatpush1.bf16.msra.mxu0 %v2106
        %3174 = vmatprep.subr.bf16.mxu0 0
        %3175 = vmatpush2.bf16.msra.mxu0 0
        %3176 = vmatprep.subr.bf16.mxu0 0
        %3177 = vmatpush2.bf16.msra.mxu0 0
        %3178 = vmatprep.subr.bf16.mxu0 0
        %3179 = vmatpush2.bf16.msra.mxu0 0
        %3180 = vmatprep.subr.bf16.mxu0 0
        %3181 = vmatpush2.bf16.msra.mxu0 0
        %3182 = vmatprep.subr.bf16.mxu0 0
        %3183 = vmatpush2.bf16.msra.mxu0 0
        %3184 = vmatprep.subr.bf16.mxu0 0
        %3185 = vmatpush2.bf16.msra.mxu0 0
        %3186 = vmatprep.subr.bf16.mxu0 0
        %3187 = vmatpush2.bf16.msra.mxu0 0
        %3188 = vmatprep.subr.bf16.mxu0 0
        %3189 = vmatpush2.bf16.msra.mxu0 0
        %3190 = vmatprep.mubr.bf16.mxu0 0
        %3191 = vmatmul.mubr.bf16.gmra.mxu0 %v3046
        %v3192 = vpop.f32.mrf.mxu0
        %v3193 = vadd.f32 0.0, %v3192
        %v3194 = vpop.f32.mrf.mxu0
        %v3195 = vpop.f32.mrf.mxu0
        %v3196 = vpop.f32.mrf.mxu0
        %3197 = vdwg.mxu0
        %v3199 = vrot.slane %v3193, 6
        %v3201 = vadd.f32 %v1858, %v3199
        %3202 = vmatprep.subr.bf16.mxu0 0
        %3203 = vmatpush1.bf16.msra.mxu0 0
        %3204 = vmatprep.subr.bf16.mxu0 0
        %3205 = vmatpush1.bf16.msra.mxu0 0
        %3206 = vmatprep.subr.bf16.mxu0 0
        %3207 = vmatpush1.bf16.msra.mxu0 0
        %3208 = vmatprep.subr.bf16.mxu0 0
        %3209 = vmatpush1.bf16.msra.mxu0 0
        %3210 = vmatprep.subr.bf16.mxu0 0
        %3211 = vmatpush1.bf16.msra.mxu0 0
        %3212 = vmatprep.subr.bf16.mxu0 0
        %3213 = vmatpush1.bf16.msra.mxu0 0
        %3214 = vmatprep.subr.bf16.mxu0 0
        %3215 = vmatpush1.bf16.msra.mxu0 %v2164
        %3216 = vmatprep.subr.bf16.mxu0 0
        %3217 = vmatpush1.bf16.msra.mxu0 %v2163
        %3218 = vmatprep.subr.bf16.mxu0 0
        %3219 = vmatpush2.bf16.msra.mxu0 0
        %3220 = vmatprep.subr.bf16.mxu0 0
        %3221 = vmatpush2.bf16.msra.mxu0 0
        %3222 = vmatprep.subr.bf16.mxu0 0
        %3223 = vmatpush2.bf16.msra.mxu0 0
        %3224 = vmatprep.subr.bf16.mxu0 0
        %3225 = vmatpush2.bf16.msra.mxu0 0
        %3226 = vmatprep.subr.bf16.mxu0 0
        %3227 = vmatpush2.bf16.msra.mxu0 0
        %3228 = vmatprep.subr.bf16.mxu0 0
        %3229 = vmatpush2.bf16.msra.mxu0 0
        %3230 = vmatprep.subr.bf16.mxu0 0
        %3231 = vmatpush2.bf16.msra.mxu0 0
        %3232 = vmatprep.subr.bf16.mxu0 0
        %3233 = vmatpush2.bf16.msra.mxu0 0
        %3234 = vmatprep.mubr.bf16.mxu0 0
        %3235 = vmatmul.mubr.bf16.gmra.mxu0 %v3046
        %v3236 = vpop.f32.mrf.mxu0
        %v3237 = vadd.f32 0.0, %v3236
        %v3238 = vpop.f32.mrf.mxu0
        %v3239 = vpop.f32.mrf.mxu0
        %v3240 = vpop.f32.mrf.mxu0
        %3241 = vdwg.mxu0
        %v3243 = vrot.slane %v3237, 6
        %v3245 = vadd.f32 %v1916, %v3243
        %3246 = vmatprep.subr.bf16.mxu0 0
        %3247 = vmatpush1.bf16.msra.mxu0 0
        %3248 = vmatprep.subr.bf16.mxu0 0
        %3249 = vmatpush1.bf16.msra.mxu0 0
        %3250 = vmatprep.subr.bf16.mxu0 0
        %3251 = vmatpush1.bf16.msra.mxu0 0
        %3252 = vmatprep.subr.bf16.mxu0 0
        %3253 = vmatpush1.bf16.msra.mxu0 0
        %3254 = vmatprep.subr.bf16.mxu0 0
        %3255 = vmatpush1.bf16.msra.mxu0 0
        %3256 = vmatprep.subr.bf16.mxu0 0
        %3257 = vmatpush1.bf16.msra.mxu0 0
        %3258 = vmatprep.subr.bf16.mxu0 0
        %3259 = vmatpush1.bf16.msra.mxu0 %v2217
        %3260 = vmatprep.subr.bf16.mxu0 0
        %3261 = vmatpush1.bf16.msra.mxu0 %v2216
        %3262 = vmatprep.subr.bf16.mxu0 0
        %3263 = vmatpush2.bf16.msra.mxu0 0
        %3264 = vmatprep.subr.bf16.mxu0 0
        %3265 = vmatpush2.bf16.msra.mxu0 0
        %3266 = vmatprep.subr.bf16.mxu0 0
        %3267 = vmatpush2.bf16.msra.mxu0 0
        %3268 = vmatprep.subr.bf16.mxu0 0
        %3269 = vmatpush2.bf16.msra.mxu0 0
        %3270 = vmatprep.subr.bf16.mxu0 0
        %3271 = vmatpush2.bf16.msra.mxu0 0
        %3272 = vmatprep.subr.bf16.mxu0 0
        %3273 = vmatpush2.bf16.msra.mxu0 0
        %3274 = vmatprep.subr.bf16.mxu0 0
        %3275 = vmatpush2.bf16.msra.mxu0 0
        %3276 = vmatprep.subr.bf16.mxu0 0
        %3277 = vmatpush2.bf16.msra.mxu0 0
        %3278 = vmatprep.mubr.bf16.mxu0 0
        %3279 = vmatmul.mubr.bf16.gmra.mxu0 %v3046
        %v3280 = vpop.f32.mrf.mxu0
        %v3281 = vadd.f32 0.0, %v3280
        %v3282 = vpop.f32.mrf.mxu0
        %v3283 = vpop.f32.mrf.mxu0
        %v3284 = vpop.f32.mrf.mxu0
        %3285 = vdwg.mxu0
        %v3287 = vrot.slane %v3281, 6
        %v3289 = vadd.f32 %v1974, %v3287
        %3290 = vmatprep.subr.bf16.mxu0 0
        %3291 = vmatpush1.bf16.msra.mxu0 0
        %3292 = vmatprep.subr.bf16.mxu0 0
        %3293 = vmatpush1.bf16.msra.mxu0 0
        %3294 = vmatprep.subr.bf16.mxu0 0
        %3295 = vmatpush1.bf16.msra.mxu0 0
        %3296 = vmatprep.subr.bf16.mxu0 0
        %3297 = vmatpush1.bf16.msra.mxu0 0
        %3298 = vmatprep.subr.bf16.mxu0 0
        %3299 = vmatpush1.bf16.msra.mxu0 0
        %3300 = vmatprep.subr.bf16.mxu0 0
        %3301 = vmatpush1.bf16.msra.mxu0 0
        %3302 = vmatprep.subr.bf16.mxu0 0
        %3303 = vmatpush1.bf16.msra.mxu0 %v2270
        %3304 = vmatprep.subr.bf16.mxu0 0
        %3305 = vmatpush1.bf16.msra.mxu0 %v2269
        %3306 = vmatprep.subr.bf16.mxu0 0
        %3307 = vmatpush2.bf16.msra.mxu0 0
        %3308 = vmatprep.subr.bf16.mxu0 0
        %3309 = vmatpush2.bf16.msra.mxu0 0
        %3310 = vmatprep.subr.bf16.mxu0 0
        %3311 = vmatpush2.bf16.msra.mxu0 0
        %3312 = vmatprep.subr.bf16.mxu0 0
        %3313 = vmatpush2.bf16.msra.mxu0 0
        %3314 = vmatprep.subr.bf16.mxu0 0
        %3315 = vmatpush2.bf16.msra.mxu0 0
        %3316 = vmatprep.subr.bf16.mxu0 0
        %3317 = vmatpush2.bf16.msra.mxu0 0
        %3318 = vmatprep.subr.bf16.mxu0 0
        %3319 = vmatpush2.bf16.msra.mxu0 0
        %3320 = vmatprep.subr.bf16.mxu0 0
        %3321 = vmatpush2.bf16.msra.mxu0 0
        %3322 = vmatprep.mubr.bf16.mxu0 0
        %3323 = vmatmul.mubr.bf16.gmra.mxu0 %v3046
        %v3324 = vpop.f32.mrf.mxu0
        %v3325 = vadd.f32 0.0, %v3324
        %v3326 = vpop.f32.mrf.mxu0
        %v3327 = vpop.f32.mrf.mxu0
        %v3328 = vpop.f32.mrf.mxu0
        %3329 = vdwg.mxu0
        %v3331 = vrot.slane %v3325, 6
        %v3333 = vadd.f32 %v2032, %v3331
        %v3334 = vxor.u32 %v3245, 2147483648
        %v3335 = vmul.f32 %v3334, 1.442695
        %v3336 = vpow.pop %v3335
        %v3337 = vadd.f32 %v3336, 1.0
        %v3338 = vrcp.pop %v3337
        %v3339 = vmul.f32 1.0, %v3338
        %v3341 = vrot.slane %v2949, 7
        %v3343 = vmul.f32 %v3339, %v3341
        %v3344 = vxor.u32 %v3201, 2147483648
        %v3345 = vmul.f32 %v3344, 1.442695
        %v3346 = vpow.pop %v3345
        %v3347 = vadd.f32 %v3346, 1.0
        %v3348 = vrcp.pop %v3347
        %v3349 = vmul.f32 1.0, %v3348
        %v3350 = vtanh.pop %v3289
        %v3351 = vmul.f32 %v3349, %v3350
        %v3352 = vadd.f32 %v3343, %v3351
        %v3353 = vxor.u32 %v3333, 2147483648
        %v3354 = vmul.f32 %v3353, 1.442695
        %v3355 = vpow.pop %v3354
        %v3356 = vadd.f32 %v3355, 1.0
        %v3357 = vrcp.pop %v3356
        %v3358 = vmul.f32 1.0, %v3357
        %v3359 = vtanh.pop %v3352
        %v3360 = vmul.f32 %v3358, %v3359
        %v3361 = vpack.c.bf16 %v3360, %v3360
        %v3362 = vpack.c.bf16 %v3157, %v3157
        %3363 = vmatprep.subr.bf16.mxu0 %v2464
        %3364 = vmatpush1.bf16.msra.mxu0 %v2463
        %3365 = vmatprep.subr.bf16.mxu0 %v2460
        %3366 = vmatpush1.bf16.msra.mxu0 %v2459
        %3367 = vmatprep.subr.bf16.mxu0 %v2456
        %3368 = vmatpush1.bf16.msra.mxu0 %v2455
        %3369 = vmatprep.subr.bf16.mxu0 %v2452
        %3370 = vmatpush1.bf16.msra.mxu0 %v2451
        %3371 = vmatprep.subr.bf16.mxu0 %v2448
        %3372 = vmatpush1.bf16.msra.mxu0 %v2447
        %3373 = vmatprep.subr.bf16.mxu0 %v2444
        %3374 = vmatpush1.bf16.msra.mxu0 %v2443
        %3375 = vmatprep.subr.bf16.mxu0 %v2440
        %3376 = vmatpush1.bf16.msra.mxu0 %v2439
        %3377 = vmatprep.subr.bf16.mxu0 %v2436
        %3378 = vmatpush1.bf16.msra.mxu0 %v2435
        %3379 = vmatprep.subr.bf16.mxu0 0
        %3380 = vmatpush2.bf16.msra.mxu0 0
        %3381 = vmatprep.subr.bf16.mxu0 0
        %3382 = vmatpush2.bf16.msra.mxu0 0
        %3383 = vmatprep.subr.bf16.mxu0 0
        %3384 = vmatpush2.bf16.msra.mxu0 0
        %3385 = vmatprep.subr.bf16.mxu0 0
        %3386 = vmatpush2.bf16.msra.mxu0 0
        %3387 = vmatprep.subr.bf16.mxu0 0
        %3388 = vmatpush2.bf16.msra.mxu0 0
        %3389 = vmatprep.subr.bf16.mxu0 0
        %3390 = vmatpush2.bf16.msra.mxu0 0
        %3391 = vmatprep.subr.bf16.mxu0 0
        %3392 = vmatpush2.bf16.msra.mxu0 0
        %3393 = vmatprep.subr.bf16.mxu0 0
        %3394 = vmatpush2.bf16.msra.mxu0 0
        %3395 = vmatprep.mubr.bf16.mxu0 0
        %3396 = vmatmul.mubr.bf16.gmra.mxu0 %v3362
        %v3397 = vpop.f32.mrf.mxu0
        %v3398 = vadd.f32 0.0, %v3397
        %v3399 = vpop.f32.mrf.mxu0
        %v3400 = vadd.f32 0.0, %v3399
        %v3401 = vpop.f32.mrf.mxu0
        %v3402 = vpop.f32.mrf.mxu0
        %3403 = vdwg.mxu0
        %3404 = vmatprep.subr.bf16.mxu0 %v2466
        %3405 = vmatpush1.bf16.msra.mxu0 %v2465
        %3406 = vmatprep.subr.bf16.mxu0 %v2462
        %3407 = vmatpush1.bf16.msra.mxu0 %v2461
        %3408 = vmatprep.subr.bf16.mxu0 %v2458
        %3409 = vmatpush1.bf16.msra.mxu0 %v2457
        %3410 = vmatprep.subr.bf16.mxu0 %v2454
        %3411 = vmatpush1.bf16.msra.mxu0 %v2453
        %3412 = vmatprep.subr.bf16.mxu0 %v2450
        %3413 = vmatpush1.bf16.msra.mxu0 %v2449
        %3414 = vmatprep.subr.bf16.mxu0 %v2446
        %3415 = vmatpush1.bf16.msra.mxu0 %v2445
        %3416 = vmatprep.subr.bf16.mxu0 %v2442
        %3417 = vmatpush1.bf16.msra.mxu0 %v2441
        %3418 = vmatprep.subr.bf16.mxu0 %v2438
        %3419 = vmatpush1.bf16.msra.mxu0 %v2437
        %3420 = vmatprep.subr.bf16.mxu0 0
        %3421 = vmatpush2.bf16.msra.mxu0 0
        %3422 = vmatprep.subr.bf16.mxu0 0
        %3423 = vmatpush2.bf16.msra.mxu0 0
        %3424 = vmatprep.subr.bf16.mxu0 0
        %3425 = vmatpush2.bf16.msra.mxu0 0
        %3426 = vmatprep.subr.bf16.mxu0 0
        %3427 = vmatpush2.bf16.msra.mxu0 0
        %3428 = vmatprep.subr.bf16.mxu0 0
        %3429 = vmatpush2.bf16.msra.mxu0 0
        %3430 = vmatprep.subr.bf16.mxu0 0
        %3431 = vmatpush2.bf16.msra.mxu0 0
        %3432 = vmatprep.subr.bf16.mxu0 0
        %3433 = vmatpush2.bf16.msra.mxu0 0
        %3434 = vmatprep.subr.bf16.mxu0 0
        %3435 = vmatpush2.bf16.msra.mxu0 0
        %3436 = vmatprep.mubr.bf16.mxu0 0
        %3437 = vmatmul.mubr.bf16.gmra.mxu0 %v3362
        %v3438 = vpop.f32.mrf.mxu0
        %v3439 = vadd.f32 0.0, %v3438
        %v3440 = vpop.f32.mrf.mxu0
        %v3441 = vadd.f32 0.0, %v3440
        %v3442 = vpop.f32.mrf.mxu0
        %v3443 = vpop.f32.mrf.mxu0
        %3444 = vdwg.mxu0
        %v3446 = vrot.slane %v3361, 1
        %v3448 = vsel %vm2110, %v3446, 0
        %3450 = vmatprep.subr.bf16.mxu0 0
        %3451 = vmatpush1.bf16.msra.mxu0 0
        %3452 = vmatprep.subr.bf16.mxu0 0
        %3453 = vmatpush1.bf16.msra.mxu0 0
        %3454 = vmatprep.subr.bf16.mxu0 0
        %3455 = vmatpush1.bf16.msra.mxu0 0
        %3456 = vmatprep.subr.bf16.mxu0 0
        %3457 = vmatpush1.bf16.msra.mxu0 0
        %3458 = vmatprep.subr.bf16.mxu0 0
        %3459 = vmatpush1.bf16.msra.mxu0 0
        %3460 = vmatprep.subr.bf16.mxu0 0
        %3461 = vmatpush1.bf16.msra.mxu0 0
        %3462 = vmatprep.subr.bf16.mxu0 %v2610
        %3463 = vmatpush1.bf16.msra.mxu0 %v2609
        %3464 = vmatprep.subr.bf16.mxu0 %v2606
        %3465 = vmatpush1.bf16.msra.mxu0 %v2605
        %3466 = vmatprep.subr.bf16.mxu0 0
        %3467 = vmatpush2.bf16.msra.mxu0 0
        %3468 = vmatprep.subr.bf16.mxu0 0
        %3469 = vmatpush2.bf16.msra.mxu0 0
        %3470 = vmatprep.subr.bf16.mxu0 0
        %3471 = vmatpush2.bf16.msra.mxu0 0
        %3472 = vmatprep.subr.bf16.mxu0 0
        %3473 = vmatpush2.bf16.msra.mxu0 0
        %3474 = vmatprep.subr.bf16.mxu0 0
        %3475 = vmatpush2.bf16.msra.mxu0 0
        %3476 = vmatprep.subr.bf16.mxu0 0
        %3477 = vmatpush2.bf16.msra.mxu0 0
        %3478 = vmatprep.subr.bf16.mxu0 0
        %3479 = vmatpush2.bf16.msra.mxu0 0
        %3480 = vmatprep.subr.bf16.mxu0 0
        %3481 = vmatpush2.bf16.msra.mxu0 0
        %3482 = vmatprep.mubr.bf16.mxu0 0
        %3483 = vmatmul.mubr.bf16.gmra.mxu0 %v3448
        %v3484 = vpop.f32.mrf.mxu0
        %v3485 = vadd.f32 %v3398, %v3484
        %v3486 = vpop.f32.mrf.mxu0
        %v3487 = vadd.f32 %v3400, %v3486
        %v3488 = vpop.f32.mrf.mxu0
        %v3489 = vpop.f32.mrf.mxu0
        %3490 = vdwg.mxu0
        %3491 = vmatprep.subr.bf16.mxu0 0
        %3492 = vmatpush1.bf16.msra.mxu0 0
        %3493 = vmatprep.subr.bf16.mxu0 0
        %3494 = vmatpush1.bf16.msra.mxu0 0
        %3495 = vmatprep.subr.bf16.mxu0 0
        %3496 = vmatpush1.bf16.msra.mxu0 0
        %3497 = vmatprep.subr.bf16.mxu0 0
        %3498 = vmatpush1.bf16.msra.mxu0 0
        %3499 = vmatprep.subr.bf16.mxu0 0
        %3500 = vmatpush1.bf16.msra.mxu0 0
        %3501 = vmatprep.subr.bf16.mxu0 0
        %3502 = vmatpush1.bf16.msra.mxu0 0
        %3503 = vmatprep.subr.bf16.mxu0 %v2612
        %3504 = vmatpush1.bf16.msra.mxu0 %v2611
        %3505 = vmatprep.subr.bf16.mxu0 %v2608
        %3506 = vmatpush1.bf16.msra.mxu0 %v2607
        %3507 = vmatprep.subr.bf16.mxu0 0
        %3508 = vmatpush2.bf16.msra.mxu0 0
        %3509 = vmatprep.subr.bf16.mxu0 0
        %3510 = vmatpush2.bf16.msra.mxu0 0
        %3511 = vmatprep.subr.bf16.mxu0 0
        %3512 = vmatpush2.bf16.msra.mxu0 0
        %3513 = vmatprep.subr.bf16.mxu0 0
        %3514 = vmatpush2.bf16.msra.mxu0 0
        %3515 = vmatprep.subr.bf16.mxu0 0
        %3516 = vmatpush2.bf16.msra.mxu0 0
        %3517 = vmatprep.subr.bf16.mxu0 0
        %3518 = vmatpush2.bf16.msra.mxu0 0
        %3519 = vmatprep.subr.bf16.mxu0 0
        %3520 = vmatpush2.bf16.msra.mxu0 0
        %3521 = vmatprep.subr.bf16.mxu0 0
        %3522 = vmatpush2.bf16.msra.mxu0 0
        %3523 = vmatprep.mubr.bf16.mxu0 0
        %3524 = vmatmul.mubr.bf16.gmra.mxu0 %v3448
        %v3525 = vpop.f32.mrf.mxu0
        %v3526 = vadd.f32 %v3439, %v3525
        %v3527 = vpop.f32.mrf.mxu0
        %v3528 = vadd.f32 %v3441, %v3527
        %v3529 = vpop.f32.mrf.mxu0
        %v3530 = vpop.f32.mrf.mxu0
        %3531 = vdwg.mxu0
        %v3532 = vadd.f32 %v3485, %v2710
        %v3533 = vadd.f32 %v3487, %v2714
        %v3534 = vadd.f32 %v3526, %v2718
        %v3535 = vadd.f32 %v3528, %v2722
        %v3536 = vxor.u32 %v3532, 2147483648
        %v3537 = vmul.f32 %v3536, 1.442695
        %v3538 = vpow.pop %v3537
        %v3539 = vadd.f32 %v3538, 1.0
        %v3540 = vrcp.pop %v3539
        %v3541 = vmul.f32 1.0, %v3540
        %v3542 = vxor.u32 %v3533, 2147483648
        %v3543 = vmul.f32 %v3542, 1.442695
        %v3544 = vpow.pop %v3543
        %v3545 = vadd.f32 %v3544, 1.0
        %v3546 = vrcp.pop %v3545
        %v3547 = vmul.f32 1.0, %v3546
        %v3548 = vtanh.pop %v3534
        %v3549 = vxor.u32 %v3535, 2147483648
        %v3550 = vmul.f32 %v3549, 1.442695
        %v3551 = vpow.pop %v3550
        %v3552 = vadd.f32 %v3551, 1.0
        %v3553 = vrcp.pop %v3552
        %v3554 = vmul.f32 1.0, %v3553
        %v3555 = vmul.f32 %v3547, %v3155
        %v3556 = vmul.f32 %v3541, %v3548
        %v3557 = vadd.f32 %v3555, %v3556
        %v3558 = vtanh.pop %v3557
        %v3559 = vmul.f32 %v3554, %v3558
        %3560 = vmatprep.subr.bf16.mxu0 0
        %3561 = vmatpush1.bf16.msra.mxu0 0
        %3562 = vmatprep.subr.bf16.mxu0 0
        %3563 = vmatpush1.bf16.msra.mxu0 0
        %3564 = vmatprep.subr.bf16.mxu0 0
        %3565 = vmatpush1.bf16.msra.mxu0 0
        %3566 = vmatprep.subr.bf16.mxu0 0
        %3567 = vmatpush1.bf16.msra.mxu0 0
        %3568 = vmatprep.subr.bf16.mxu0 0
        %3569 = vmatpush1.bf16.msra.mxu0 0
        %3570 = vmatprep.subr.bf16.mxu0 0
        %3571 = vmatpush1.bf16.msra.mxu0 0
        %3572 = vmatprep.subr.bf16.mxu0 0
        %3573 = vmatpush1.bf16.msra.mxu0 %v2107
        %3574 = vmatprep.subr.bf16.mxu0 0
        %3575 = vmatpush1.bf16.msra.mxu0 %v2106
        %3576 = vmatprep.subr.bf16.mxu0 0
        %3577 = vmatpush2.bf16.msra.mxu0 0
        %3578 = vmatprep.subr.bf16.mxu0 0
        %3579 = vmatpush2.bf16.msra.mxu0 0
        %3580 = vmatprep.subr.bf16.mxu0 0
        %3581 = vmatpush2.bf16.msra.mxu0 0
        %3582 = vmatprep.subr.bf16.mxu0 0
        %3583 = vmatpush2.bf16.msra.mxu0 0
        %3584 = vmatprep.subr.bf16.mxu0 0
        %3585 = vmatpush2.bf16.msra.mxu0 0
        %3586 = vmatprep.subr.bf16.mxu0 0
        %3587 = vmatpush2.bf16.msra.mxu0 0
        %3588 = vmatprep.subr.bf16.mxu0 0
        %3589 = vmatpush2.bf16.msra.mxu0 0
        %3590 = vmatprep.subr.bf16.mxu0 0
        %3591 = vmatpush2.bf16.msra.mxu0 0
        %3592 = vmatprep.mubr.bf16.mxu0 0
        %3593 = vmatmul.mubr.bf16.gmra.mxu0 %v3448
        %v3594 = vpop.f32.mrf.mxu0
        %v3595 = vadd.f32 0.0, %v3594
        %v3596 = vpop.f32.mrf.mxu0
        %v3597 = vpop.f32.mrf.mxu0
        %v3598 = vpop.f32.mrf.mxu0
        %3599 = vdwg.mxu0
        %v3601 = vrot.slane %v3595, 5
        %v3603 = vadd.f32 %v1858, %v3601
        %3604 = vmatprep.subr.bf16.mxu0 0
        %3605 = vmatpush1.bf16.msra.mxu0 0
        %3606 = vmatprep.subr.bf16.mxu0 0
        %3607 = vmatpush1.bf16.msra.mxu0 0
        %3608 = vmatprep.subr.bf16.mxu0 0
        %3609 = vmatpush1.bf16.msra.mxu0 0
        %3610 = vmatprep.subr.bf16.mxu0 0
        %3611 = vmatpush1.bf16.msra.mxu0 0
        %3612 = vmatprep.subr.bf16.mxu0 0
        %3613 = vmatpush1.bf16.msra.mxu0 0
        %3614 = vmatprep.subr.bf16.mxu0 0
        %3615 = vmatpush1.bf16.msra.mxu0 0
        %3616 = vmatprep.subr.bf16.mxu0 0
        %3617 = vmatpush1.bf16.msra.mxu0 %v2164
        %3618 = vmatprep.subr.bf16.mxu0 0
        %3619 = vmatpush1.bf16.msra.mxu0 %v2163
        %3620 = vmatprep.subr.bf16.mxu0 0
        %3621 = vmatpush2.bf16.msra.mxu0 0
        %3622 = vmatprep.subr.bf16.mxu0 0
        %3623 = vmatpush2.bf16.msra.mxu0 0
        %3624 = vmatprep.subr.bf16.mxu0 0
        %3625 = vmatpush2.bf16.msra.mxu0 0
        %3626 = vmatprep.subr.bf16.mxu0 0
        %3627 = vmatpush2.bf16.msra.mxu0 0
        %3628 = vmatprep.subr.bf16.mxu0 0
        %3629 = vmatpush2.bf16.msra.mxu0 0
        %3630 = vmatprep.subr.bf16.mxu0 0
        %3631 = vmatpush2.bf16.msra.mxu0 0
        %3632 = vmatprep.subr.bf16.mxu0 0
        %3633 = vmatpush2.bf16.msra.mxu0 0
        %3634 = vmatprep.subr.bf16.mxu0 0
        %3635 = vmatpush2.bf16.msra.mxu0 0
        %3636 = vmatprep.mubr.bf16.mxu0 0
        %3637 = vmatmul.mubr.bf16.gmra.mxu0 %v3448
        %v3638 = vpop.f32.mrf.mxu0
        %v3639 = vadd.f32 0.0, %v3638
        %v3640 = vpop.f32.mrf.mxu0
        %v3641 = vpop.f32.mrf.mxu0
        %v3642 = vpop.f32.mrf.mxu0
        %3643 = vdwg.mxu0
        %v3645 = vrot.slane %v3639, 5
        %v3647 = vadd.f32 %v1916, %v3645
        %3648 = vmatprep.subr.bf16.mxu0 0
        %3649 = vmatpush1.bf16.msra.mxu0 0
        %3650 = vmatprep.subr.bf16.mxu0 0
        %3651 = vmatpush1.bf16.msra.mxu0 0
        %3652 = vmatprep.subr.bf16.mxu0 0
        %3653 = vmatpush1.bf16.msra.mxu0 0
        %3654 = vmatprep.subr.bf16.mxu0 0
        %3655 = vmatpush1.bf16.msra.mxu0 0
        %3656 = vmatprep.subr.bf16.mxu0 0
        %3657 = vmatpush1.bf16.msra.mxu0 0
        %3658 = vmatprep.subr.bf16.mxu0 0
        %3659 = vmatpush1.bf16.msra.mxu0 0
        %3660 = vmatprep.subr.bf16.mxu0 0
        %3661 = vmatpush1.bf16.msra.mxu0 %v2217
        %3662 = vmatprep.subr.bf16.mxu0 0
        %3663 = vmatpush1.bf16.msra.mxu0 %v2216
        %3664 = vmatprep.subr.bf16.mxu0 0
        %3665 = vmatpush2.bf16.msra.mxu0 0
        %3666 = vmatprep.subr.bf16.mxu0 0
        %3667 = vmatpush2.bf16.msra.mxu0 0
        %3668 = vmatprep.subr.bf16.mxu0 0
        %3669 = vmatpush2.bf16.msra.mxu0 0
        %3670 = vmatprep.subr.bf16.mxu0 0
        %3671 = vmatpush2.bf16.msra.mxu0 0
        %3672 = vmatprep.subr.bf16.mxu0 0
        %3673 = vmatpush2.bf16.msra.mxu0 0
        %3674 = vmatprep.subr.bf16.mxu0 0
        %3675 = vmatpush2.bf16.msra.mxu0 0
        %3676 = vmatprep.subr.bf16.mxu0 0
        %3677 = vmatpush2.bf16.msra.mxu0 0
        %3678 = vmatprep.subr.bf16.mxu0 0
        %3679 = vmatpush2.bf16.msra.mxu0 0
        %3680 = vmatprep.mubr.bf16.mxu0 0
        %3681 = vmatmul.mubr.bf16.gmra.mxu0 %v3448
        %v3682 = vpop.f32.mrf.mxu0
        %v3683 = vadd.f32 0.0, %v3682
        %v3684 = vpop.f32.mrf.mxu0
        %v3685 = vpop.f32.mrf.mxu0
        %v3686 = vpop.f32.mrf.mxu0
        %3687 = vdwg.mxu0
        %v3689 = vrot.slane %v3683, 5
        %v3691 = vadd.f32 %v1974, %v3689
        %3692 = vmatprep.subr.bf16.mxu0 0
        %3693 = vmatpush1.bf16.msra.mxu0 0
        %3694 = vmatprep.subr.bf16.mxu0 0
        %3695 = vmatpush1.bf16.msra.mxu0 0
        %3696 = vmatprep.subr.bf16.mxu0 0
        %3697 = vmatpush1.bf16.msra.mxu0 0
        %3698 = vmatprep.subr.bf16.mxu0 0
        %3699 = vmatpush1.bf16.msra.mxu0 0
        %3700 = vmatprep.subr.bf16.mxu0 0
        %3701 = vmatpush1.bf16.msra.mxu0 0
        %3702 = vmatprep.subr.bf16.mxu0 0
        %3703 = vmatpush1.bf16.msra.mxu0 0
        %3704 = vmatprep.subr.bf16.mxu0 0
        %3705 = vmatpush1.bf16.msra.mxu0 %v2270
        %3706 = vmatprep.subr.bf16.mxu0 0
        %3707 = vmatpush1.bf16.msra.mxu0 %v2269
        %3708 = vmatprep.subr.bf16.mxu0 0
        %3709 = vmatpush2.bf16.msra.mxu0 0
        %3710 = vmatprep.subr.bf16.mxu0 0
        %3711 = vmatpush2.bf16.msra.mxu0 0
        %3712 = vmatprep.subr.bf16.mxu0 0
        %3713 = vmatpush2.bf16.msra.mxu0 0
        %3714 = vmatprep.subr.bf16.mxu0 0
        %3715 = vmatpush2.bf16.msra.mxu0 0
        %3716 = vmatprep.subr.bf16.mxu0 0
        %3717 = vmatpush2.bf16.msra.mxu0 0
        %3718 = vmatprep.subr.bf16.mxu0 0
        %3719 = vmatpush2.bf16.msra.mxu0 0
        %3720 = vmatprep.subr.bf16.mxu0 0
        %3721 = vmatpush2.bf16.msra.mxu0 0
        %3722 = vmatprep.subr.bf16.mxu0 0
        %3723 = vmatpush2.bf16.msra.mxu0 0
        %3724 = vmatprep.mubr.bf16.mxu0 0
        %3725 = vmatmul.mubr.bf16.gmra.mxu0 %v3448
        %v3726 = vpop.f32.mrf.mxu0
        %v3727 = vadd.f32 0.0, %v3726
        %v3728 = vpop.f32.mrf.mxu0
        %v3729 = vpop.f32.mrf.mxu0
        %v3730 = vpop.f32.mrf.mxu0
        %3731 = vdwg.mxu0
        %v3733 = vrot.slane %v3727, 5
        %v3735 = vadd.f32 %v2032, %v3733
        %v3736 = vxor.u32 %v3647, 2147483648
        %v3737 = vmul.f32 %v3736, 1.442695
        %v3738 = vpow.pop %v3737
        %v3739 = vadd.f32 %v3738, 1.0
        %v3740 = vrcp.pop %v3739
        %v3741 = vmul.f32 1.0, %v3740
        %v3743 = vrot.slane %v3352, 7
        %v3745 = vmul.f32 %v3741, %v3743
        %v3746 = vxor.u32 %v3603, 2147483648
        %v3747 = vmul.f32 %v3746, 1.442695
        %v3748 = vpow.pop %v3747
        %v3749 = vadd.f32 %v3748, 1.0
        %v3750 = vrcp.pop %v3749
        %v3751 = vmul.f32 1.0, %v3750
        %v3752 = vtanh.pop %v3691
        %v3753 = vmul.f32 %v3751, %v3752
        %v3754 = vadd.f32 %v3745, %v3753
        %v3755 = vxor.u32 %v3735, 2147483648
        %v3756 = vmul.f32 %v3755, 1.442695
        %v3757 = vpow.pop %v3756
        %v3758 = vadd.f32 %v3757, 1.0
        %v3759 = vrcp.pop %v3758
        %v3760 = vmul.f32 1.0, %v3759
        %v3761 = vtanh.pop %v3754
        %v3762 = vmul.f32 %v3760, %v3761
        %v3763 = vpack.c.bf16 %v3762, %v3762
        %v3764 = vpack.c.bf16 %v3559, %v3559
        %3765 = vmatprep.subr.bf16.mxu0 %v2464
        %3766 = vmatpush1.bf16.msra.mxu0 %v2463
        %3767 = vmatprep.subr.bf16.mxu0 %v2460
        %3768 = vmatpush1.bf16.msra.mxu0 %v2459
        %3769 = vmatprep.subr.bf16.mxu0 %v2456
        %3770 = vmatpush1.bf16.msra.mxu0 %v2455
        %3771 = vmatprep.subr.bf16.mxu0 %v2452
        %3772 = vmatpush1.bf16.msra.mxu0 %v2451
        %3773 = vmatprep.subr.bf16.mxu0 %v2448
        %3774 = vmatpush1.bf16.msra.mxu0 %v2447
        %3775 = vmatprep.subr.bf16.mxu0 %v2444
        %3776 = vmatpush1.bf16.msra.mxu0 %v2443
        %3777 = vmatprep.subr.bf16.mxu0 %v2440
        %3778 = vmatpush1.bf16.msra.mxu0 %v2439
        %3779 = vmatprep.subr.bf16.mxu0 %v2436
        %3780 = vmatpush1.bf16.msra.mxu0 %v2435
        %3781 = vmatprep.subr.bf16.mxu0 0
        %3782 = vmatpush2.bf16.msra.mxu0 0
        %3783 = vmatprep.subr.bf16.mxu0 0
        %3784 = vmatpush2.bf16.msra.mxu0 0
        %3785 = vmatprep.subr.bf16.mxu0 0
        %3786 = vmatpush2.bf16.msra.mxu0 0
        %3787 = vmatprep.subr.bf16.mxu0 0
        %3788 = vmatpush2.bf16.msra.mxu0 0
        %3789 = vmatprep.subr.bf16.mxu0 0
        %3790 = vmatpush2.bf16.msra.mxu0 0
        %3791 = vmatprep.subr.bf16.mxu0 0
        %3792 = vmatpush2.bf16.msra.mxu0 0
        %3793 = vmatprep.subr.bf16.mxu0 0
        %3794 = vmatpush2.bf16.msra.mxu0 0
        %3795 = vmatprep.subr.bf16.mxu0 0
        %3796 = vmatpush2.bf16.msra.mxu0 0
        %3797 = vmatprep.mubr.bf16.mxu0 0
        %3798 = vmatmul.mubr.bf16.gmra.mxu0 %v3764
        %v3799 = vpop.f32.mrf.mxu0
        %v3800 = vadd.f32 0.0, %v3799
        %v3801 = vpop.f32.mrf.mxu0
        %v3802 = vadd.f32 0.0, %v3801
        %v3803 = vpop.f32.mrf.mxu0
        %v3804 = vpop.f32.mrf.mxu0
        %3805 = vdwg.mxu0
        %3806 = vmatprep.subr.bf16.mxu0 %v2466
        %3807 = vmatpush1.bf16.msra.mxu0 %v2465
        %3808 = vmatprep.subr.bf16.mxu0 %v2462
        %3809 = vmatpush1.bf16.msra.mxu0 %v2461
        %3810 = vmatprep.subr.bf16.mxu0 %v2458
        %3811 = vmatpush1.bf16.msra.mxu0 %v2457
        %3812 = vmatprep.subr.bf16.mxu0 %v2454
        %3813 = vmatpush1.bf16.msra.mxu0 %v2453
        %3814 = vmatprep.subr.bf16.mxu0 %v2450
        %3815 = vmatpush1.bf16.msra.mxu0 %v2449
        %3816 = vmatprep.subr.bf16.mxu0 %v2446
        %3817 = vmatpush1.bf16.msra.mxu0 %v2445
        %3818 = vmatprep.subr.bf16.mxu0 %v2442
        %3819 = vmatpush1.bf16.msra.mxu0 %v2441
        %3820 = vmatprep.subr.bf16.mxu0 %v2438
        %3821 = vmatpush1.bf16.msra.mxu0 %v2437
        %3822 = vmatprep.subr.bf16.mxu0 0
        %3823 = vmatpush2.bf16.msra.mxu0 0
        %3824 = vmatprep.subr.bf16.mxu0 0
        %3825 = vmatpush2.bf16.msra.mxu0 0
        %3826 = vmatprep.subr.bf16.mxu0 0
        %3827 = vmatpush2.bf16.msra.mxu0 0
        %3828 = vmatprep.subr.bf16.mxu0 0
        %3829 = vmatpush2.bf16.msra.mxu0 0
        %3830 = vmatprep.subr.bf16.mxu0 0
        %3831 = vmatpush2.bf16.msra.mxu0 0
        %3832 = vmatprep.subr.bf16.mxu0 0
        %3833 = vmatpush2.bf16.msra.mxu0 0
        %3834 = vmatprep.subr.bf16.mxu0 0
        %3835 = vmatpush2.bf16.msra.mxu0 0
        %3836 = vmatprep.subr.bf16.mxu0 0
        %3837 = vmatpush2.bf16.msra.mxu0 0
        %3838 = vmatprep.mubr.bf16.mxu0 0
        %3839 = vmatmul.mubr.bf16.gmra.mxu0 %v3764
        %v3840 = vpop.f32.mrf.mxu0
        %v3841 = vadd.f32 0.0, %v3840
        %v3842 = vpop.f32.mrf.mxu0
        %v3843 = vadd.f32 0.0, %v3842
        %v3844 = vpop.f32.mrf.mxu0
        %v3845 = vpop.f32.mrf.mxu0
        %3846 = vdwg.mxu0
        %v3848 = vshrl.u32 %v3763, 16
        %v3850 = vrot.slane %v3848, 1
        %v3852 = vsel %vm2110, %v3850, 0
        %3854 = vmatprep.subr.bf16.mxu0 0
        %3855 = vmatpush1.bf16.msra.mxu0 0
        %3856 = vmatprep.subr.bf16.mxu0 0
        %3857 = vmatpush1.bf16.msra.mxu0 0
        %3858 = vmatprep.subr.bf16.mxu0 0
        %3859 = vmatpush1.bf16.msra.mxu0 0
        %3860 = vmatprep.subr.bf16.mxu0 0
        %3861 = vmatpush1.bf16.msra.mxu0 0
        %3862 = vmatprep.subr.bf16.mxu0 0
        %3863 = vmatpush1.bf16.msra.mxu0 0
        %3864 = vmatprep.subr.bf16.mxu0 0
        %3865 = vmatpush1.bf16.msra.mxu0 0
        %3866 = vmatprep.subr.bf16.mxu0 %v2610
        %3867 = vmatpush1.bf16.msra.mxu0 %v2609
        %3868 = vmatprep.subr.bf16.mxu0 %v2606
        %3869 = vmatpush1.bf16.msra.mxu0 %v2605
        %3870 = vmatprep.subr.bf16.mxu0 0
        %3871 = vmatpush2.bf16.msra.mxu0 0
        %3872 = vmatprep.subr.bf16.mxu0 0
        %3873 = vmatpush2.bf16.msra.mxu0 0
        %3874 = vmatprep.subr.bf16.mxu0 0
        %3875 = vmatpush2.bf16.msra.mxu0 0
        %3876 = vmatprep.subr.bf16.mxu0 0
        %3877 = vmatpush2.bf16.msra.mxu0 0
        %3878 = vmatprep.subr.bf16.mxu0 0
        %3879 = vmatpush2.bf16.msra.mxu0 0
        %3880 = vmatprep.subr.bf16.mxu0 0
        %3881 = vmatpush2.bf16.msra.mxu0 0
        %3882 = vmatprep.subr.bf16.mxu0 0
        %3883 = vmatpush2.bf16.msra.mxu0 0
        %3884 = vmatprep.subr.bf16.mxu0 0
        %3885 = vmatpush2.bf16.msra.mxu0 0
        %3886 = vmatprep.mubr.bf16.mxu0 0
        %3887 = vmatmul.mubr.bf16.gmra.mxu0 %v3852
        %v3888 = vpop.f32.mrf.mxu0
        %v3889 = vadd.f32 %v3800, %v3888
        %v3890 = vpop.f32.mrf.mxu0
        %v3891 = vadd.f32 %v3802, %v3890
        %v3892 = vpop.f32.mrf.mxu0
        %v3893 = vpop.f32.mrf.mxu0
        %3894 = vdwg.mxu0
        %3895 = vmatprep.subr.bf16.mxu0 0
        %3896 = vmatpush1.bf16.msra.mxu0 0
        %3897 = vmatprep.subr.bf16.mxu0 0
        %3898 = vmatpush1.bf16.msra.mxu0 0
        %3899 = vmatprep.subr.bf16.mxu0 0
        %3900 = vmatpush1.bf16.msra.mxu0 0
        %3901 = vmatprep.subr.bf16.mxu0 0
        %3902 = vmatpush1.bf16.msra.mxu0 0
        %3903 = vmatprep.subr.bf16.mxu0 0
        %3904 = vmatpush1.bf16.msra.mxu0 0
        %3905 = vmatprep.subr.bf16.mxu0 0
        %3906 = vmatpush1.bf16.msra.mxu0 0
        %3907 = vmatprep.subr.bf16.mxu0 %v2612
        %3908 = vmatpush1.bf16.msra.mxu0 %v2611
        %3909 = vmatprep.subr.bf16.mxu0 %v2608
        %3910 = vmatpush1.bf16.msra.mxu0 %v2607
        %3911 = vmatprep.subr.bf16.mxu0 0
        %3912 = vmatpush2.bf16.msra.mxu0 0
        %3913 = vmatprep.subr.bf16.mxu0 0
        %3914 = vmatpush2.bf16.msra.mxu0 0
        %3915 = vmatprep.subr.bf16.mxu0 0
        %3916 = vmatpush2.bf16.msra.mxu0 0
        %3917 = vmatprep.subr.bf16.mxu0 0
        %3918 = vmatpush2.bf16.msra.mxu0 0
        %3919 = vmatprep.subr.bf16.mxu0 0
        %3920 = vmatpush2.bf16.msra.mxu0 0
        %3921 = vmatprep.subr.bf16.mxu0 0
        %3922 = vmatpush2.bf16.msra.mxu0 0
        %3923 = vmatprep.subr.bf16.mxu0 0
        %3924 = vmatpush2.bf16.msra.mxu0 0
        %3925 = vmatprep.subr.bf16.mxu0 0
        %3926 = vmatpush2.bf16.msra.mxu0 0
        %3927 = vmatprep.mubr.bf16.mxu0 0
        %3928 = vmatmul.mubr.bf16.gmra.mxu0 %v3852
        %v3929 = vpop.f32.mrf.mxu0
        %v3930 = vadd.f32 %v3841, %v3929
        %v3931 = vpop.f32.mrf.mxu0
        %v3932 = vadd.f32 %v3843, %v3931
        %v3933 = vpop.f32.mrf.mxu0
        %v3934 = vpop.f32.mrf.mxu0
        %3935 = vdwg.mxu0
        %v3936 = vadd.f32 %v3889, %v2710
        %v3937 = vadd.f32 %v3891, %v2714
        %v3938 = vadd.f32 %v3930, %v2718
        %v3939 = vadd.f32 %v3932, %v2722
        %v3940 = vxor.u32 %v3936, 2147483648
        %v3941 = vmul.f32 %v3940, 1.442695
        %v3942 = vpow.pop %v3941
        %v3943 = vadd.f32 %v3942, 1.0
        %v3944 = vrcp.pop %v3943
        %v3945 = vmul.f32 1.0, %v3944
        %v3946 = vxor.u32 %v3937, 2147483648
        %v3947 = vmul.f32 %v3946, 1.442695
        %v3948 = vpow.pop %v3947
        %v3949 = vadd.f32 %v3948, 1.0
        %v3950 = vrcp.pop %v3949
        %v3951 = vmul.f32 1.0, %v3950
        %v3952 = vtanh.pop %v3938
        %v3953 = vxor.u32 %v3939, 2147483648
        %v3954 = vmul.f32 %v3953, 1.442695
        %v3955 = vpow.pop %v3954
        %v3956 = vadd.f32 %v3955, 1.0
        %v3957 = vrcp.pop %v3956
        %v3958 = vmul.f32 1.0, %v3957
        %v3959 = vmul.f32 %v3951, %v3557
        %v3960 = vmul.f32 %v3945, %v3952
        %v3961 = vadd.f32 %v3959, %v3960
        %v3962 = vtanh.pop %v3961
        %v3963 = vmul.f32 %v3958, %v3962
        %3964 = vmatprep.subr.bf16.mxu0 0
        %3965 = vmatpush1.bf16.msra.mxu0 0
        %3966 = vmatprep.subr.bf16.mxu0 0
        %3967 = vmatpush1.bf16.msra.mxu0 0
        %3968 = vmatprep.subr.bf16.mxu0 0
        %3969 = vmatpush1.bf16.msra.mxu0 0
        %3970 = vmatprep.subr.bf16.mxu0 0
        %3971 = vmatpush1.bf16.msra.mxu0 0
        %3972 = vmatprep.subr.bf16.mxu0 0
        %3973 = vmatpush1.bf16.msra.mxu0 0
        %3974 = vmatprep.subr.bf16.mxu0 0
        %3975 = vmatpush1.bf16.msra.mxu0 0
        %3976 = vmatprep.subr.bf16.mxu0 0
        %3977 = vmatpush1.bf16.msra.mxu0 %v2107
        %3978 = vmatprep.subr.bf16.mxu0 0
        %3979 = vmatpush1.bf16.msra.mxu0 %v2106
        %3980 = vmatprep.subr.bf16.mxu0 0
        %3981 = vmatpush2.bf16.msra.mxu0 0
        %3982 = vmatprep.subr.bf16.mxu0 0
        %3983 = vmatpush2.bf16.msra.mxu0 0
        %3984 = vmatprep.subr.bf16.mxu0 0
        %3985 = vmatpush2.bf16.msra.mxu0 0
        %3986 = vmatprep.subr.bf16.mxu0 0
        %3987 = vmatpush2.bf16.msra.mxu0 0
        %3988 = vmatprep.subr.bf16.mxu0 0
        %3989 = vmatpush2.bf16.msra.mxu0 0
        %3990 = vmatprep.subr.bf16.mxu0 0
        %3991 = vmatpush2.bf16.msra.mxu0 0
        %3992 = vmatprep.subr.bf16.mxu0 0
        %3993 = vmatpush2.bf16.msra.mxu0 0
        %3994 = vmatprep.subr.bf16.mxu0 0
        %3995 = vmatpush2.bf16.msra.mxu0 0
        %3996 = vmatprep.mubr.bf16.mxu0 0
        %3997 = vmatmul.mubr.bf16.gmra.mxu0 %v3852
        %v3998 = vpop.f32.mrf.mxu0
        %v3999 = vadd.f32 0.0, %v3998
        %v4000 = vpop.f32.mrf.mxu0
        %v4001 = vpop.f32.mrf.mxu0
        %v4002 = vpop.f32.mrf.mxu0
        %4003 = vdwg.mxu0
        %v4005 = vrot.slane %v3999, 4
        %v4007 = vadd.f32 %v1858, %v4005
        %4008 = vmatprep.subr.bf16.mxu0 0
        %4009 = vmatpush1.bf16.msra.mxu0 0
        %4010 = vmatprep.subr.bf16.mxu0 0
        %4011 = vmatpush1.bf16.msra.mxu0 0
        %4012 = vmatprep.subr.bf16.mxu0 0
        %4013 = vmatpush1.bf16.msra.mxu0 0
        %4014 = vmatprep.subr.bf16.mxu0 0
        %4015 = vmatpush1.bf16.msra.mxu0 0
        %4016 = vmatprep.subr.bf16.mxu0 0
        %4017 = vmatpush1.bf16.msra.mxu0 0
        %4018 = vmatprep.subr.bf16.mxu0 0
        %4019 = vmatpush1.bf16.msra.mxu0 0
        %4020 = vmatprep.subr.bf16.mxu0 0
        %4021 = vmatpush1.bf16.msra.mxu0 %v2164
        %4022 = vmatprep.subr.bf16.mxu0 0
        %4023 = vmatpush1.bf16.msra.mxu0 %v2163
        %4024 = vmatprep.subr.bf16.mxu0 0
        %4025 = vmatpush2.bf16.msra.mxu0 0
        %4026 = vmatprep.subr.bf16.mxu0 0
        %4027 = vmatpush2.bf16.msra.mxu0 0
        %4028 = vmatprep.subr.bf16.mxu0 0
        %4029 = vmatpush2.bf16.msra.mxu0 0
        %4030 = vmatprep.subr.bf16.mxu0 0
        %4031 = vmatpush2.bf16.msra.mxu0 0
        %4032 = vmatprep.subr.bf16.mxu0 0
        %4033 = vmatpush2.bf16.msra.mxu0 0
        %4034 = vmatprep.subr.bf16.mxu0 0
        %4035 = vmatpush2.bf16.msra.mxu0 0
        %4036 = vmatprep.subr.bf16.mxu0 0
        %4037 = vmatpush2.bf16.msra.mxu0 0
        %4038 = vmatprep.subr.bf16.mxu0 0
        %4039 = vmatpush2.bf16.msra.mxu0 0
        %4040 = vmatprep.mubr.bf16.mxu0 0
        %4041 = vmatmul.mubr.bf16.gmra.mxu0 %v3852
        %v4042 = vpop.f32.mrf.mxu0
        %v4043 = vadd.f32 0.0, %v4042
        %v4044 = vpop.f32.mrf.mxu0
        %v4045 = vpop.f32.mrf.mxu0
        %v4046 = vpop.f32.mrf.mxu0
        %4047 = vdwg.mxu0
        %v4049 = vrot.slane %v4043, 4
        %v4051 = vadd.f32 %v1916, %v4049
        %4052 = vmatprep.subr.bf16.mxu0 0
        %4053 = vmatpush1.bf16.msra.mxu0 0
        %4054 = vmatprep.subr.bf16.mxu0 0
        %4055 = vmatpush1.bf16.msra.mxu0 0
        %4056 = vmatprep.subr.bf16.mxu0 0
        %4057 = vmatpush1.bf16.msra.mxu0 0
        %4058 = vmatprep.subr.bf16.mxu0 0
        %4059 = vmatpush1.bf16.msra.mxu0 0
        %4060 = vmatprep.subr.bf16.mxu0 0
        %4061 = vmatpush1.bf16.msra.mxu0 0
        %4062 = vmatprep.subr.bf16.mxu0 0
        %4063 = vmatpush1.bf16.msra.mxu0 0
        %4064 = vmatprep.subr.bf16.mxu0 0
        %4065 = vmatpush1.bf16.msra.mxu0 %v2217
        %4066 = vmatprep.subr.bf16.mxu0 0
        %4067 = vmatpush1.bf16.msra.mxu0 %v2216
        %4068 = vmatprep.subr.bf16.mxu0 0
        %4069 = vmatpush2.bf16.msra.mxu0 0
        %4070 = vmatprep.subr.bf16.mxu0 0
        %4071 = vmatpush2.bf16.msra.mxu0 0
        %4072 = vmatprep.subr.bf16.mxu0 0
        %4073 = vmatpush2.bf16.msra.mxu0 0
        %4074 = vmatprep.subr.bf16.mxu0 0
        %4075 = vmatpush2.bf16.msra.mxu0 0
        %4076 = vmatprep.subr.bf16.mxu0 0
        %4077 = vmatpush2.bf16.msra.mxu0 0
        %4078 = vmatprep.subr.bf16.mxu0 0
        %4079 = vmatpush2.bf16.msra.mxu0 0
        %4080 = vmatprep.subr.bf16.mxu0 0
        %4081 = vmatpush2.bf16.msra.mxu0 0
        %4082 = vmatprep.subr.bf16.mxu0 0
        %4083 = vmatpush2.bf16.msra.mxu0 0
        %4084 = vmatprep.mubr.bf16.mxu0 0
        %4085 = vmatmul.mubr.bf16.gmra.mxu0 %v3852
        %v4086 = vpop.f32.mrf.mxu0
        %v4087 = vadd.f32 0.0, %v4086
        %v4088 = vpop.f32.mrf.mxu0
        %v4089 = vpop.f32.mrf.mxu0
        %v4090 = vpop.f32.mrf.mxu0
        %4091 = vdwg.mxu0
        %v4093 = vrot.slane %v4087, 4
        %v4095 = vadd.f32 %v1974, %v4093
        %4096 = vmatprep.subr.bf16.mxu0 0
        %4097 = vmatpush1.bf16.msra.mxu0 0
        %4098 = vmatprep.subr.bf16.mxu0 0
        %4099 = vmatpush1.bf16.msra.mxu0 0
        %4100 = vmatprep.subr.bf16.mxu0 0
        %4101 = vmatpush1.bf16.msra.mxu0 0
        %4102 = vmatprep.subr.bf16.mxu0 0
        %4103 = vmatpush1.bf16.msra.mxu0 0
        %4104 = vmatprep.subr.bf16.mxu0 0
        %4105 = vmatpush1.bf16.msra.mxu0 0
        %4106 = vmatprep.subr.bf16.mxu0 0
        %4107 = vmatpush1.bf16.msra.mxu0 0
        %4108 = vmatprep.subr.bf16.mxu0 0
        %4109 = vmatpush1.bf16.msra.mxu0 %v2270
        %4110 = vmatprep.subr.bf16.mxu0 0
        %4111 = vmatpush1.bf16.msra.mxu0 %v2269
        %4112 = vmatprep.subr.bf16.mxu0 0
        %4113 = vmatpush2.bf16.msra.mxu0 0
        %4114 = vmatprep.subr.bf16.mxu0 0
        %4115 = vmatpush2.bf16.msra.mxu0 0
        %4116 = vmatprep.subr.bf16.mxu0 0
        %4117 = vmatpush2.bf16.msra.mxu0 0
        %4118 = vmatprep.subr.bf16.mxu0 0
        %4119 = vmatpush2.bf16.msra.mxu0 0
        %4120 = vmatprep.subr.bf16.mxu0 0
        %4121 = vmatpush2.bf16.msra.mxu0 0
        %4122 = vmatprep.subr.bf16.mxu0 0
        %4123 = vmatpush2.bf16.msra.mxu0 0
        %4124 = vmatprep.subr.bf16.mxu0 0
        %4125 = vmatpush2.bf16.msra.mxu0 0
        %4126 = vmatprep.subr.bf16.mxu0 0
        %4127 = vmatpush2.bf16.msra.mxu0 0
        %4128 = vmatprep.mubr.bf16.mxu0 0
        %4129 = vmatmul.mubr.bf16.gmra.mxu0 %v3852
        %v4130 = vpop.f32.mrf.mxu0
        %v4131 = vadd.f32 0.0, %v4130
        %v4132 = vpop.f32.mrf.mxu0
        %v4133 = vpop.f32.mrf.mxu0
        %v4134 = vpop.f32.mrf.mxu0
        %4135 = vdwg.mxu0
        %v4137 = vrot.slane %v4131, 4
        %v4139 = vadd.f32 %v2032, %v4137
        %v4140 = vxor.u32 %v4051, 2147483648
        %v4141 = vmul.f32 %v4140, 1.442695
        %v4142 = vpow.pop %v4141
        %v4143 = vadd.f32 %v4142, 1.0
        %v4144 = vrcp.pop %v4143
        %v4145 = vmul.f32 1.0, %v4144
        %v4147 = vrot.slane %v3754, 7
        %v4149 = vmul.f32 %v4145, %v4147
        %v4150 = vxor.u32 %v4007, 2147483648
        %v4151 = vmul.f32 %v4150, 1.442695
        %v4152 = vpow.pop %v4151
        %v4153 = vadd.f32 %v4152, 1.0
        %v4154 = vrcp.pop %v4153
        %v4155 = vmul.f32 1.0, %v4154
        %v4156 = vtanh.pop %v4095
        %v4157 = vmul.f32 %v4155, %v4156
        %v4158 = vadd.f32 %v4149, %v4157
        %v4159 = vxor.u32 %v4139, 2147483648
        %v4160 = vmul.f32 %v4159, 1.442695
        %v4161 = vpow.pop %v4160
        %v4162 = vadd.f32 %v4161, 1.0
        %v4163 = vrcp.pop %v4162
        %v4164 = vmul.f32 1.0, %v4163
        %v4165 = vtanh.pop %v4158
        %v4166 = vmul.f32 %v4164, %v4165
        %v4167 = vpack.c.bf16 %v4166, %v4166
        %v4168 = vpack.c.bf16 %v3963, %v3963
        %4169 = vmatprep.subr.bf16.mxu0 %v2464
        %4170 = vmatpush1.bf16.msra.mxu0 %v2463
        %4171 = vmatprep.subr.bf16.mxu0 %v2460
        %4172 = vmatpush1.bf16.msra.mxu0 %v2459
        %4173 = vmatprep.subr.bf16.mxu0 %v2456
        %4174 = vmatpush1.bf16.msra.mxu0 %v2455
        %4175 = vmatprep.subr.bf16.mxu0 %v2452
        %4176 = vmatpush1.bf16.msra.mxu0 %v2451
        %4177 = vmatprep.subr.bf16.mxu0 %v2448
        %4178 = vmatpush1.bf16.msra.mxu0 %v2447
        %4179 = vmatprep.subr.bf16.mxu0 %v2444
        %4180 = vmatpush1.bf16.msra.mxu0 %v2443
        %4181 = vmatprep.subr.bf16.mxu0 %v2440
        %4182 = vmatpush1.bf16.msra.mxu0 %v2439
        %4183 = vmatprep.subr.bf16.mxu0 %v2436
        %4184 = vmatpush1.bf16.msra.mxu0 %v2435
        %4185 = vmatprep.subr.bf16.mxu0 0
        %4186 = vmatpush2.bf16.msra.mxu0 0
        %4187 = vmatprep.subr.bf16.mxu0 0
        %4188 = vmatpush2.bf16.msra.mxu0 0
        %4189 = vmatprep.subr.bf16.mxu0 0
        %4190 = vmatpush2.bf16.msra.mxu0 0
        %4191 = vmatprep.subr.bf16.mxu0 0
        %4192 = vmatpush2.bf16.msra.mxu0 0
        %4193 = vmatprep.subr.bf16.mxu0 0
        %4194 = vmatpush2.bf16.msra.mxu0 0
        %4195 = vmatprep.subr.bf16.mxu0 0
        %4196 = vmatpush2.bf16.msra.mxu0 0
        %4197 = vmatprep.subr.bf16.mxu0 0
        %4198 = vmatpush2.bf16.msra.mxu0 0
        %4199 = vmatprep.subr.bf16.mxu0 0
        %4200 = vmatpush2.bf16.msra.mxu0 0
        %4201 = vmatprep.mubr.bf16.mxu0 0
        %4202 = vmatmul.mubr.bf16.gmra.mxu0 %v4168
        %v4203 = vpop.f32.mrf.mxu0
        %v4204 = vadd.f32 0.0, %v4203
        %v4205 = vpop.f32.mrf.mxu0
        %v4206 = vadd.f32 0.0, %v4205
        %v4207 = vpop.f32.mrf.mxu0
        %v4208 = vpop.f32.mrf.mxu0
        %4209 = vdwg.mxu0
        %4210 = vmatprep.subr.bf16.mxu0 %v2466
        %4211 = vmatpush1.bf16.msra.mxu0 %v2465
        %4212 = vmatprep.subr.bf16.mxu0 %v2462
        %4213 = vmatpush1.bf16.msra.mxu0 %v2461
        %4214 = vmatprep.subr.bf16.mxu0 %v2458
        %4215 = vmatpush1.bf16.msra.mxu0 %v2457
        %4216 = vmatprep.subr.bf16.mxu0 %v2454
        %4217 = vmatpush1.bf16.msra.mxu0 %v2453
        %4218 = vmatprep.subr.bf16.mxu0 %v2450
        %4219 = vmatpush1.bf16.msra.mxu0 %v2449
        %4220 = vmatprep.subr.bf16.mxu0 %v2446
        %4221 = vmatpush1.bf16.msra.mxu0 %v2445
        %4222 = vmatprep.subr.bf16.mxu0 %v2442
        %4223 = vmatpush1.bf16.msra.mxu0 %v2441
        %4224 = vmatprep.subr.bf16.mxu0 %v2438
        %4225 = vmatpush1.bf16.msra.mxu0 %v2437
        %4226 = vmatprep.subr.bf16.mxu0 0
        %4227 = vmatpush2.bf16.msra.mxu0 0
        %4228 = vmatprep.subr.bf16.mxu0 0
        %4229 = vmatpush2.bf16.msra.mxu0 0
        %4230 = vmatprep.subr.bf16.mxu0 0
        %4231 = vmatpush2.bf16.msra.mxu0 0
        %4232 = vmatprep.subr.bf16.mxu0 0
        %4233 = vmatpush2.bf16.msra.mxu0 0
        %4234 = vmatprep.subr.bf16.mxu0 0
        %4235 = vmatpush2.bf16.msra.mxu0 0
        %4236 = vmatprep.subr.bf16.mxu0 0
        %4237 = vmatpush2.bf16.msra.mxu0 0
        %4238 = vmatprep.subr.bf16.mxu0 0
        %4239 = vmatpush2.bf16.msra.mxu0 0
        %4240 = vmatprep.subr.bf16.mxu0 0
        %4241 = vmatpush2.bf16.msra.mxu0 0
        %4242 = vmatprep.mubr.bf16.mxu0 0
        %4243 = vmatmul.mubr.bf16.gmra.mxu0 %v4168
        %v4244 = vpop.f32.mrf.mxu0
        %v4245 = vadd.f32 0.0, %v4244
        %v4246 = vpop.f32.mrf.mxu0
        %v4247 = vadd.f32 0.0, %v4246
        %v4248 = vpop.f32.mrf.mxu0
        %v4249 = vpop.f32.mrf.mxu0
        %4250 = vdwg.mxu0
        %v4252 = vrot.slane %v4167, 2
        %v4254 = vsel %vm2110, %v4252, 0
        %4256 = vmatprep.subr.bf16.mxu0 0
        %4257 = vmatpush1.bf16.msra.mxu0 0
        %4258 = vmatprep.subr.bf16.mxu0 0
        %4259 = vmatpush1.bf16.msra.mxu0 0
        %4260 = vmatprep.subr.bf16.mxu0 0
        %4261 = vmatpush1.bf16.msra.mxu0 0
        %4262 = vmatprep.subr.bf16.mxu0 0
        %4263 = vmatpush1.bf16.msra.mxu0 0
        %4264 = vmatprep.subr.bf16.mxu0 0
        %4265 = vmatpush1.bf16.msra.mxu0 0
        %4266 = vmatprep.subr.bf16.mxu0 0
        %4267 = vmatpush1.bf16.msra.mxu0 0
        %4268 = vmatprep.subr.bf16.mxu0 %v2610
        %4269 = vmatpush1.bf16.msra.mxu0 %v2609
        %4270 = vmatprep.subr.bf16.mxu0 %v2606
        %4271 = vmatpush1.bf16.msra.mxu0 %v2605
        %4272 = vmatprep.subr.bf16.mxu0 0
        %4273 = vmatpush2.bf16.msra.mxu0 0
        %4274 = vmatprep.subr.bf16.mxu0 0
        %4275 = vmatpush2.bf16.msra.mxu0 0
        %4276 = vmatprep.subr.bf16.mxu0 0
        %4277 = vmatpush2.bf16.msra.mxu0 0
        %4278 = vmatprep.subr.bf16.mxu0 0
        %4279 = vmatpush2.bf16.msra.mxu0 0
        %4280 = vmatprep.subr.bf16.mxu0 0
        %4281 = vmatpush2.bf16.msra.mxu0 0
        %4282 = vmatprep.subr.bf16.mxu0 0
        %4283 = vmatpush2.bf16.msra.mxu0 0
        %4284 = vmatprep.subr.bf16.mxu0 0
        %4285 = vmatpush2.bf16.msra.mxu0 0
        %4286 = vmatprep.subr.bf16.mxu0 0
        %4287 = vmatpush2.bf16.msra.mxu0 0
        %4288 = vmatprep.mubr.bf16.mxu0 0
        %4289 = vmatmul.mubr.bf16.gmra.mxu0 %v4254
        %v4290 = vpop.f32.mrf.mxu0
        %v4291 = vadd.f32 %v4204, %v4290
        %v4292 = vpop.f32.mrf.mxu0
        %v4293 = vadd.f32 %v4206, %v4292
        %v4294 = vpop.f32.mrf.mxu0
        %v4295 = vpop.f32.mrf.mxu0
        %4296 = vdwg.mxu0
        %4297 = vmatprep.subr.bf16.mxu0 0
        %4298 = vmatpush1.bf16.msra.mxu0 0
        %4299 = vmatprep.subr.bf16.mxu0 0
        %4300 = vmatpush1.bf16.msra.mxu0 0
        %4301 = vmatprep.subr.bf16.mxu0 0
        %4302 = vmatpush1.bf16.msra.mxu0 0
        %4303 = vmatprep.subr.bf16.mxu0 0
        %4304 = vmatpush1.bf16.msra.mxu0 0
        %4305 = vmatprep.subr.bf16.mxu0 0
        %4306 = vmatpush1.bf16.msra.mxu0 0
        %4307 = vmatprep.subr.bf16.mxu0 0
        %4308 = vmatpush1.bf16.msra.mxu0 0
        %4309 = vmatprep.subr.bf16.mxu0 %v2612
        %4310 = vmatpush1.bf16.msra.mxu0 %v2611
        %4311 = vmatprep.subr.bf16.mxu0 %v2608
        %4312 = vmatpush1.bf16.msra.mxu0 %v2607
        %4313 = vmatprep.subr.bf16.mxu0 0
        %4314 = vmatpush2.bf16.msra.mxu0 0
        %4315 = vmatprep.subr.bf16.mxu0 0
        %4316 = vmatpush2.bf16.msra.mxu0 0
        %4317 = vmatprep.subr.bf16.mxu0 0
        %4318 = vmatpush2.bf16.msra.mxu0 0
        %4319 = vmatprep.subr.bf16.mxu0 0
        %4320 = vmatpush2.bf16.msra.mxu0 0
        %4321 = vmatprep.subr.bf16.mxu0 0
        %4322 = vmatpush2.bf16.msra.mxu0 0
        %4323 = vmatprep.subr.bf16.mxu0 0
        %4324 = vmatpush2.bf16.msra.mxu0 0
        %4325 = vmatprep.subr.bf16.mxu0 0
        %4326 = vmatpush2.bf16.msra.mxu0 0
        %4327 = vmatprep.subr.bf16.mxu0 0
        %4328 = vmatpush2.bf16.msra.mxu0 0
        %4329 = vmatprep.mubr.bf16.mxu0 0
        %4330 = vmatmul.mubr.bf16.gmra.mxu0 %v4254
        %v4331 = vpop.f32.mrf.mxu0
        %v4332 = vadd.f32 %v4245, %v4331
        %v4333 = vpop.f32.mrf.mxu0
        %v4334 = vadd.f32 %v4247, %v4333
        %v4335 = vpop.f32.mrf.mxu0
        %v4336 = vpop.f32.mrf.mxu0
        %4337 = vdwg.mxu0
        %v4338 = vadd.f32 %v4291, %v2710
        %v4339 = vadd.f32 %v4293, %v2714
        %v4340 = vadd.f32 %v4332, %v2718
        %v4341 = vadd.f32 %v4334, %v2722
        %v4342 = vxor.u32 %v4338, 2147483648
        %v4343 = vmul.f32 %v4342, 1.442695
        %v4344 = vpow.pop %v4343
        %v4345 = vadd.f32 %v4344, 1.0
        %v4346 = vrcp.pop %v4345
        %v4347 = vmul.f32 1.0, %v4346
        %v4348 = vxor.u32 %v4339, 2147483648
        %v4349 = vmul.f32 %v4348, 1.442695
        %v4350 = vpow.pop %v4349
        %v4351 = vadd.f32 %v4350, 1.0
        %v4352 = vrcp.pop %v4351
        %v4353 = vmul.f32 1.0, %v4352
        %v4354 = vtanh.pop %v4340
        %v4355 = vxor.u32 %v4341, 2147483648
        %v4356 = vmul.f32 %v4355, 1.442695
        %v4357 = vpow.pop %v4356
        %v4358 = vadd.f32 %v4357, 1.0
        %v4359 = vrcp.pop %v4358
        %v4360 = vmul.f32 1.0, %v4359
        %v4361 = vmul.f32 %v4353, %v3961
        %v4362 = vmul.f32 %v4347, %v4354
        %v4363 = vadd.f32 %v4361, %v4362
        %v4364 = vtanh.pop %v4363
        %v4365 = vmul.f32 %v4360, %v4364
        %4366 = vmatprep.subr.bf16.mxu0 0
        %4367 = vmatpush1.bf16.msra.mxu0 0
        %4368 = vmatprep.subr.bf16.mxu0 0
        %4369 = vmatpush1.bf16.msra.mxu0 0
        %4370 = vmatprep.subr.bf16.mxu0 0
        %4371 = vmatpush1.bf16.msra.mxu0 0
        %4372 = vmatprep.subr.bf16.mxu0 0
        %4373 = vmatpush1.bf16.msra.mxu0 0
        %4374 = vmatprep.subr.bf16.mxu0 0
        %4375 = vmatpush1.bf16.msra.mxu0 0
        %4376 = vmatprep.subr.bf16.mxu0 0
        %4377 = vmatpush1.bf16.msra.mxu0 0
        %4378 = vmatprep.subr.bf16.mxu0 0
        %4379 = vmatpush1.bf16.msra.mxu0 %v2107
        %4380 = vmatprep.subr.bf16.mxu0 0
        %4381 = vmatpush1.bf16.msra.mxu0 %v2106
        %4382 = vmatprep.subr.bf16.mxu0 0
        %4383 = vmatpush2.bf16.msra.mxu0 0
        %4384 = vmatprep.subr.bf16.mxu0 0
        %4385 = vmatpush2.bf16.msra.mxu0 0
        %4386 = vmatprep.subr.bf16.mxu0 0
        %4387 = vmatpush2.bf16.msra.mxu0 0
        %4388 = vmatprep.subr.bf16.mxu0 0
        %4389 = vmatpush2.bf16.msra.mxu0 0
        %4390 = vmatprep.subr.bf16.mxu0 0
        %4391 = vmatpush2.bf16.msra.mxu0 0
        %4392 = vmatprep.subr.bf16.mxu0 0
        %4393 = vmatpush2.bf16.msra.mxu0 0
        %4394 = vmatprep.subr.bf16.mxu0 0
        %4395 = vmatpush2.bf16.msra.mxu0 0
        %4396 = vmatprep.subr.bf16.mxu0 0
        %4397 = vmatpush2.bf16.msra.mxu0 0
        %4398 = vmatprep.mubr.bf16.mxu0 0
        %4399 = vmatmul.mubr.bf16.gmra.mxu0 %v4254
        %v4400 = vpop.f32.mrf.mxu0
        %v4401 = vadd.f32 0.0, %v4400
        %v4402 = vpop.f32.mrf.mxu0
        %v4403 = vpop.f32.mrf.mxu0
        %v4404 = vpop.f32.mrf.mxu0
        %4405 = vdwg.mxu0
        %v4407 = vrot.slane %v4401, 3
        %v4409 = vadd.f32 %v1858, %v4407
        %4410 = vmatprep.subr.bf16.mxu0 0
        %4411 = vmatpush1.bf16.msra.mxu0 0
        %4412 = vmatprep.subr.bf16.mxu0 0
        %4413 = vmatpush1.bf16.msra.mxu0 0
        %4414 = vmatprep.subr.bf16.mxu0 0
        %4415 = vmatpush1.bf16.msra.mxu0 0
        %4416 = vmatprep.subr.bf16.mxu0 0
        %4417 = vmatpush1.bf16.msra.mxu0 0
        %4418 = vmatprep.subr.bf16.mxu0 0
        %4419 = vmatpush1.bf16.msra.mxu0 0
        %4420 = vmatprep.subr.bf16.mxu0 0
        %4421 = vmatpush1.bf16.msra.mxu0 0
        %4422 = vmatprep.subr.bf16.mxu0 0
        %4423 = vmatpush1.bf16.msra.mxu0 %v2164
        %4424 = vmatprep.subr.bf16.mxu0 0
        %4425 = vmatpush1.bf16.msra.mxu0 %v2163
        %4426 = vmatprep.subr.bf16.mxu0 0
        %4427 = vmatpush2.bf16.msra.mxu0 0
        %4428 = vmatprep.subr.bf16.mxu0 0
        %4429 = vmatpush2.bf16.msra.mxu0 0
        %4430 = vmatprep.subr.bf16.mxu0 0
        %4431 = vmatpush2.bf16.msra.mxu0 0
        %4432 = vmatprep.subr.bf16.mxu0 0
        %4433 = vmatpush2.bf16.msra.mxu0 0
        %4434 = vmatprep.subr.bf16.mxu0 0
        %4435 = vmatpush2.bf16.msra.mxu0 0
        %4436 = vmatprep.subr.bf16.mxu0 0
        %4437 = vmatpush2.bf16.msra.mxu0 0
        %4438 = vmatprep.subr.bf16.mxu0 0
        %4439 = vmatpush2.bf16.msra.mxu0 0
        %4440 = vmatprep.subr.bf16.mxu0 0
        %4441 = vmatpush2.bf16.msra.mxu0 0
        %4442 = vmatprep.mubr.bf16.mxu0 0
        %4443 = vmatmul.mubr.bf16.gmra.mxu0 %v4254
        %v4444 = vpop.f32.mrf.mxu0
        %v4445 = vadd.f32 0.0, %v4444
        %v4446 = vpop.f32.mrf.mxu0
        %v4447 = vpop.f32.mrf.mxu0
        %v4448 = vpop.f32.mrf.mxu0
        %4449 = vdwg.mxu0
        %v4451 = vrot.slane %v4445, 3
        %v4453 = vadd.f32 %v1916, %v4451
        %4454 = vmatprep.subr.bf16.mxu0 0
        %4455 = vmatpush1.bf16.msra.mxu0 0
        %4456 = vmatprep.subr.bf16.mxu0 0
        %4457 = vmatpush1.bf16.msra.mxu0 0
        %4458 = vmatprep.subr.bf16.mxu0 0
        %4459 = vmatpush1.bf16.msra.mxu0 0
        %4460 = vmatprep.subr.bf16.mxu0 0
        %4461 = vmatpush1.bf16.msra.mxu0 0
        %4462 = vmatprep.subr.bf16.mxu0 0
        %4463 = vmatpush1.bf16.msra.mxu0 0
        %4464 = vmatprep.subr.bf16.mxu0 0
        %4465 = vmatpush1.bf16.msra.mxu0 0
        %4466 = vmatprep.subr.bf16.mxu0 0
        %4467 = vmatpush1.bf16.msra.mxu0 %v2217
        %4468 = vmatprep.subr.bf16.mxu0 0
        %4469 = vmatpush1.bf16.msra.mxu0 %v2216
        %4470 = vmatprep.subr.bf16.mxu0 0
        %4471 = vmatpush2.bf16.msra.mxu0 0
        %4472 = vmatprep.subr.bf16.mxu0 0
        %4473 = vmatpush2.bf16.msra.mxu0 0
        %4474 = vmatprep.subr.bf16.mxu0 0
        %4475 = vmatpush2.bf16.msra.mxu0 0
        %4476 = vmatprep.subr.bf16.mxu0 0
        %4477 = vmatpush2.bf16.msra.mxu0 0
        %4478 = vmatprep.subr.bf16.mxu0 0
        %4479 = vmatpush2.bf16.msra.mxu0 0
        %4480 = vmatprep.subr.bf16.mxu0 0
        %4481 = vmatpush2.bf16.msra.mxu0 0
        %4482 = vmatprep.subr.bf16.mxu0 0
        %4483 = vmatpush2.bf16.msra.mxu0 0
        %4484 = vmatprep.subr.bf16.mxu0 0
        %4485 = vmatpush2.bf16.msra.mxu0 0
        %4486 = vmatprep.mubr.bf16.mxu0 0
        %4487 = vmatmul.mubr.bf16.gmra.mxu0 %v4254
        %v4488 = vpop.f32.mrf.mxu0
        %v4489 = vadd.f32 0.0, %v4488
        %v4490 = vpop.f32.mrf.mxu0
        %v4491 = vpop.f32.mrf.mxu0
        %v4492 = vpop.f32.mrf.mxu0
        %4493 = vdwg.mxu0
        %v4495 = vrot.slane %v4489, 3
        %v4497 = vadd.f32 %v1974, %v4495
        %4498 = vmatprep.subr.bf16.mxu0 0
        %4499 = vmatpush1.bf16.msra.mxu0 0
        %4500 = vmatprep.subr.bf16.mxu0 0
        %4501 = vmatpush1.bf16.msra.mxu0 0
        %4502 = vmatprep.subr.bf16.mxu0 0
        %4503 = vmatpush1.bf16.msra.mxu0 0
        %4504 = vmatprep.subr.bf16.mxu0 0
        %4505 = vmatpush1.bf16.msra.mxu0 0
        %4506 = vmatprep.subr.bf16.mxu0 0
        %4507 = vmatpush1.bf16.msra.mxu0 0
        %4508 = vmatprep.subr.bf16.mxu0 0
        %4509 = vmatpush1.bf16.msra.mxu0 0
        %4510 = vmatprep.subr.bf16.mxu0 0
        %4511 = vmatpush1.bf16.msra.mxu0 %v2270
        %4512 = vmatprep.subr.bf16.mxu0 0
        %4513 = vmatpush1.bf16.msra.mxu0 %v2269
        %4514 = vmatprep.subr.bf16.mxu0 0
        %4515 = vmatpush2.bf16.msra.mxu0 0
        %4516 = vmatprep.subr.bf16.mxu0 0
        %4517 = vmatpush2.bf16.msra.mxu0 0
        %4518 = vmatprep.subr.bf16.mxu0 0
        %4519 = vmatpush2.bf16.msra.mxu0 0
        %4520 = vmatprep.subr.bf16.mxu0 0
        %4521 = vmatpush2.bf16.msra.mxu0 0
        %4522 = vmatprep.subr.bf16.mxu0 0
        %4523 = vmatpush2.bf16.msra.mxu0 0
        %4524 = vmatprep.subr.bf16.mxu0 0
        %4525 = vmatpush2.bf16.msra.mxu0 0
        %4526 = vmatprep.subr.bf16.mxu0 0
        %4527 = vmatpush2.bf16.msra.mxu0 0
        %4528 = vmatprep.subr.bf16.mxu0 0
        %4529 = vmatpush2.bf16.msra.mxu0 0
        %4530 = vmatprep.mubr.bf16.mxu0 0
        %4531 = vmatmul.mubr.bf16.gmra.mxu0 %v4254
        %v4532 = vpop.f32.mrf.mxu0
        %v4533 = vadd.f32 0.0, %v4532
        %v4534 = vpop.f32.mrf.mxu0
        %v4535 = vpop.f32.mrf.mxu0
        %v4536 = vpop.f32.mrf.mxu0
        %4537 = vdwg.mxu0
        %v4539 = vrot.slane %v4533, 3
        %v4541 = vadd.f32 %v2032, %v4539
        %v4542 = vxor.u32 %v4453, 2147483648
        %v4543 = vmul.f32 %v4542, 1.442695
        %v4544 = vpow.pop %v4543
        %v4545 = vadd.f32 %v4544, 1.0
        %v4546 = vrcp.pop %v4545
        %v4547 = vmul.f32 1.0, %v4546
        %v4549 = vrot.slane %v4158, 7
        %v4551 = vmul.f32 %v4547, %v4549
        %v4552 = vxor.u32 %v4409, 2147483648
        %v4553 = vmul.f32 %v4552, 1.442695
        %v4554 = vpow.pop %v4553
        %v4555 = vadd.f32 %v4554, 1.0
        %v4556 = vrcp.pop %v4555
        %v4557 = vmul.f32 1.0, %v4556
        %v4558 = vtanh.pop %v4497
        %v4559 = vmul.f32 %v4557, %v4558
        %v4560 = vadd.f32 %v4551, %v4559
        %v4561 = vxor.u32 %v4541, 2147483648
        %v4562 = vmul.f32 %v4561, 1.442695
        %v4563 = vpow.pop %v4562
        %v4564 = vadd.f32 %v4563, 1.0
        %v4565 = vrcp.pop %v4564
        %v4566 = vmul.f32 1.0, %v4565
        %v4567 = vtanh.pop %v4560
        %v4568 = vmul.f32 %v4566, %v4567
        %v4569 = vpack.c.bf16 %v4568, %v4568
        %v4570 = vpack.c.bf16 %v4365, %v4365
        %4571 = vmatprep.subr.bf16.mxu0 %v2464
        %4572 = vmatpush1.bf16.msra.mxu0 %v2463
        %4573 = vmatprep.subr.bf16.mxu0 %v2460
        %4574 = vmatpush1.bf16.msra.mxu0 %v2459
        %4575 = vmatprep.subr.bf16.mxu0 %v2456
        %4576 = vmatpush1.bf16.msra.mxu0 %v2455
        %4577 = vmatprep.subr.bf16.mxu0 %v2452
        %4578 = vmatpush1.bf16.msra.mxu0 %v2451
        %4579 = vmatprep.subr.bf16.mxu0 %v2448
        %4580 = vmatpush1.bf16.msra.mxu0 %v2447
        %4581 = vmatprep.subr.bf16.mxu0 %v2444
        %4582 = vmatpush1.bf16.msra.mxu0 %v2443
        %4583 = vmatprep.subr.bf16.mxu0 %v2440
        %4584 = vmatpush1.bf16.msra.mxu0 %v2439
        %4585 = vmatprep.subr.bf16.mxu0 %v2436
        %4586 = vmatpush1.bf16.msra.mxu0 %v2435
        %4587 = vmatprep.subr.bf16.mxu0 0
        %4588 = vmatpush2.bf16.msra.mxu0 0
        %4589 = vmatprep.subr.bf16.mxu0 0
        %4590 = vmatpush2.bf16.msra.mxu0 0
        %4591 = vmatprep.subr.bf16.mxu0 0
        %4592 = vmatpush2.bf16.msra.mxu0 0
        %4593 = vmatprep.subr.bf16.mxu0 0
        %4594 = vmatpush2.bf16.msra.mxu0 0
        %4595 = vmatprep.subr.bf16.mxu0 0
        %4596 = vmatpush2.bf16.msra.mxu0 0
        %4597 = vmatprep.subr.bf16.mxu0 0
        %4598 = vmatpush2.bf16.msra.mxu0 0
        %4599 = vmatprep.subr.bf16.mxu0 0
        %4600 = vmatpush2.bf16.msra.mxu0 0
        %4601 = vmatprep.subr.bf16.mxu0 0
        %4602 = vmatpush2.bf16.msra.mxu0 0
        %4603 = vmatprep.mubr.bf16.mxu0 0
        %4604 = vmatmul.mubr.bf16.gmra.mxu0 %v4570
        %v4605 = vpop.f32.mrf.mxu0
        %v4606 = vadd.f32 0.0, %v4605
        %v4607 = vpop.f32.mrf.mxu0
        %v4608 = vadd.f32 0.0, %v4607
        %v4609 = vpop.f32.mrf.mxu0
        %v4610 = vpop.f32.mrf.mxu0
        %4611 = vdwg.mxu0
        %4612 = vmatprep.subr.bf16.mxu0 %v2466
        %4613 = vmatpush1.bf16.msra.mxu0 %v2465
        %4614 = vmatprep.subr.bf16.mxu0 %v2462
        %4615 = vmatpush1.bf16.msra.mxu0 %v2461
        %4616 = vmatprep.subr.bf16.mxu0 %v2458
        %4617 = vmatpush1.bf16.msra.mxu0 %v2457
        %4618 = vmatprep.subr.bf16.mxu0 %v2454
        %4619 = vmatpush1.bf16.msra.mxu0 %v2453
        %4620 = vmatprep.subr.bf16.mxu0 %v2450
        %4621 = vmatpush1.bf16.msra.mxu0 %v2449
        %4622 = vmatprep.subr.bf16.mxu0 %v2446
        %4623 = vmatpush1.bf16.msra.mxu0 %v2445
        %4624 = vmatprep.subr.bf16.mxu0 %v2442
        %4625 = vmatpush1.bf16.msra.mxu0 %v2441
        %4626 = vmatprep.subr.bf16.mxu0 %v2438
        %4627 = vmatpush1.bf16.msra.mxu0 %v2437
        %4628 = vmatprep.subr.bf16.mxu0 0
        %4629 = vmatpush2.bf16.msra.mxu0 0
        %4630 = vmatprep.subr.bf16.mxu0 0
        %4631 = vmatpush2.bf16.msra.mxu0 0
        %4632 = vmatprep.subr.bf16.mxu0 0
        %4633 = vmatpush2.bf16.msra.mxu0 0
        %4634 = vmatprep.subr.bf16.mxu0 0
        %4635 = vmatpush2.bf16.msra.mxu0 0
        %4636 = vmatprep.subr.bf16.mxu0 0
        %4637 = vmatpush2.bf16.msra.mxu0 0
        %4638 = vmatprep.subr.bf16.mxu0 0
        %4639 = vmatpush2.bf16.msra.mxu0 0
        %4640 = vmatprep.subr.bf16.mxu0 0
        %4641 = vmatpush2.bf16.msra.mxu0 0
        %4642 = vmatprep.subr.bf16.mxu0 0
        %4643 = vmatpush2.bf16.msra.mxu0 0
        %4644 = vmatprep.mubr.bf16.mxu0 0
        %4645 = vmatmul.mubr.bf16.gmra.mxu0 %v4570
        %v4646 = vpop.f32.mrf.mxu0
        %v4647 = vadd.f32 0.0, %v4646
        %v4648 = vpop.f32.mrf.mxu0
        %v4649 = vadd.f32 0.0, %v4648
        %v4650 = vpop.f32.mrf.mxu0
        %v4651 = vpop.f32.mrf.mxu0
        %4652 = vdwg.mxu0
        %v4654 = vshrl.u32 %v4569, 16
        %v4656 = vrot.slane %v4654, 2
        %v4658 = vsel %vm2110, %v4656, 0
        %4660 = vmatprep.subr.bf16.mxu0 0
        %4661 = vmatpush1.bf16.msra.mxu0 0
        %4662 = vmatprep.subr.bf16.mxu0 0
        %4663 = vmatpush1.bf16.msra.mxu0 0
        %4664 = vmatprep.subr.bf16.mxu0 0
        %4665 = vmatpush1.bf16.msra.mxu0 0
        %4666 = vmatprep.subr.bf16.mxu0 0
        %4667 = vmatpush1.bf16.msra.mxu0 0
        %4668 = vmatprep.subr.bf16.mxu0 0
        %4669 = vmatpush1.bf16.msra.mxu0 0
        %4670 = vmatprep.subr.bf16.mxu0 0
        %4671 = vmatpush1.bf16.msra.mxu0 0
        %4672 = vmatprep.subr.bf16.mxu0 %v2610
        %4673 = vmatpush1.bf16.msra.mxu0 %v2609
        %4674 = vmatprep.subr.bf16.mxu0 %v2606
        %4675 = vmatpush1.bf16.msra.mxu0 %v2605
        %4676 = vmatprep.subr.bf16.mxu0 0
        %4677 = vmatpush2.bf16.msra.mxu0 0
        %4678 = vmatprep.subr.bf16.mxu0 0
        %4679 = vmatpush2.bf16.msra.mxu0 0
        %4680 = vmatprep.subr.bf16.mxu0 0
        %4681 = vmatpush2.bf16.msra.mxu0 0
        %4682 = vmatprep.subr.bf16.mxu0 0
        %4683 = vmatpush2.bf16.msra.mxu0 0
        %4684 = vmatprep.subr.bf16.mxu0 0
        %4685 = vmatpush2.bf16.msra.mxu0 0
        %4686 = vmatprep.subr.bf16.mxu0 0
        %4687 = vmatpush2.bf16.msra.mxu0 0
        %4688 = vmatprep.subr.bf16.mxu0 0
        %4689 = vmatpush2.bf16.msra.mxu0 0
        %4690 = vmatprep.subr.bf16.mxu0 0
        %4691 = vmatpush2.bf16.msra.mxu0 0
        %4692 = vmatprep.mubr.bf16.mxu0 0
        %4693 = vmatmul.mubr.bf16.gmra.mxu0 %v4658
        %v4694 = vpop.f32.mrf.mxu0
        %v4695 = vadd.f32 %v4606, %v4694
        %v4696 = vpop.f32.mrf.mxu0
        %v4697 = vadd.f32 %v4608, %v4696
        %v4698 = vpop.f32.mrf.mxu0
        %v4699 = vpop.f32.mrf.mxu0
        %4700 = vdwg.mxu0
        %4701 = vmatprep.subr.bf16.mxu0 0
        %4702 = vmatpush1.bf16.msra.mxu0 0
        %4703 = vmatprep.subr.bf16.mxu0 0
        %4704 = vmatpush1.bf16.msra.mxu0 0
        %4705 = vmatprep.subr.bf16.mxu0 0
        %4706 = vmatpush1.bf16.msra.mxu0 0
        %4707 = vmatprep.subr.bf16.mxu0 0
        %4708 = vmatpush1.bf16.msra.mxu0 0
        %4709 = vmatprep.subr.bf16.mxu0 0
        %4710 = vmatpush1.bf16.msra.mxu0 0
        %4711 = vmatprep.subr.bf16.mxu0 0
        %4712 = vmatpush1.bf16.msra.mxu0 0
        %4713 = vmatprep.subr.bf16.mxu0 %v2612
        %4714 = vmatpush1.bf16.msra.mxu0 %v2611
        %4715 = vmatprep.subr.bf16.mxu0 %v2608
        %4716 = vmatpush1.bf16.msra.mxu0 %v2607
        %4717 = vmatprep.subr.bf16.mxu0 0
        %4718 = vmatpush2.bf16.msra.mxu0 0
        %4719 = vmatprep.subr.bf16.mxu0 0
        %4720 = vmatpush2.bf16.msra.mxu0 0
        %4721 = vmatprep.subr.bf16.mxu0 0
        %4722 = vmatpush2.bf16.msra.mxu0 0
        %4723 = vmatprep.subr.bf16.mxu0 0
        %4724 = vmatpush2.bf16.msra.mxu0 0
        %4725 = vmatprep.subr.bf16.mxu0 0
        %4726 = vmatpush2.bf16.msra.mxu0 0
        %4727 = vmatprep.subr.bf16.mxu0 0
        %4728 = vmatpush2.bf16.msra.mxu0 0
        %4729 = vmatprep.subr.bf16.mxu0 0
        %4730 = vmatpush2.bf16.msra.mxu0 0
        %4731 = vmatprep.subr.bf16.mxu0 0
        %4732 = vmatpush2.bf16.msra.mxu0 0
        %4733 = vmatprep.mubr.bf16.mxu0 0
        %4734 = vmatmul.mubr.bf16.gmra.mxu0 %v4658
        %v4735 = vpop.f32.mrf.mxu0
        %v4736 = vadd.f32 %v4647, %v4735
        %v4737 = vpop.f32.mrf.mxu0
        %v4738 = vadd.f32 %v4649, %v4737
        %v4739 = vpop.f32.mrf.mxu0
        %v4740 = vpop.f32.mrf.mxu0
        %4741 = vdwg.mxu0
        %v4742 = vadd.f32 %v4695, %v2710
        %v4743 = vadd.f32 %v4697, %v2714
        %v4744 = vadd.f32 %v4736, %v2718
        %v4745 = vadd.f32 %v4738, %v2722
        %v4746 = vxor.u32 %v4742, 2147483648
        %v4747 = vmul.f32 %v4746, 1.442695
        %v4748 = vpow.pop %v4747
        %v4749 = vadd.f32 %v4748, 1.0
        %v4750 = vrcp.pop %v4749
        %v4751 = vmul.f32 1.0, %v4750
        %v4752 = vxor.u32 %v4743, 2147483648
        %v4753 = vmul.f32 %v4752, 1.442695
        %v4754 = vpow.pop %v4753
        %v4755 = vadd.f32 %v4754, 1.0
        %v4756 = vrcp.pop %v4755
        %v4757 = vmul.f32 1.0, %v4756
        %v4758 = vtanh.pop %v4744
        %v4759 = vxor.u32 %v4745, 2147483648
        %v4760 = vmul.f32 %v4759, 1.442695
        %v4761 = vpow.pop %v4760
        %v4762 = vadd.f32 %v4761, 1.0
        %v4763 = vrcp.pop %v4762
        %v4764 = vmul.f32 1.0, %v4763
        %v4765 = vmul.f32 %v4757, %v4363
        %v4766 = vmul.f32 %v4751, %v4758
        %v4767 = vadd.f32 %v4765, %v4766
        %v4768 = vtanh.pop %v4767
        %v4769 = vmul.f32 %v4764, %v4768
        %4770 = vmatprep.subr.bf16.mxu0 0
        %4771 = vmatpush1.bf16.msra.mxu0 0
        %4772 = vmatprep.subr.bf16.mxu0 0
        %4773 = vmatpush1.bf16.msra.mxu0 0
        %4774 = vmatprep.subr.bf16.mxu0 0
        %4775 = vmatpush1.bf16.msra.mxu0 0
        %4776 = vmatprep.subr.bf16.mxu0 0
        %4777 = vmatpush1.bf16.msra.mxu0 0
        %4778 = vmatprep.subr.bf16.mxu0 0
        %4779 = vmatpush1.bf16.msra.mxu0 0
        %4780 = vmatprep.subr.bf16.mxu0 0
        %4781 = vmatpush1.bf16.msra.mxu0 0
        %4782 = vmatprep.subr.bf16.mxu0 0
        %4783 = vmatpush1.bf16.msra.mxu0 %v2107
        %4784 = vmatprep.subr.bf16.mxu0 0
        %4785 = vmatpush1.bf16.msra.mxu0 %v2106
        %4786 = vmatprep.subr.bf16.mxu0 0
        %4787 = vmatpush2.bf16.msra.mxu0 0
        %4788 = vmatprep.subr.bf16.mxu0 0
        %4789 = vmatpush2.bf16.msra.mxu0 0
        %4790 = vmatprep.subr.bf16.mxu0 0
        %4791 = vmatpush2.bf16.msra.mxu0 0
        %4792 = vmatprep.subr.bf16.mxu0 0
        %4793 = vmatpush2.bf16.msra.mxu0 0
        %4794 = vmatprep.subr.bf16.mxu0 0
        %4795 = vmatpush2.bf16.msra.mxu0 0
        %4796 = vmatprep.subr.bf16.mxu0 0
        %4797 = vmatpush2.bf16.msra.mxu0 0
        %4798 = vmatprep.subr.bf16.mxu0 0
        %4799 = vmatpush2.bf16.msra.mxu0 0
        %4800 = vmatprep.subr.bf16.mxu0 0
        %4801 = vmatpush2.bf16.msra.mxu0 0
        %4802 = vmatprep.mubr.bf16.mxu0 0
        %4803 = vmatmul.mubr.bf16.gmra.mxu0 %v4658
        %v4804 = vpop.f32.mrf.mxu0
        %v4805 = vadd.f32 0.0, %v4804
        %v4806 = vpop.f32.mrf.mxu0
        %v4807 = vpop.f32.mrf.mxu0
        %v4808 = vpop.f32.mrf.mxu0
        %4809 = vdwg.mxu0
        %v4811 = vrot.slane %v4805, 2
        %v4813 = vadd.f32 %v1858, %v4811
        %4814 = vmatprep.subr.bf16.mxu0 0
        %4815 = vmatpush1.bf16.msra.mxu0 0
        %4816 = vmatprep.subr.bf16.mxu0 0
        %4817 = vmatpush1.bf16.msra.mxu0 0
        %4818 = vmatprep.subr.bf16.mxu0 0
        %4819 = vmatpush1.bf16.msra.mxu0 0
        %4820 = vmatprep.subr.bf16.mxu0 0
        %4821 = vmatpush1.bf16.msra.mxu0 0
        %4822 = vmatprep.subr.bf16.mxu0 0
        %4823 = vmatpush1.bf16.msra.mxu0 0
        %4824 = vmatprep.subr.bf16.mxu0 0
        %4825 = vmatpush1.bf16.msra.mxu0 0
        %4826 = vmatprep.subr.bf16.mxu0 0
        %4827 = vmatpush1.bf16.msra.mxu0 %v2164
        %4828 = vmatprep.subr.bf16.mxu0 0
        %4829 = vmatpush1.bf16.msra.mxu0 %v2163
        %4830 = vmatprep.subr.bf16.mxu0 0
        %4831 = vmatpush2.bf16.msra.mxu0 0
        %4832 = vmatprep.subr.bf16.mxu0 0
        %4833 = vmatpush2.bf16.msra.mxu0 0
        %4834 = vmatprep.subr.bf16.mxu0 0
        %4835 = vmatpush2.bf16.msra.mxu0 0
        %4836 = vmatprep.subr.bf16.mxu0 0
        %4837 = vmatpush2.bf16.msra.mxu0 0
        %4838 = vmatprep.subr.bf16.mxu0 0
        %4839 = vmatpush2.bf16.msra.mxu0 0
        %4840 = vmatprep.subr.bf16.mxu0 0
        %4841 = vmatpush2.bf16.msra.mxu0 0
        %4842 = vmatprep.subr.bf16.mxu0 0
        %4843 = vmatpush2.bf16.msra.mxu0 0
        %4844 = vmatprep.subr.bf16.mxu0 0
        %4845 = vmatpush2.bf16.msra.mxu0 0
        %4846 = vmatprep.mubr.bf16.mxu0 0
        %4847 = vmatmul.mubr.bf16.gmra.mxu0 %v4658
        %v4848 = vpop.f32.mrf.mxu0
        %v4849 = vadd.f32 0.0, %v4848
        %v4850 = vpop.f32.mrf.mxu0
        %v4851 = vpop.f32.mrf.mxu0
        %v4852 = vpop.f32.mrf.mxu0
        %4853 = vdwg.mxu0
        %v4855 = vrot.slane %v4849, 2
        %v4857 = vadd.f32 %v1916, %v4855
        %4858 = vmatprep.subr.bf16.mxu0 0
        %4859 = vmatpush1.bf16.msra.mxu0 0
        %4860 = vmatprep.subr.bf16.mxu0 0
        %4861 = vmatpush1.bf16.msra.mxu0 0
        %4862 = vmatprep.subr.bf16.mxu0 0
        %4863 = vmatpush1.bf16.msra.mxu0 0
        %4864 = vmatprep.subr.bf16.mxu0 0
        %4865 = vmatpush1.bf16.msra.mxu0 0
        %4866 = vmatprep.subr.bf16.mxu0 0
        %4867 = vmatpush1.bf16.msra.mxu0 0
        %4868 = vmatprep.subr.bf16.mxu0 0
        %4869 = vmatpush1.bf16.msra.mxu0 0
        %4870 = vmatprep.subr.bf16.mxu0 0
        %4871 = vmatpush1.bf16.msra.mxu0 %v2217
        %4872 = vmatprep.subr.bf16.mxu0 0
        %4873 = vmatpush1.bf16.msra.mxu0 %v2216
        %4874 = vmatprep.subr.bf16.mxu0 0
        %4875 = vmatpush2.bf16.msra.mxu0 0
        %4876 = vmatprep.subr.bf16.mxu0 0
        %4877 = vmatpush2.bf16.msra.mxu0 0
        %4878 = vmatprep.subr.bf16.mxu0 0
        %4879 = vmatpush2.bf16.msra.mxu0 0
        %4880 = vmatprep.subr.bf16.mxu0 0
        %4881 = vmatpush2.bf16.msra.mxu0 0
        %4882 = vmatprep.subr.bf16.mxu0 0
        %4883 = vmatpush2.bf16.msra.mxu0 0
        %4884 = vmatprep.subr.bf16.mxu0 0
        %4885 = vmatpush2.bf16.msra.mxu0 0
        %4886 = vmatprep.subr.bf16.mxu0 0
        %4887 = vmatpush2.bf16.msra.mxu0 0
        %4888 = vmatprep.subr.bf16.mxu0 0
        %4889 = vmatpush2.bf16.msra.mxu0 0
        %4890 = vmatprep.mubr.bf16.mxu0 0
        %4891 = vmatmul.mubr.bf16.gmra.mxu0 %v4658
        %v4892 = vpop.f32.mrf.mxu0
        %v4893 = vadd.f32 0.0, %v4892
        %v4894 = vpop.f32.mrf.mxu0
        %v4895 = vpop.f32.mrf.mxu0
        %v4896 = vpop.f32.mrf.mxu0
        %4897 = vdwg.mxu0
        %v4899 = vrot.slane %v4893, 2
        %v4901 = vadd.f32 %v1974, %v4899
        %4902 = vmatprep.subr.bf16.mxu0 0
        %4903 = vmatpush1.bf16.msra.mxu0 0
        %4904 = vmatprep.subr.bf16.mxu0 0
        %4905 = vmatpush1.bf16.msra.mxu0 0
        %4906 = vmatprep.subr.bf16.mxu0 0
        %4907 = vmatpush1.bf16.msra.mxu0 0
        %4908 = vmatprep.subr.bf16.mxu0 0
        %4909 = vmatpush1.bf16.msra.mxu0 0
        %4910 = vmatprep.subr.bf16.mxu0 0
        %4911 = vmatpush1.bf16.msra.mxu0 0
        %4912 = vmatprep.subr.bf16.mxu0 0
        %4913 = vmatpush1.bf16.msra.mxu0 0
        %4914 = vmatprep.subr.bf16.mxu0 0
        %4915 = vmatpush1.bf16.msra.mxu0 %v2270
        %4916 = vmatprep.subr.bf16.mxu0 0
        %4917 = vmatpush1.bf16.msra.mxu0 %v2269
        %4918 = vmatprep.subr.bf16.mxu0 0
        %4919 = vmatpush2.bf16.msra.mxu0 0
        %4920 = vmatprep.subr.bf16.mxu0 0
        %4921 = vmatpush2.bf16.msra.mxu0 0
        %4922 = vmatprep.subr.bf16.mxu0 0
        %4923 = vmatpush2.bf16.msra.mxu0 0
        %4924 = vmatprep.subr.bf16.mxu0 0
        %4925 = vmatpush2.bf16.msra.mxu0 0
        %4926 = vmatprep.subr.bf16.mxu0 0
        %4927 = vmatpush2.bf16.msra.mxu0 0
        %4928 = vmatprep.subr.bf16.mxu0 0
        %4929 = vmatpush2.bf16.msra.mxu0 0
        %4930 = vmatprep.subr.bf16.mxu0 0
        %4931 = vmatpush2.bf16.msra.mxu0 0
        %4932 = vmatprep.subr.bf16.mxu0 0
        %4933 = vmatpush2.bf16.msra.mxu0 0
        %4934 = vmatprep.mubr.bf16.mxu0 0
        %4935 = vmatmul.mubr.bf16.gmra.mxu0 %v4658
        %v4936 = vpop.f32.mrf.mxu0
        %v4937 = vadd.f32 0.0, %v4936
        %v4938 = vpop.f32.mrf.mxu0
        %v4939 = vpop.f32.mrf.mxu0
        %v4940 = vpop.f32.mrf.mxu0
        %4941 = vdwg.mxu0
        %v4943 = vrot.slane %v4937, 2
        %v4945 = vadd.f32 %v2032, %v4943
        %v4946 = vxor.u32 %v4857, 2147483648
        %v4947 = vmul.f32 %v4946, 1.442695
        %v4948 = vpow.pop %v4947
        %v4949 = vadd.f32 %v4948, 1.0
        %v4950 = vrcp.pop %v4949
        %v4951 = vmul.f32 1.0, %v4950
        %v4953 = vrot.slane %v4560, 7
        %v4955 = vmul.f32 %v4951, %v4953
        %v4956 = vxor.u32 %v4813, 2147483648
        %v4957 = vmul.f32 %v4956, 1.442695
        %v4958 = vpow.pop %v4957
        %v4959 = vadd.f32 %v4958, 1.0
        %v4960 = vrcp.pop %v4959
        %v4961 = vmul.f32 1.0, %v4960
        %v4962 = vtanh.pop %v4901
        %v4963 = vmul.f32 %v4961, %v4962
        %v4964 = vadd.f32 %v4955, %v4963
        %v4965 = vxor.u32 %v4945, 2147483648
        %v4966 = vmul.f32 %v4965, 1.442695
        %v4967 = vpow.pop %v4966
        %v4968 = vadd.f32 %v4967, 1.0
        %v4969 = vrcp.pop %v4968
        %v4970 = vmul.f32 1.0, %v4969
        %v4971 = vtanh.pop %v4964
        %v4972 = vmul.f32 %v4970, %v4971
        %v4973 = vpack.c.bf16 %v4972, %v4972
        %v4974 = vpack.c.bf16 %v4769, %v4769
        %4975 = vmatprep.subr.bf16.mxu0 %v2464
        %4976 = vmatpush1.bf16.msra.mxu0 %v2463
        %4977 = vmatprep.subr.bf16.mxu0 %v2460
        %4978 = vmatpush1.bf16.msra.mxu0 %v2459
        %4979 = vmatprep.subr.bf16.mxu0 %v2456
        %4980 = vmatpush1.bf16.msra.mxu0 %v2455
        %4981 = vmatprep.subr.bf16.mxu0 %v2452
        %4982 = vmatpush1.bf16.msra.mxu0 %v2451
        %4983 = vmatprep.subr.bf16.mxu0 %v2448
        %4984 = vmatpush1.bf16.msra.mxu0 %v2447
        %4985 = vmatprep.subr.bf16.mxu0 %v2444
        %4986 = vmatpush1.bf16.msra.mxu0 %v2443
        %4987 = vmatprep.subr.bf16.mxu0 %v2440
        %4988 = vmatpush1.bf16.msra.mxu0 %v2439
        %4989 = vmatprep.subr.bf16.mxu0 %v2436
        %4990 = vmatpush1.bf16.msra.mxu0 %v2435
        %4991 = vmatprep.subr.bf16.mxu0 0
        %4992 = vmatpush2.bf16.msra.mxu0 0
        %4993 = vmatprep.subr.bf16.mxu0 0
        %4994 = vmatpush2.bf16.msra.mxu0 0
        %4995 = vmatprep.subr.bf16.mxu0 0
        %4996 = vmatpush2.bf16.msra.mxu0 0
        %4997 = vmatprep.subr.bf16.mxu0 0
        %4998 = vmatpush2.bf16.msra.mxu0 0
        %4999 = vmatprep.subr.bf16.mxu0 0
        %5000 = vmatpush2.bf16.msra.mxu0 0
        %5001 = vmatprep.subr.bf16.mxu0 0
        %5002 = vmatpush2.bf16.msra.mxu0 0
        %5003 = vmatprep.subr.bf16.mxu0 0
        %5004 = vmatpush2.bf16.msra.mxu0 0
        %5005 = vmatprep.subr.bf16.mxu0 0
        %5006 = vmatpush2.bf16.msra.mxu0 0
        %5007 = vmatprep.mubr.bf16.mxu0 0
        %5008 = vmatmul.mubr.bf16.gmra.mxu0 %v4974
        %v5009 = vpop.f32.mrf.mxu0
        %v5010 = vadd.f32 0.0, %v5009
        %v5011 = vpop.f32.mrf.mxu0
        %v5012 = vadd.f32 0.0, %v5011
        %v5013 = vpop.f32.mrf.mxu0
        %v5014 = vpop.f32.mrf.mxu0
        %5015 = vdwg.mxu0
        %5016 = vmatprep.subr.bf16.mxu0 %v2466
        %5017 = vmatpush1.bf16.msra.mxu0 %v2465
        %5018 = vmatprep.subr.bf16.mxu0 %v2462
        %5019 = vmatpush1.bf16.msra.mxu0 %v2461
        %5020 = vmatprep.subr.bf16.mxu0 %v2458
        %5021 = vmatpush1.bf16.msra.mxu0 %v2457
        %5022 = vmatprep.subr.bf16.mxu0 %v2454
        %5023 = vmatpush1.bf16.msra.mxu0 %v2453
        %5024 = vmatprep.subr.bf16.mxu0 %v2450
        %5025 = vmatpush1.bf16.msra.mxu0 %v2449
        %5026 = vmatprep.subr.bf16.mxu0 %v2446
        %5027 = vmatpush1.bf16.msra.mxu0 %v2445
        %5028 = vmatprep.subr.bf16.mxu0 %v2442
        %5029 = vmatpush1.bf16.msra.mxu0 %v2441
        %5030 = vmatprep.subr.bf16.mxu0 %v2438
        %5031 = vmatpush1.bf16.msra.mxu0 %v2437
        %5032 = vmatprep.subr.bf16.mxu0 0
        %5033 = vmatpush2.bf16.msra.mxu0 0
        %5034 = vmatprep.subr.bf16.mxu0 0
        %5035 = vmatpush2.bf16.msra.mxu0 0
        %5036 = vmatprep.subr.bf16.mxu0 0
        %5037 = vmatpush2.bf16.msra.mxu0 0
        %5038 = vmatprep.subr.bf16.mxu0 0
        %5039 = vmatpush2.bf16.msra.mxu0 0
        %5040 = vmatprep.subr.bf16.mxu0 0
        %5041 = vmatpush2.bf16.msra.mxu0 0
        %5042 = vmatprep.subr.bf16.mxu0 0
        %5043 = vmatpush2.bf16.msra.mxu0 0
        %5044 = vmatprep.subr.bf16.mxu0 0
        %5045 = vmatpush2.bf16.msra.mxu0 0
        %5046 = vmatprep.subr.bf16.mxu0 0
        %5047 = vmatpush2.bf16.msra.mxu0 0
        %5048 = vmatprep.mubr.bf16.mxu0 0
        %5049 = vmatmul.mubr.bf16.gmra.mxu0 %v4974
        %v5050 = vpop.f32.mrf.mxu0
        %v5051 = vadd.f32 0.0, %v5050
        %v5052 = vpop.f32.mrf.mxu0
        %v5053 = vadd.f32 0.0, %v5052
        %v5054 = vpop.f32.mrf.mxu0
        %v5055 = vpop.f32.mrf.mxu0
        %5056 = vdwg.mxu0
        %v5058 = vrot.slane %v4973, 3
        %v5060 = vsel %vm2110, %v5058, 0
        %5062 = vmatprep.subr.bf16.mxu0 0
        %5063 = vmatpush1.bf16.msra.mxu0 0
        %5064 = vmatprep.subr.bf16.mxu0 0
        %5065 = vmatpush1.bf16.msra.mxu0 0
        %5066 = vmatprep.subr.bf16.mxu0 0
        %5067 = vmatpush1.bf16.msra.mxu0 0
        %5068 = vmatprep.subr.bf16.mxu0 0
        %5069 = vmatpush1.bf16.msra.mxu0 0
        %5070 = vmatprep.subr.bf16.mxu0 0
        %5071 = vmatpush1.bf16.msra.mxu0 0
        %5072 = vmatprep.subr.bf16.mxu0 0
        %5073 = vmatpush1.bf16.msra.mxu0 0
        %5074 = vmatprep.subr.bf16.mxu0 %v2610
        %5075 = vmatpush1.bf16.msra.mxu0 %v2609
        %5076 = vmatprep.subr.bf16.mxu0 %v2606
        %5077 = vmatpush1.bf16.msra.mxu0 %v2605
        %5078 = vmatprep.subr.bf16.mxu0 0
        %5079 = vmatpush2.bf16.msra.mxu0 0
        %5080 = vmatprep.subr.bf16.mxu0 0
        %5081 = vmatpush2.bf16.msra.mxu0 0
        %5082 = vmatprep.subr.bf16.mxu0 0
        %5083 = vmatpush2.bf16.msra.mxu0 0
        %5084 = vmatprep.subr.bf16.mxu0 0
        %5085 = vmatpush2.bf16.msra.mxu0 0
        %5086 = vmatprep.subr.bf16.mxu0 0
        %5087 = vmatpush2.bf16.msra.mxu0 0
        %5088 = vmatprep.subr.bf16.mxu0 0
        %5089 = vmatpush2.bf16.msra.mxu0 0
        %5090 = vmatprep.subr.bf16.mxu0 0
        %5091 = vmatpush2.bf16.msra.mxu0 0
        %5092 = vmatprep.subr.bf16.mxu0 0
        %5093 = vmatpush2.bf16.msra.mxu0 0
        %5094 = vmatprep.mubr.bf16.mxu0 0
        %5095 = vmatmul.mubr.bf16.gmra.mxu0 %v5060
        %v5096 = vpop.f32.mrf.mxu0
        %v5097 = vadd.f32 %v5010, %v5096
        %v5098 = vpop.f32.mrf.mxu0
        %v5099 = vadd.f32 %v5012, %v5098
        %v5100 = vpop.f32.mrf.mxu0
        %v5101 = vpop.f32.mrf.mxu0
        %5102 = vdwg.mxu0
        %5103 = vmatprep.subr.bf16.mxu0 0
        %5104 = vmatpush1.bf16.msra.mxu0 0
        %5105 = vmatprep.subr.bf16.mxu0 0
        %5106 = vmatpush1.bf16.msra.mxu0 0
        %5107 = vmatprep.subr.bf16.mxu0 0
        %5108 = vmatpush1.bf16.msra.mxu0 0
        %5109 = vmatprep.subr.bf16.mxu0 0
        %5110 = vmatpush1.bf16.msra.mxu0 0
        %5111 = vmatprep.subr.bf16.mxu0 0
        %5112 = vmatpush1.bf16.msra.mxu0 0
        %5113 = vmatprep.subr.bf16.mxu0 0
        %5114 = vmatpush1.bf16.msra.mxu0 0
        %5115 = vmatprep.subr.bf16.mxu0 %v2612
        %5116 = vmatpush1.bf16.msra.mxu0 %v2611
        %5117 = vmatprep.subr.bf16.mxu0 %v2608
        %5118 = vmatpush1.bf16.msra.mxu0 %v2607
        %5119 = vmatprep.subr.bf16.mxu0 0
        %5120 = vmatpush2.bf16.msra.mxu0 0
        %5121 = vmatprep.subr.bf16.mxu0 0
        %5122 = vmatpush2.bf16.msra.mxu0 0
        %5123 = vmatprep.subr.bf16.mxu0 0
        %5124 = vmatpush2.bf16.msra.mxu0 0
        %5125 = vmatprep.subr.bf16.mxu0 0
        %5126 = vmatpush2.bf16.msra.mxu0 0
        %5127 = vmatprep.subr.bf16.mxu0 0
        %5128 = vmatpush2.bf16.msra.mxu0 0
        %5129 = vmatprep.subr.bf16.mxu0 0
        %5130 = vmatpush2.bf16.msra.mxu0 0
        %5131 = vmatprep.subr.bf16.mxu0 0
        %5132 = vmatpush2.bf16.msra.mxu0 0
        %5133 = vmatprep.subr.bf16.mxu0 0
        %5134 = vmatpush2.bf16.msra.mxu0 0
        %5135 = vmatprep.mubr.bf16.mxu0 0
        %5136 = vmatmul.mubr.bf16.gmra.mxu0 %v5060
        %v5137 = vpop.f32.mrf.mxu0
        %v5138 = vadd.f32 %v5051, %v5137
        %v5139 = vpop.f32.mrf.mxu0
        %v5140 = vadd.f32 %v5053, %v5139
        %v5141 = vpop.f32.mrf.mxu0
        %v5142 = vpop.f32.mrf.mxu0
        %5143 = vdwg.mxu0
        %v5144 = vadd.f32 %v5097, %v2710
        %v5145 = vadd.f32 %v5099, %v2714
        %v5146 = vadd.f32 %v5138, %v2718
        %v5147 = vadd.f32 %v5140, %v2722
        %v5148 = vxor.u32 %v5144, 2147483648
        %v5149 = vmul.f32 %v5148, 1.442695
        %v5150 = vpow.pop %v5149
        %v5151 = vadd.f32 %v5150, 1.0
        %v5152 = vrcp.pop %v5151
        %v5153 = vmul.f32 1.0, %v5152
        %v5154 = vxor.u32 %v5145, 2147483648
        %v5155 = vmul.f32 %v5154, 1.442695
        %v5156 = vpow.pop %v5155
        %v5157 = vadd.f32 %v5156, 1.0
        %v5158 = vrcp.pop %v5157
        %v5159 = vmul.f32 1.0, %v5158
        %v5160 = vtanh.pop %v5146
        %v5161 = vxor.u32 %v5147, 2147483648
        %v5162 = vmul.f32 %v5161, 1.442695
        %v5163 = vpow.pop %v5162
        %v5164 = vadd.f32 %v5163, 1.0
        %v5165 = vrcp.pop %v5164
        %v5166 = vmul.f32 1.0, %v5165
        %v5167 = vmul.f32 %v5159, %v4767
        %v5168 = vmul.f32 %v5153, %v5160
        %v5169 = vadd.f32 %v5167, %v5168
        %v5170 = vtanh.pop %v5169
        %v5171 = vmul.f32 %v5166, %v5170
        %5172 = vmatprep.subr.bf16.mxu0 0
        %5173 = vmatpush1.bf16.msra.mxu0 0
        %5174 = vmatprep.subr.bf16.mxu0 0
        %5175 = vmatpush1.bf16.msra.mxu0 0
        %5176 = vmatprep.subr.bf16.mxu0 0
        %5177 = vmatpush1.bf16.msra.mxu0 0
        %5178 = vmatprep.subr.bf16.mxu0 0
        %5179 = vmatpush1.bf16.msra.mxu0 0
        %5180 = vmatprep.subr.bf16.mxu0 0
        %5181 = vmatpush1.bf16.msra.mxu0 0
        %5182 = vmatprep.subr.bf16.mxu0 0
        %5183 = vmatpush1.bf16.msra.mxu0 0
        %5184 = vmatprep.subr.bf16.mxu0 0
        %5185 = vmatpush1.bf16.msra.mxu0 %v2107
        %5186 = vmatprep.subr.bf16.mxu0 0
        %5187 = vmatpush1.bf16.msra.mxu0 %v2106
        %5188 = vmatprep.subr.bf16.mxu0 0
        %5189 = vmatpush2.bf16.msra.mxu0 0
        %5190 = vmatprep.subr.bf16.mxu0 0
        %5191 = vmatpush2.bf16.msra.mxu0 0
        %5192 = vmatprep.subr.bf16.mxu0 0
        %5193 = vmatpush2.bf16.msra.mxu0 0
        %5194 = vmatprep.subr.bf16.mxu0 0
        %5195 = vmatpush2.bf16.msra.mxu0 0
        %5196 = vmatprep.subr.bf16.mxu0 0
        %5197 = vmatpush2.bf16.msra.mxu0 0
        %5198 = vmatprep.subr.bf16.mxu0 0
        %5199 = vmatpush2.bf16.msra.mxu0 0
        %5200 = vmatprep.subr.bf16.mxu0 0
        %5201 = vmatpush2.bf16.msra.mxu0 0
        %5202 = vmatprep.subr.bf16.mxu0 0
        %5203 = vmatpush2.bf16.msra.mxu0 0
        %5204 = vmatprep.mubr.bf16.mxu0 0
        %5205 = vmatmul.mubr.bf16.gmra.mxu0 %v5060
        %v5206 = vpop.f32.mrf.mxu0
        %v5207 = vadd.f32 0.0, %v5206
        %v5208 = vpop.f32.mrf.mxu0
        %v5209 = vpop.f32.mrf.mxu0
        %v5210 = vpop.f32.mrf.mxu0
        %5211 = vdwg.mxu0
        %v5213 = vrot.slane %v5207, 1
        %v5215 = vadd.f32 %v1858, %v5213
        %5216 = vmatprep.subr.bf16.mxu0 0
        %5217 = vmatpush1.bf16.msra.mxu0 0
        %5218 = vmatprep.subr.bf16.mxu0 0
        %5219 = vmatpush1.bf16.msra.mxu0 0
        %5220 = vmatprep.subr.bf16.mxu0 0
        %5221 = vmatpush1.bf16.msra.mxu0 0
        %5222 = vmatprep.subr.bf16.mxu0 0
        %5223 = vmatpush1.bf16.msra.mxu0 0
        %5224 = vmatprep.subr.bf16.mxu0 0
        %5225 = vmatpush1.bf16.msra.mxu0 0
        %5226 = vmatprep.subr.bf16.mxu0 0
        %5227 = vmatpush1.bf16.msra.mxu0 0
        %5228 = vmatprep.subr.bf16.mxu0 0
        %5229 = vmatpush1.bf16.msra.mxu0 %v2164
        %5230 = vmatprep.subr.bf16.mxu0 0
        %5231 = vmatpush1.bf16.msra.mxu0 %v2163
        %5232 = vmatprep.subr.bf16.mxu0 0
        %5233 = vmatpush2.bf16.msra.mxu0 0
        %5234 = vmatprep.subr.bf16.mxu0 0
        %5235 = vmatpush2.bf16.msra.mxu0 0
        %5236 = vmatprep.subr.bf16.mxu0 0
        %5237 = vmatpush2.bf16.msra.mxu0 0
        %5238 = vmatprep.subr.bf16.mxu0 0
        %5239 = vmatpush2.bf16.msra.mxu0 0
        %5240 = vmatprep.subr.bf16.mxu0 0
        %5241 = vmatpush2.bf16.msra.mxu0 0
        %5242 = vmatprep.subr.bf16.mxu0 0
        %5243 = vmatpush2.bf16.msra.mxu0 0
        %5244 = vmatprep.subr.bf16.mxu0 0
        %5245 = vmatpush2.bf16.msra.mxu0 0
        %5246 = vmatprep.subr.bf16.mxu0 0
        %5247 = vmatpush2.bf16.msra.mxu0 0
        %5248 = vmatprep.mubr.bf16.mxu0 0
        %5249 = vmatmul.mubr.bf16.gmra.mxu0 %v5060
        %v5250 = vpop.f32.mrf.mxu0
        %v5251 = vadd.f32 0.0, %v5250
        %v5252 = vpop.f32.mrf.mxu0
        %v5253 = vpop.f32.mrf.mxu0
        %v5254 = vpop.f32.mrf.mxu0
        %5255 = vdwg.mxu0
        %v5257 = vrot.slane %v5251, 1
        %v5259 = vadd.f32 %v1916, %v5257
        %5260 = vmatprep.subr.bf16.mxu0 0
        %5261 = vmatpush1.bf16.msra.mxu0 0
        %5262 = vmatprep.subr.bf16.mxu0 0
        %5263 = vmatpush1.bf16.msra.mxu0 0
        %5264 = vmatprep.subr.bf16.mxu0 0
        %5265 = vmatpush1.bf16.msra.mxu0 0
        %5266 = vmatprep.subr.bf16.mxu0 0
        %5267 = vmatpush1.bf16.msra.mxu0 0
        %5268 = vmatprep.subr.bf16.mxu0 0
        %5269 = vmatpush1.bf16.msra.mxu0 0
        %5270 = vmatprep.subr.bf16.mxu0 0
        %5271 = vmatpush1.bf16.msra.mxu0 0
        %5272 = vmatprep.subr.bf16.mxu0 0
        %5273 = vmatpush1.bf16.msra.mxu0 %v2217
        %5274 = vmatprep.subr.bf16.mxu0 0
        %5275 = vmatpush1.bf16.msra.mxu0 %v2216
        %5276 = vmatprep.subr.bf16.mxu0 0
        %5277 = vmatpush2.bf16.msra.mxu0 0
        %5278 = vmatprep.subr.bf16.mxu0 0
        %5279 = vmatpush2.bf16.msra.mxu0 0
        %5280 = vmatprep.subr.bf16.mxu0 0
        %5281 = vmatpush2.bf16.msra.mxu0 0
        %5282 = vmatprep.subr.bf16.mxu0 0
        %5283 = vmatpush2.bf16.msra.mxu0 0
        %5284 = vmatprep.subr.bf16.mxu0 0
        %5285 = vmatpush2.bf16.msra.mxu0 0
        %5286 = vmatprep.subr.bf16.mxu0 0
        %5287 = vmatpush2.bf16.msra.mxu0 0
        %5288 = vmatprep.subr.bf16.mxu0 0
        %5289 = vmatpush2.bf16.msra.mxu0 0
        %5290 = vmatprep.subr.bf16.mxu0 0
        %5291 = vmatpush2.bf16.msra.mxu0 0
        %5292 = vmatprep.mubr.bf16.mxu0 0
        %5293 = vmatmul.mubr.bf16.gmra.mxu0 %v5060
        %v5294 = vpop.f32.mrf.mxu0
        %v5295 = vadd.f32 0.0, %v5294
        %v5296 = vpop.f32.mrf.mxu0
        %v5297 = vpop.f32.mrf.mxu0
        %v5298 = vpop.f32.mrf.mxu0
        %5299 = vdwg.mxu0
        %v5301 = vrot.slane %v5295, 1
        %v5303 = vadd.f32 %v1974, %v5301
        %5304 = vmatprep.subr.bf16.mxu0 0
        %5305 = vmatpush1.bf16.msra.mxu0 0
        %5306 = vmatprep.subr.bf16.mxu0 0
        %5307 = vmatpush1.bf16.msra.mxu0 0
        %5308 = vmatprep.subr.bf16.mxu0 0
        %5309 = vmatpush1.bf16.msra.mxu0 0
        %5310 = vmatprep.subr.bf16.mxu0 0
        %5311 = vmatpush1.bf16.msra.mxu0 0
        %5312 = vmatprep.subr.bf16.mxu0 0
        %5313 = vmatpush1.bf16.msra.mxu0 0
        %5314 = vmatprep.subr.bf16.mxu0 0
        %5315 = vmatpush1.bf16.msra.mxu0 0
        %5316 = vmatprep.subr.bf16.mxu0 0
        %5317 = vmatpush1.bf16.msra.mxu0 %v2270
        %5318 = vmatprep.subr.bf16.mxu0 0
        %5319 = vmatpush1.bf16.msra.mxu0 %v2269
        %5320 = vmatprep.subr.bf16.mxu0 0
        %5321 = vmatpush2.bf16.msra.mxu0 0
        %5322 = vmatprep.subr.bf16.mxu0 0
        %5323 = vmatpush2.bf16.msra.mxu0 0
        %5324 = vmatprep.subr.bf16.mxu0 0
        %5325 = vmatpush2.bf16.msra.mxu0 0
        %5326 = vmatprep.subr.bf16.mxu0 0
        %5327 = vmatpush2.bf16.msra.mxu0 0
        %5328 = vmatprep.subr.bf16.mxu0 0
        %5329 = vmatpush2.bf16.msra.mxu0 0
        %5330 = vmatprep.subr.bf16.mxu0 0
        %5331 = vmatpush2.bf16.msra.mxu0 0
        %5332 = vmatprep.subr.bf16.mxu0 0
        %5333 = vmatpush2.bf16.msra.mxu0 0
        %5334 = vmatprep.subr.bf16.mxu0 0
        %5335 = vmatpush2.bf16.msra.mxu0 0
        %5336 = vmatprep.mubr.bf16.mxu0 0
        %5337 = vmatmul.mubr.bf16.gmra.mxu0 %v5060
        %v5338 = vpop.f32.mrf.mxu0
        %v5339 = vadd.f32 0.0, %v5338
        %v5340 = vpop.f32.mrf.mxu0
        %v5341 = vpop.f32.mrf.mxu0
        %v5342 = vpop.f32.mrf.mxu0
        %5343 = vdwg.mxu0
        %v5345 = vrot.slane %v5339, 1
        %v5347 = vadd.f32 %v2032, %v5345
        %v5348 = vxor.u32 %v5259, 2147483648
        %v5349 = vmul.f32 %v5348, 1.442695
        %v5350 = vpow.pop %v5349
        %v5351 = vadd.f32 %v5350, 1.0
        %v5352 = vrcp.pop %v5351
        %v5353 = vmul.f32 1.0, %v5352
        %v5355 = vrot.slane %v4964, 7
        %v5357 = vmul.f32 %v5353, %v5355
        %v5358 = vxor.u32 %v5215, 2147483648
        %v5359 = vmul.f32 %v5358, 1.442695
        %v5360 = vpow.pop %v5359
        %v5361 = vadd.f32 %v5360, 1.0
        %v5362 = vrcp.pop %v5361
        %v5363 = vmul.f32 1.0, %v5362
        %v5364 = vtanh.pop %v5303
        %v5365 = vmul.f32 %v5363, %v5364
        %v5366 = vadd.f32 %v5357, %v5365
        %v5367 = vxor.u32 %v5347, 2147483648
        %v5368 = vmul.f32 %v5367, 1.442695
        %v5369 = vpow.pop %v5368
        %v5370 = vadd.f32 %v5369, 1.0
        %v5371 = vrcp.pop %v5370
        %v5372 = vmul.f32 1.0, %v5371
        %v5373 = vtanh.pop %v5366
        %v5374 = vmul.f32 %v5372, %v5373
        %v5375 = vpack.c.bf16 %v5374, %v5374
        %v5376 = vpack.c.bf16 %v5171, %v5171
        %5377 = vmatprep.subr.bf16.mxu0 %v2464
        %5378 = vmatpush1.bf16.msra.mxu0 %v2463
        %5379 = vmatprep.subr.bf16.mxu0 %v2460
        %5380 = vmatpush1.bf16.msra.mxu0 %v2459
        %5381 = vmatprep.subr.bf16.mxu0 %v2456
        %5382 = vmatpush1.bf16.msra.mxu0 %v2455
        %5383 = vmatprep.subr.bf16.mxu0 %v2452
        %5384 = vmatpush1.bf16.msra.mxu0 %v2451
        %5385 = vmatprep.subr.bf16.mxu0 %v2448
        %5386 = vmatpush1.bf16.msra.mxu0 %v2447
        %5387 = vmatprep.subr.bf16.mxu0 %v2444
        %5388 = vmatpush1.bf16.msra.mxu0 %v2443
        %5389 = vmatprep.subr.bf16.mxu0 %v2440
        %5390 = vmatpush1.bf16.msra.mxu0 %v2439
        %5391 = vmatprep.subr.bf16.mxu0 %v2436
        %5392 = vmatpush1.bf16.msra.mxu0 %v2435
        %5393 = vmatprep.subr.bf16.mxu0 0
        %5394 = vmatpush2.bf16.msra.mxu0 0
        %5395 = vmatprep.subr.bf16.mxu0 0
        %5396 = vmatpush2.bf16.msra.mxu0 0
        %5397 = vmatprep.subr.bf16.mxu0 0
        %5398 = vmatpush2.bf16.msra.mxu0 0
        %5399 = vmatprep.subr.bf16.mxu0 0
        %5400 = vmatpush2.bf16.msra.mxu0 0
        %5401 = vmatprep.subr.bf16.mxu0 0
        %5402 = vmatpush2.bf16.msra.mxu0 0
        %5403 = vmatprep.subr.bf16.mxu0 0
        %5404 = vmatpush2.bf16.msra.mxu0 0
        %5405 = vmatprep.subr.bf16.mxu0 0
        %5406 = vmatpush2.bf16.msra.mxu0 0
        %5407 = vmatprep.subr.bf16.mxu0 0
        %5408 = vmatpush2.bf16.msra.mxu0 0
        %5409 = vmatprep.mubr.bf16.mxu0 0
        %5410 = vmatmul.mubr.bf16.gmra.mxu0 %v5376
        %v5411 = vpop.f32.mrf.mxu0
        %v5412 = vadd.f32 0.0, %v5411
        %v5413 = vpop.f32.mrf.mxu0
        %v5414 = vadd.f32 0.0, %v5413
        %v5415 = vpop.f32.mrf.mxu0
        %v5416 = vpop.f32.mrf.mxu0
        %5417 = vdwg.mxu0
        %5418 = vmatprep.subr.bf16.mxu0 %v2466
        %5419 = vmatpush1.bf16.msra.mxu0 %v2465
        %5420 = vmatprep.subr.bf16.mxu0 %v2462
        %5421 = vmatpush1.bf16.msra.mxu0 %v2461
        %5422 = vmatprep.subr.bf16.mxu0 %v2458
        %5423 = vmatpush1.bf16.msra.mxu0 %v2457
        %5424 = vmatprep.subr.bf16.mxu0 %v2454
        %5425 = vmatpush1.bf16.msra.mxu0 %v2453
        %5426 = vmatprep.subr.bf16.mxu0 %v2450
        %5427 = vmatpush1.bf16.msra.mxu0 %v2449
        %5428 = vmatprep.subr.bf16.mxu0 %v2446
        %5429 = vmatpush1.bf16.msra.mxu0 %v2445
        %5430 = vmatprep.subr.bf16.mxu0 %v2442
        %5431 = vmatpush1.bf16.msra.mxu0 %v2441
        %5432 = vmatprep.subr.bf16.mxu0 %v2438
        %5433 = vmatpush1.bf16.msra.mxu0 %v2437
        %5434 = vmatprep.subr.bf16.mxu0 0
        %5435 = vmatpush2.bf16.msra.mxu0 0
        %5436 = vmatprep.subr.bf16.mxu0 0
        %5437 = vmatpush2.bf16.msra.mxu0 0
        %5438 = vmatprep.subr.bf16.mxu0 0
        %5439 = vmatpush2.bf16.msra.mxu0 0
        %5440 = vmatprep.subr.bf16.mxu0 0
        %5441 = vmatpush2.bf16.msra.mxu0 0
        %5442 = vmatprep.subr.bf16.mxu0 0
        %5443 = vmatpush2.bf16.msra.mxu0 0
        %5444 = vmatprep.subr.bf16.mxu0 0
        %5445 = vmatpush2.bf16.msra.mxu0 0
        %5446 = vmatprep.subr.bf16.mxu0 0
        %5447 = vmatpush2.bf16.msra.mxu0 0
        %5448 = vmatprep.subr.bf16.mxu0 0
        %5449 = vmatpush2.bf16.msra.mxu0 0
        %5450 = vmatprep.mubr.bf16.mxu0 0
        %5451 = vmatmul.mubr.bf16.gmra.mxu0 %v5376
        %v5452 = vpop.f32.mrf.mxu0
        %v5453 = vadd.f32 0.0, %v5452
        %v5454 = vpop.f32.mrf.mxu0
        %v5455 = vadd.f32 0.0, %v5454
        %v5456 = vpop.f32.mrf.mxu0
        %v5457 = vpop.f32.mrf.mxu0
        %5458 = vdwg.mxu0
        %v5460 = vshrl.u32 %v5375, 16
        %v5462 = vrot.slane %v5460, 3
        %v5464 = vsel %vm2110, %v5462, 0
        %5466 = vmatprep.subr.bf16.mxu0 0
        %5467 = vmatpush1.bf16.msra.mxu0 0
        %5468 = vmatprep.subr.bf16.mxu0 0
        %5469 = vmatpush1.bf16.msra.mxu0 0
        %5470 = vmatprep.subr.bf16.mxu0 0
        %5471 = vmatpush1.bf16.msra.mxu0 0
        %5472 = vmatprep.subr.bf16.mxu0 0
        %5473 = vmatpush1.bf16.msra.mxu0 0
        %5474 = vmatprep.subr.bf16.mxu0 0
        %5475 = vmatpush1.bf16.msra.mxu0 0
        %5476 = vmatprep.subr.bf16.mxu0 0
        %5477 = vmatpush1.bf16.msra.mxu0 0
        %5478 = vmatprep.subr.bf16.mxu0 %v2610
        %5479 = vmatpush1.bf16.msra.mxu0 %v2609
        %5480 = vmatprep.subr.bf16.mxu0 %v2606
        %5481 = vmatpush1.bf16.msra.mxu0 %v2605
        %5482 = vmatprep.subr.bf16.mxu0 0
        %5483 = vmatpush2.bf16.msra.mxu0 0
        %5484 = vmatprep.subr.bf16.mxu0 0
        %5485 = vmatpush2.bf16.msra.mxu0 0
        %5486 = vmatprep.subr.bf16.mxu0 0
        %5487 = vmatpush2.bf16.msra.mxu0 0
        %5488 = vmatprep.subr.bf16.mxu0 0
        %5489 = vmatpush2.bf16.msra.mxu0 0
        %5490 = vmatprep.subr.bf16.mxu0 0
        %5491 = vmatpush2.bf16.msra.mxu0 0
        %5492 = vmatprep.subr.bf16.mxu0 0
        %5493 = vmatpush2.bf16.msra.mxu0 0
        %5494 = vmatprep.subr.bf16.mxu0 0
        %5495 = vmatpush2.bf16.msra.mxu0 0
        %5496 = vmatprep.subr.bf16.mxu0 0
        %5497 = vmatpush2.bf16.msra.mxu0 0
        %5498 = vmatprep.mubr.bf16.mxu0 0
        %5499 = vmatmul.mubr.bf16.gmra.mxu0 %v5464
        %v5500 = vpop.f32.mrf.mxu0
        %v5501 = vadd.f32 %v5412, %v5500
        %v5502 = vpop.f32.mrf.mxu0
        %v5503 = vadd.f32 %v5414, %v5502
        %v5504 = vpop.f32.mrf.mxu0
        %v5505 = vpop.f32.mrf.mxu0
        %5506 = vdwg.mxu0
        %5507 = vmatprep.subr.bf16.mxu0 0
        %5508 = vmatpush1.bf16.msra.mxu0 0
        %5509 = vmatprep.subr.bf16.mxu0 0
        %5510 = vmatpush1.bf16.msra.mxu0 0
        %5511 = vmatprep.subr.bf16.mxu0 0
        %5512 = vmatpush1.bf16.msra.mxu0 0
        %5513 = vmatprep.subr.bf16.mxu0 0
        %5514 = vmatpush1.bf16.msra.mxu0 0
        %5515 = vmatprep.subr.bf16.mxu0 0
        %5516 = vmatpush1.bf16.msra.mxu0 0
        %5517 = vmatprep.subr.bf16.mxu0 0
        %5518 = vmatpush1.bf16.msra.mxu0 0
        %5519 = vmatprep.subr.bf16.mxu0 %v2612
        %5520 = vmatpush1.bf16.msra.mxu0 %v2611
        %5521 = vmatprep.subr.bf16.mxu0 %v2608
        %5522 = vmatpush1.bf16.msra.mxu0 %v2607
        %5523 = vmatprep.subr.bf16.mxu0 0
        %5524 = vmatpush2.bf16.msra.mxu0 0
        %5525 = vmatprep.subr.bf16.mxu0 0
        %5526 = vmatpush2.bf16.msra.mxu0 0
        %5527 = vmatprep.subr.bf16.mxu0 0
        %5528 = vmatpush2.bf16.msra.mxu0 0
        %5529 = vmatprep.subr.bf16.mxu0 0
        %5530 = vmatpush2.bf16.msra.mxu0 0
        %5531 = vmatprep.subr.bf16.mxu0 0
        %5532 = vmatpush2.bf16.msra.mxu0 0
        %5533 = vmatprep.subr.bf16.mxu0 0
        %5534 = vmatpush2.bf16.msra.mxu0 0
        %5535 = vmatprep.subr.bf16.mxu0 0
        %5536 = vmatpush2.bf16.msra.mxu0 0
        %5537 = vmatprep.subr.bf16.mxu0 0
        %5538 = vmatpush2.bf16.msra.mxu0 0
        %5539 = vmatprep.mubr.bf16.mxu0 0
        %5540 = vmatmul.mubr.bf16.gmra.mxu0 %v5464
        %v5541 = vpop.f32.mrf.mxu0
        %v5542 = vadd.f32 %v5453, %v5541
        %v5543 = vpop.f32.mrf.mxu0
        %v5544 = vadd.f32 %v5455, %v5543
        %v5545 = vpop.f32.mrf.mxu0
        %v5546 = vpop.f32.mrf.mxu0
        %5547 = vdwg.mxu0
        %v5548 = vadd.f32 %v5501, %v2710
        %v5549 = vadd.f32 %v5503, %v2714
        %v5550 = vadd.f32 %v5542, %v2718
        %v5551 = vadd.f32 %v5544, %v2722
        %v5552 = vxor.u32 %v5548, 2147483648
        %v5553 = vmul.f32 %v5552, 1.442695
        %v5554 = vpow.pop %v5553
        %v5555 = vadd.f32 %v5554, 1.0
        %v5556 = vrcp.pop %v5555
        %v5557 = vmul.f32 1.0, %v5556
        %v5558 = vxor.u32 %v5549, 2147483648
        %v5559 = vmul.f32 %v5558, 1.442695
        %v5560 = vpow.pop %v5559
        %v5561 = vadd.f32 %v5560, 1.0
        %v5562 = vrcp.pop %v5561
        %v5563 = vmul.f32 1.0, %v5562
        %v5564 = vtanh.pop %v5550
        %v5565 = vxor.u32 %v5551, 2147483648
        %v5566 = vmul.f32 %v5565, 1.442695
        %v5567 = vpow.pop %v5566
        %v5568 = vadd.f32 %v5567, 1.0
        %v5569 = vrcp.pop %v5568
        %v5570 = vmul.f32 1.0, %v5569
        %v5571 = vmul.f32 %v5563, %v5169
        %v5572 = vmul.f32 %v5557, %v5564
        %v5573 = vadd.f32 %v5571, %v5572
        %v5574 = vtanh.pop %v5573
        %v5575 = vmul.f32 %v5570, %v5574
        %5576 = vmatprep.subr.bf16.mxu0 0
        %5577 = vmatpush1.bf16.msra.mxu0 0
        %5578 = vmatprep.subr.bf16.mxu0 0
        %5579 = vmatpush1.bf16.msra.mxu0 0
        %5580 = vmatprep.subr.bf16.mxu0 0
        %5581 = vmatpush1.bf16.msra.mxu0 0
        %5582 = vmatprep.subr.bf16.mxu0 0
        %5583 = vmatpush1.bf16.msra.mxu0 0
        %5584 = vmatprep.subr.bf16.mxu0 0
        %5585 = vmatpush1.bf16.msra.mxu0 0
        %5586 = vmatprep.subr.bf16.mxu0 0
        %5587 = vmatpush1.bf16.msra.mxu0 0
        %5588 = vmatprep.subr.bf16.mxu0 0
        %5589 = vmatpush1.bf16.msra.mxu0 %v2107
        %5590 = vmatprep.subr.bf16.mxu0 0
        %5591 = vmatpush1.bf16.msra.mxu0 %v2106
        %5592 = vmatprep.subr.bf16.mxu0 0
        %5593 = vmatpush2.bf16.msra.mxu0 0
        %5594 = vmatprep.subr.bf16.mxu0 0
        %5595 = vmatpush2.bf16.msra.mxu0 0
        %5596 = vmatprep.subr.bf16.mxu0 0
        %5597 = vmatpush2.bf16.msra.mxu0 0
        %5598 = vmatprep.subr.bf16.mxu0 0
        %5599 = vmatpush2.bf16.msra.mxu0 0
        %5600 = vmatprep.subr.bf16.mxu0 0
        %5601 = vmatpush2.bf16.msra.mxu0 0
        %5602 = vmatprep.subr.bf16.mxu0 0
        %5603 = vmatpush2.bf16.msra.mxu0 0
        %5604 = vmatprep.subr.bf16.mxu0 0
        %5605 = vmatpush2.bf16.msra.mxu0 0
        %5606 = vmatprep.subr.bf16.mxu0 0
        %5607 = vmatpush2.bf16.msra.mxu0 0
        %5608 = vmatprep.mubr.bf16.mxu0 0
        %5609 = vmatmul.mubr.bf16.gmra.mxu0 %v5464
        %v5610 = vpop.f32.mrf.mxu0
        %v5611 = vadd.f32 0.0, %v5610
        %v5612 = vpop.f32.mrf.mxu0
        %v5613 = vpop.f32.mrf.mxu0
        %v5614 = vpop.f32.mrf.mxu0
        %5615 = vdwg.mxu0
        %v5616 = vadd.f32 %v1861, %v5611
        %5617 = vmatprep.subr.bf16.mxu0 0
        %5618 = vmatpush1.bf16.msra.mxu0 0
        %5619 = vmatprep.subr.bf16.mxu0 0
        %5620 = vmatpush1.bf16.msra.mxu0 0
        %5621 = vmatprep.subr.bf16.mxu0 0
        %5622 = vmatpush1.bf16.msra.mxu0 0
        %5623 = vmatprep.subr.bf16.mxu0 0
        %5624 = vmatpush1.bf16.msra.mxu0 0
        %5625 = vmatprep.subr.bf16.mxu0 0
        %5626 = vmatpush1.bf16.msra.mxu0 0
        %5627 = vmatprep.subr.bf16.mxu0 0
        %5628 = vmatpush1.bf16.msra.mxu0 0
        %5629 = vmatprep.subr.bf16.mxu0 0
        %5630 = vmatpush1.bf16.msra.mxu0 %v2164
        %5631 = vmatprep.subr.bf16.mxu0 0
        %5632 = vmatpush1.bf16.msra.mxu0 %v2163
        %5633 = vmatprep.subr.bf16.mxu0 0
        %5634 = vmatpush2.bf16.msra.mxu0 0
        %5635 = vmatprep.subr.bf16.mxu0 0
        %5636 = vmatpush2.bf16.msra.mxu0 0
        %5637 = vmatprep.subr.bf16.mxu0 0
        %5638 = vmatpush2.bf16.msra.mxu0 0
        %5639 = vmatprep.subr.bf16.mxu0 0
        %5640 = vmatpush2.bf16.msra.mxu0 0
        %5641 = vmatprep.subr.bf16.mxu0 0
        %5642 = vmatpush2.bf16.msra.mxu0 0
        %5643 = vmatprep.subr.bf16.mxu0 0
        %5644 = vmatpush2.bf16.msra.mxu0 0
        %5645 = vmatprep.subr.bf16.mxu0 0
        %5646 = vmatpush2.bf16.msra.mxu0 0
        %5647 = vmatprep.subr.bf16.mxu0 0
        %5648 = vmatpush2.bf16.msra.mxu0 0
        %5649 = vmatprep.mubr.bf16.mxu0 0
        %5650 = vmatmul.mubr.bf16.gmra.mxu0 %v5464
        %v5651 = vpop.f32.mrf.mxu0
        %v5652 = vadd.f32 0.0, %v5651
        %v5653 = vpop.f32.mrf.mxu0
        %v5654 = vpop.f32.mrf.mxu0
        %v5655 = vpop.f32.mrf.mxu0
        %5656 = vdwg.mxu0
        %v5657 = vadd.f32 %v1919, %v5652
        %5658 = vmatprep.subr.bf16.mxu0 0
        %5659 = vmatpush1.bf16.msra.mxu0 0
        %5660 = vmatprep.subr.bf16.mxu0 0
        %5661 = vmatpush1.bf16.msra.mxu0 0
        %5662 = vmatprep.subr.bf16.mxu0 0
        %5663 = vmatpush1.bf16.msra.mxu0 0
        %5664 = vmatprep.subr.bf16.mxu0 0
        %5665 = vmatpush1.bf16.msra.mxu0 0
        %5666 = vmatprep.subr.bf16.mxu0 0
        %5667 = vmatpush1.bf16.msra.mxu0 0
        %5668 = vmatprep.subr.bf16.mxu0 0
        %5669 = vmatpush1.bf16.msra.mxu0 0
        %5670 = vmatprep.subr.bf16.mxu0 0
        %5671 = vmatpush1.bf16.msra.mxu0 %v2217
        %5672 = vmatprep.subr.bf16.mxu0 0
        %5673 = vmatpush1.bf16.msra.mxu0 %v2216
        %5674 = vmatprep.subr.bf16.mxu0 0
        %5675 = vmatpush2.bf16.msra.mxu0 0
        %5676 = vmatprep.subr.bf16.mxu0 0
        %5677 = vmatpush2.bf16.msra.mxu0 0
        %5678 = vmatprep.subr.bf16.mxu0 0
        %5679 = vmatpush2.bf16.msra.mxu0 0
        %5680 = vmatprep.subr.bf16.mxu0 0
        %5681 = vmatpush2.bf16.msra.mxu0 0
        %5682 = vmatprep.subr.bf16.mxu0 0
        %5683 = vmatpush2.bf16.msra.mxu0 0
        %5684 = vmatprep.subr.bf16.mxu0 0
        %5685 = vmatpush2.bf16.msra.mxu0 0
        %5686 = vmatprep.subr.bf16.mxu0 0
        %5687 = vmatpush2.bf16.msra.mxu0 0
        %5688 = vmatprep.subr.bf16.mxu0 0
        %5689 = vmatpush2.bf16.msra.mxu0 0
        %5690 = vmatprep.mubr.bf16.mxu0 0
        %5691 = vmatmul.mubr.bf16.gmra.mxu0 %v5464
        %v5692 = vpop.f32.mrf.mxu0
        %v5693 = vadd.f32 0.0, %v5692
        %v5694 = vpop.f32.mrf.mxu0
        %v5695 = vpop.f32.mrf.mxu0
        %v5696 = vpop.f32.mrf.mxu0
        %5697 = vdwg.mxu0
        %v5698 = vadd.f32 %v1977, %v5693
        %5699 = vmatprep.subr.bf16.mxu0 0
        %5700 = vmatpush1.bf16.msra.mxu0 0
        %5701 = vmatprep.subr.bf16.mxu0 0
        %5702 = vmatpush1.bf16.msra.mxu0 0
        %5703 = vmatprep.subr.bf16.mxu0 0
        %5704 = vmatpush1.bf16.msra.mxu0 0
        %5705 = vmatprep.subr.bf16.mxu0 0
        %5706 = vmatpush1.bf16.msra.mxu0 0
        %5707 = vmatprep.subr.bf16.mxu0 0
        %5708 = vmatpush1.bf16.msra.mxu0 0
        %5709 = vmatprep.subr.bf16.mxu0 0
        %5710 = vmatpush1.bf16.msra.mxu0 0
        %5711 = vmatprep.subr.bf16.mxu0 0
        %5712 = vmatpush1.bf16.msra.mxu0 %v2270
        %5713 = vmatprep.subr.bf16.mxu0 0
        %5714 = vmatpush1.bf16.msra.mxu0 %v2269
        %5715 = vmatprep.subr.bf16.mxu0 0
        %5716 = vmatpush2.bf16.msra.mxu0 0
        %5717 = vmatprep.subr.bf16.mxu0 0
        %5718 = vmatpush2.bf16.msra.mxu0 0
        %5719 = vmatprep.subr.bf16.mxu0 0
        %5720 = vmatpush2.bf16.msra.mxu0 0
        %5721 = vmatprep.subr.bf16.mxu0 0
        %5722 = vmatpush2.bf16.msra.mxu0 0
        %5723 = vmatprep.subr.bf16.mxu0 0
        %5724 = vmatpush2.bf16.msra.mxu0 0
        %5725 = vmatprep.subr.bf16.mxu0 0
        %5726 = vmatpush2.bf16.msra.mxu0 0
        %5727 = vmatprep.subr.bf16.mxu0 0
        %5728 = vmatpush2.bf16.msra.mxu0 0
        %5729 = vmatprep.subr.bf16.mxu0 0
        %5730 = vmatpush2.bf16.msra.mxu0 0
        %5731 = vmatprep.mubr.bf16.mxu0 0
        %5732 = vmatmul.mubr.bf16.gmra.mxu0 %v5464
        %v5733 = vpop.f32.mrf.mxu0
        %v5734 = vadd.f32 0.0, %v5733
        %v5735 = vpop.f32.mrf.mxu0
        %v5736 = vpop.f32.mrf.mxu0
        %v5737 = vpop.f32.mrf.mxu0
        %5738 = vdwg.mxu0
        %v5739 = vadd.f32 %v2035, %v5734
        %v5740 = vxor.u32 %v5657, 2147483648
        %v5741 = vmul.f32 %v5740, 1.442695
        %v5742 = vpow.pop %v5741
        %v5743 = vadd.f32 %v5742, 1.0
        %v5744 = vrcp.pop %v5743
        %v5745 = vmul.f32 1.0, %v5744
        %v5747 = vrot.slane %v5366, 7
        %v5749 = vmul.f32 %v5745, %v5747
        %v5750 = vxor.u32 %v5616, 2147483648
        %v5751 = vmul.f32 %v5750, 1.442695
        %v5752 = vpow.pop %v5751
        %v5753 = vadd.f32 %v5752, 1.0
        %v5754 = vrcp.pop %v5753
        %v5755 = vmul.f32 1.0, %v5754
        %v5756 = vtanh.pop %v5698
        %v5757 = vmul.f32 %v5755, %v5756
        %v5758 = vadd.f32 %v5749, %v5757
        %v5759 = vxor.u32 %v5739, 2147483648
        %v5760 = vmul.f32 %v5759, 1.442695
        %v5761 = vpow.pop %v5760
        %v5762 = vadd.f32 %v5761, 1.0
        %v5763 = vrcp.pop %v5762
        %v5764 = vmul.f32 1.0, %v5763
        %v5765 = vtanh.pop %v5758
        %v5766 = vmul.f32 %v5764, %v5765
        %v5767 = vpack.c.bf16 %v5766, %v5766
        %v5768 = vpack.c.bf16 %v5575, %v5575
        %5769 = vmatprep.subr.bf16.mxu0 %v2464
        %5770 = vmatpush1.bf16.msra.mxu0 %v2463
        %5771 = vmatprep.subr.bf16.mxu0 %v2460
        %5772 = vmatpush1.bf16.msra.mxu0 %v2459
        %5773 = vmatprep.subr.bf16.mxu0 %v2456
        %5774 = vmatpush1.bf16.msra.mxu0 %v2455
        %5775 = vmatprep.subr.bf16.mxu0 %v2452
        %5776 = vmatpush1.bf16.msra.mxu0 %v2451
        %5777 = vmatprep.subr.bf16.mxu0 %v2448
        %5778 = vmatpush1.bf16.msra.mxu0 %v2447
        %5779 = vmatprep.subr.bf16.mxu0 %v2444
        %5780 = vmatpush1.bf16.msra.mxu0 %v2443
        %5781 = vmatprep.subr.bf16.mxu0 %v2440
        %5782 = vmatpush1.bf16.msra.mxu0 %v2439
        %5783 = vmatprep.subr.bf16.mxu0 %v2436
        %5784 = vmatpush1.bf16.msra.mxu0 %v2435
        %5785 = vmatprep.subr.bf16.mxu0 0
        %5786 = vmatpush2.bf16.msra.mxu0 0
        %5787 = vmatprep.subr.bf16.mxu0 0
        %5788 = vmatpush2.bf16.msra.mxu0 0
        %5789 = vmatprep.subr.bf16.mxu0 0
        %5790 = vmatpush2.bf16.msra.mxu0 0
        %5791 = vmatprep.subr.bf16.mxu0 0
        %5792 = vmatpush2.bf16.msra.mxu0 0
        %5793 = vmatprep.subr.bf16.mxu0 0
        %5794 = vmatpush2.bf16.msra.mxu0 0
        %5795 = vmatprep.subr.bf16.mxu0 0
        %5796 = vmatpush2.bf16.msra.mxu0 0
        %5797 = vmatprep.subr.bf16.mxu0 0
        %5798 = vmatpush2.bf16.msra.mxu0 0
        %5799 = vmatprep.subr.bf16.mxu0 0
        %5800 = vmatpush2.bf16.msra.mxu0 0
        %5801 = vmatprep.mubr.bf16.mxu0 0
        %5802 = vmatmul.mubr.bf16.gmra.mxu0 %v5768
        %v5803 = vpop.f32.mrf.mxu0
        %v5804 = vadd.f32 0.0, %v5803
        %v5805 = vpop.f32.mrf.mxu0
        %v5806 = vadd.f32 0.0, %v5805
        %v5807 = vpop.f32.mrf.mxu0
        %v5808 = vpop.f32.mrf.mxu0
        %5809 = vdwg.mxu0
        %5810 = vmatprep.subr.bf16.mxu0 %v2466
        %5811 = vmatpush1.bf16.msra.mxu0 %v2465
        %5812 = vmatprep.subr.bf16.mxu0 %v2462
        %5813 = vmatpush1.bf16.msra.mxu0 %v2461
        %5814 = vmatprep.subr.bf16.mxu0 %v2458
        %5815 = vmatpush1.bf16.msra.mxu0 %v2457
        %5816 = vmatprep.subr.bf16.mxu0 %v2454
        %5817 = vmatpush1.bf16.msra.mxu0 %v2453
        %5818 = vmatprep.subr.bf16.mxu0 %v2450
        %5819 = vmatpush1.bf16.msra.mxu0 %v2449
        %5820 = vmatprep.subr.bf16.mxu0 %v2446
        %5821 = vmatpush1.bf16.msra.mxu0 %v2445
        %5822 = vmatprep.subr.bf16.mxu0 %v2442
        %5823 = vmatpush1.bf16.msra.mxu0 %v2441
        %5824 = vmatprep.subr.bf16.mxu0 %v2438
        %5825 = vmatpush1.bf16.msra.mxu0 %v2437
        %5826 = vmatprep.subr.bf16.mxu0 0
        %5827 = vmatpush2.bf16.msra.mxu0 0
        %5828 = vmatprep.subr.bf16.mxu0 0
        %5829 = vmatpush2.bf16.msra.mxu0 0
        %5830 = vmatprep.subr.bf16.mxu0 0
        %5831 = vmatpush2.bf16.msra.mxu0 0
        %5832 = vmatprep.subr.bf16.mxu0 0
        %5833 = vmatpush2.bf16.msra.mxu0 0
        %5834 = vmatprep.subr.bf16.mxu0 0
        %5835 = vmatpush2.bf16.msra.mxu0 0
        %5836 = vmatprep.subr.bf16.mxu0 0
        %5837 = vmatpush2.bf16.msra.mxu0 0
        %5838 = vmatprep.subr.bf16.mxu0 0
        %5839 = vmatpush2.bf16.msra.mxu0 0
        %5840 = vmatprep.subr.bf16.mxu0 0
        %5841 = vmatpush2.bf16.msra.mxu0 0
        %5842 = vmatprep.mubr.bf16.mxu0 0
        %5843 = vmatmul.mubr.bf16.gmra.mxu0 %v5768
        %v5844 = vpop.f32.mrf.mxu0
        %v5845 = vadd.f32 0.0, %v5844
        %v5846 = vpop.f32.mrf.mxu0
        %v5847 = vadd.f32 0.0, %v5846
        %v5848 = vpop.f32.mrf.mxu0
        %v5849 = vpop.f32.mrf.mxu0
        %5850 = vdwg.mxu0
        %v5852 = vsel %vm2110, %v5767, 0
        %5854 = vmatprep.subr.bf16.mxu0 0
        %5855 = vmatpush1.bf16.msra.mxu0 0
        %5856 = vmatprep.subr.bf16.mxu0 0
        %5857 = vmatpush1.bf16.msra.mxu0 0
        %5858 = vmatprep.subr.bf16.mxu0 0
        %5859 = vmatpush1.bf16.msra.mxu0 0
        %5860 = vmatprep.subr.bf16.mxu0 0
        %5861 = vmatpush1.bf16.msra.mxu0 0
        %5862 = vmatprep.subr.bf16.mxu0 0
        %5863 = vmatpush1.bf16.msra.mxu0 0
        %5864 = vmatprep.subr.bf16.mxu0 0
        %5865 = vmatpush1.bf16.msra.mxu0 0
        %5866 = vmatprep.subr.bf16.mxu0 %v2610
        %5867 = vmatpush1.bf16.msra.mxu0 %v2609
        %5868 = vmatprep.subr.bf16.mxu0 %v2606
        %5869 = vmatpush1.bf16.msra.mxu0 %v2605
        %5870 = vmatprep.subr.bf16.mxu0 0
        %5871 = vmatpush2.bf16.msra.mxu0 0
        %5872 = vmatprep.subr.bf16.mxu0 0
        %5873 = vmatpush2.bf16.msra.mxu0 0
        %5874 = vmatprep.subr.bf16.mxu0 0
        %5875 = vmatpush2.bf16.msra.mxu0 0
        %5876 = vmatprep.subr.bf16.mxu0 0
        %5877 = vmatpush2.bf16.msra.mxu0 0
        %5878 = vmatprep.subr.bf16.mxu0 0
        %5879 = vmatpush2.bf16.msra.mxu0 0
        %5880 = vmatprep.subr.bf16.mxu0 0
        %5881 = vmatpush2.bf16.msra.mxu0 0
        %5882 = vmatprep.subr.bf16.mxu0 0
        %5883 = vmatpush2.bf16.msra.mxu0 0
        %5884 = vmatprep.subr.bf16.mxu0 0
        %5885 = vmatpush2.bf16.msra.mxu0 0
        %5886 = vmatprep.mubr.bf16.mxu0 0
        %5887 = vmatmul.mubr.bf16.gmra.mxu0 %v5852
        %v5888 = vpop.f32.mrf.mxu0
        %v5889 = vadd.f32 %v5804, %v5888
        %v5890 = vpop.f32.mrf.mxu0
        %v5891 = vadd.f32 %v5806, %v5890
        %v5892 = vpop.f32.mrf.mxu0
        %v5893 = vpop.f32.mrf.mxu0
        %5894 = vdwg.mxu0
        %5895 = vmatprep.subr.bf16.mxu0 0
        %5896 = vmatpush1.bf16.msra.mxu0 0
        %5897 = vmatprep.subr.bf16.mxu0 0
        %5898 = vmatpush1.bf16.msra.mxu0 0
        %5899 = vmatprep.subr.bf16.mxu0 0
        %5900 = vmatpush1.bf16.msra.mxu0 0
        %5901 = vmatprep.subr.bf16.mxu0 0
        %5902 = vmatpush1.bf16.msra.mxu0 0
        %5903 = vmatprep.subr.bf16.mxu0 0
        %5904 = vmatpush1.bf16.msra.mxu0 0
        %5905 = vmatprep.subr.bf16.mxu0 0
        %5906 = vmatpush1.bf16.msra.mxu0 0
        %5907 = vmatprep.subr.bf16.mxu0 %v2612
        %5908 = vmatpush1.bf16.msra.mxu0 %v2611
        %5909 = vmatprep.subr.bf16.mxu0 %v2608
        %5910 = vmatpush1.bf16.msra.mxu0 %v2607
        %5911 = vmatprep.subr.bf16.mxu0 0
        %5912 = vmatpush2.bf16.msra.mxu0 0
        %5913 = vmatprep.subr.bf16.mxu0 0
        %5914 = vmatpush2.bf16.msra.mxu0 0
        %5915 = vmatprep.subr.bf16.mxu0 0
        %5916 = vmatpush2.bf16.msra.mxu0 0
        %5917 = vmatprep.subr.bf16.mxu0 0
        %5918 = vmatpush2.bf16.msra.mxu0 0
        %5919 = vmatprep.subr.bf16.mxu0 0
        %5920 = vmatpush2.bf16.msra.mxu0 0
        %5921 = vmatprep.subr.bf16.mxu0 0
        %5922 = vmatpush2.bf16.msra.mxu0 0
        %5923 = vmatprep.subr.bf16.mxu0 0
        %5924 = vmatpush2.bf16.msra.mxu0 0
        %5925 = vmatprep.subr.bf16.mxu0 0
        %5926 = vmatpush2.bf16.msra.mxu0 0
        %5927 = vmatprep.mubr.bf16.mxu0 0
        %5928 = vmatmul.mubr.bf16.gmra.mxu0 %v5852
        %v5929 = vpop.f32.mrf.mxu0
        %v5930 = vadd.f32 %v5845, %v5929
        %v5931 = vpop.f32.mrf.mxu0
        %v5932 = vadd.f32 %v5847, %v5931
        %v5933 = vpop.f32.mrf.mxu0
        %v5934 = vpop.f32.mrf.mxu0
        %5935 = vdwg.mxu0
        %v5936 = vadd.f32 %v5889, %v2710
        %v5937 = vadd.f32 %v5891, %v2714
        %v5938 = vadd.f32 %v5930, %v2718
        %v5939 = vadd.f32 %v5932, %v2722
        %v5940 = vxor.u32 %v5936, 2147483648
        %v5941 = vmul.f32 %v5940, 1.442695
        %v5942 = vpow.pop %v5941
        %v5943 = vadd.f32 %v5942, 1.0
        %v5944 = vrcp.pop %v5943
        %v5945 = vmul.f32 1.0, %v5944
        %v5946 = vxor.u32 %v5937, 2147483648
        %v5947 = vmul.f32 %v5946, 1.442695
        %v5948 = vpow.pop %v5947
        %v5949 = vadd.f32 %v5948, 1.0
        %v5950 = vrcp.pop %v5949
        %v5951 = vmul.f32 1.0, %v5950
        %v5952 = vtanh.pop %v5938
        %v5953 = vxor.u32 %v5939, 2147483648
        %v5954 = vmul.f32 %v5953, 1.442695
        %v5955 = vpow.pop %v5954
        %v5956 = vadd.f32 %v5955, 1.0
        %v5957 = vrcp.pop %v5956
        %v5958 = vmul.f32 1.0, %v5957
        %v5959 = vmul.f32 %v5951, %v5573
        %v5960 = vmul.f32 %v5945, %v5952
        %v5961 = vadd.f32 %v5959, %v5960
        %v5962 = vtanh.pop %v5961
        %v5963 = vmul.f32 %v5958, %v5962
        %5964 = vmatprep.subr.bf16.mxu0 0
        %5965 = vmatpush1.bf16.msra.mxu0 0
        %5966 = vmatprep.subr.bf16.mxu0 0
        %5967 = vmatpush1.bf16.msra.mxu0 0
        %5968 = vmatprep.subr.bf16.mxu0 0
        %5969 = vmatpush1.bf16.msra.mxu0 0
        %5970 = vmatprep.subr.bf16.mxu0 0
        %5971 = vmatpush1.bf16.msra.mxu0 0
        %5972 = vmatprep.subr.bf16.mxu0 0
        %5973 = vmatpush1.bf16.msra.mxu0 0
        %5974 = vmatprep.subr.bf16.mxu0 0
        %5975 = vmatpush1.bf16.msra.mxu0 0
        %5976 = vmatprep.subr.bf16.mxu0 0
        %5977 = vmatpush1.bf16.msra.mxu0 %v2107
        %5978 = vmatprep.subr.bf16.mxu0 0
        %5979 = vmatpush1.bf16.msra.mxu0 %v2106
        %5980 = vmatprep.subr.bf16.mxu0 0
        %5981 = vmatpush2.bf16.msra.mxu0 0
        %5982 = vmatprep.subr.bf16.mxu0 0
        %5983 = vmatpush2.bf16.msra.mxu0 0
        %5984 = vmatprep.subr.bf16.mxu0 0
        %5985 = vmatpush2.bf16.msra.mxu0 0
        %5986 = vmatprep.subr.bf16.mxu0 0
        %5987 = vmatpush2.bf16.msra.mxu0 0
        %5988 = vmatprep.subr.bf16.mxu0 0
        %5989 = vmatpush2.bf16.msra.mxu0 0
        %5990 = vmatprep.subr.bf16.mxu0 0
        %5991 = vmatpush2.bf16.msra.mxu0 0
        %5992 = vmatprep.subr.bf16.mxu0 0
        %5993 = vmatpush2.bf16.msra.mxu0 0
        %5994 = vmatprep.subr.bf16.mxu0 0
        %5995 = vmatpush2.bf16.msra.mxu0 0
        %5996 = vmatprep.mubr.bf16.mxu0 0
        %5997 = vmatmul.mubr.bf16.gmra.mxu0 %v5852
        %v5998 = vpop.f32.mrf.mxu0
        %v5999 = vadd.f32 0.0, %v5998
        %v6000 = vpop.f32.mrf.mxu0
        %v6001 = vpop.f32.mrf.mxu0
        %v6002 = vpop.f32.mrf.mxu0
        %6003 = vdwg.mxu0
        %v6005 = vrot.slane %v5999, 7
        %v6007 = vadd.f32 %v1861, %v6005
        %6008 = vmatprep.subr.bf16.mxu0 0
        %6009 = vmatpush1.bf16.msra.mxu0 0
        %6010 = vmatprep.subr.bf16.mxu0 0
        %6011 = vmatpush1.bf16.msra.mxu0 0
        %6012 = vmatprep.subr.bf16.mxu0 0
        %6013 = vmatpush1.bf16.msra.mxu0 0
        %6014 = vmatprep.subr.bf16.mxu0 0
        %6015 = vmatpush1.bf16.msra.mxu0 0
        %6016 = vmatprep.subr.bf16.mxu0 0
        %6017 = vmatpush1.bf16.msra.mxu0 0
        %6018 = vmatprep.subr.bf16.mxu0 0
        %6019 = vmatpush1.bf16.msra.mxu0 0
        %6020 = vmatprep.subr.bf16.mxu0 0
        %6021 = vmatpush1.bf16.msra.mxu0 %v2164
        %6022 = vmatprep.subr.bf16.mxu0 0
        %6023 = vmatpush1.bf16.msra.mxu0 %v2163
        %6024 = vmatprep.subr.bf16.mxu0 0
        %6025 = vmatpush2.bf16.msra.mxu0 0
        %6026 = vmatprep.subr.bf16.mxu0 0
        %6027 = vmatpush2.bf16.msra.mxu0 0
        %6028 = vmatprep.subr.bf16.mxu0 0
        %6029 = vmatpush2.bf16.msra.mxu0 0
        %6030 = vmatprep.subr.bf16.mxu0 0
        %6031 = vmatpush2.bf16.msra.mxu0 0
        %6032 = vmatprep.subr.bf16.mxu0 0
        %6033 = vmatpush2.bf16.msra.mxu0 0
        %6034 = vmatprep.subr.bf16.mxu0 0
        %6035 = vmatpush2.bf16.msra.mxu0 0
        %6036 = vmatprep.subr.bf16.mxu0 0
        %6037 = vmatpush2.bf16.msra.mxu0 0
        %6038 = vmatprep.subr.bf16.mxu0 0
        %6039 = vmatpush2.bf16.msra.mxu0 0
        %6040 = vmatprep.mubr.bf16.mxu0 0
        %6041 = vmatmul.mubr.bf16.gmra.mxu0 %v5852
        %v6042 = vpop.f32.mrf.mxu0
        %v6043 = vadd.f32 0.0, %v6042
        %v6044 = vpop.f32.mrf.mxu0
        %v6045 = vpop.f32.mrf.mxu0
        %v6046 = vpop.f32.mrf.mxu0
        %6047 = vdwg.mxu0
        %v6049 = vrot.slane %v6043, 7
        %v6051 = vadd.f32 %v1919, %v6049
        %6052 = vmatprep.subr.bf16.mxu0 0
        %6053 = vmatpush1.bf16.msra.mxu0 0
        %6054 = vmatprep.subr.bf16.mxu0 0
        %6055 = vmatpush1.bf16.msra.mxu0 0
        %6056 = vmatprep.subr.bf16.mxu0 0
        %6057 = vmatpush1.bf16.msra.mxu0 0
        %6058 = vmatprep.subr.bf16.mxu0 0
        %6059 = vmatpush1.bf16.msra.mxu0 0
        %6060 = vmatprep.subr.bf16.mxu0 0
        %6061 = vmatpush1.bf16.msra.mxu0 0
        %6062 = vmatprep.subr.bf16.mxu0 0
        %6063 = vmatpush1.bf16.msra.mxu0 0
        %6064 = vmatprep.subr.bf16.mxu0 0
        %6065 = vmatpush1.bf16.msra.mxu0 %v2217
        %6066 = vmatprep.subr.bf16.mxu0 0
        %6067 = vmatpush1.bf16.msra.mxu0 %v2216
        %6068 = vmatprep.subr.bf16.mxu0 0
        %6069 = vmatpush2.bf16.msra.mxu0 0
        %6070 = vmatprep.subr.bf16.mxu0 0
        %6071 = vmatpush2.bf16.msra.mxu0 0
        %6072 = vmatprep.subr.bf16.mxu0 0
        %6073 = vmatpush2.bf16.msra.mxu0 0
        %6074 = vmatprep.subr.bf16.mxu0 0
        %6075 = vmatpush2.bf16.msra.mxu0 0
        %6076 = vmatprep.subr.bf16.mxu0 0
        %6077 = vmatpush2.bf16.msra.mxu0 0
        %6078 = vmatprep.subr.bf16.mxu0 0
        %6079 = vmatpush2.bf16.msra.mxu0 0
        %6080 = vmatprep.subr.bf16.mxu0 0
        %6081 = vmatpush2.bf16.msra.mxu0 0
        %6082 = vmatprep.subr.bf16.mxu0 0
        %6083 = vmatpush2.bf16.msra.mxu0 0
        %6084 = vmatprep.mubr.bf16.mxu0 0
        %6085 = vmatmul.mubr.bf16.gmra.mxu0 %v5852
        %v6086 = vpop.f32.mrf.mxu0
        %v6087 = vadd.f32 0.0, %v6086
        %v6088 = vpop.f32.mrf.mxu0
        %v6089 = vpop.f32.mrf.mxu0
        %v6090 = vpop.f32.mrf.mxu0
        %6091 = vdwg.mxu0
        %v6093 = vrot.slane %v6087, 7
        %v6095 = vadd.f32 %v1977, %v6093
        %6096 = vmatprep.subr.bf16.mxu0 0
        %6097 = vmatpush1.bf16.msra.mxu0 0
        %6098 = vmatprep.subr.bf16.mxu0 0
        %6099 = vmatpush1.bf16.msra.mxu0 0
        %6100 = vmatprep.subr.bf16.mxu0 0
        %6101 = vmatpush1.bf16.msra.mxu0 0
        %6102 = vmatprep.subr.bf16.mxu0 0
        %6103 = vmatpush1.bf16.msra.mxu0 0
        %6104 = vmatprep.subr.bf16.mxu0 0
        %6105 = vmatpush1.bf16.msra.mxu0 0
        %6106 = vmatprep.subr.bf16.mxu0 0
        %6107 = vmatpush1.bf16.msra.mxu0 0
        %6108 = vmatprep.subr.bf16.mxu0 0
        %6109 = vmatpush1.bf16.msra.mxu0 %v2270
        %6110 = vmatprep.subr.bf16.mxu0 0
        %6111 = vmatpush1.bf16.msra.mxu0 %v2269
        %6112 = vmatprep.subr.bf16.mxu0 0
        %6113 = vmatpush2.bf16.msra.mxu0 0
        %6114 = vmatprep.subr.bf16.mxu0 0
        %6115 = vmatpush2.bf16.msra.mxu0 0
        %6116 = vmatprep.subr.bf16.mxu0 0
        %6117 = vmatpush2.bf16.msra.mxu0 0
        %6118 = vmatprep.subr.bf16.mxu0 0
        %6119 = vmatpush2.bf16.msra.mxu0 0
        %6120 = vmatprep.subr.bf16.mxu0 0
        %6121 = vmatpush2.bf16.msra.mxu0 0
        %6122 = vmatprep.subr.bf16.mxu0 0
        %6123 = vmatpush2.bf16.msra.mxu0 0
        %6124 = vmatprep.subr.bf16.mxu0 0
        %6125 = vmatpush2.bf16.msra.mxu0 0
        %6126 = vmatprep.subr.bf16.mxu0 0
        %6127 = vmatpush2.bf16.msra.mxu0 0
        %6128 = vmatprep.mubr.bf16.mxu0 0
        %6129 = vmatmul.mubr.bf16.gmra.mxu0 %v5852
        %v6130 = vpop.f32.mrf.mxu0
        %v6131 = vadd.f32 0.0, %v6130
        %v6132 = vpop.f32.mrf.mxu0
        %v6133 = vpop.f32.mrf.mxu0
        %v6134 = vpop.f32.mrf.mxu0
        %6135 = vdwg.mxu0
        %v6137 = vrot.slane %v6131, 7
        %v6139 = vadd.f32 %v2035, %v6137
        %v6140 = vxor.u32 %v6051, 2147483648
        %v6141 = vmul.f32 %v6140, 1.442695
        %v6142 = vpow.pop %v6141
        %v6143 = vadd.f32 %v6142, 1.0
        %v6144 = vrcp.pop %v6143
        %v6145 = vmul.f32 1.0, %v6144
        %v6147 = vrot.slane %v5758, 7
        %v6149 = vmul.f32 %v6145, %v6147
        %v6150 = vxor.u32 %v6007, 2147483648
        %v6151 = vmul.f32 %v6150, 1.442695
        %v6152 = vpow.pop %v6151
        %v6153 = vadd.f32 %v6152, 1.0
        %v6154 = vrcp.pop %v6153
        %v6155 = vmul.f32 1.0, %v6154
        %v6156 = vtanh.pop %v6095
        %v6157 = vmul.f32 %v6155, %v6156
        %v6158 = vadd.f32 %v6149, %v6157
        %v6159 = vxor.u32 %v6139, 2147483648
        %v6160 = vmul.f32 %v6159, 1.442695
        %v6161 = vpow.pop %v6160
        %v6162 = vadd.f32 %v6161, 1.0
        %v6163 = vrcp.pop %v6162
        %v6164 = vmul.f32 1.0, %v6163
        %v6165 = vtanh.pop %v6158
        %v6166 = vmul.f32 %v6164, %v6165
        %v6167 = vpack.c.bf16 %v6166, %v6166
        %v6168 = vpack.c.bf16 %v5963, %v5963
        %6169 = vmatprep.subr.bf16.mxu0 %v2464
        %6170 = vmatpush1.bf16.msra.mxu0 %v2463
        %6171 = vmatprep.subr.bf16.mxu0 %v2460
        %6172 = vmatpush1.bf16.msra.mxu0 %v2459
        %6173 = vmatprep.subr.bf16.mxu0 %v2456
        %6174 = vmatpush1.bf16.msra.mxu0 %v2455
        %6175 = vmatprep.subr.bf16.mxu0 %v2452
        %6176 = vmatpush1.bf16.msra.mxu0 %v2451
        %6177 = vmatprep.subr.bf16.mxu0 %v2448
        %6178 = vmatpush1.bf16.msra.mxu0 %v2447
        %6179 = vmatprep.subr.bf16.mxu0 %v2444
        %6180 = vmatpush1.bf16.msra.mxu0 %v2443
        %6181 = vmatprep.subr.bf16.mxu0 %v2440
        %6182 = vmatpush1.bf16.msra.mxu0 %v2439
        %6183 = vmatprep.subr.bf16.mxu0 %v2436
        %6184 = vmatpush1.bf16.msra.mxu0 %v2435
        %6185 = vmatprep.subr.bf16.mxu0 0
        %6186 = vmatpush2.bf16.msra.mxu0 0
        %6187 = vmatprep.subr.bf16.mxu0 0
        %6188 = vmatpush2.bf16.msra.mxu0 0
        %6189 = vmatprep.subr.bf16.mxu0 0
        %6190 = vmatpush2.bf16.msra.mxu0 0
        %6191 = vmatprep.subr.bf16.mxu0 0
        %6192 = vmatpush2.bf16.msra.mxu0 0
        %6193 = vmatprep.subr.bf16.mxu0 0
        %6194 = vmatpush2.bf16.msra.mxu0 0
        %6195 = vmatprep.subr.bf16.mxu0 0
        %6196 = vmatpush2.bf16.msra.mxu0 0
        %6197 = vmatprep.subr.bf16.mxu0 0
        %6198 = vmatpush2.bf16.msra.mxu0 0
        %6199 = vmatprep.subr.bf16.mxu0 0
        %6200 = vmatpush2.bf16.msra.mxu0 0
        %6201 = vmatprep.mubr.bf16.mxu0 0
        %6202 = vmatmul.mubr.bf16.gmra.mxu0 %v6168
        %v6203 = vpop.f32.mrf.mxu0
        %v6204 = vadd.f32 0.0, %v6203
        %v6205 = vpop.f32.mrf.mxu0
        %v6206 = vadd.f32 0.0, %v6205
        %v6207 = vpop.f32.mrf.mxu0
        %v6208 = vpop.f32.mrf.mxu0
        %6209 = vdwg.mxu0
        %6210 = vmatprep.subr.bf16.mxu0 %v2466
        %6211 = vmatpush1.bf16.msra.mxu0 %v2465
        %6212 = vmatprep.subr.bf16.mxu0 %v2462
        %6213 = vmatpush1.bf16.msra.mxu0 %v2461
        %6214 = vmatprep.subr.bf16.mxu0 %v2458
        %6215 = vmatpush1.bf16.msra.mxu0 %v2457
        %6216 = vmatprep.subr.bf16.mxu0 %v2454
        %6217 = vmatpush1.bf16.msra.mxu0 %v2453
        %6218 = vmatprep.subr.bf16.mxu0 %v2450
        %6219 = vmatpush1.bf16.msra.mxu0 %v2449
        %6220 = vmatprep.subr.bf16.mxu0 %v2446
        %6221 = vmatpush1.bf16.msra.mxu0 %v2445
        %6222 = vmatprep.subr.bf16.mxu0 %v2442
        %6223 = vmatpush1.bf16.msra.mxu0 %v2441
        %6224 = vmatprep.subr.bf16.mxu0 %v2438
        %6225 = vmatpush1.bf16.msra.mxu0 %v2437
        %6226 = vmatprep.subr.bf16.mxu0 0
        %6227 = vmatpush2.bf16.msra.mxu0 0
        %6228 = vmatprep.subr.bf16.mxu0 0
        %6229 = vmatpush2.bf16.msra.mxu0 0
        %6230 = vmatprep.subr.bf16.mxu0 0
        %6231 = vmatpush2.bf16.msra.mxu0 0
        %6232 = vmatprep.subr.bf16.mxu0 0
        %6233 = vmatpush2.bf16.msra.mxu0 0
        %6234 = vmatprep.subr.bf16.mxu0 0
        %6235 = vmatpush2.bf16.msra.mxu0 0
        %6236 = vmatprep.subr.bf16.mxu0 0
        %6237 = vmatpush2.bf16.msra.mxu0 0
        %6238 = vmatprep.subr.bf16.mxu0 0
        %6239 = vmatpush2.bf16.msra.mxu0 0
        %6240 = vmatprep.subr.bf16.mxu0 0
        %6241 = vmatpush2.bf16.msra.mxu0 0
        %6242 = vmatprep.mubr.bf16.mxu0 0
        %6243 = vmatmul.mubr.bf16.gmra.mxu0 %v6168
        %v6244 = vpop.f32.mrf.mxu0
        %v6245 = vadd.f32 0.0, %v6244
        %v6246 = vpop.f32.mrf.mxu0
        %v6247 = vadd.f32 0.0, %v6246
        %v6248 = vpop.f32.mrf.mxu0
        %v6249 = vpop.f32.mrf.mxu0
        %6250 = vdwg.mxu0
        %v6252 = vshrl.u32 %v6167, 16
        %v6255 = vsel %vm2110, %v6252, 0
        %6257 = vmatprep.subr.bf16.mxu0 0
        %6258 = vmatpush1.bf16.msra.mxu0 0
        %6259 = vmatprep.subr.bf16.mxu0 0
        %6260 = vmatpush1.bf16.msra.mxu0 0
        %6261 = vmatprep.subr.bf16.mxu0 0
        %6262 = vmatpush1.bf16.msra.mxu0 0
        %6263 = vmatprep.subr.bf16.mxu0 0
        %6264 = vmatpush1.bf16.msra.mxu0 0
        %6265 = vmatprep.subr.bf16.mxu0 0
        %6266 = vmatpush1.bf16.msra.mxu0 0
        %6267 = vmatprep.subr.bf16.mxu0 0
        %6268 = vmatpush1.bf16.msra.mxu0 0
        %6269 = vmatprep.subr.bf16.mxu0 %v2610
        %6270 = vmatpush1.bf16.msra.mxu0 %v2609
        %6271 = vmatprep.subr.bf16.mxu0 %v2606
        %6272 = vmatpush1.bf16.msra.mxu0 %v2605
        %6273 = vmatprep.subr.bf16.mxu0 0
        %6274 = vmatpush2.bf16.msra.mxu0 0
        %6275 = vmatprep.subr.bf16.mxu0 0
        %6276 = vmatpush2.bf16.msra.mxu0 0
        %6277 = vmatprep.subr.bf16.mxu0 0
        %6278 = vmatpush2.bf16.msra.mxu0 0
        %6279 = vmatprep.subr.bf16.mxu0 0
        %6280 = vmatpush2.bf16.msra.mxu0 0
        %6281 = vmatprep.subr.bf16.mxu0 0
        %6282 = vmatpush2.bf16.msra.mxu0 0
        %6283 = vmatprep.subr.bf16.mxu0 0
        %6284 = vmatpush2.bf16.msra.mxu0 0
        %6285 = vmatprep.subr.bf16.mxu0 0
        %6286 = vmatpush2.bf16.msra.mxu0 0
        %6287 = vmatprep.subr.bf16.mxu0 0
        %6288 = vmatpush2.bf16.msra.mxu0 0
        %6289 = vmatprep.mubr.bf16.mxu0 0
        %6290 = vmatmul.mubr.bf16.gmra.mxu0 %v6255
        %v6291 = vpop.f32.mrf.mxu0
        %v6292 = vadd.f32 %v6204, %v6291
        %v6293 = vpop.f32.mrf.mxu0
        %v6294 = vadd.f32 %v6206, %v6293
        %v6295 = vpop.f32.mrf.mxu0
        %v6296 = vpop.f32.mrf.mxu0
        %6297 = vdwg.mxu0
        %6298 = vmatprep.subr.bf16.mxu0 0
        %6299 = vmatpush1.bf16.msra.mxu0 0
        %6300 = vmatprep.subr.bf16.mxu0 0
        %6301 = vmatpush1.bf16.msra.mxu0 0
        %6302 = vmatprep.subr.bf16.mxu0 0
        %6303 = vmatpush1.bf16.msra.mxu0 0
        %6304 = vmatprep.subr.bf16.mxu0 0
        %6305 = vmatpush1.bf16.msra.mxu0 0
        %6306 = vmatprep.subr.bf16.mxu0 0
        %6307 = vmatpush1.bf16.msra.mxu0 0
        %6308 = vmatprep.subr.bf16.mxu0 0
        %6309 = vmatpush1.bf16.msra.mxu0 0
        %6310 = vmatprep.subr.bf16.mxu0 %v2612
        %6311 = vmatpush1.bf16.msra.mxu0 %v2611
        %6312 = vmatprep.subr.bf16.mxu0 %v2608
        %6313 = vmatpush1.bf16.msra.mxu0 %v2607
        %6314 = vmatprep.subr.bf16.mxu0 0
        %6315 = vmatpush2.bf16.msra.mxu0 0
        %6316 = vmatprep.subr.bf16.mxu0 0
        %6317 = vmatpush2.bf16.msra.mxu0 0
        %6318 = vmatprep.subr.bf16.mxu0 0
        %6319 = vmatpush2.bf16.msra.mxu0 0
        %6320 = vmatprep.subr.bf16.mxu0 0
        %6321 = vmatpush2.bf16.msra.mxu0 0
        %6322 = vmatprep.subr.bf16.mxu0 0
        %6323 = vmatpush2.bf16.msra.mxu0 0
        %6324 = vmatprep.subr.bf16.mxu0 0
        %6325 = vmatpush2.bf16.msra.mxu0 0
        %6326 = vmatprep.subr.bf16.mxu0 0
        %6327 = vmatpush2.bf16.msra.mxu0 0
        %6328 = vmatprep.subr.bf16.mxu0 0
        %6329 = vmatpush2.bf16.msra.mxu0 0
        %6330 = vmatprep.mubr.bf16.mxu0 0
        %6331 = vmatmul.mubr.bf16.gmra.mxu0 %v6255
        %v6332 = vpop.f32.mrf.mxu0
        %v6333 = vadd.f32 %v6245, %v6332
        %v6334 = vpop.f32.mrf.mxu0
        %v6335 = vadd.f32 %v6247, %v6334
        %v6336 = vpop.f32.mrf.mxu0
        %v6337 = vpop.f32.mrf.mxu0
        %6338 = vdwg.mxu0
        %v6339 = vadd.f32 %v6292, %v2710
        %v6340 = vadd.f32 %v6294, %v2714
        %v6341 = vadd.f32 %v6333, %v2718
        %v6342 = vadd.f32 %v6335, %v2722
        %v6343 = vxor.u32 %v6339, 2147483648
        %v6344 = vmul.f32 %v6343, 1.442695
        %v6345 = vpow.pop %v6344
        %v6346 = vadd.f32 %v6345, 1.0
        %v6347 = vrcp.pop %v6346
        %v6348 = vmul.f32 1.0, %v6347
        %v6349 = vxor.u32 %v6340, 2147483648
        %v6350 = vmul.f32 %v6349, 1.442695
        %v6351 = vpow.pop %v6350
        %v6352 = vadd.f32 %v6351, 1.0
        %v6353 = vrcp.pop %v6352
        %v6354 = vmul.f32 1.0, %v6353
        %v6355 = vtanh.pop %v6341
        %v6356 = vxor.u32 %v6342, 2147483648
        %v6357 = vmul.f32 %v6356, 1.442695
        %v6358 = vpow.pop %v6357
        %v6359 = vadd.f32 %v6358, 1.0
        %v6360 = vrcp.pop %v6359
        %v6361 = vmul.f32 1.0, %v6360
        %v6362 = vmul.f32 %v6354, %v5961
        %v6363 = vmul.f32 %v6348, %v6355
        %v6364 = vadd.f32 %v6362, %v6363
        %v6365 = vtanh.pop %v6364
        %v6366 = vmul.f32 %v6361, %v6365
        %6367 = vmatprep.subr.bf16.mxu0 0
        %6368 = vmatpush1.bf16.msra.mxu0 0
        %6369 = vmatprep.subr.bf16.mxu0 0
        %6370 = vmatpush1.bf16.msra.mxu0 0
        %6371 = vmatprep.subr.bf16.mxu0 0
        %6372 = vmatpush1.bf16.msra.mxu0 0
        %6373 = vmatprep.subr.bf16.mxu0 0
        %6374 = vmatpush1.bf16.msra.mxu0 0
        %6375 = vmatprep.subr.bf16.mxu0 0
        %6376 = vmatpush1.bf16.msra.mxu0 0
        %6377 = vmatprep.subr.bf16.mxu0 0
        %6378 = vmatpush1.bf16.msra.mxu0 0
        %6379 = vmatprep.subr.bf16.mxu0 0
        %6380 = vmatpush1.bf16.msra.mxu0 %v2107
        %6381 = vmatprep.subr.bf16.mxu0 0
        %6382 = vmatpush1.bf16.msra.mxu0 %v2106
        %6383 = vmatprep.subr.bf16.mxu0 0
        %6384 = vmatpush2.bf16.msra.mxu0 0
        %6385 = vmatprep.subr.bf16.mxu0 0
        %6386 = vmatpush2.bf16.msra.mxu0 0
        %6387 = vmatprep.subr.bf16.mxu0 0
        %6388 = vmatpush2.bf16.msra.mxu0 0
        %6389 = vmatprep.subr.bf16.mxu0 0
        %6390 = vmatpush2.bf16.msra.mxu0 0
        %6391 = vmatprep.subr.bf16.mxu0 0
        %6392 = vmatpush2.bf16.msra.mxu0 0
        %6393 = vmatprep.subr.bf16.mxu0 0
        %6394 = vmatpush2.bf16.msra.mxu0 0
        %6395 = vmatprep.subr.bf16.mxu0 0
        %6396 = vmatpush2.bf16.msra.mxu0 0
        %6397 = vmatprep.subr.bf16.mxu0 0
        %6398 = vmatpush2.bf16.msra.mxu0 0
        %6399 = vmatprep.mubr.bf16.mxu0 0
        %6400 = vmatmul.mubr.bf16.gmra.mxu0 %v6255
        %v6401 = vpop.f32.mrf.mxu0
        %v6402 = vadd.f32 0.0, %v6401
        %v6403 = vpop.f32.mrf.mxu0
        %v6404 = vpop.f32.mrf.mxu0
        %v6405 = vpop.f32.mrf.mxu0
        %6406 = vdwg.mxu0
        %v6408 = vrot.slane %v6402, 6
        %v6410 = vadd.f32 %v1861, %v6408
        %6411 = vmatprep.subr.bf16.mxu0 0
        %6412 = vmatpush1.bf16.msra.mxu0 0
        %6413 = vmatprep.subr.bf16.mxu0 0
        %6414 = vmatpush1.bf16.msra.mxu0 0
        %6415 = vmatprep.subr.bf16.mxu0 0
        %6416 = vmatpush1.bf16.msra.mxu0 0
        %6417 = vmatprep.subr.bf16.mxu0 0
        %6418 = vmatpush1.bf16.msra.mxu0 0
        %6419 = vmatprep.subr.bf16.mxu0 0
        %6420 = vmatpush1.bf16.msra.mxu0 0
        %6421 = vmatprep.subr.bf16.mxu0 0
        %6422 = vmatpush1.bf16.msra.mxu0 0
        %6423 = vmatprep.subr.bf16.mxu0 0
        %6424 = vmatpush1.bf16.msra.mxu0 %v2164
        %6425 = vmatprep.subr.bf16.mxu0 0
        %6426 = vmatpush1.bf16.msra.mxu0 %v2163
        %6427 = vmatprep.subr.bf16.mxu0 0
        %6428 = vmatpush2.bf16.msra.mxu0 0
        %6429 = vmatprep.subr.bf16.mxu0 0
        %6430 = vmatpush2.bf16.msra.mxu0 0
        %6431 = vmatprep.subr.bf16.mxu0 0
        %6432 = vmatpush2.bf16.msra.mxu0 0
        %6433 = vmatprep.subr.bf16.mxu0 0
        %6434 = vmatpush2.bf16.msra.mxu0 0
        %6435 = vmatprep.subr.bf16.mxu0 0
        %6436 = vmatpush2.bf16.msra.mxu0 0
        %6437 = vmatprep.subr.bf16.mxu0 0
        %6438 = vmatpush2.bf16.msra.mxu0 0
        %6439 = vmatprep.subr.bf16.mxu0 0
        %6440 = vmatpush2.bf16.msra.mxu0 0
        %6441 = vmatprep.subr.bf16.mxu0 0
        %6442 = vmatpush2.bf16.msra.mxu0 0
        %6443 = vmatprep.mubr.bf16.mxu0 0
        %6444 = vmatmul.mubr.bf16.gmra.mxu0 %v6255
        %v6445 = vpop.f32.mrf.mxu0
        %v6446 = vadd.f32 0.0, %v6445
        %v6447 = vpop.f32.mrf.mxu0
        %v6448 = vpop.f32.mrf.mxu0
        %v6449 = vpop.f32.mrf.mxu0
        %6450 = vdwg.mxu0
        %v6452 = vrot.slane %v6446, 6
        %v6454 = vadd.f32 %v1919, %v6452
        %6455 = vmatprep.subr.bf16.mxu0 0
        %6456 = vmatpush1.bf16.msra.mxu0 0
        %6457 = vmatprep.subr.bf16.mxu0 0
        %6458 = vmatpush1.bf16.msra.mxu0 0
        %6459 = vmatprep.subr.bf16.mxu0 0
        %6460 = vmatpush1.bf16.msra.mxu0 0
        %6461 = vmatprep.subr.bf16.mxu0 0
        %6462 = vmatpush1.bf16.msra.mxu0 0
        %6463 = vmatprep.subr.bf16.mxu0 0
        %6464 = vmatpush1.bf16.msra.mxu0 0
        %6465 = vmatprep.subr.bf16.mxu0 0
        %6466 = vmatpush1.bf16.msra.mxu0 0
        %6467 = vmatprep.subr.bf16.mxu0 0
        %6468 = vmatpush1.bf16.msra.mxu0 %v2217
        %6469 = vmatprep.subr.bf16.mxu0 0
        %6470 = vmatpush1.bf16.msra.mxu0 %v2216
        %6471 = vmatprep.subr.bf16.mxu0 0
        %6472 = vmatpush2.bf16.msra.mxu0 0
        %6473 = vmatprep.subr.bf16.mxu0 0
        %6474 = vmatpush2.bf16.msra.mxu0 0
        %6475 = vmatprep.subr.bf16.mxu0 0
        %6476 = vmatpush2.bf16.msra.mxu0 0
        %6477 = vmatprep.subr.bf16.mxu0 0
        %6478 = vmatpush2.bf16.msra.mxu0 0
        %6479 = vmatprep.subr.bf16.mxu0 0
        %6480 = vmatpush2.bf16.msra.mxu0 0
        %6481 = vmatprep.subr.bf16.mxu0 0
        %6482 = vmatpush2.bf16.msra.mxu0 0
        %6483 = vmatprep.subr.bf16.mxu0 0
        %6484 = vmatpush2.bf16.msra.mxu0 0
        %6485 = vmatprep.subr.bf16.mxu0 0
        %6486 = vmatpush2.bf16.msra.mxu0 0
        %6487 = vmatprep.mubr.bf16.mxu0 0
        %6488 = vmatmul.mubr.bf16.gmra.mxu0 %v6255
        %v6489 = vpop.f32.mrf.mxu0
        %v6490 = vadd.f32 0.0, %v6489
        %v6491 = vpop.f32.mrf.mxu0
        %v6492 = vpop.f32.mrf.mxu0
        %v6493 = vpop.f32.mrf.mxu0
        %6494 = vdwg.mxu0
        %v6496 = vrot.slane %v6490, 6
        %v6498 = vadd.f32 %v1977, %v6496
        %6499 = vmatprep.subr.bf16.mxu0 0
        %6500 = vmatpush1.bf16.msra.mxu0 0
        %6501 = vmatprep.subr.bf16.mxu0 0
        %6502 = vmatpush1.bf16.msra.mxu0 0
        %6503 = vmatprep.subr.bf16.mxu0 0
        %6504 = vmatpush1.bf16.msra.mxu0 0
        %6505 = vmatprep.subr.bf16.mxu0 0
        %6506 = vmatpush1.bf16.msra.mxu0 0
        %6507 = vmatprep.subr.bf16.mxu0 0
        %6508 = vmatpush1.bf16.msra.mxu0 0
        %6509 = vmatprep.subr.bf16.mxu0 0
        %6510 = vmatpush1.bf16.msra.mxu0 0
        %6511 = vmatprep.subr.bf16.mxu0 0
        %6512 = vmatpush1.bf16.msra.mxu0 %v2270
        %6513 = vmatprep.subr.bf16.mxu0 0
        %6514 = vmatpush1.bf16.msra.mxu0 %v2269
        %6515 = vmatprep.subr.bf16.mxu0 0
        %6516 = vmatpush2.bf16.msra.mxu0 0
        %6517 = vmatprep.subr.bf16.mxu0 0
        %6518 = vmatpush2.bf16.msra.mxu0 0
        %6519 = vmatprep.subr.bf16.mxu0 0
        %6520 = vmatpush2.bf16.msra.mxu0 0
        %6521 = vmatprep.subr.bf16.mxu0 0
        %6522 = vmatpush2.bf16.msra.mxu0 0
        %6523 = vmatprep.subr.bf16.mxu0 0
        %6524 = vmatpush2.bf16.msra.mxu0 0
        %6525 = vmatprep.subr.bf16.mxu0 0
        %6526 = vmatpush2.bf16.msra.mxu0 0
        %6527 = vmatprep.subr.bf16.mxu0 0
        %6528 = vmatpush2.bf16.msra.mxu0 0
        %6529 = vmatprep.subr.bf16.mxu0 0
        %6530 = vmatpush2.bf16.msra.mxu0 0
        %6531 = vmatprep.mubr.bf16.mxu0 0
        %6532 = vmatmul.mubr.bf16.gmra.mxu0 %v6255
        %v6533 = vpop.f32.mrf.mxu0
        %v6534 = vadd.f32 0.0, %v6533
        %v6535 = vpop.f32.mrf.mxu0
        %v6536 = vpop.f32.mrf.mxu0
        %v6537 = vpop.f32.mrf.mxu0
        %6538 = vdwg.mxu0
        %v6540 = vrot.slane %v6534, 6
        %v6542 = vadd.f32 %v2035, %v6540
        %v6543 = vxor.u32 %v6454, 2147483648
        %v6544 = vmul.f32 %v6543, 1.442695
        %v6545 = vpow.pop %v6544
        %v6546 = vadd.f32 %v6545, 1.0
        %v6547 = vrcp.pop %v6546
        %v6548 = vmul.f32 1.0, %v6547
        %v6550 = vrot.slane %v6158, 7
        %v6552 = vmul.f32 %v6548, %v6550
        %v6553 = vxor.u32 %v6410, 2147483648
        %v6554 = vmul.f32 %v6553, 1.442695
        %v6555 = vpow.pop %v6554
        %v6556 = vadd.f32 %v6555, 1.0
        %v6557 = vrcp.pop %v6556
        %v6558 = vmul.f32 1.0, %v6557
        %v6559 = vtanh.pop %v6498
        %v6560 = vmul.f32 %v6558, %v6559
        %v6561 = vadd.f32 %v6552, %v6560
        %v6562 = vxor.u32 %v6542, 2147483648
        %v6563 = vmul.f32 %v6562, 1.442695
        %v6564 = vpow.pop %v6563
        %v6565 = vadd.f32 %v6564, 1.0
        %v6566 = vrcp.pop %v6565
        %v6567 = vmul.f32 1.0, %v6566
        %v6568 = vtanh.pop %v6561
        %v6569 = vmul.f32 %v6567, %v6568
        %v6570 = vpack.c.bf16 %v6569, %v6569
        %v6571 = vpack.c.bf16 %v6366, %v6366
        %6572 = vmatprep.subr.bf16.mxu0 %v2464
        %6573 = vmatpush1.bf16.msra.mxu0 %v2463
        %6574 = vmatprep.subr.bf16.mxu0 %v2460
        %6575 = vmatpush1.bf16.msra.mxu0 %v2459
        %6576 = vmatprep.subr.bf16.mxu0 %v2456
        %6577 = vmatpush1.bf16.msra.mxu0 %v2455
        %6578 = vmatprep.subr.bf16.mxu0 %v2452
        %6579 = vmatpush1.bf16.msra.mxu0 %v2451
        %6580 = vmatprep.subr.bf16.mxu0 %v2448
        %6581 = vmatpush1.bf16.msra.mxu0 %v2447
        %6582 = vmatprep.subr.bf16.mxu0 %v2444
        %6583 = vmatpush1.bf16.msra.mxu0 %v2443
        %6584 = vmatprep.subr.bf16.mxu0 %v2440
        %6585 = vmatpush1.bf16.msra.mxu0 %v2439
        %6586 = vmatprep.subr.bf16.mxu0 %v2436
        %6587 = vmatpush1.bf16.msra.mxu0 %v2435
        %6588 = vmatprep.subr.bf16.mxu0 0
        %6589 = vmatpush2.bf16.msra.mxu0 0
        %6590 = vmatprep.subr.bf16.mxu0 0
        %6591 = vmatpush2.bf16.msra.mxu0 0
        %6592 = vmatprep.subr.bf16.mxu0 0
        %6593 = vmatpush2.bf16.msra.mxu0 0
        %6594 = vmatprep.subr.bf16.mxu0 0
        %6595 = vmatpush2.bf16.msra.mxu0 0
        %6596 = vmatprep.subr.bf16.mxu0 0
        %6597 = vmatpush2.bf16.msra.mxu0 0
        %6598 = vmatprep.subr.bf16.mxu0 0
        %6599 = vmatpush2.bf16.msra.mxu0 0
        %6600 = vmatprep.subr.bf16.mxu0 0
        %6601 = vmatpush2.bf16.msra.mxu0 0
        %6602 = vmatprep.subr.bf16.mxu0 0
        %6603 = vmatpush2.bf16.msra.mxu0 0
        %6604 = vmatprep.mubr.bf16.mxu0 0
        %6605 = vmatmul.mubr.bf16.gmra.mxu0 %v6571
        %v6606 = vpop.f32.mrf.mxu0
        %v6607 = vadd.f32 0.0, %v6606
        %v6608 = vpop.f32.mrf.mxu0
        %v6609 = vadd.f32 0.0, %v6608
        %v6610 = vpop.f32.mrf.mxu0
        %v6611 = vpop.f32.mrf.mxu0
        %6612 = vdwg.mxu0
        %6613 = vmatprep.subr.bf16.mxu0 %v2466
        %6614 = vmatpush1.bf16.msra.mxu0 %v2465
        %6615 = vmatprep.subr.bf16.mxu0 %v2462
        %6616 = vmatpush1.bf16.msra.mxu0 %v2461
        %6617 = vmatprep.subr.bf16.mxu0 %v2458
        %6618 = vmatpush1.bf16.msra.mxu0 %v2457
        %6619 = vmatprep.subr.bf16.mxu0 %v2454
        %6620 = vmatpush1.bf16.msra.mxu0 %v2453
        %6621 = vmatprep.subr.bf16.mxu0 %v2450
        %6622 = vmatpush1.bf16.msra.mxu0 %v2449
        %6623 = vmatprep.subr.bf16.mxu0 %v2446
        %6624 = vmatpush1.bf16.msra.mxu0 %v2445
        %6625 = vmatprep.subr.bf16.mxu0 %v2442
        %6626 = vmatpush1.bf16.msra.mxu0 %v2441
        %6627 = vmatprep.subr.bf16.mxu0 %v2438
        %6628 = vmatpush1.bf16.msra.mxu0 %v2437
        %6629 = vmatprep.subr.bf16.mxu0 0
        %6630 = vmatpush2.bf16.msra.mxu0 0
        %6631 = vmatprep.subr.bf16.mxu0 0
        %6632 = vmatpush2.bf16.msra.mxu0 0
        %6633 = vmatprep.subr.bf16.mxu0 0
        %6634 = vmatpush2.bf16.msra.mxu0 0
        %6635 = vmatprep.subr.bf16.mxu0 0
        %6636 = vmatpush2.bf16.msra.mxu0 0
        %6637 = vmatprep.subr.bf16.mxu0 0
        %6638 = vmatpush2.bf16.msra.mxu0 0
        %6639 = vmatprep.subr.bf16.mxu0 0
        %6640 = vmatpush2.bf16.msra.mxu0 0
        %6641 = vmatprep.subr.bf16.mxu0 0
        %6642 = vmatpush2.bf16.msra.mxu0 0
        %6643 = vmatprep.subr.bf16.mxu0 0
        %6644 = vmatpush2.bf16.msra.mxu0 0
        %6645 = vmatprep.mubr.bf16.mxu0 0
        %6646 = vmatmul.mubr.bf16.gmra.mxu0 %v6571
        %v6647 = vpop.f32.mrf.mxu0
        %v6648 = vadd.f32 0.0, %v6647
        %v6649 = vpop.f32.mrf.mxu0
        %v6650 = vadd.f32 0.0, %v6649
        %v6651 = vpop.f32.mrf.mxu0
        %v6652 = vpop.f32.mrf.mxu0
        %6653 = vdwg.mxu0
        %v6655 = vrot.slane %v6570, 1
        %v6657 = vsel %vm2110, %v6655, 0
        %6659 = vmatprep.subr.bf16.mxu0 0
        %6660 = vmatpush1.bf16.msra.mxu0 0
        %6661 = vmatprep.subr.bf16.mxu0 0
        %6662 = vmatpush1.bf16.msra.mxu0 0
        %6663 = vmatprep.subr.bf16.mxu0 0
        %6664 = vmatpush1.bf16.msra.mxu0 0
        %6665 = vmatprep.subr.bf16.mxu0 0
        %6666 = vmatpush1.bf16.msra.mxu0 0
        %6667 = vmatprep.subr.bf16.mxu0 0
        %6668 = vmatpush1.bf16.msra.mxu0 0
        %6669 = vmatprep.subr.bf16.mxu0 0
        %6670 = vmatpush1.bf16.msra.mxu0 0
        %6671 = vmatprep.subr.bf16.mxu0 %v2610
        %6672 = vmatpush1.bf16.msra.mxu0 %v2609
        %6673 = vmatprep.subr.bf16.mxu0 %v2606
        %6674 = vmatpush1.bf16.msra.mxu0 %v2605
        %6675 = vmatprep.subr.bf16.mxu0 0
        %6676 = vmatpush2.bf16.msra.mxu0 0
        %6677 = vmatprep.subr.bf16.mxu0 0
        %6678 = vmatpush2.bf16.msra.mxu0 0
        %6679 = vmatprep.subr.bf16.mxu0 0
        %6680 = vmatpush2.bf16.msra.mxu0 0
        %6681 = vmatprep.subr.bf16.mxu0 0
        %6682 = vmatpush2.bf16.msra.mxu0 0
        %6683 = vmatprep.subr.bf16.mxu0 0
        %6684 = vmatpush2.bf16.msra.mxu0 0
        %6685 = vmatprep.subr.bf16.mxu0 0
        %6686 = vmatpush2.bf16.msra.mxu0 0
        %6687 = vmatprep.subr.bf16.mxu0 0
        %6688 = vmatpush2.bf16.msra.mxu0 0
        %6689 = vmatprep.subr.bf16.mxu0 0
        %6690 = vmatpush2.bf16.msra.mxu0 0
        %6691 = vmatprep.mubr.bf16.mxu0 0
        %6692 = vmatmul.mubr.bf16.gmra.mxu0 %v6657
        %v6693 = vpop.f32.mrf.mxu0
        %v6694 = vadd.f32 %v6607, %v6693
        %v6695 = vpop.f32.mrf.mxu0
        %v6696 = vadd.f32 %v6609, %v6695
        %v6697 = vpop.f32.mrf.mxu0
        %v6698 = vpop.f32.mrf.mxu0
        %6699 = vdwg.mxu0
        %6700 = vmatprep.subr.bf16.mxu0 0
        %6701 = vmatpush1.bf16.msra.mxu0 0
        %6702 = vmatprep.subr.bf16.mxu0 0
        %6703 = vmatpush1.bf16.msra.mxu0 0
        %6704 = vmatprep.subr.bf16.mxu0 0
        %6705 = vmatpush1.bf16.msra.mxu0 0
        %6706 = vmatprep.subr.bf16.mxu0 0
        %6707 = vmatpush1.bf16.msra.mxu0 0
        %6708 = vmatprep.subr.bf16.mxu0 0
        %6709 = vmatpush1.bf16.msra.mxu0 0
        %6710 = vmatprep.subr.bf16.mxu0 0
        %6711 = vmatpush1.bf16.msra.mxu0 0
        %6712 = vmatprep.subr.bf16.mxu0 %v2612
        %6713 = vmatpush1.bf16.msra.mxu0 %v2611
        %6714 = vmatprep.subr.bf16.mxu0 %v2608
        %6715 = vmatpush1.bf16.msra.mxu0 %v2607
        %6716 = vmatprep.subr.bf16.mxu0 0
        %6717 = vmatpush2.bf16.msra.mxu0 0
        %6718 = vmatprep.subr.bf16.mxu0 0
        %6719 = vmatpush2.bf16.msra.mxu0 0
        %6720 = vmatprep.subr.bf16.mxu0 0
        %6721 = vmatpush2.bf16.msra.mxu0 0
        %6722 = vmatprep.subr.bf16.mxu0 0
        %6723 = vmatpush2.bf16.msra.mxu0 0
        %6724 = vmatprep.subr.bf16.mxu0 0
        %6725 = vmatpush2.bf16.msra.mxu0 0
        %6726 = vmatprep.subr.bf16.mxu0 0
        %6727 = vmatpush2.bf16.msra.mxu0 0
        %6728 = vmatprep.subr.bf16.mxu0 0
        %6729 = vmatpush2.bf16.msra.mxu0 0
        %6730 = vmatprep.subr.bf16.mxu0 0
        %6731 = vmatpush2.bf16.msra.mxu0 0
        %6732 = vmatprep.mubr.bf16.mxu0 0
        %6733 = vmatmul.mubr.bf16.gmra.mxu0 %v6657
        %v6734 = vpop.f32.mrf.mxu0
        %v6735 = vadd.f32 %v6648, %v6734
        %v6736 = vpop.f32.mrf.mxu0
        %v6737 = vadd.f32 %v6650, %v6736
        %v6738 = vpop.f32.mrf.mxu0
        %v6739 = vpop.f32.mrf.mxu0
        %6740 = vdwg.mxu0
        %v6741 = vadd.f32 %v6694, %v2710
        %v6742 = vadd.f32 %v6696, %v2714
        %v6743 = vadd.f32 %v6735, %v2718
        %v6744 = vadd.f32 %v6737, %v2722
        %v6745 = vxor.u32 %v6741, 2147483648
        %v6746 = vmul.f32 %v6745, 1.442695
        %v6747 = vpow.pop %v6746
        %v6748 = vadd.f32 %v6747, 1.0
        %v6749 = vrcp.pop %v6748
        %v6750 = vmul.f32 1.0, %v6749
        %v6751 = vxor.u32 %v6742, 2147483648
        %v6752 = vmul.f32 %v6751, 1.442695
        %v6753 = vpow.pop %v6752
        %v6754 = vadd.f32 %v6753, 1.0
        %v6755 = vrcp.pop %v6754
        %v6756 = vmul.f32 1.0, %v6755
        %v6757 = vtanh.pop %v6743
        %v6758 = vxor.u32 %v6744, 2147483648
        %v6759 = vmul.f32 %v6758, 1.442695
        %v6760 = vpow.pop %v6759
        %v6761 = vadd.f32 %v6760, 1.0
        %v6762 = vrcp.pop %v6761
        %v6763 = vmul.f32 1.0, %v6762
        %v6764 = vmul.f32 %v6756, %v6364
        %v6765 = vmul.f32 %v6750, %v6757
        %v6766 = vadd.f32 %v6764, %v6765
        %v6767 = vtanh.pop %v6766
        %v6768 = vmul.f32 %v6763, %v6767
        %6769 = vmatprep.subr.bf16.mxu0 0
        %6770 = vmatpush1.bf16.msra.mxu0 0
        %6771 = vmatprep.subr.bf16.mxu0 0
        %6772 = vmatpush1.bf16.msra.mxu0 0
        %6773 = vmatprep.subr.bf16.mxu0 0
        %6774 = vmatpush1.bf16.msra.mxu0 0
        %6775 = vmatprep.subr.bf16.mxu0 0
        %6776 = vmatpush1.bf16.msra.mxu0 0
        %6777 = vmatprep.subr.bf16.mxu0 0
        %6778 = vmatpush1.bf16.msra.mxu0 0
        %6779 = vmatprep.subr.bf16.mxu0 0
        %6780 = vmatpush1.bf16.msra.mxu0 0
        %6781 = vmatprep.subr.bf16.mxu0 0
        %6782 = vmatpush1.bf16.msra.mxu0 %v2107
        %6783 = vmatprep.subr.bf16.mxu0 0
        %6784 = vmatpush1.bf16.msra.mxu0 %v2106
        %6785 = vmatprep.subr.bf16.mxu0 0
        %6786 = vmatpush2.bf16.msra.mxu0 0
        %6787 = vmatprep.subr.bf16.mxu0 0
        %6788 = vmatpush2.bf16.msra.mxu0 0
        %6789 = vmatprep.subr.bf16.mxu0 0
        %6790 = vmatpush2.bf16.msra.mxu0 0
        %6791 = vmatprep.subr.bf16.mxu0 0
        %6792 = vmatpush2.bf16.msra.mxu0 0
        %6793 = vmatprep.subr.bf16.mxu0 0
        %6794 = vmatpush2.bf16.msra.mxu0 0
        %6795 = vmatprep.subr.bf16.mxu0 0
        %6796 = vmatpush2.bf16.msra.mxu0 0
        %6797 = vmatprep.subr.bf16.mxu0 0
        %6798 = vmatpush2.bf16.msra.mxu0 0
        %6799 = vmatprep.subr.bf16.mxu0 0
        %6800 = vmatpush2.bf16.msra.mxu0 0
        %6801 = vmatprep.mubr.bf16.mxu0 0
        %6802 = vmatmul.mubr.bf16.gmra.mxu0 %v6657
        %v6803 = vpop.f32.mrf.mxu0
        %v6804 = vadd.f32 0.0, %v6803
        %v6805 = vpop.f32.mrf.mxu0
        %v6806 = vpop.f32.mrf.mxu0
        %v6807 = vpop.f32.mrf.mxu0
        %6808 = vdwg.mxu0
        %v6810 = vrot.slane %v6804, 5
        %v6812 = vadd.f32 %v1861, %v6810
        %6813 = vmatprep.subr.bf16.mxu0 0
        %6814 = vmatpush1.bf16.msra.mxu0 0
        %6815 = vmatprep.subr.bf16.mxu0 0
        %6816 = vmatpush1.bf16.msra.mxu0 0
        %6817 = vmatprep.subr.bf16.mxu0 0
        %6818 = vmatpush1.bf16.msra.mxu0 0
        %6819 = vmatprep.subr.bf16.mxu0 0
        %6820 = vmatpush1.bf16.msra.mxu0 0
        %6821 = vmatprep.subr.bf16.mxu0 0
        %6822 = vmatpush1.bf16.msra.mxu0 0
        %6823 = vmatprep.subr.bf16.mxu0 0
        %6824 = vmatpush1.bf16.msra.mxu0 0
        %6825 = vmatprep.subr.bf16.mxu0 0
        %6826 = vmatpush1.bf16.msra.mxu0 %v2164
        %6827 = vmatprep.subr.bf16.mxu0 0
        %6828 = vmatpush1.bf16.msra.mxu0 %v2163
        %6829 = vmatprep.subr.bf16.mxu0 0
        %6830 = vmatpush2.bf16.msra.mxu0 0
        %6831 = vmatprep.subr.bf16.mxu0 0
        %6832 = vmatpush2.bf16.msra.mxu0 0
        %6833 = vmatprep.subr.bf16.mxu0 0
        %6834 = vmatpush2.bf16.msra.mxu0 0
        %6835 = vmatprep.subr.bf16.mxu0 0
        %6836 = vmatpush2.bf16.msra.mxu0 0
        %6837 = vmatprep.subr.bf16.mxu0 0
        %6838 = vmatpush2.bf16.msra.mxu0 0
        %6839 = vmatprep.subr.bf16.mxu0 0
        %6840 = vmatpush2.bf16.msra.mxu0 0
        %6841 = vmatprep.subr.bf16.mxu0 0
        %6842 = vmatpush2.bf16.msra.mxu0 0
        %6843 = vmatprep.subr.bf16.mxu0 0
        %6844 = vmatpush2.bf16.msra.mxu0 0
        %6845 = vmatprep.mubr.bf16.mxu0 0
        %6846 = vmatmul.mubr.bf16.gmra.mxu0 %v6657
        %v6847 = vpop.f32.mrf.mxu0
        %v6848 = vadd.f32 0.0, %v6847
        %v6849 = vpop.f32.mrf.mxu0
        %v6850 = vpop.f32.mrf.mxu0
        %v6851 = vpop.f32.mrf.mxu0
        %6852 = vdwg.mxu0
        %v6854 = vrot.slane %v6848, 5
        %v6856 = vadd.f32 %v1919, %v6854
        %6857 = vmatprep.subr.bf16.mxu0 0
        %6858 = vmatpush1.bf16.msra.mxu0 0
        %6859 = vmatprep.subr.bf16.mxu0 0
        %6860 = vmatpush1.bf16.msra.mxu0 0
        %6861 = vmatprep.subr.bf16.mxu0 0
        %6862 = vmatpush1.bf16.msra.mxu0 0
        %6863 = vmatprep.subr.bf16.mxu0 0
        %6864 = vmatpush1.bf16.msra.mxu0 0
        %6865 = vmatprep.subr.bf16.mxu0 0
        %6866 = vmatpush1.bf16.msra.mxu0 0
        %6867 = vmatprep.subr.bf16.mxu0 0
        %6868 = vmatpush1.bf16.msra.mxu0 0
        %6869 = vmatprep.subr.bf16.mxu0 0
        %6870 = vmatpush1.bf16.msra.mxu0 %v2217
        %6871 = vmatprep.subr.bf16.mxu0 0
        %6872 = vmatpush1.bf16.msra.mxu0 %v2216
        %6873 = vmatprep.subr.bf16.mxu0 0
        %6874 = vmatpush2.bf16.msra.mxu0 0
        %6875 = vmatprep.subr.bf16.mxu0 0
        %6876 = vmatpush2.bf16.msra.mxu0 0
        %6877 = vmatprep.subr.bf16.mxu0 0
        %6878 = vmatpush2.bf16.msra.mxu0 0
        %6879 = vmatprep.subr.bf16.mxu0 0
        %6880 = vmatpush2.bf16.msra.mxu0 0
        %6881 = vmatprep.subr.bf16.mxu0 0
        %6882 = vmatpush2.bf16.msra.mxu0 0
        %6883 = vmatprep.subr.bf16.mxu0 0
        %6884 = vmatpush2.bf16.msra.mxu0 0
        %6885 = vmatprep.subr.bf16.mxu0 0
        %6886 = vmatpush2.bf16.msra.mxu0 0
        %6887 = vmatprep.subr.bf16.mxu0 0
        %6888 = vmatpush2.bf16.msra.mxu0 0
        %6889 = vmatprep.mubr.bf16.mxu0 0
        %6890 = vmatmul.mubr.bf16.gmra.mxu0 %v6657
        %v6891 = vpop.f32.mrf.mxu0
        %v6892 = vadd.f32 0.0, %v6891
        %v6893 = vpop.f32.mrf.mxu0
        %v6894 = vpop.f32.mrf.mxu0
        %v6895 = vpop.f32.mrf.mxu0
        %6896 = vdwg.mxu0
        %v6898 = vrot.slane %v6892, 5
        %v6900 = vadd.f32 %v1977, %v6898
        %6901 = vmatprep.subr.bf16.mxu0 0
        %6902 = vmatpush1.bf16.msra.mxu0 0
        %6903 = vmatprep.subr.bf16.mxu0 0
        %6904 = vmatpush1.bf16.msra.mxu0 0
        %6905 = vmatprep.subr.bf16.mxu0 0
        %6906 = vmatpush1.bf16.msra.mxu0 0
        %6907 = vmatprep.subr.bf16.mxu0 0
        %6908 = vmatpush1.bf16.msra.mxu0 0
        %6909 = vmatprep.subr.bf16.mxu0 0
        %6910 = vmatpush1.bf16.msra.mxu0 0
        %6911 = vmatprep.subr.bf16.mxu0 0
        %6912 = vmatpush1.bf16.msra.mxu0 0
        %6913 = vmatprep.subr.bf16.mxu0 0
        %6914 = vmatpush1.bf16.msra.mxu0 %v2270
        %6915 = vmatprep.subr.bf16.mxu0 0
        %6916 = vmatpush1.bf16.msra.mxu0 %v2269
        %6917 = vmatprep.subr.bf16.mxu0 0
        %6918 = vmatpush2.bf16.msra.mxu0 0
        %6919 = vmatprep.subr.bf16.mxu0 0
        %6920 = vmatpush2.bf16.msra.mxu0 0
        %6921 = vmatprep.subr.bf16.mxu0 0
        %6922 = vmatpush2.bf16.msra.mxu0 0
        %6923 = vmatprep.subr.bf16.mxu0 0
        %6924 = vmatpush2.bf16.msra.mxu0 0
        %6925 = vmatprep.subr.bf16.mxu0 0
        %6926 = vmatpush2.bf16.msra.mxu0 0
        %6927 = vmatprep.subr.bf16.mxu0 0
        %6928 = vmatpush2.bf16.msra.mxu0 0
        %6929 = vmatprep.subr.bf16.mxu0 0
        %6930 = vmatpush2.bf16.msra.mxu0 0
        %6931 = vmatprep.subr.bf16.mxu0 0
        %6932 = vmatpush2.bf16.msra.mxu0 0
        %6933 = vmatprep.mubr.bf16.mxu0 0
        %6934 = vmatmul.mubr.bf16.gmra.mxu0 %v6657
        %v6935 = vpop.f32.mrf.mxu0
        %v6936 = vadd.f32 0.0, %v6935
        %v6937 = vpop.f32.mrf.mxu0
        %v6938 = vpop.f32.mrf.mxu0
        %v6939 = vpop.f32.mrf.mxu0
        %6940 = vdwg.mxu0
        %v6942 = vrot.slane %v6936, 5
        %v6944 = vadd.f32 %v2035, %v6942
        %v6945 = vxor.u32 %v6856, 2147483648
        %v6946 = vmul.f32 %v6945, 1.442695
        %v6947 = vpow.pop %v6946
        %v6948 = vadd.f32 %v6947, 1.0
        %v6949 = vrcp.pop %v6948
        %v6950 = vmul.f32 1.0, %v6949
        %v6952 = vrot.slane %v6561, 7
        %v6954 = vmul.f32 %v6950, %v6952
        %v6955 = vxor.u32 %v6812, 2147483648
        %v6956 = vmul.f32 %v6955, 1.442695
        %v6957 = vpow.pop %v6956
        %v6958 = vadd.f32 %v6957, 1.0
        %v6959 = vrcp.pop %v6958
        %v6960 = vmul.f32 1.0, %v6959
        %v6961 = vtanh.pop %v6900
        %v6962 = vmul.f32 %v6960, %v6961
        %v6963 = vadd.f32 %v6954, %v6962
        %v6964 = vxor.u32 %v6944, 2147483648
        %v6965 = vmul.f32 %v6964, 1.442695
        %v6966 = vpow.pop %v6965
        %v6967 = vadd.f32 %v6966, 1.0
        %v6968 = vrcp.pop %v6967
        %v6969 = vmul.f32 1.0, %v6968
        %v6970 = vtanh.pop %v6963
        %v6971 = vmul.f32 %v6969, %v6970
        %v6972 = vpack.c.bf16 %v6971, %v6971
        %v6973 = vpack.c.bf16 %v6768, %v6768
        %6974 = vmatprep.subr.bf16.mxu0 %v2464
        %6975 = vmatpush1.bf16.msra.mxu0 %v2463
        %6976 = vmatprep.subr.bf16.mxu0 %v2460
        %6977 = vmatpush1.bf16.msra.mxu0 %v2459
        %6978 = vmatprep.subr.bf16.mxu0 %v2456
        %6979 = vmatpush1.bf16.msra.mxu0 %v2455
        %6980 = vmatprep.subr.bf16.mxu0 %v2452
        %6981 = vmatpush1.bf16.msra.mxu0 %v2451
        %6982 = vmatprep.subr.bf16.mxu0 %v2448
        %6983 = vmatpush1.bf16.msra.mxu0 %v2447
        %6984 = vmatprep.subr.bf16.mxu0 %v2444
        %6985 = vmatpush1.bf16.msra.mxu0 %v2443
        %6986 = vmatprep.subr.bf16.mxu0 %v2440
        %6987 = vmatpush1.bf16.msra.mxu0 %v2439
        %6988 = vmatprep.subr.bf16.mxu0 %v2436
        %6989 = vmatpush1.bf16.msra.mxu0 %v2435
        %6990 = vmatprep.subr.bf16.mxu0 0
        %6991 = vmatpush2.bf16.msra.mxu0 0
        %6992 = vmatprep.subr.bf16.mxu0 0
        %6993 = vmatpush2.bf16.msra.mxu0 0
        %6994 = vmatprep.subr.bf16.mxu0 0
        %6995 = vmatpush2.bf16.msra.mxu0 0
        %6996 = vmatprep.subr.bf16.mxu0 0
        %6997 = vmatpush2.bf16.msra.mxu0 0
        %6998 = vmatprep.subr.bf16.mxu0 0
        %6999 = vmatpush2.bf16.msra.mxu0 0
        %7000 = vmatprep.subr.bf16.mxu0 0
        %7001 = vmatpush2.bf16.msra.mxu0 0
        %7002 = vmatprep.subr.bf16.mxu0 0
        %7003 = vmatpush2.bf16.msra.mxu0 0
        %7004 = vmatprep.subr.bf16.mxu0 0
        %7005 = vmatpush2.bf16.msra.mxu0 0
        %7006 = vmatprep.mubr.bf16.mxu0 0
        %7007 = vmatmul.mubr.bf16.gmra.mxu0 %v6973
        %v7008 = vpop.f32.mrf.mxu0
        %v7009 = vadd.f32 0.0, %v7008
        %v7010 = vpop.f32.mrf.mxu0
        %v7011 = vadd.f32 0.0, %v7010
        %v7012 = vpop.f32.mrf.mxu0
        %v7013 = vpop.f32.mrf.mxu0
        %7014 = vdwg.mxu0
        %7015 = vmatprep.subr.bf16.mxu0 %v2466
        %7016 = vmatpush1.bf16.msra.mxu0 %v2465
        %7017 = vmatprep.subr.bf16.mxu0 %v2462
        %7018 = vmatpush1.bf16.msra.mxu0 %v2461
        %7019 = vmatprep.subr.bf16.mxu0 %v2458
        %7020 = vmatpush1.bf16.msra.mxu0 %v2457
        %7021 = vmatprep.subr.bf16.mxu0 %v2454
        %7022 = vmatpush1.bf16.msra.mxu0 %v2453
        %7023 = vmatprep.subr.bf16.mxu0 %v2450
        %7024 = vmatpush1.bf16.msra.mxu0 %v2449
        %7025 = vmatprep.subr.bf16.mxu0 %v2446
        %7026 = vmatpush1.bf16.msra.mxu0 %v2445
        %7027 = vmatprep.subr.bf16.mxu0 %v2442
        %7028 = vmatpush1.bf16.msra.mxu0 %v2441
        %7029 = vmatprep.subr.bf16.mxu0 %v2438
        %7030 = vmatpush1.bf16.msra.mxu0 %v2437
        %7031 = vmatprep.subr.bf16.mxu0 0
        %7032 = vmatpush2.bf16.msra.mxu0 0
        %7033 = vmatprep.subr.bf16.mxu0 0
        %7034 = vmatpush2.bf16.msra.mxu0 0
        %7035 = vmatprep.subr.bf16.mxu0 0
        %7036 = vmatpush2.bf16.msra.mxu0 0
        %7037 = vmatprep.subr.bf16.mxu0 0
        %7038 = vmatpush2.bf16.msra.mxu0 0
        %7039 = vmatprep.subr.bf16.mxu0 0
        %7040 = vmatpush2.bf16.msra.mxu0 0
        %7041 = vmatprep.subr.bf16.mxu0 0
        %7042 = vmatpush2.bf16.msra.mxu0 0
        %7043 = vmatprep.subr.bf16.mxu0 0
        %7044 = vmatpush2.bf16.msra.mxu0 0
        %7045 = vmatprep.subr.bf16.mxu0 0
        %7046 = vmatpush2.bf16.msra.mxu0 0
        %7047 = vmatprep.mubr.bf16.mxu0 0
        %7048 = vmatmul.mubr.bf16.gmra.mxu0 %v6973
        %v7049 = vpop.f32.mrf.mxu0
        %v7050 = vadd.f32 0.0, %v7049
        %v7051 = vpop.f32.mrf.mxu0
        %v7052 = vadd.f32 0.0, %v7051
        %v7053 = vpop.f32.mrf.mxu0
        %v7054 = vpop.f32.mrf.mxu0
        %7055 = vdwg.mxu0
        %v7057 = vshrl.u32 %v6972, 16
        %v7059 = vrot.slane %v7057, 1
        %v7061 = vsel %vm2110, %v7059, 0
        %7063 = vmatprep.subr.bf16.mxu0 0
        %7064 = vmatpush1.bf16.msra.mxu0 0
        %7065 = vmatprep.subr.bf16.mxu0 0
        %7066 = vmatpush1.bf16.msra.mxu0 0
        %7067 = vmatprep.subr.bf16.mxu0 0
        %7068 = vmatpush1.bf16.msra.mxu0 0
        %7069 = vmatprep.subr.bf16.mxu0 0
        %7070 = vmatpush1.bf16.msra.mxu0 0
        %7071 = vmatprep.subr.bf16.mxu0 0
        %7072 = vmatpush1.bf16.msra.mxu0 0
        %7073 = vmatprep.subr.bf16.mxu0 0
        %7074 = vmatpush1.bf16.msra.mxu0 0
        %7075 = vmatprep.subr.bf16.mxu0 %v2610
        %7076 = vmatpush1.bf16.msra.mxu0 %v2609
        %7077 = vmatprep.subr.bf16.mxu0 %v2606
        %7078 = vmatpush1.bf16.msra.mxu0 %v2605
        %7079 = vmatprep.subr.bf16.mxu0 0
        %7080 = vmatpush2.bf16.msra.mxu0 0
        %7081 = vmatprep.subr.bf16.mxu0 0
        %7082 = vmatpush2.bf16.msra.mxu0 0
        %7083 = vmatprep.subr.bf16.mxu0 0
        %7084 = vmatpush2.bf16.msra.mxu0 0
        %7085 = vmatprep.subr.bf16.mxu0 0
        %7086 = vmatpush2.bf16.msra.mxu0 0
        %7087 = vmatprep.subr.bf16.mxu0 0
        %7088 = vmatpush2.bf16.msra.mxu0 0
        %7089 = vmatprep.subr.bf16.mxu0 0
        %7090 = vmatpush2.bf16.msra.mxu0 0
        %7091 = vmatprep.subr.bf16.mxu0 0
        %7092 = vmatpush2.bf16.msra.mxu0 0
        %7093 = vmatprep.subr.bf16.mxu0 0
        %7094 = vmatpush2.bf16.msra.mxu0 0
        %7095 = vmatprep.mubr.bf16.mxu0 0
        %7096 = vmatmul.mubr.bf16.gmra.mxu0 %v7061
        %v7097 = vpop.f32.mrf.mxu0
        %v7098 = vadd.f32 %v7009, %v7097
        %v7099 = vpop.f32.mrf.mxu0
        %v7100 = vadd.f32 %v7011, %v7099
        %v7101 = vpop.f32.mrf.mxu0
        %v7102 = vpop.f32.mrf.mxu0
        %7103 = vdwg.mxu0
        %7104 = vmatprep.subr.bf16.mxu0 0
        %7105 = vmatpush1.bf16.msra.mxu0 0
        %7106 = vmatprep.subr.bf16.mxu0 0
        %7107 = vmatpush1.bf16.msra.mxu0 0
        %7108 = vmatprep.subr.bf16.mxu0 0
        %7109 = vmatpush1.bf16.msra.mxu0 0
        %7110 = vmatprep.subr.bf16.mxu0 0
        %7111 = vmatpush1.bf16.msra.mxu0 0
        %7112 = vmatprep.subr.bf16.mxu0 0
        %7113 = vmatpush1.bf16.msra.mxu0 0
        %7114 = vmatprep.subr.bf16.mxu0 0
        %7115 = vmatpush1.bf16.msra.mxu0 0
        %7116 = vmatprep.subr.bf16.mxu0 %v2612
        %7117 = vmatpush1.bf16.msra.mxu0 %v2611
        %7118 = vmatprep.subr.bf16.mxu0 %v2608
        %7119 = vmatpush1.bf16.msra.mxu0 %v2607
        %7120 = vmatprep.subr.bf16.mxu0 0
        %7121 = vmatpush2.bf16.msra.mxu0 0
        %7122 = vmatprep.subr.bf16.mxu0 0
        %7123 = vmatpush2.bf16.msra.mxu0 0
        %7124 = vmatprep.subr.bf16.mxu0 0
        %7125 = vmatpush2.bf16.msra.mxu0 0
        %7126 = vmatprep.subr.bf16.mxu0 0
        %7127 = vmatpush2.bf16.msra.mxu0 0
        %7128 = vmatprep.subr.bf16.mxu0 0
        %7129 = vmatpush2.bf16.msra.mxu0 0
        %7130 = vmatprep.subr.bf16.mxu0 0
        %7131 = vmatpush2.bf16.msra.mxu0 0
        %7132 = vmatprep.subr.bf16.mxu0 0
        %7133 = vmatpush2.bf16.msra.mxu0 0
        %7134 = vmatprep.subr.bf16.mxu0 0
        %7135 = vmatpush2.bf16.msra.mxu0 0
        %7136 = vmatprep.mubr.bf16.mxu0 0
        %7137 = vmatmul.mubr.bf16.gmra.mxu0 %v7061
        %v7138 = vpop.f32.mrf.mxu0
        %v7139 = vadd.f32 %v7050, %v7138
        %v7140 = vpop.f32.mrf.mxu0
        %v7141 = vadd.f32 %v7052, %v7140
        %v7142 = vpop.f32.mrf.mxu0
        %v7143 = vpop.f32.mrf.mxu0
        %7144 = vdwg.mxu0
        %v7145 = vadd.f32 %v7098, %v2710
        %v7146 = vadd.f32 %v7100, %v2714
        %v7147 = vadd.f32 %v7139, %v2718
        %v7148 = vadd.f32 %v7141, %v2722
        %v7149 = vxor.u32 %v7145, 2147483648
        %v7150 = vmul.f32 %v7149, 1.442695
        %v7151 = vpow.pop %v7150
        %v7152 = vadd.f32 %v7151, 1.0
        %v7153 = vrcp.pop %v7152
        %v7154 = vmul.f32 1.0, %v7153
        %v7155 = vxor.u32 %v7146, 2147483648
        %v7156 = vmul.f32 %v7155, 1.442695
        %v7157 = vpow.pop %v7156
        %v7158 = vadd.f32 %v7157, 1.0
        %v7159 = vrcp.pop %v7158
        %v7160 = vmul.f32 1.0, %v7159
        %v7161 = vtanh.pop %v7147
        %v7162 = vxor.u32 %v7148, 2147483648
        %v7163 = vmul.f32 %v7162, 1.442695
        %v7164 = vpow.pop %v7163
        %v7165 = vadd.f32 %v7164, 1.0
        %v7166 = vrcp.pop %v7165
        %v7167 = vmul.f32 1.0, %v7166
        %v7168 = vmul.f32 %v7160, %v6766
        %v7169 = vmul.f32 %v7154, %v7161
        %v7170 = vadd.f32 %v7168, %v7169
        %v7171 = vtanh.pop %v7170
        %v7172 = vmul.f32 %v7167, %v7171
        %v7173 = vpack.c.bf16 %v7172, %v7172
        %v7174 = vld [vmem:[%s12] sm:$0xf]
        %v7175 = vld [vmem:[%s12 + $0x4] sm:$0xf]
        %v7176 = vld [vmem:[%s12 + $0x8] sm:$0xf]
        %v7177 = vld [vmem:[%s12 + $0xc] sm:$0xf]
        %v7178 = vld [vmem:[%s12 + $0x10] sm:$0xf]
        %v7179 = vld [vmem:[%s12 + $0x14] sm:$0xf]
        %v7180 = vld [vmem:[%s12 + $0x18] sm:$0xf]
        %v7181 = vld [vmem:[%s12 + $0x1c] sm:$0xf]
        %v7182 = vld [vmem:[%s12 + $0x20] sm:$0xf]
        %v7183 = vld [vmem:[%s12 + $0x24] sm:$0xf]
        %v7184 = vld [vmem:[%s12 + $0x28] sm:$0xf]
        %v7185 = vld [vmem:[%s12 + $0x2c] sm:$0xf]
        %v7186 = vld [vmem:[%s12 + $0x30] sm:$0xf]
        %v7187 = vld [vmem:[%s12 + $0x34] sm:$0xf]
        %v7188 = vld [vmem:[%s12 + $0x38] sm:$0xf]
        %v7189 = vld [vmem:[%s12 + $0x3c] sm:$0xf]
        %v7190 = vld [vmem:[%s13] sm:$0x1]
        %v7207 = vunpack.c.l.b16 %v7174
        %v7208 = vunpack.c.l.b16 %v7175
        %v7209 = vunpack.c.l.b16 %v7176
        %v7210 = vunpack.c.l.b16 %v7177
        %v7211 = vunpack.c.l.b16 %v7178
        %v7212 = vunpack.c.l.b16 %v7179
        %v7213 = vunpack.c.l.b16 %v7180
        %v7214 = vunpack.c.l.b16 %v7181
        %v7215 = vunpack.c.l.b16 %v7182
        %v7216 = vunpack.c.l.b16 %v7183
        %v7217 = vunpack.c.l.b16 %v7184
        %v7218 = vunpack.c.l.b16 %v7185
        %v7219 = vunpack.c.l.b16 %v7186
        %v7220 = vunpack.c.l.b16 %v7187
        %v7221 = vunpack.c.l.b16 %v7188
        %v7222 = vunpack.c.l.b16 %v7189
        %v7223 = vpack.c.b16 %v7208, %v7207
        %v7224 = vpack.c.b16 %v7210, %v7209
        %v7225 = vpack.c.b16 %v7212, %v7211
        %v7226 = vpack.c.b16 %v7214, %v7213
        %v7227 = vpack.c.b16 %v7216, %v7215
        %v7228 = vpack.c.b16 %v7218, %v7217
        %v7229 = vpack.c.b16 %v7220, %v7219
        %v7230 = vpack.c.b16 %v7222, %v7221
        %7239 = vmatprep.subr.bf16.mxu0 0
        %7240 = vmatpush1.bf16.msra.mxu0 %v7230
        %7241 = vmatprep.subr.bf16.mxu0 0
        %7242 = vmatpush1.bf16.msra.mxu0 %v7229
        %7243 = vmatprep.subr.bf16.mxu0 0
        %7244 = vmatpush1.bf16.msra.mxu0 %v7228
        %7245 = vmatprep.subr.bf16.mxu0 0
        %7246 = vmatpush1.bf16.msra.mxu0 %v7227
        %7247 = vmatprep.subr.bf16.mxu0 0
        %7248 = vmatpush1.bf16.msra.mxu0 %v7226
        %7249 = vmatprep.subr.bf16.mxu0 0
        %7250 = vmatpush1.bf16.msra.mxu0 %v7225
        %7251 = vmatprep.subr.bf16.mxu0 0
        %7252 = vmatpush1.bf16.msra.mxu0 %v7224
        %7253 = vmatprep.subr.bf16.mxu0 0
        %7254 = vmatpush1.bf16.msra.mxu0 %v7223
        %7255 = vmatprep.subr.bf16.mxu0 0
        %7256 = vmatpush2.bf16.msra.mxu0 0
        %7257 = vmatprep.subr.bf16.mxu0 0
        %7258 = vmatpush2.bf16.msra.mxu0 0
        %7259 = vmatprep.subr.bf16.mxu0 0
        %7260 = vmatpush2.bf16.msra.mxu0 0
        %7261 = vmatprep.subr.bf16.mxu0 0
        %7262 = vmatpush2.bf16.msra.mxu0 0
        %7263 = vmatprep.subr.bf16.mxu0 0
        %7264 = vmatpush2.bf16.msra.mxu0 0
        %7265 = vmatprep.subr.bf16.mxu0 0
        %7266 = vmatpush2.bf16.msra.mxu0 0
        %7267 = vmatprep.subr.bf16.mxu0 0
        %7268 = vmatpush2.bf16.msra.mxu0 0
        %7269 = vmatprep.subr.bf16.mxu0 0
        %7270 = vmatpush2.bf16.msra.mxu0 0
        %7271 = vmatprep.mubr.bf16.mxu0 0
        %7272 = vmatmul.mubr.bf16.gmra.mxu0 %v7173
        %v7273 = vpop.f32.mrf.mxu0
        %v7274 = vadd.f32 %v7190, %v7273
        %v7275 = vpop.f32.mrf.mxu0
        %v7276 = vpop.f32.mrf.mxu0
        %v7277 = vpop.f32.mrf.mxu0
        %7278 = vdwg.mxu0
        %vm7279 = vcmask 385024
        %7280 = vst.msk [vmem:[%s553] sm:$0x1] %vm7279, %v7274
        %s7281 = sand.u32 %s345, 1
        %s7282 = scalar_lea.sflag [#allocation4], %s7281
        %s7283 = sand.u32 %s345, 1
        %s7284 = scalar_lea.vmem [#allocation11], %s7283
        // Predicated region
        $region97: #{tpu_custom_call.1} parent=75 // pred_check
          %p7285 = pneg %p355
        $region98: #{tpu_custom_call.1} parent=75 // pred_check_branch
          %7287 = sbr.rel (%p7285) target = $region100
        $region99: #{tpu_custom_call.1} parent=75 // pred_region
          %s7289 = ssub.s32 16, 16
          %7290 = vsyncadd %s7282, %s7289
          %s7291 = smul.addr %s33, 16
          %s7292 = scalar_lea.hbm %s14, %s7291
          %s7294 = sshll.u32 %s7284, 4
          %s7295 = int_to_ptr.vmem [resolvable:$true] %s7294
          %7297 = dma.vmem_to_hbm [thread:$0]  %s7295, 16, %s7292, %s7282
        $region100: #{tpu_custom_call.1} parent=75 // pred_fallthru
          _
      $region76: #{tpu_custom_call.1} parent=5 // pred_fallthru
        _
      %p7298 = scmp.le.s32.totalorder 2, %s28
      // Predicated region
      $region101: #{tpu_custom_call.1} parent=5 // pred_check
        %p7299 = pneg %p7298
      $region102: #{tpu_custom_call.1} parent=5 // pred_check_branch
        %7301 = sbr.rel (%p7299) target = $region104
      $region103: #{tpu_custom_call.1} parent=5 // pred_region
        %s7302 = ssub.s32 %s28, 2
        // Predicated region
        $region105: #{tpu_custom_call.1} parent=103 // pred_check
          %p7303 = pneg %p361
        $region106: #{tpu_custom_call.1} parent=103 // pred_check_branch
          %7305 = sbr.rel (%p7303) target = $region108
        $region107: #{tpu_custom_call.1} parent=103 // pred_region
          %s7306 = sand.u32 %s346, 1
          %s7307 = scalar_lea.sflag [#allocation4], %s7306
          %s7308 = sand.u32 %s346, 1
          %s7309 = scalar_lea.vmem [#allocation11], %s7308
          %7310 = dma.done %s7307, 16
        $region108: #{tpu_custom_call.1} parent=103 // pred_fallthru
          _
      $region104: #{tpu_custom_call.1} parent=5 // pred_fallthru
        _
    $region6: #{tpu_custom_call.1} parent=1 // loop_footer
      %s32 = sadd.s32 1, %s28
    $region7: #{tpu_custom_call.1} parent=1 // loop_footer_branch
      %27 = sbr.rel target = $region3
    $region8: #{tpu_custom_call.1} parent=1 // loop_exit
      _
    %7311 = vsyncpa [#allocation3], 1
    %s7312 = scalar_lea.sflag [#allocation3], 1
    %7313 = vsyncpa %s7312, 1
    %7314 = vsyncpa [#allocation6], 1
    %7315 = vsyncpa [#allocation9], 1
    %7316 = vsyncpa [#allocation4], 1
    %s7317 = scalar_lea.sflag [#allocation4], 1
    %7318 = vsyncpa %s7317, 1

</llo_original>
